<compile_context>
chip_gen: v6e
topology: v6e:2x2x1
jax: 0.10.0
libtpu: 0.0.40
codegen_flags: <defaults>
</compile_context>

<pallas_src>
import math
import functools

import jax
import jax.numpy as jnp
from jax.experimental import pallas as pl
from jax.experimental.pallas import tpu as pltpu


_LN_EPS = 1e-5
_GELU_C = math.sqrt(2.0 / math.pi)
_NEG_INF = -1e30                 # exp(-1e30 - m) underflows to exactly 0 in f32
_VMEM_LIMIT = 32 * 1024 * 1024   # explicit scoped-VMEM limit; tune per generation


# ----------------------------------------------------------------------------
# Helpers
# ----------------------------------------------------------------------------

def _layernorm(x, w, b):
    # PyTorch nn.LayerNorm: biased variance, eps=1e-5, computed in f32.
    mean = jnp.mean(x, axis=-1, keepdims=True)
    var = jnp.mean(jnp.square(x - mean), axis=-1, keepdims=True)
    return (x - mean) * jax.lax.rsqrt(var + _LN_EPS) * w + b


def _pick_row_tile(n, target=256):
    """Largest divisor of n that is <= target and a multiple of 8 (else n)."""
    if n <= target:
        return n
    for t in range(target - target % 8, 7, -8):
        if n % t == 0:
            return t
    return n


def _pick_lane_tile(n, target=2048):
    """Largest divisor of n that is <= target and a multiple of 128 (else n)."""
    if n <= target:
        return n
    for t in range(target - target % 128, 127, -128):
        if n % t == 0:
            return t
    return n


def _cparams(*semantics):
    return pltpu.CompilerParams(dimension_semantics=tuple(semantics),
                                vmem_limit_bytes=_VMEM_LIMIT)


def _cost(flops, transcendentals, bytes_accessed):
    return pl.CostEstimate(flops=int(flops), transcendentals=int(transcendentals),
                           bytes_accessed=int(bytes_accessed))


# ----------------------------------------------------------------------------
# Pallas kernels
# ----------------------------------------------------------------------------

def ln_qkv_kernel(x_ref, lnw_ref, lnb_ref, w_ref, b_ref, o_ref):
    # x: (bm, E) bf16 residual tile.  LN1 (f32) + fused QKV matmul (bf16 MXU,
    # f32 accumulation).  Q columns / bias and the rel-emb table are pre-scaled
    # by 1/sqrt(head_dim) at param-prep time so the reference
    # softmax((qk + mask)/sqrt(hd)) semantics are preserved.
    x = x_ref[...].astype(jnp.float32)
    n = _layernorm(x, lnw_ref[...], lnb_ref[...])
    qkv = jnp.dot(n.astype(jnp.bfloat16), w_ref[...],
                  preferred_element_type=jnp.float32) + b_ref[...]
    o_ref[...] = qkv.astype(jnp.bfloat16)


def attn_core_kernel(rel_ref, q_ref, k_ref, v_ref, o_ref, *,
                     num_heads, pos_buckets):
    # One (batch, head) pair per grid step.  q/k/v: (1, 1, L, hd) bf16,
    # Q pre-scaled.  rel_ref: SMEM (pos_buckets * num_heads,) f32, pre-scaled.
    L, hd = q_ref.shape[2], q_ref.shape[3]
    h = pl.program_id(1)

    qb = q_ref[0, 0]                                   # (L, hd) bf16
    kb = k_ref[0, 0]
    vb = v_ref[0, 0]

    # Scores on the MXU (contract head_dim directly, no explicit transpose).
    s = jax.lax.dot_general(qb, kb, (((1,), (1,)), ((), ())),
                            preferred_element_type=jnp.float32)   # (L, L)

    # Relative-position bias + causal mask rebuilt in-kernel (no (H,L,L) DMA).
    # NB: reproduces the reference's overwritten log-bucket computation:
    # effective bucket index is min(|mem - ctx|, pos_buckets - 1).
    row = jax.lax.broadcasted_iota(jnp.int32, (L, L), 0)   # query position
    col = jax.lax.broadcasted_iota(jnp.int32, (L, L), 1)   # key position
    bucket = jnp.minimum(jnp.abs(col - row), pos_buckets - 1)
    bias = jnp.zeros((L, L), jnp.float32)
    for p in range(pos_buckets):                           # static, tiny table
        coef = rel_ref[p * num_heads + h]                  # scalar SMEM read
        bias = bias + jnp.where(bucket == p, coef, 0.0)
    s = jnp.where(col <= row, s + bias, _NEG_INF)          # causal mask

    # Softmax (f32) with approx reciprocal on the EUP.
    m = jnp.max(s, axis=-1, keepdims=True)
    e = jnp.exp(s - m)
    denom = jnp.sum(e, axis=-1, keepdims=True)
    p_att = e * pl.reciprocal(denom, approx=True)

    out = jnp.dot(p_att.astype(jnp.bfloat16), vb,
                  preferred_element_type=jnp.float32)       # (L, hd)
    o_ref[0, 0] = out.astype(jnp.bfloat16)


def proj_ffn_kernel(att_ref, x_ref, wo_ref, bo_ref, lnw_ref, lnb_ref,
                    w1_ref, b1_ref, w2_ref, b2_ref, o_ref):
    # Fused: out-projection + residual + LN2 + FF1 + NewGELU + FF2 + residual.
    y = jnp.dot(att_ref[...], wo_ref[...],
                preferred_element_type=jnp.float32) + bo_ref[...]
    x1 = x_ref[...].astype(jnp.float32) + y                 # residual 1 (f32)
    n = _layernorm(x1, lnw_ref[...], lnb_ref[...])
    hdn = jnp.dot(n.astype(jnp.bfloat16), w1_ref[...],
                  preferred_element_type=jnp.float32) + b1_ref[...]
    g = 0.5 * hdn * (1.0 + jnp.tanh(_GELU_C * (hdn + 0.044715 * hdn * hdn * hdn)))
    x2 = x1 + jnp.dot(g.astype(jnp.bfloat16), w2_ref[...],
                      preferred_element_type=jnp.float32) + b2_ref[...]
    o_ref[...] = x2.astype(jnp.bfloat16)                    # residual 2, bf16 out


def head_kernel(x_ref, lnw_ref, lnb_ref, w_ref, b_ref, o_ref):
    # Fused last LayerNorm + lm_head tile: (bm, E) bf16 -> (bm, bn) f32 logits.
    n = _layernorm(x_ref[...].astype(jnp.float32), lnw_ref[...], lnb_ref[...])
    o_ref[...] = jnp.dot(n.astype(jnp.bfloat16), w_ref[...],
                         preferred_element_type=jnp.float32) + b_ref[...]


# ----------------------------------------------------------------------------
# Pallas wrappers
# ----------------------------------------------------------------------------

def ln_qkv_block(x2d, layer):
    M, E = x2d.shape
    bm = _pick_row_tile(M)
    # TODO(synk): single-buffer the constant-index weight blocks (Buffered(1))
    # once pipeline_mode single-buffering is stable for top-level pallas_call;
    # after removing the mask these blocks are small at the shipped sizes.
    return pl.pallas_call(
        ln_qkv_kernel,
        out_shape=jax.ShapeDtypeStruct((M, 3 * E), jnp.bfloat16),
        grid=(M // bm,),
        in_specs=[
            pl.BlockSpec((bm, E), lambda i: (i, 0)),
            pl.BlockSpec((1, E), lambda i: (0, 0)),
            pl.BlockSpec((1, E), lambda i: (0, 0)),
            pl.BlockSpec((E, 3 * E), lambda i: (0, 0)),
            pl.BlockSpec((1, 3 * E), lambda i: (0, 0)),
        ],
        out_specs=pl.BlockSpec((bm, 3 * E), lambda i: (i, 0)),
        compiler_params=_cparams("parallel"),
        cost_estimate=_cost(2 * M * E * 3 * E, M,
                            M * E * 2 + E * 3 * E * 2 + M * 3 * E * 2),
    )(x2d, layer["ln1_w"], layer["ln1_b"], layer["wqkv"], layer["bqkv"])


def attn_core(q, k, v, rel_scaled, num_heads, pos_buckets):
    B, H, L, hd = q.shape
    kernel = functools.partial(attn_core_kernel,
                               num_heads=num_heads, pos_buckets=pos_buckets)
    # TODO(synk): for long L (>= 1024) add a kv-tile grid axis with flash-style
    # online-softmax scratch accumulators; at these sizes one (L,L) tile fits.
    return pl.pallas_call(
        kernel,
        out_shape=jax.ShapeDtypeStruct((B, H, L, hd), jnp.bfloat16),
        grid=(B, H),
        in_specs=[
            pl.BlockSpec(memory_space=pltpu.MemorySpace.SMEM),          # rel table
            pl.BlockSpec((1, 1, L, hd), lambda b, h: (b, h, 0, 0)),     # q
            pl.BlockSpec((1, 1, L, hd), lambda b, h: (b, h, 0, 0)),     # k
            pl.BlockSpec((1, 1, L, hd), lambda b, h: (b, h, 0, 0)),     # v
        ],
        out_specs=pl.BlockSpec((1, 1, L, hd), lambda b, h: (b, h, 0, 0)),
        compiler_params=_cparams("parallel", "parallel"),
        cost_estimate=_cost(4 * B * H * L * L * hd, B * H * L * L,
                            4 * B * H * L * hd * 2 + rel_scaled.size * 4),
    )(rel_scaled, q, k, v)


def proj_ffn_block(att2d, x2d, layer):
    M, E = x2d.shape
    Hf = layer["w1"].shape[1]
    bm = _pick_row_tile(M)
    return pl.pallas_call(
        proj_ffn_kernel,
        out_shape=jax.ShapeDtypeStruct((M, E), jnp.bfloat16),
        grid=(M // bm,),
        in_specs=[
            pl.BlockSpec((bm, E), lambda i: (i, 0)),     # attention output
            pl.BlockSpec((bm, E), lambda i: (i, 0)),     # residual stream
            pl.BlockSpec((E, E), lambda i: (0, 0)),      # wo
            pl.BlockSpec((1, E), lambda i: (0, 0)),      # bo
            pl.BlockSpec((1, E), lambda i: (0, 0)),      # ln2 w
            pl.BlockSpec((1, E), lambda i: (0, 0)),      # ln2 b
            pl.BlockSpec((E, Hf), lambda i: (0, 0)),     # w1
            pl.BlockSpec((1, Hf), lambda i: (0, 0)),     # b1
            pl.BlockSpec((Hf, E), lambda i: (0, 0)),     # w2
            pl.BlockSpec((1, E), lambda i: (0, 0)),      # b2
        ],
        out_specs=pl.BlockSpec((bm, E), lambda i: (i, 0)),
        compiler_params=_cparams("parallel"),
        cost_estimate=_cost(2 * M * E * E + 4 * M * E * Hf, M * Hf,
                            3 * M * E * 2 + (E * E + 2 * E * Hf) * 2),
    )(att2d, x2d, layer["wo"], layer["bo"], layer["ln2_w"], layer["ln2_b"],
      layer["w1"], layer["b1"], layer["w2"], layer["b2"])


def lm_head_block(x2d, ln_w, ln_b, w, b):
    M, E = x2d.shape
    V = w.shape[1]
    bm = _pick_row_tile(M)
    bn = _pick_lane_tile(V)
    # Vocab axis OUTER, rows INNER: the (E, V) bf16 weight (usually the largest
    # operand) is fetched from HBM exactly once; only x is re-streamed.
    return pl.pallas_call(
        head_kernel,
        out_shape=jax.ShapeDtypeStruct((M, V), jnp.float32),
        grid=(V // bn, M // bm),
        in_specs=[
            pl.BlockSpec((bm, E), lambda j, i: (i, 0)),
            pl.BlockSpec((1, E), lambda j, i: (0, 0)),
            pl.BlockSpec((1, E), lambda j, i: (0, 0)),
            pl.BlockSpec((E, bn), lambda j, i: (0, j)),
            pl.BlockSpec((1, bn), lambda j, i: (0, j)),
        ],
        out_specs=pl.BlockSpec((bm, bn), lambda j, i: (i, j)),
        compiler_params=_cparams("parallel", "parallel"),
        cost_estimate=_cost(2 * M * E * V, M,
                            M * E * 2 + E * V * 2 + M * V * 4),
    )(x2d, ln_w, ln_b, w, b)


# ----------------------------------------------------------------------------
# Model (glue in plain JAX, hot paths in Pallas)
# ----------------------------------------------------------------------------

def init_params(key, vocab_size, embed_dim, num_layers, num_heads, hidden_size,
                pos_buckets):
    """Deterministic init mirroring T5DecoderLM._init_weights (float32)."""
    std = 0.02
    params = {}
    key, k_emb, k_rel = jax.random.split(key, 3)
    params["embedding"] = std * jax.random.normal(
        k_emb, (vocab_size, embed_dim), jnp.float32)
    params["relative_embedding"] = std * jax.random.normal(
        k_rel, (pos_buckets, num_heads), jnp.float32)

    def linear_init(k, out_dim, in_dim):
        # PyTorch stores (out, in); transpose for x @ w.
        w = std * jax.random.normal(k, (out_dim, in_dim), jnp.float32)
        return w.T, jnp.zeros((out_dim,), jnp.float32)

    layers = []
    for _ in range(num_layers):
        key, kq, kk, kv, ko, kf1, kf2 = jax.random.split(key, 7)
        layer = {
            "norm1_w": jnp.ones((embed_dim,), jnp.float32),
            "norm1_b": jnp.zeros((embed_dim,), jnp.float32),
            "norm2_w": jnp.ones((embed_dim,), jnp.float32),
            "norm2_b": jnp.zeros((embed_dim,), jnp.float32),
        }
        layer["q_w"], layer["q_b"] = linear_init(kq, embed_dim, embed_dim)
        layer["k_w"], layer["k_b"] = linear_init(kk, embed_dim, embed_dim)
        layer["v_w"], layer["v_b"] = linear_init(kv, embed_dim, embed_dim)
        layer["o_w"], layer["o_b"] = linear_init(ko, embed_dim, embed_dim)
        layer["ff1_w"], layer["ff1_b"] = linear_init(kf1, hidden_size, embed_dim)
        layer["ff2_w"], layer["ff2_b"] = linear_init(kf2, embed_dim, hidden_size)
        layers.append(layer)
    params["layers"] = layers

    params["last_norm_w"] = jnp.ones((embed_dim,), jnp.float32)
    params["last_norm_b"] = jnp.zeros((embed_dim,), jnp.float32)
    key, k_head = jax.random.split(key)
    params["lm_head_w"], params["lm_head_b"] = linear_init(
        k_head, vocab_size, embed_dim)
    return params


def prepare_params(raw, num_heads):
    """Fuse QKV weights (Q pre-scaled), cast matmul weights to bf16, pre-shape
    biases / LN params, flatten + pre-scale the relative-embedding table."""
    bf = jnp.bfloat16
    E = raw["embedding"].shape[1]
    hd = E // num_heads
    scale = 1.0 / math.sqrt(hd)
    prepared = {
        "embedding": raw["embedding"],
        # (pos_buckets * H,) f32, pre-scaled by 1/sqrt(hd); indexed p*H + h.
        "rel_scaled": (raw["relative_embedding"] * scale).reshape(-1),
        "last_norm_w": raw["last_norm_w"].reshape(1, E),
        "last_norm_b": raw["last_norm_b"].reshape(1, E),
        "lm_head_w": raw["lm_head_w"].astype(bf),
        "lm_head_b": raw["lm_head_b"].reshape(1, -1),
        "layers": [],
    }
    for layer in raw["layers"]:
        Hf = layer["ff1_w"].shape[1]
        prepared["layers"].append({
            "ln1_w": layer["norm1_w"].reshape(1, E),
            "ln1_b": layer["norm1_b"].reshape(1, E),
            "ln2_w": layer["norm2_w"].reshape(1, E),
            "ln2_b": layer["norm2_b"].reshape(1, E),
            # Columns ordered [Q heads | K heads | V heads]; Q pre-scaled.
            "wqkv": jnp.concatenate(
                [layer["q_w"] * scale, layer["k_w"], layer["v_w"]],
                axis=1).astype(bf),
            "bqkv": jnp.concatenate(
                [layer["q_b"] * scale, layer["k_b"], layer["v_b"]]
            ).reshape(1, 3 * E),
            "wo": layer["o_w"].astype(bf),
            "bo": layer["o_b"].reshape(1, E),
            "w1": layer["ff1_w"].astype(bf),
            "b1": layer["ff1_b"].reshape(1, Hf),
            "w2": layer["ff2_w"].astype(bf),
            "b2": layer["ff2_b"].reshape(1, E),
        })
    return prepared


def t5_decoder_lm_forward(params, tokens, num_heads, pos_buckets):
    B, L = tokens.shape
    E = params["embedding"].shape[1]
    H = num_heads
    hd = E // H

    # TODO(synk): embedding gather stays in plain JAX (tiny table; no clean
    # Pallas gather win for this pattern).  Residual stream carried in bf16.
    x2d = params["embedding"][tokens].astype(jnp.bfloat16).reshape(B * L, E)

    for layer in params["layers"]:
        # LN1 + fused QKV projection (one pallas_call, row-tiled).
        qkv = ln_qkv_block(x2d, layer)                              # (B*L, 3E)
        # Layout plumbing to head-major (done by XLA, not in-kernel).
        qkv = qkv.reshape(B, L, 3, H, hd).transpose(2, 0, 3, 1, 4)  # (3,B,H,L,hd)
        q, k, v = qkv[0], qkv[1], qkv[2]
        # Attention core: one lane-dense head per (b, h) grid step; bias + causal
        # mask rebuilt in-kernel from the tiny rel-emb table (no (H,L,L) DMA).
        att = attn_core(q, k, v, params["rel_scaled"], H, pos_buckets)
        att2d = att.transpose(0, 2, 1, 3).reshape(B * L, E)
        # Out-proj + residual + LN2 + FFN + residual (one pallas_call).
        x2d = proj_ffn_block(att2d, x2d, layer)

    # logits = lm_head(last_norm(x))  (one pallas_call, vocab-outer tiling).
    # TODO(synk): optional non_pad_indexes row gather is left to XLA callers.
    logits = lm_head_block(x2d, params["last_norm_w"], params["last_norm_b"],
                           params["lm_head_w"], params["lm_head_b"])
    return logits                                                   # (B*L, V)


# ----------------------------------------------------------------------------
# Main
# ----------------------------------------------------------------------------

if __name__ == "__main__":
    # Lane-dense demo config (E, hd, L, hidden, vocab all multiples of 128).
    vocab_size = 512
    embed_dim = 256
    num_layers = 2
    num_heads = 2            # head_dim = 128 -> lane-dense per-head tiles
    hidden_size = 512
    pos_buckets = 32
    B, L = 2, 128

    key = jax.random.PRNGKey(0)
    key, k_tok = jax.random.split(key)
    raw_params = init_params(key, vocab_size, embed_dim, num_layers, num_heads,
                             hidden_size, pos_buckets)
    params = prepare_params(raw_params, num_heads)
    tokens = jax.random.randint(k_tok, (B, L), 0, vocab_size, dtype=jnp.int32)

    fwd = jax.jit(functools.partial(t5_decoder_lm_forward,
                                    num_heads=num_heads,
                                    pos_buckets=pos_buckets))
    logits = fwd(params, tokens)
    jax.block_until_ready(logits)
    assert logits.shape == (B * L, vocab_size)
    assert bool(jnp.all(jnp.isfinite(logits)))
    print("KERNEL_OK")
</pallas_src>

<mosaic_0001>
module attributes {stable_mosaic.version = 11 : i64} {
  func.func @ln_qkv_kernel(%arg0: i32, %arg1: memref<256x256xbf16, #tpu.memory_space<vmem>>, %arg2: memref<1x256xf32, #tpu.memory_space<vmem>>, %arg3: memref<1x256xf32, #tpu.memory_space<vmem>>, %arg4: memref<256x768xbf16, #tpu.memory_space<vmem>>, %arg5: memref<1x768xf32, #tpu.memory_space<vmem>>, %arg6: memref<256x768xbf16, #tpu.memory_space<vmem>>) attributes {dimension_semantics = [#tpu.dimension_semantics<parallel>], iteration_bounds = array<i64: 1>, scalar_prefetch = 0 : i64, scratch_operands = 0 : i64, tpu.core_type = #tpu.core_type<tc>, window_params = [{transform_indices = @transform_0, window_bounds = array<i64: 256, 256>}, {pipeline_mode = #tpu.pipeline_mode<synchronous>, transform_indices = @transform_1, window_bounds = array<i64: 1, 256>}, {pipeline_mode = #tpu.pipeline_mode<synchronous>, transform_indices = @transform_2, window_bounds = array<i64: 1, 256>}, {pipeline_mode = #tpu.pipeline_mode<synchronous>, transform_indices = @transform_3, window_bounds = array<i64: 256, 768>}, {pipeline_mode = #tpu.pipeline_mode<synchronous>, transform_indices = @transform_4, window_bounds = array<i64: 1, 768>}, {transform_indices = @transform_5, window_bounds = array<i64: 256, 768>}]} {
    %c0 = arith.constant 0 : index
    %c0_0 = arith.constant 0 : index
    %0 = vector.load %arg1[%c0, %c0_0] : memref<256x256xbf16, #tpu.memory_space<vmem>>, vector<256x256xbf16>
    %1 = arith.extf %0 : vector<256x256xbf16> to vector<256x256xf32>
    %c0_1 = arith.constant 0 : index
    %c0_2 = arith.constant 0 : index
    %2 = vector.load %arg2[%c0_1, %c0_2] : memref<1x256xf32, #tpu.memory_space<vmem>>, vector<1x256xf32>
    %c0_3 = arith.constant 0 : index
    %c0_4 = arith.constant 0 : index
    %3 = vector.load %arg3[%c0_3, %c0_4] : memref<1x256xf32, #tpu.memory_space<vmem>>, vector<1x256xf32>
    %cst = arith.constant dense<0.000000e+00> : vector<256xf32>
    %4 = vector.multi_reduction <add>, %1, %cst [1] : vector<256x256xf32> to vector<256xf32>
    %5 = vector.shape_cast %4 : vector<256xf32> to vector<256x1xf32>
    %cst_5 = arith.constant 2.560000e+02 : f32
    %6 = vector.broadcast %cst_5 : f32 to vector<256x1xf32>
    %7 = arith.divf %5, %6 : vector<256x1xf32>
    %8 = vector.broadcast %7 : vector<256x1xf32> to vector<256x256xf32>
    %9 = arith.subf %1, %8 : vector<256x256xf32>
    %10 = arith.mulf %9, %9 : vector<256x256xf32>
    %cst_6 = arith.constant dense<0.000000e+00> : vector<256xf32>
    %11 = vector.multi_reduction <add>, %10, %cst_6 [1] : vector<256x256xf32> to vector<256xf32>
    %12 = vector.shape_cast %11 : vector<256xf32> to vector<256x1xf32>
    %cst_7 = arith.constant 2.560000e+02 : f32
    %13 = vector.broadcast %cst_7 : f32 to vector<256x1xf32>
    %14 = arith.divf %12, %13 : vector<256x1xf32>
    %15 = vector.broadcast %7 : vector<256x1xf32> to vector<256x256xf32>
    %16 = arith.subf %1, %15 : vector<256x256xf32>
    %cst_8 = arith.constant 9.99999974E-6 : f32
    %17 = vector.broadcast %cst_8 : f32 to vector<256x1xf32>
    %18 = arith.addf %14, %17 : vector<256x1xf32>
    %19 = math.rsqrt %18 : vector<256x1xf32>
    %20 = vector.broadcast %19 : vector<256x1xf32> to vector<256x256xf32>
    %21 = arith.mulf %16, %20 : vector<256x256xf32>
    %22 = vector.broadcast %2 : vector<1x256xf32> to vector<256x256xf32>
    %23 = arith.mulf %21, %22 : vector<256x256xf32>
    %24 = vector.broadcast %3 : vector<1x256xf32> to vector<256x256xf32>
    %25 = arith.addf %23, %24 : vector<256x256xf32>
    %26 = arith.truncf %25 : vector<256x256xf32> to vector<256x256xbf16>
    %c0_9 = arith.constant 0 : index
    %c0_10 = arith.constant 0 : index
    %27 = vector.load %arg4[%c0_9, %c0_10] : memref<256x768xbf16, #tpu.memory_space<vmem>>, vector<256x768xbf16>
    %cst_11 = arith.constant dense<0.000000e+00> : vector<256x768xf32>
    %28 = tpu.matmul %26, %27, %cst_11 {dimension_numbers = #tpu.dot_dimension_numbers<[1], [0], [0], [1], [0, 0, 1, 1], [], []>} : vector<256x256xbf16>, vector<256x768xbf16>, vector<256x768xf32> -> vector<256x768xf32>
    %c0_12 = arith.constant 0 : index
    %c0_13 = arith.constant 0 : index
    %29 = vector.load %arg5[%c0_12, %c0_13] : memref<1x768xf32, #tpu.memory_space<vmem>>, vector<1x768xf32>
    %30 = vector.broadcast %29 : vector<1x768xf32> to vector<256x768xf32>
    %31 = arith.addf %28, %30 : vector<256x768xf32>
    %32 = arith.truncf %31 : vector<256x768xf32> to vector<256x768xbf16>
    %c0_14 = arith.constant 0 : index
    %c0_15 = arith.constant 0 : index
    %33 = vector.load %arg6[%c0_14, %c0_15] : memref<256x768xbf16, #tpu.memory_space<vmem>>, vector<256x768xbf16>
    tpu.vector_store %arg6[%c0_14, %c0_15], %32 {strides = array<i32>} : memref<256x768xbf16, #tpu.memory_space<vmem>>, vector<256x768xbf16>,
    return
  }
  func.func @transform_0(%arg0: i32) -> (i32, i32) {
    %c0_i32 = arith.constant 0 : i32
    %c0_i32_0 = arith.constant 0 : i32
    return %arg0, %c0_i32 : i32, i32
  }
  func.func @transform_1(%arg0: i32) -> (i32, i32) {
    %c0_i32 = arith.constant 0 : i32
    %c0_i32_0 = arith.constant 0 : i32
    %c0_i32_1 = arith.constant 0 : i32
    return %c0_i32, %c0_i32_0 : i32, i32
  }
  func.func @transform_2(%arg0: i32) -> (i32, i32) {
    %c0_i32 = arith.constant 0 : i32
    %c0_i32_0 = arith.constant 0 : i32
    %c0_i32_1 = arith.constant 0 : i32
    return %c0_i32, %c0_i32_0 : i32, i32
  }
  func.func @transform_3(%arg0: i32) -> (i32, i32) {
    %c0_i32 = arith.constant 0 : i32
    %c0_i32_0 = arith.constant 0 : i32
    %c0_i32_1 = arith.constant 0 : i32
    return %c0_i32, %c0_i32_0 : i32, i32
  }
  func.func @transform_4(%arg0: i32) -> (i32, i32) {
    %c0_i32 = arith.constant 0 : i32
    %c0_i32_0 = arith.constant 0 : i32
    %c0_i32_1 = arith.constant 0 : i32
    return %c0_i32, %c0_i32_0 : i32, i32
  }
  func.func @transform_5(%arg0: i32) -> (i32, i32) {
    %c0_i32 = arith.constant 0 : i32
    %c0_i32_0 = arith.constant 0 : i32
    return %arg0, %c0_i32 : i32, i32
  }
}

module attributes {stable_mosaic.version = 11 : i64} {
  func.func @attn_core_kernel(%arg0: i32, %arg1: i32, %arg2: memref<64xf32, #tpu.memory_space<smem>>, %arg3: memref<1x1x128x128xbf16, #tpu.memory_space<vmem>>, %arg4: memref<1x1x128x128xbf16, #tpu.memory_space<vmem>>, %arg5: memref<1x1x128x128xbf16, #tpu.memory_space<vmem>>, %arg6: memref<1x1x128x128xbf16, #tpu.memory_space<vmem>>) attributes {dimension_semantics = [#tpu.dimension_semantics<parallel>, #tpu.dimension_semantics<parallel>], iteration_bounds = array<i64: 2, 2>, scalar_prefetch = 0 : i64, scratch_operands = 0 : i64, tpu.core_type = #tpu.core_type<tc>, window_params = [{transform_indices = @transform_0, window_bounds = array<i64: 64>}, {transform_indices = @transform_1, window_bounds = array<i64: 1, 1, 128, 128>}, {transform_indices = @transform_2, window_bounds = array<i64: 1, 1, 128, 128>}, {transform_indices = @transform_3, window_bounds = array<i64: 1, 1, 128, 128>}, {transform_indices = @transform_4, window_bounds = array<i64: 1, 1, 128, 128>}]} {
    %c0 = arith.constant 0 : index
    %c0_0 = arith.constant 0 : index
    %c0_1 = arith.constant 0 : index
    %c0_2 = arith.constant 0 : index
    %0 = vector.load %arg3[%c0, %c0_0, %c0_1, %c0_2] : memref<1x1x128x128xbf16, #tpu.memory_space<vmem>>, vector<1x1x128x128xbf16>
    %1 = vector.shape_cast %0 : vector<1x1x128x128xbf16> to vector<128x128xbf16>
    %c0_3 = arith.constant 0 : index
    %c0_4 = arith.constant 0 : index
    %c0_5 = arith.constant 0 : index
    %c0_6 = arith.constant 0 : index
    %2 = vector.load %arg4[%c0_3, %c0_4, %c0_5, %c0_6] : memref<1x1x128x128xbf16, #tpu.memory_space<vmem>>, vector<1x1x128x128xbf16>
    %3 = vector.shape_cast %2 : vector<1x1x128x128xbf16> to vector<128x128xbf16>
    %c0_7 = arith.constant 0 : index
    %c0_8 = arith.constant 0 : index
    %c0_9 = arith.constant 0 : index
    %c0_10 = arith.constant 0 : index
    %4 = vector.load %arg5[%c0_7, %c0_8, %c0_9, %c0_10] : memref<1x1x128x128xbf16, #tpu.memory_space<vmem>>, vector<1x1x128x128xbf16>
    %5 = vector.shape_cast %4 : vector<1x1x128x128xbf16> to vector<128x128xbf16>
    %cst = arith.constant dense<0.000000e+00> : vector<128x128xf32>
    %6 = tpu.matmul %1, %3, %cst {dimension_numbers = #tpu.dot_dimension_numbers<[1], [1], [0], [0], [0, 0, 1, 0], [], []>} : vector<128x128xbf16>, vector<128x128xbf16>, vector<128x128xf32> -> vector<128x128xf32>
    %7 = tpu.iota {dimensions = array<i32: 0>} : vector<128x128xi32>
    %8 = tpu.iota {dimensions = array<i32: 1>} : vector<128x128xi32>
    %9 = arith.subi %8, %7 : vector<128x128xi32>
    %10 = math.absi %9 : vector<128x128xi32>
    %c31_i32 = arith.constant 31 : i32
    %11 = vector.broadcast %c31_i32 : i32 to vector<128x128xi32>
    %12 = arith.minsi %10, %11 : vector<128x128xi32>
    %cst_11 = arith.constant 0.000000e+00 : f32
    %13 = vector.broadcast %cst_11 : f32 to vector<128x128xf32>
    %c0_i32 = arith.constant 0 : i32
    %14 = arith.addi %c0_i32, %arg1 : i32
    %15 = arith.index_cast %14 : i32 to index
    %16 = memref.load %arg2[%15] : memref<64xf32, #tpu.memory_space<smem>>
    %c0_i32_12 = arith.constant 0 : i32
    %17 = vector.broadcast %c0_i32_12 : i32 to vector<128x128xi32>
    %18 = arith.cmpi eq, %12, %17 : vector<128x128xi32>
    %cst_13 = arith.constant 0.000000e+00 : f32
    %19 = vector.broadcast %16 : f32 to vector<128x128xf32>
    %20 = vector.broadcast %cst_13 : f32 to vector<128x128xf32>
    %21 = arith.select %18, %19, %20 : vector<128x128xi1>, vector<128x128xf32>
    %22 = arith.addf %13, %21 : vector<128x128xf32>
    %c2_i32 = arith.constant 2 : i32
    %23 = arith.addi %c2_i32, %arg1 : i32
    %24 = arith.index_cast %23 : i32 to index
    %25 = memref.load %arg2[%24] : memref<64xf32, #tpu.memory_space<smem>>
    %c1_i32 = arith.constant 1 : i32
    %26 = vector.broadcast %c1_i32 : i32 to vector<128x128xi32>
    %27 = arith.cmpi eq, %12, %26 : vector<128x128xi32>
    %cst_14 = arith.constant 0.000000e+00 : f32
    %28 = vector.broadcast %25 : f32 to vector<128x128xf32>
    %29 = vector.broadcast %cst_14 : f32 to vector<128x128xf32>
    %30 = arith.select %27, %28, %29 : vector<128x128xi1>, vector<128x128xf32>
    %31 = arith.addf %22, %30 : vector<128x128xf32>
    %c4_i32 = arith.constant 4 : i32
    %32 = arith.addi %c4_i32, %arg1 : i32
    %33 = arith.index_cast %32 : i32 to index
    %34 = memref.load %arg2[%33] : memref<64xf32, #tpu.memory_space<smem>>
    %c2_i32_15 = arith.constant 2 : i32
    %35 = vector.broadcast %c2_i32_15 : i32 to vector<128x128xi32>
    %36 = arith.cmpi eq, %12, %35 : vector<128x128xi32>
    %cst_16 = arith.constant 0.000000e+00 : f32
    %37 = vector.broadcast %34 : f32 to vector<128x128xf32>
    %38 = vector.broadcast %cst_16 : f32 to vector<128x128xf32>
    %39 = arith.select %36, %37, %38 : vector<128x128xi1>, vector<128x128xf32>
    %40 = arith.addf %31, %39 : vector<128x128xf32>
    %c6_i32 = arith.constant 6 : i32
    %41 = arith.addi %c6_i32, %arg1 : i32
    %42 = arith.index_cast %41 : i32 to index
    %43 = memref.load %arg2[%42] : memref<64xf32, #tpu.memory_space<smem>>
    %c3_i32 = arith.constant 3 : i32
    %44 = vector.broadcast %c3_i32 : i32 to vector<128x128xi32>
    %45 = arith.cmpi eq, %12, %44 : vector<128x128xi32>
    %cst_17 = arith.constant 0.000000e+00 : f32
    %46 = vector.broadcast %43 : f32 to vector<128x128xf32>
    %47 = vector.broadcast %cst_17 : f32 to vector<128x128xf32>
    %48 = arith.select %45, %46, %47 : vector<128x128xi1>, vector<128x128xf32>
    %49 = arith.addf %40, %48 : vector<128x128xf32>
    %c8_i32 = arith.constant 8 : i32
    %50 = arith.addi %c8_i32, %arg1 : i32
    %51 = arith.index_cast %50 : i32 to index
    %52 = memref.load %arg2[%51] : memref<64xf32, #tpu.memory_space<smem>>
    %c4_i32_18 = arith.constant 4 : i32
    %53 = vector.broadcast %c4_i32_18 : i32 to vector<128x128xi32>
    %54 = arith.cmpi eq, %12, %53 : vector<128x128xi32>
    %cst_19 = arith.constant 0.000000e+00 : f32
    %55 = vector.broadcast %52 : f32 to vector<128x128xf32>
    %56 = vector.broadcast %cst_19 : f32 to vector<128x128xf32>
    %57 = arith.select %54, %55, %56 : vector<128x128xi1>, vector<128x128xf32>
    %58 = arith.addf %49, %57 : vector<128x128xf32>
    %c10_i32 = arith.constant 10 : i32
    %59 = arith.addi %c10_i32, %arg1 : i32
    %60 = arith.index_cast %59 : i32 to index
    %61 = memref.load %arg2[%60] : memref<64xf32, #tpu.memory_space<smem>>
    %c5_i32 = arith.constant 5 : i32
    %62 = vector.broadcast %c5_i32 : i32 to vector<128x128xi32>
    %63 = arith.cmpi eq, %12, %62 : vector<128x128xi32>
    %cst_20 = arith.constant 0.000000e+00 : f32
    %64 = vector.broadcast %61 : f32 to vector<128x128xf32>
    %65 = vector.broadcast %cst_20 : f32 to vector<128x128xf32>
    %66 = arith.select %63, %64, %65 : vector<128x128xi1>, vector<128x128xf32>
    %67 = arith.addf %58, %66 : vector<128x128xf32>
    %c12_i32 = arith.constant 12 : i32
    %68 = arith.addi %c12_i32, %arg1 : i32
    %69 = arith.index_cast %68 : i32 to index
    %70 = memref.load %arg2[%69] : memref<64xf32, #tpu.memory_space<smem>>
    %c6_i32_21 = arith.constant 6 : i32
    %71 = vector.broadcast %c6_i32_21 : i32 to vector<128x128xi32>
    %72 = arith.cmpi eq, %12, %71 : vector<128x128xi32>
    %cst_22 = arith.constant 0.000000e+00 : f32
    %73 = vector.broadcast %70 : f32 to vector<128x128xf32>
    %74 = vector.broadcast %cst_22 : f32 to vector<128x128xf32>
    %75 = arith.select %72, %73, %74 : vector<128x128xi1>, vector<128x128xf32>
    %76 = arith.addf %67, %75 : vector<128x128xf32>
    %c14_i32 = arith.constant 14 : i32
    %77 = arith.addi %c14_i32, %arg1 : i32
    %78 = arith.index_cast %77 : i32 to index
    %79 = memref.load %arg2[%78] : memref<64xf32, #tpu.memory_space<smem>>
    %c7_i32 = arith.constant 7 : i32
    %80 = vector.broadcast %c7_i32 : i32 to vector<128x128xi32>
    %81 = arith.cmpi eq, %12, %80 : vector<128x128xi32>
    %cst_23 = arith.constant 0.000000e+00 : f32
    %82 = vector.broadcast %79 : f32 to vector<128x128xf32>
    %83 = vector.broadcast %cst_23 : f32 to vector<128x128xf32>
    %84 = arith.select %81, %82, %83 : vector<128x128xi1>, vector<128x128xf32>
    %85 = arith.addf %76, %84 : vector<128x128xf32>
    %c16_i32 = arith.constant 16 : i32
    %86 = arith.addi %c16_i32, %arg1 : i32
    %87 = arith.index_cast %86 : i32 to index
    %88 = memref.load %arg2[%87] : memref<64xf32, #tpu.memory_space<smem>>
    %c8_i32_24 = arith.constant 8 : i32
    %89 = vector.broadcast %c8_i32_24 : i32 to vector<128x128xi32>
    %90 = arith.cmpi eq, %12, %89 : vector<128x128xi32>
    %cst_25 = arith.constant 0.000000e+00 : f32
    %91 = vector.broadcast %88 : f32 to vector<128x128xf32>
    %92 = vector.broadcast %cst_25 : f32 to vector<128x128xf32>
    %93 = arith.select %90, %91, %92 : vector<128x128xi1>, vector<128x128xf32>
    %94 = arith.addf %85, %93 : vector<128x128xf32>
    %c18_i32 = arith.constant 18 : i32
    %95 = arith.addi %c18_i32, %arg1 : i32
    %96 = arith.index_cast %95 : i32 to index
    %97 = memref.load %arg2[%96] : memref<64xf32, #tpu.memory_space<smem>>
    %c9_i32 = arith.constant 9 : i32
    %98 = vector.broadcast %c9_i32 : i32 to vector<128x128xi32>
    %99 = arith.cmpi eq, %12, %98 : vector<128x128xi32>
    %cst_26 = arith.constant 0.000000e+00 : f32
    %100 = vector.broadcast %97 : f32 to vector<128x128xf32>
    %101 = vector.broadcast %cst_26 : f32 to vector<128x128xf32>
    %102 = arith.select %99, %100, %101 : vector<128x128xi1>, vector<128x128xf32>
    %103 = arith.addf %94, %102 : vector<128x128xf32>
    %c20_i32 = arith.constant 20 : i32
    %104 = arith.addi %c20_i32, %arg1 : i32
    %105 = arith.index_cast %104 : i32 to index
    %106 = memref.load %arg2[%105] : memref<64xf32, #tpu.memory_space<smem>>
    %c10_i32_27 = arith.constant 10 : i32
    %107 = vector.broadcast %c10_i32_27 : i32 to vector<128x128xi32>
    %108 = arith.cmpi eq, %12, %107 : vector<128x128xi32>
    %cst_28 = arith.constant 0.000000e+00 : f32
    %109 = vector.broadcast %106 : f32 to vector<128x128xf32>
    %110 = vector.broadcast %cst_28 : f32 to vector<128x128xf32>
    %111 = arith.select %108, %109, %110 : vector<128x128xi1>, vector<128x128xf32>
    %112 = arith.addf %103, %111 : vector<128x128xf32>
    %c22_i32 = arith.constant 22 : i32
    %113 = arith.addi %c22_i32, %arg1 : i32
    %114 = arith.index_cast %113 : i32 to index
    %115 = memref.load %arg2[%114] : memref<64xf32, #tpu.memory_space<smem>>
    %c11_i32 = arith.constant 11 : i32
    %116 = vector.broadcast %c11_i32 : i32 to vector<128x128xi32>
    %117 = arith.cmpi eq, %12, %116 : vector<128x128xi32>
    %cst_29 = arith.constant 0.000000e+00 : f32
    %118 = vector.broadcast %115 : f32 to vector<128x128xf32>
    %119 = vector.broadcast %cst_29 : f32 to vector<128x128xf32>
    %120 = arith.select %117, %118, %119 : vector<128x128xi1>, vector<128x128xf32>
    %121 = arith.addf %112, %120 : vector<128x128xf32>
    %c24_i32 = arith.constant 24 : i32
    %122 = arith.addi %c24_i32, %arg1 : i32
    %123 = arith.index_cast %122 : i32 to index
    %124 = memref.load %arg2[%123] : memref<64xf32, #tpu.memory_space<smem>>
    %c12_i32_30 = arith.constant 12 : i32
    %125 = vector.broadcast %c12_i32_30 : i32 to vector<128x128xi32>
    %126 = arith.cmpi eq, %12, %125 : vector<128x128xi32>
    %cst_31 = arith.constant 0.000000e+00 : f32
    %127 = vector.broadcast %124 : f32 to vector<128x128xf32>
    %128 = vector.broadcast %cst_31 : f32 to vector<128x128xf32>
    %129 = arith.select %126, %127, %128 : vector<128x128xi1>, vector<128x128xf32>
    %130 = arith.addf %121, %129 : vector<128x128xf32>
    %c26_i32 = arith.constant 26 : i32
    %131 = arith.addi %c26_i32, %arg1 : i32
    %132 = arith.index_cast %131 : i32 to index
    %133 = memref.load %arg2[%132] : memref<64xf32, #tpu.memory_space<smem>>
    %c13_i32 = arith.constant 13 : i32
    %134 = vector.broadcast %c13_i32 : i32 to vector<128x128xi32>
    %135 = arith.cmpi eq, %12, %134 : vector<128x128xi32>
    %cst_32 = arith.constant 0.000000e+00 : f32
    %136 = vector.broadcast %133 : f32 to vector<128x128xf32>
    %137 = vector.broadcast %cst_32 : f32 to vector<128x128xf32>
    %138 = arith.select %135, %136, %137 : vector<128x128xi1>, vector<128x128xf32>
    %139 = arith.addf %130, %138 : vector<128x128xf32>
    %c28_i32 = arith.constant 28 : i32
    %140 = arith.addi %c28_i32, %arg1 : i32
    %141 = arith.index_cast %140 : i32 to index
    %142 = memref.load %arg2[%141] : memref<64xf32, #tpu.memory_space<smem>>
    %c14_i32_33 = arith.constant 14 : i32
    %143 = vector.broadcast %c14_i32_33 : i32 to vector<128x128xi32>
    %144 = arith.cmpi eq, %12, %143 : vector<128x128xi32>
    %cst_34 = arith.constant 0.000000e+00 : f32
    %145 = vector.broadcast %142 : f32 to vector<128x128xf32>
    %146 = vector.broadcast %cst_34 : f32 to vector<128x128xf32>
    %147 = arith.select %144, %145, %146 : vector<128x128xi1>, vector<128x128xf32>
    %148 = arith.addf %139, %147 : vector<128x128xf32>
    %c30_i32 = arith.constant 30 : i32
    %149 = arith.addi %c30_i32, %arg1 : i32
    %150 = arith.index_cast %149 : i32 to index
    %151 = memref.load %arg2[%150] : memref<64xf32, #tpu.memory_space<smem>>
    %c15_i32 = arith.constant 15 : i32
    %152 = vector.broadcast %c15_i32 : i32 to vector<128x128xi32>
    %153 = arith.cmpi eq, %12, %152 : vector<128x128xi32>
    %cst_35 = arith.constant 0.000000e+00 : f32
    %154 = vector.broadcast %151 : f32 to vector<128x128xf32>
    %155 = vector.broadcast %cst_35 : f32 to vector<128x128xf32>
    %156 = arith.select %153, %154, %155 : vector<128x128xi1>, vector<128x128xf32>
    %157 = arith.addf %148, %156 : vector<128x128xf32>
    %c32_i32 = arith.constant 32 : i32
    %158 = arith.addi %c32_i32, %arg1 : i32
    %159 = arith.index_cast %158 : i32 to index
    %160 = memref.load %arg2[%159] : memref<64xf32, #tpu.memory_space<smem>>
    %c16_i32_36 = arith.constant 16 : i32
    %161 = vector.broadcast %c16_i32_36 : i32 to vector<128x128xi32>
    %162 = arith.cmpi eq, %12, %161 : vector<128x128xi32>
    %cst_37 = arith.constant 0.000000e+00 : f32
    %163 = vector.broadcast %160 : f32 to vector<128x128xf32>
    %164 = vector.broadcast %cst_37 : f32 to vector<128x128xf32>
    %165 = arith.select %162, %163, %164 : vector<128x128xi1>, vector<128x128xf32>
    %166 = arith.addf %157, %165 : vector<128x128xf32>
    %c34_i32 = arith.constant 34 : i32
    %167 = arith.addi %c34_i32, %arg1 : i32
    %168 = arith.index_cast %167 : i32 to index
    %169 = memref.load %arg2[%168] : memref<64xf32, #tpu.memory_space<smem>>
    %c17_i32 = arith.constant 17 : i32
    %170 = vector.broadcast %c17_i32 : i32 to vector<128x128xi32>
    %171 = arith.cmpi eq, %12, %170 : vector<128x128xi32>
    %cst_38 = arith.constant 0.000000e+00 : f32
    %172 = vector.broadcast %169 : f32 to vector<128x128xf32>
    %173 = vector.broadcast %cst_38 : f32 to vector<128x128xf32>
    %174 = arith.select %171, %172, %173 : vector<128x128xi1>, vector<128x128xf32>
    %175 = arith.addf %166, %174 : vector<128x128xf32>
    %c36_i32 = arith.constant 36 : i32
    %176 = arith.addi %c36_i32, %arg1 : i32
    %177 = arith.index_cast %176 : i32 to index
    %178 = memref.load %arg2[%177] : memref<64xf32, #tpu.memory_space<smem>>
    %c18_i32_39 = arith.constant 18 : i32
    %179 = vector.broadcast %c18_i32_39 : i32 to vector<128x128xi32>
    %180 = arith.cmpi eq, %12, %179 : vector<128x128xi32>
    %cst_40 = arith.constant 0.000000e+00 : f32
    %181 = vector.broadcast %178 : f32 to vector<128x128xf32>
    %182 = vector.broadcast %cst_40 : f32 to vector<128x128xf32>
    %183 = arith.select %180, %181, %182 : vector<128x128xi1>, vector<128x128xf32>
    %184 = arith.addf %175, %183 : vector<128x128xf32>
    %c38_i32 = arith.constant 38 : i32
    %185 = arith.addi %c38_i32, %arg1 : i32
    %186 = arith.index_cast %185 : i32 to index
    %187 = memref.load %arg2[%186] : memref<64xf32, #tpu.memory_space<smem>>
    %c19_i32 = arith.constant 19 : i32
    %188 = vector.broadcast %c19_i32 : i32 to vector<128x128xi32>
    %189 = arith.cmpi eq, %12, %188 : vector<128x128xi32>
    %cst_41 = arith.constant 0.000000e+00 : f32
    %190 = vector.broadcast %187 : f32 to vector<128x128xf32>
    %191 = vector.broadcast %cst_41 : f32 to vector<128x128xf32>
    %192 = arith.select %189, %190, %191 : vector<128x128xi1>, vector<128x128xf32>
    %193 = arith.addf %184, %192 : vector<128x128xf32>
    %c40_i32 = arith.constant 40 : i32
    %194 = arith.addi %c40_i32, %arg1 : i32
    %195 = arith.index_cast %194 : i32 to index
    %196 = memref.load %arg2[%195] : memref<64xf32, #tpu.memory_space<smem>>
    %c20_i32_42 = arith.constant 20 : i32
    %197 = vector.broadcast %c20_i32_42 : i32 to vector<128x128xi32>
    %198 = arith.cmpi eq, %12, %197 : vector<128x128xi32>
    %cst_43 = arith.constant 0.000000e+00 : f32
    %199 = vector.broadcast %196 : f32 to vector<128x128xf32>
    %200 = vector.broadcast %cst_43 : f32 to vector<128x128xf32>
    %201 = arith.select %198, %199, %200 : vector<128x128xi1>, vector<128x128xf32>
    %202 = arith.addf %193, %201 : vector<128x128xf32>
    %c42_i32 = arith.constant 42 : i32
    %203 = arith.addi %c42_i32, %arg1 : i32
    %204 = arith.index_cast %203 : i32 to index
    %205 = memref.load %arg2[%204] : memref<64xf32, #tpu.memory_space<smem>>
    %c21_i32 = arith.constant 21 : i32
    %206 = vector.broadcast %c21_i32 : i32 to vector<128x128xi32>
    %207 = arith.cmpi eq, %12, %206 : vector<128x128xi32>
    %cst_44 = arith.constant 0.000000e+00 : f32
    %208 = vector.broadcast %205 : f32 to vector<128x128xf32>
    %209 = vector.broadcast %cst_44 : f32 to vector<128x128xf32>
    %210 = arith.select %207, %208, %209 : vector<128x128xi1>, vector<128x128xf32>
    %211 = arith.addf %202, %210 : vector<128x128xf32>
    %c44_i32 = arith.constant 44 : i32
    %212 = arith.addi %c44_i32, %arg1 : i32
    %213 = arith.index_cast %212 : i32 to index
    %214 = memref.load %arg2[%213] : memref<64xf32, #tpu.memory_space<smem>>
    %c22_i32_45 = arith.constant 22 : i32
    %215 = vector.broadcast %c22_i32_45 : i32 to vector<128x128xi32>
    %216 = arith.cmpi eq, %12, %215 : vector<128x128xi32>
    %cst_46 = arith.constant 0.000000e+00 : f32
    %217 = vector.broadcast %214 : f32 to vector<128x128xf32>
    %218 = vector.broadcast %cst_46 : f32 to vector<128x128xf32>
    %219 = arith.select %216, %217, %218 : vector<128x128xi1>, vector<128x128xf32>
    %220 = arith.addf %211, %219 : vector<128x128xf32>
    %c46_i32 = arith.constant 46 : i32
    %221 = arith.addi %c46_i32, %arg1 : i32
    %222 = arith.index_cast %221 : i32 to index
    %223 = memref.load %arg2[%222] : memref<64xf32, #tpu.memory_space<smem>>
    %c23_i32 = arith.constant 23 : i32
    %224 = vector.broadcast %c23_i32 : i32 to vector<128x128xi32>
    %225 = arith.cmpi eq, %12, %224 : vector<128x128xi32>
    %cst_47 = arith.constant 0.000000e+00 : f32
    %226 = vector.broadcast %223 : f32 to vector<128x128xf32>
    %227 = vector.broadcast %cst_47 : f32 to vector<128x128xf32>
    %228 = arith.select %225, %226, %227 : vector<128x128xi1>, vector<128x128xf32>
    %229 = arith.addf %220, %228 : vector<128x128xf32>
    %c48_i32 = arith.constant 48 : i32
    %230 = arith.addi %c48_i32, %arg1 : i32
    %231 = arith.index_cast %230 : i32 to index
    %232 = memref.load %arg2[%231] : memref<64xf32, #tpu.memory_space<smem>>
    %c24_i32_48 = arith.constant 24 : i32
    %233 = vector.broadcast %c24_i32_48 : i32 to vector<128x128xi32>
    %234 = arith.cmpi eq, %12, %233 : vector<128x128xi32>
    %cst_49 = arith.constant 0.000000e+00 : f32
    %235 = vector.broadcast %232 : f32 to vector<128x128xf32>
    %236 = vector.broadcast %cst_49 : f32 to vector<128x128xf32>
    %237 = arith.select %234, %235, %236 : vector<128x128xi1>, vector<128x128xf32>
    %238 = arith.addf %229, %237 : vector<128x128xf32>
    %c50_i32 = arith.constant 50 : i32
    %239 = arith.addi %c50_i32, %arg1 : i32
    %240 = arith.index_cast %239 : i32 to index
    %241 = memref.load %arg2[%240] : memref<64xf32, #tpu.memory_space<smem>>
    %c25_i32 = arith.constant 25 : i32
    %242 = vector.broadcast %c25_i32 : i32 to vector<128x128xi32>
    %243 = arith.cmpi eq, %12, %242 : vector<128x128xi32>
    %cst_50 = arith.constant 0.000000e+00 : f32
    %244 = vector.broadcast %241 : f32 to vector<128x128xf32>
    %245 = vector.broadcast %cst_50 : f32 to vector<128x128xf32>
    %246 = arith.select %243, %244, %245 : vector<128x128xi1>, vector<128x128xf32>
    %247 = arith.addf %238, %246 : vector<128x128xf32>
    %c52_i32 = arith.constant 52 : i32
    %248 = arith.addi %c52_i32, %arg1 : i32
    %249 = arith.index_cast %248 : i32 to index
    %250 = memref.load %arg2[%249] : memref<64xf32, #tpu.memory_space<smem>>
    %c26_i32_51 = arith.constant 26 : i32
    %251 = vector.broadcast %c26_i32_51 : i32 to vector<128x128xi32>
    %252 = arith.cmpi eq, %12, %251 : vector<128x128xi32>
    %cst_52 = arith.constant 0.000000e+00 : f32
    %253 = vector.broadcast %250 : f32 to vector<128x128xf32>
    %254 = vector.broadcast %cst_52 : f32 to vector<128x128xf32>
    %255 = arith.select %252, %253, %254 : vector<128x128xi1>, vector<128x128xf32>
    %256 = arith.addf %247, %255 : vector<128x128xf32>
    %c54_i32 = arith.constant 54 : i32
    %257 = arith.addi %c54_i32, %arg1 : i32
    %258 = arith.index_cast %257 : i32 to index
    %259 = memref.load %arg2[%258] : memref<64xf32, #tpu.memory_space<smem>>
    %c27_i32 = arith.constant 27 : i32
    %260 = vector.broadcast %c27_i32 : i32 to vector<128x128xi32>
    %261 = arith.cmpi eq, %12, %260 : vector<128x128xi32>
    %cst_53 = arith.constant 0.000000e+00 : f32
    %262 = vector.broadcast %259 : f32 to vector<128x128xf32>
    %263 = vector.broadcast %cst_53 : f32 to vector<128x128xf32>
    %264 = arith.select %261, %262, %263 : vector<128x128xi1>, vector<128x128xf32>
    %265 = arith.addf %256, %264 : vector<128x128xf32>
    %c56_i32 = arith.constant 56 : i32
    %266 = arith.addi %c56_i32, %arg1 : i32
    %267 = arith.index_cast %266 : i32 to index
    %268 = memref.load %arg2[%267] : memref<64xf32, #tpu.memory_space<smem>>
    %c28_i32_54 = arith.constant 28 : i32
    %269 = vector.broadcast %c28_i32_54 : i32 to vector<128x128xi32>
    %270 = arith.cmpi eq, %12, %269 : vector<128x128xi32>
    %cst_55 = arith.constant 0.000000e+00 : f32
    %271 = vector.broadcast %268 : f32 to vector<128x128xf32>
    %272 = vector.broadcast %cst_55 : f32 to vector<128x128xf32>
    %273 = arith.select %270, %271, %272 : vector<128x128xi1>, vector<128x128xf32>
    %274 = arith.addf %265, %273 : vector<128x128xf32>
    %c58_i32 = arith.constant 58 : i32
    %275 = arith.addi %c58_i32, %arg1 : i32
    %276 = arith.index_cast %275 : i32 to index
    %277 = memref.load %arg2[%276] : memref<64xf32, #tpu.memory_space<smem>>
    %c29_i32 = arith.constant 29 : i32
    %278 = vector.broadcast %c29_i32 : i32 to vector<128x128xi32>
    %279 = arith.cmpi eq, %12, %278 : vector<128x128xi32>
    %cst_56 = arith.constant 0.000000e+00 : f32
    %280 = vector.broadcast %277 : f32 to vector<128x128xf32>
    %281 = vector.broadcast %cst_56 : f32 to vector<128x128xf32>
    %282 = arith.select %279, %280, %281 : vector<128x128xi1>, vector<128x128xf32>
    %283 = arith.addf %274, %282 : vector<128x128xf32>
    %c60_i32 = arith.constant 60 : i32
    %284 = arith.addi %c60_i32, %arg1 : i32
    %285 = arith.index_cast %284 : i32 to index
    %286 = memref.load %arg2[%285] : memref<64xf32, #tpu.memory_space<smem>>
    %c30_i32_57 = arith.constant 30 : i32
    %287 = vector.broadcast %c30_i32_57 : i32 to vector<128x128xi32>
    %288 = arith.cmpi eq, %12, %287 : vector<128x128xi32>
    %cst_58 = arith.constant 0.000000e+00 : f32
    %289 = vector.broadcast %286 : f32 to vector<128x128xf32>
    %290 = vector.broadcast %cst_58 : f32 to vector<128x128xf32>
    %291 = arith.select %288, %289, %290 : vector<128x128xi1>, vector<128x128xf32>
    %292 = arith.addf %283, %291 : vector<128x128xf32>
    %c62_i32 = arith.constant 62 : i32
    %293 = arith.addi %c62_i32, %arg1 : i32
    %294 = arith.index_cast %293 : i32 to index
    %295 = memref.load %arg2[%294] : memref<64xf32, #tpu.memory_space<smem>>
    %c31_i32_59 = arith.constant 31 : i32
    %296 = vector.broadcast %c31_i32_59 : i32 to vector<128x128xi32>
    %297 = arith.cmpi eq, %12, %296 : vector<128x128xi32>
    %cst_60 = arith.constant 0.000000e+00 : f32
    %298 = vector.broadcast %295 : f32 to vector<128x128xf32>
    %299 = vector.broadcast %cst_60 : f32 to vector<128x128xf32>
    %300 = arith.select %297, %298, %299 : vector<128x128xi1>, vector<128x128xf32>
    %301 = arith.addf %292, %300 : vector<128x128xf32>
    %302 = arith.cmpi sle, %8, %7 : vector<128x128xi32>
    %303 = arith.addf %6, %301 : vector<128x128xf32>
    %cst_61 = arith.constant -1.000000e+30 : f32
    %304 = vector.broadcast %cst_61 : f32 to vector<128x128xf32>
    %305 = arith.select %302, %303, %304 : vector<128x128xi1>, vector<128x128xf32>
    %cst_62 = arith.constant dense<0xFF800000> : vector<128xf32>
    %306 = vector.multi_reduction <maximumf>, %305, %cst_62 [1] : vector<128x128xf32> to vector<128xf32>
    %307 = vector.shape_cast %306 : vector<128xf32> to vector<128x1xf32>
    %308 = vector.broadcast %307 : vector<128x1xf32> to vector<128x128xf32>
    %309 = arith.subf %305, %308 : vector<128x128xf32>
    %310 = math.exp %309 : vector<128x128xf32>
    %cst_63 = arith.constant dense<0.000000e+00> : vector<128xf32>
    %311 = vector.multi_reduction <add>, %310, %cst_63 [1] : vector<128x128xf32> to vector<128xf32>
    %312 = vector.shape_cast %311 : vector<128xf32> to vector<128x1xf32>
    %313 = tpu.reciprocal %312 {approx = true} : vector<128x1xf32> -> vector<128x1xf32>
    %314 = vector.broadcast %313 : vector<128x1xf32> to vector<128x128xf32>
    %315 = arith.mulf %310, %314 : vector<128x128xf32>
    %316 = arith.truncf %315 : vector<128x128xf32> to vector<128x128xbf16>
    %cst_64 = arith.constant dense<0.000000e+00> : vector<128x128xf32>
    %317 = tpu.matmul %316, %5, %cst_64 {dimension_numbers = #tpu.dot_dimension_numbers<[1], [0], [0], [1], [0, 0, 1, 1], [], []>} : vector<128x128xbf16>, vector<128x128xbf16>, vector<128x128xf32> -> vector<128x128xf32>
    %318 = arith.truncf %317 : vector<128x128xf32> to vector<128x128xbf16>
    %c0_65 = arith.constant 0 : index
    %c0_66 = arith.constant 0 : index
    %c0_67 = arith.constant 0 : index
    %c0_68 = arith.constant 0 : index
    %319 = vector.load %arg6[%c0_65, %c0_66, %c0_67, %c0_68] : memref<1x1x128x128xbf16, #tpu.memory_space<vmem>>, vector<1x1x128x128xbf16>
    %320 = vector.shape_cast %319 : vector<1x1x128x128xbf16> to vector<128x128xbf16>
    %321 = vector.shape_cast %318 : vector<128x128xbf16> to vector<1x1x128x128xbf16>
    tpu.vector_store %arg6[%c0_65, %c0_66, %c0_67, %c0_68], %321 {strides = array<i32>} : memref<1x1x128x128xbf16, #tpu.memory_space<vmem>>, vector<1x1x128x128xbf16>,
    return
  }
  func.func @transform_0(%arg0: i32, %arg1: i32) -> i32 {
    %c0_i32 = arith.constant 0 : i32
    %c0_i32_0 = arith.constant 0 : i32
    return %c0_i32 : i32
  }
  func.func @transform_1(%arg0: i32, %arg1: i32) -> (i32, i32, i32, i32) {
    %c0_i32 = arith.constant 0 : i32
    %c0_i32_0 = arith.constant 0 : i32
    %c0_i32_1 = arith.constant 0 : i32
    return %arg0, %arg1, %c0_i32, %c0_i32_0 : i32, i32, i32, i32
  }
  func.func @transform_2(%arg0: i32, %arg1: i32) -> (i32, i32, i32, i32) {
    %c0_i32 = arith.constant 0 : i32
    %c0_i32_0 = arith.constant 0 : i32
    %c0_i32_1 = arith.constant 0 : i32
    return %arg0, %arg1, %c0_i32, %c0_i32_0 : i32, i32, i32, i32
  }
  func.func @transform_3(%arg0: i32, %arg1: i32) -> (i32, i32, i32, i32) {
    %c0_i32 = arith.constant 0 : i32
    %c0_i32_0 = arith.constant 0 : i32
    %c0_i32_1 = arith.constant 0 : i32
    return %arg0, %arg1, %c0_i32, %c0_i32_0 : i32, i32, i32, i32
  }
  func.func @transform_4(%arg0: i32, %arg1: i32) -> (i32, i32, i32, i32) {
    %c0_i32 = arith.constant 0 : i32
    %c0_i32_0 = arith.constant 0 : i32
    %c0_i32_1 = arith.constant 0 : i32
    return %arg0, %arg1, %c0_i32, %c0_i32_0 : i32, i32, i32, i32
  }
}

module attributes {stable_mosaic.version = 11 : i64} {
  func.func @proj_ffn_kernel(%arg0: i32, %arg1: memref<256x256xbf16, #tpu.memory_space<vmem>>, %arg2: memref<256x256xbf16, #tpu.memory_space<vmem>>, %arg3: memref<256x256xbf16, #tpu.memory_space<vmem>>, %arg4: memref<1x256xf32, #tpu.memory_space<vmem>>, %arg5: memref<1x256xf32, #tpu.memory_space<vmem>>, %arg6: memref<1x256xf32, #tpu.memory_space<vmem>>, %arg7: memref<256x512xbf16, #tpu.memory_space<vmem>>, %arg8: memref<1x512xf32, #tpu.memory_space<vmem>>, %arg9: memref<512x256xbf16, #tpu.memory_space<vmem>>, %arg10: memref<1x256xf32, #tpu.memory_space<vmem>>, %arg11: memref<256x256xbf16, #tpu.memory_space<vmem>>) attributes {dimension_semantics = [#tpu.dimension_semantics<parallel>], iteration_bounds = array<i64: 1>, scalar_prefetch = 0 : i64, scratch_operands = 0 : i64, tpu.core_type = #tpu.core_type<tc>, window_params = [{transform_indices = @transform_0, window_bounds = array<i64: 256, 256>}, {transform_indices = @transform_1, window_bounds = array<i64: 256, 256>}, {pipeline_mode = #tpu.pipeline_mode<synchronous>, transform_indices = @transform_2, window_bounds = array<i64: 256, 256>}, {pipeline_mode = #tpu.pipeline_mode<synchronous>, transform_indices = @transform_3, window_bounds = array<i64: 1, 256>}, {pipeline_mode = #tpu.pipeline_mode<synchronous>, transform_indices = @transform_4, window_bounds = array<i64: 1, 256>}, {pipeline_mode = #tpu.pipeline_mode<synchronous>, transform_indices = @transform_5, window_bounds = array<i64: 1, 256>}, {pipeline_mode = #tpu.pipeline_mode<synchronous>, transform_indices = @transform_6, window_bounds = array<i64: 256, 512>}, {pipeline_mode = #tpu.pipeline_mode<synchronous>, transform_indices = @transform_7, window_bounds = array<i64: 1, 512>}, {pipeline_mode = #tpu.pipeline_mode<synchronous>, transform_indices = @transform_8, window_bounds = array<i64: 512, 256>}, {pipeline_mode = #tpu.pipeline_mode<synchronous>, transform_indices = @transform_9, window_bounds = array<i64: 1, 256>}, {transform_indices = @transform_10, window_bounds = array<i64: 256, 256>}]} {
    %c0 = arith.constant 0 : index
    %c0_0 = arith.constant 0 : index
    %0 = vector.load %arg1[%c0, %c0_0] : memref<256x256xbf16, #tpu.memory_space<vmem>>, vector<256x256xbf16>
    %c0_1 = arith.constant 0 : index
    %c0_2 = arith.constant 0 : index
    %1 = vector.load %arg3[%c0_1, %c0_2] : memref<256x256xbf16, #tpu.memory_space<vmem>>, vector<256x256xbf16>
    %cst = arith.constant dense<0.000000e+00> : vector<256x256xf32>
    %2 = tpu.matmul %0, %1, %cst {dimension_numbers = #tpu.dot_dimension_numbers<[1], [0], [0], [1], [0, 0, 1, 1], [], []>} : vector<256x256xbf16>, vector<256x256xbf16>, vector<256x256xf32> -> vector<256x256xf32>
    %c0_3 = arith.constant 0 : index
    %c0_4 = arith.constant 0 : index
    %3 = vector.load %arg4[%c0_3, %c0_4] : memref<1x256xf32, #tpu.memory_space<vmem>>, vector<1x256xf32>
    %4 = vector.broadcast %3 : vector<1x256xf32> to vector<256x256xf32>
    %5 = arith.addf %2, %4 : vector<256x256xf32>
    %c0_5 = arith.constant 0 : index
    %c0_6 = arith.constant 0 : index
    %6 = vector.load %arg2[%c0_5, %c0_6] : memref<256x256xbf16, #tpu.memory_space<vmem>>, vector<256x256xbf16>
    %7 = arith.extf %6 : vector<256x256xbf16> to vector<256x256xf32>
    %8 = arith.addf %7, %5 : vector<256x256xf32>
    %c0_7 = arith.constant 0 : index
    %c0_8 = arith.constant 0 : index
    %9 = vector.load %arg5[%c0_7, %c0_8] : memref<1x256xf32, #tpu.memory_space<vmem>>, vector<1x256xf32>
    %c0_9 = arith.constant 0 : index
    %c0_10 = arith.constant 0 : index
    %10 = vector.load %arg6[%c0_9, %c0_10] : memref<1x256xf32, #tpu.memory_space<vmem>>, vector<1x256xf32>
    %cst_11 = arith.constant dense<0.000000e+00> : vector<256xf32>
    %11 = vector.multi_reduction <add>, %8, %cst_11 [1] : vector<256x256xf32> to vector<256xf32>
    %12 = vector.shape_cast %11 : vector<256xf32> to vector<256x1xf32>
    %cst_12 = arith.constant 2.560000e+02 : f32
    %13 = vector.broadcast %cst_12 : f32 to vector<256x1xf32>
    %14 = arith.divf %12, %13 : vector<256x1xf32>
    %15 = vector.broadcast %14 : vector<256x1xf32> to vector<256x256xf32>
    %16 = arith.subf %8, %15 : vector<256x256xf32>
    %17 = arith.mulf %16, %16 : vector<256x256xf32>
    %cst_13 = arith.constant dense<0.000000e+00> : vector<256xf32>
    %18 = vector.multi_reduction <add>, %17, %cst_13 [1] : vector<256x256xf32> to vector<256xf32>
    %19 = vector.shape_cast %18 : vector<256xf32> to vector<256x1xf32>
    %cst_14 = arith.constant 2.560000e+02 : f32
    %20 = vector.broadcast %cst_14 : f32 to vector<256x1xf32>
    %21 = arith.divf %19, %20 : vector<256x1xf32>
    %22 = vector.broadcast %14 : vector<256x1xf32> to vector<256x256xf32>
    %23 = arith.subf %8, %22 : vector<256x256xf32>
    %cst_15 = arith.constant 9.99999974E-6 : f32
    %24 = vector.broadcast %cst_15 : f32 to vector<256x1xf32>
    %25 = arith.addf %21, %24 : vector<256x1xf32>
    %26 = math.rsqrt %25 : vector<256x1xf32>
    %27 = vector.broadcast %26 : vector<256x1xf32> to vector<256x256xf32>
    %28 = arith.mulf %23, %27 : vector<256x256xf32>
    %29 = vector.broadcast %9 : vector<1x256xf32> to vector<256x256xf32>
    %30 = arith.mulf %28, %29 : vector<256x256xf32>
    %31 = vector.broadcast %10 : vector<1x256xf32> to vector<256x256xf32>
    %32 = arith.addf %30, %31 : vector<256x256xf32>
    %33 = arith.truncf %32 : vector<256x256xf32> to vector<256x256xbf16>
    %c0_16 = arith.constant 0 : index
    %c0_17 = arith.constant 0 : index
    %34 = vector.load %arg7[%c0_16, %c0_17] : memref<256x512xbf16, #tpu.memory_space<vmem>>, vector<256x512xbf16>
    %cst_18 = arith.constant dense<0.000000e+00> : vector<256x512xf32>
    %35 = tpu.matmul %33, %34, %cst_18 {dimension_numbers = #tpu.dot_dimension_numbers<[1], [0], [0], [1], [0, 0, 1, 1], [], []>} : vector<256x256xbf16>, vector<256x512xbf16>, vector<256x512xf32> -> vector<256x512xf32>
    %c0_19 = arith.constant 0 : index
    %c0_20 = arith.constant 0 : index
    %36 = vector.load %arg8[%c0_19, %c0_20] : memref<1x512xf32, #tpu.memory_space<vmem>>, vector<1x512xf32>
    %37 = vector.broadcast %36 : vector<1x512xf32> to vector<256x512xf32>
    %38 = arith.addf %35, %37 : vector<256x512xf32>
    %cst_21 = arith.constant 5.000000e-01 : f32
    %39 = vector.broadcast %cst_21 : f32 to vector<256x512xf32>
    %40 = arith.mulf %39, %38 : vector<256x512xf32>
    %cst_22 = arith.constant 4.471500e-02 : f32
    %41 = vector.broadcast %cst_22 : f32 to vector<256x512xf32>
    %42 = arith.mulf %41, %38 : vector<256x512xf32>
    %43 = arith.mulf %42, %38 : vector<256x512xf32>
    %44 = arith.mulf %43, %38 : vector<256x512xf32>
    %45 = arith.addf %38, %44 : vector<256x512xf32>
    %cst_23 = arith.constant 0.797884583 : f32
    %46 = vector.broadcast %cst_23 : f32 to vector<256x512xf32>
    %47 = arith.mulf %46, %45 : vector<256x512xf32>
    %48 = math.tanh %47 : vector<256x512xf32>
    %cst_24 = arith.constant 1.000000e+00 : f32
    %49 = vector.broadcast %cst_24 : f32 to vector<256x512xf32>
    %50 = arith.addf %49, %48 : vector<256x512xf32>
    %51 = arith.mulf %40, %50 : vector<256x512xf32>
    %52 = arith.truncf %51 : vector<256x512xf32> to vector<256x512xbf16>
    %c0_25 = arith.constant 0 : index
    %c0_26 = arith.constant 0 : index
    %53 = vector.load %arg9[%c0_25, %c0_26] : memref<512x256xbf16, #tpu.memory_space<vmem>>, vector<512x256xbf16>
    %cst_27 = arith.constant dense<0.000000e+00> : vector<256x256xf32>
    %54 = tpu.matmul %52, %53, %cst_27 {dimension_numbers = #tpu.dot_dimension_numbers<[1], [0], [0], [1], [0, 0, 1, 1], [], []>} : vector<256x512xbf16>, vector<512x256xbf16>, vector<256x256xf32> -> vector<256x256xf32>
    %55 = arith.addf %8, %54 : vector<256x256xf32>
    %c0_28 = arith.constant 0 : index
    %c0_29 = arith.constant 0 : index
    %56 = vector.load %arg10[%c0_28, %c0_29] : memref<1x256xf32, #tpu.memory_space<vmem>>, vector<1x256xf32>
    %57 = vector.broadcast %56 : vector<1x256xf32> to vector<256x256xf32>
    %58 = arith.addf %55, %57 : vector<256x256xf32>
    %59 = arith.truncf %58 : vector<256x256xf32> to vector<256x256xbf16>
    %c0_30 = arith.constant 0 : index
    %c0_31 = arith.constant 0 : index
    %60 = vector.load %arg11[%c0_30, %c0_31] : memref<256x256xbf16, #tpu.memory_space<vmem>>, vector<256x256xbf16>
    tpu.vector_store %arg11[%c0_30, %c0_31], %59 {strides = array<i32>} : memref<256x256xbf16, #tpu.memory_space<vmem>>, vector<256x256xbf16>,
    return
  }
  func.func @transform_0(%arg0: i32) -> (i32, i32) {
    %c0_i32 = arith.constant 0 : i32
    %c0_i32_0 = arith.constant 0 : i32
    return %arg0, %c0_i32 : i32, i32
  }
  func.func @transform_1(%arg0: i32) -> (i32, i32) {
    %c0_i32 = arith.constant 0 : i32
    %c0_i32_0 = arith.constant 0 : i32
    return %arg0, %c0_i32 : i32, i32
  }
  func.func @transform_2(%arg0: i32) -> (i32, i32) {
    %c0_i32 = arith.constant 0 : i32
    %c0_i32_0 = arith.constant 0 : i32
    %c0_i32_1 = arith.constant 0 : i32
    return %c0_i32, %c0_i32_0 : i32, i32
  }
  func.func @transform_3(%arg0: i32) -> (i32, i32) {
    %c0_i32 = arith.constant 0 : i32
    %c0_i32_0 = arith.constant 0 : i32
    %c0_i32_1 = arith.constant 0 : i32
    return %c0_i32, %c0_i32_0 : i32, i32
  }
  func.func @transform_4(%arg0: i32) -> (i32, i32) {
    %c0_i32 = arith.constant 0 : i32
    %c0_i32_0 = arith.constant 0 : i32
    %c0_i32_1 = arith.constant 0 : i32
    return %c0_i32, %c0_i32_0 : i32, i32
  }
  func.func @transform_5(%arg0: i32) -> (i32, i32) {
    %c0_i32 = arith.constant 0 : i32
    %c0_i32_0 = arith.constant 0 : i32
    %c0_i32_1 = arith.constant 0 : i32
    return %c0_i32, %c0_i32_0 : i32, i32
  }
  func.func @transform_6(%arg0: i32) -> (i32, i32) {
    %c0_i32 = arith.constant 0 : i32
    %c0_i32_0 = arith.constant 0 : i32
    %c0_i32_1 = arith.constant 0 : i32
    return %c0_i32, %c0_i32_0 : i32, i32
  }
  func.func @transform_7(%arg0: i32) -> (i32, i32) {
    %c0_i32 = arith.constant 0 : i32
    %c0_i32_0 = arith.constant 0 : i32
    %c0_i32_1 = arith.constant 0 : i32
    return %c0_i32, %c0_i32_0 : i32, i32
  }
  func.func @transform_8(%arg0: i32) -> (i32, i32) {
    %c0_i32 = arith.constant 0 : i32
    %c0_i32_0 = arith.constant 0 : i32
    %c0_i32_1 = arith.constant 0 : i32
    return %c0_i32, %c0_i32_0 : i32, i32
  }
  func.func @transform_9(%arg0: i32) -> (i32, i32) {
    %c0_i32 = arith.constant 0 : i32
    %c0_i32_0 = arith.constant 0 : i32
    %c0_i32_1 = arith.constant 0 : i32
    return %c0_i32, %c0_i32_0 : i32, i32
  }
  func.func @transform_10(%arg0: i32) -> (i32, i32) {
    %c0_i32 = arith.constant 0 : i32
    %c0_i32_0 = arith.constant 0 : i32
    return %arg0, %c0_i32 : i32, i32
  }
}

module attributes {stable_mosaic.version = 11 : i64} {
  func.func @head_kernel(%arg0: i32, %arg1: i32, %arg2: memref<256x256xbf16, #tpu.memory_space<vmem>>, %arg3: memref<1x256xf32, #tpu.memory_space<vmem>>, %arg4: memref<1x256xf32, #tpu.memory_space<vmem>>, %arg5: memref<256x512xbf16, #tpu.memory_space<vmem>>, %arg6: memref<1x512xf32, #tpu.memory_space<vmem>>, %arg7: memref<256x512xf32, #tpu.memory_space<vmem>>) attributes {dimension_semantics = [#tpu.dimension_semantics<parallel>, #tpu.dimension_semantics<parallel>], iteration_bounds = array<i64: 1, 1>, scalar_prefetch = 0 : i64, scratch_operands = 0 : i64, tpu.core_type = #tpu.core_type<tc>, window_params = [{transform_indices = @transform_0, window_bounds = array<i64: 256, 256>}, {pipeline_mode = #tpu.pipeline_mode<synchronous>, transform_indices = @transform_1, window_bounds = array<i64: 1, 256>}, {pipeline_mode = #tpu.pipeline_mode<synchronous>, transform_indices = @transform_2, window_bounds = array<i64: 1, 256>}, {transform_indices = @transform_3, window_bounds = array<i64: 256, 512>}, {transform_indices = @transform_4, window_bounds = array<i64: 1, 512>}, {transform_indices = @transform_5, window_bounds = array<i64: 256, 512>}]} {
    %c0 = arith.constant 0 : index
    %c0_0 = arith.constant 0 : index
    %0 = vector.load %arg2[%c0, %c0_0] : memref<256x256xbf16, #tpu.memory_space<vmem>>, vector<256x256xbf16>
    %1 = arith.extf %0 : vector<256x256xbf16> to vector<256x256xf32>
    %c0_1 = arith.constant 0 : index
    %c0_2 = arith.constant 0 : index
    %2 = vector.load %arg3[%c0_1, %c0_2] : memref<1x256xf32, #tpu.memory_space<vmem>>, vector<1x256xf32>
    %c0_3 = arith.constant 0 : index
    %c0_4 = arith.constant 0 : index
    %3 = vector.load %arg4[%c0_3, %c0_4] : memref<1x256xf32, #tpu.memory_space<vmem>>, vector<1x256xf32>
    %cst = arith.constant dense<0.000000e+00> : vector<256xf32>
    %4 = vector.multi_reduction <add>, %1, %cst [1] : vector<256x256xf32> to vector<256xf32>
    %5 = vector.shape_cast %4 : vector<256xf32> to vector<256x1xf32>
    %cst_5 = arith.constant 2.560000e+02 : f32
    %6 = vector.broadcast %cst_5 : f32 to vector<256x1xf32>
    %7 = arith.divf %5, %6 : vector<256x1xf32>
    %8 = vector.broadcast %7 : vector<256x1xf32> to vector<256x256xf32>
    %9 = arith.subf %1, %8 : vector<256x256xf32>
    %10 = arith.mulf %9, %9 : vector<256x256xf32>
    %cst_6 = arith.constant dense<0.000000e+00> : vector<256xf32>
    %11 = vector.multi_reduction <add>, %10, %cst_6 [1] : vector<256x256xf32> to vector<256xf32>
    %12 = vector.shape_cast %11 : vector<256xf32> to vector<256x1xf32>
    %cst_7 = arith.constant 2.560000e+02 : f32
    %13 = vector.broadcast %cst_7 : f32 to vector<256x1xf32>
    %14 = arith.divf %12, %13 : vector<256x1xf32>
    %15 = vector.broadcast %7 : vector<256x1xf32> to vector<256x256xf32>
    %16 = arith.subf %1, %15 : vector<256x256xf32>
    %cst_8 = arith.constant 9.99999974E-6 : f32
    %17 = vector.broadcast %cst_8 : f32 to vector<256x1xf32>
    %18 = arith.addf %14, %17 : vector<256x1xf32>
    %19 = math.rsqrt %18 : vector<256x1xf32>
    %20 = vector.broadcast %19 : vector<256x1xf32> to vector<256x256xf32>
    %21 = arith.mulf %16, %20 : vector<256x256xf32>
    %22 = vector.broadcast %2 : vector<1x256xf32> to vector<256x256xf32>
    %23 = arith.mulf %21, %22 : vector<256x256xf32>
    %24 = vector.broadcast %3 : vector<1x256xf32> to vector<256x256xf32>
    %25 = arith.addf %23, %24 : vector<256x256xf32>
    %26 = arith.truncf %25 : vector<256x256xf32> to vector<256x256xbf16>
    %c0_9 = arith.constant 0 : index
    %c0_10 = arith.constant 0 : index
    %27 = vector.load %arg5[%c0_9, %c0_10] : memref<256x512xbf16, #tpu.memory_space<vmem>>, vector<256x512xbf16>
    %cst_11 = arith.constant dense<0.000000e+00> : vector<256x512xf32>
    %28 = tpu.matmul %26, %27, %cst_11 {dimension_numbers = #tpu.dot_dimension_numbers<[1], [0], [0], [1], [0, 0, 1, 1], [], []>} : vector<256x256xbf16>, vector<256x512xbf16>, vector<256x512xf32> -> vector<256x512xf32>
    %c0_12 = arith.constant 0 : index
    %c0_13 = arith.constant 0 : index
    %29 = vector.load %arg6[%c0_12, %c0_13] : memref<1x512xf32, #tpu.memory_space<vmem>>, vector<1x512xf32>
    %30 = vector.broadcast %29 : vector<1x512xf32> to vector<256x512xf32>
    %31 = arith.addf %28, %30 : vector<256x512xf32>
    %c0_14 = arith.constant 0 : index
    %c0_15 = arith.constant 0 : index
    %32 = vector.load %arg7[%c0_14, %c0_15] : memref<256x512xf32, #tpu.memory_space<vmem>>, vector<256x512xf32>
    tpu.vector_store %arg7[%c0_14, %c0_15], %31 {strides = array<i32>} : memref<256x512xf32, #tpu.memory_space<vmem>>, vector<256x512xf32>,
    return
  }
  func.func @transform_0(%arg0: i32, %arg1: i32) -> (i32, i32) {
    %c0_i32 = arith.constant 0 : i32
    %c0_i32_0 = arith.constant 0 : i32
    return %arg1, %c0_i32 : i32, i32
  }
  func.func @transform_1(%arg0: i32, %arg1: i32) -> (i32, i32) {
    %c0_i32 = arith.constant 0 : i32
    %c0_i32_0 = arith.constant 0 : i32
    %c0_i32_1 = arith.constant 0 : i32
    return %c0_i32, %c0_i32_0 : i32, i32
  }
  func.func @transform_2(%arg0: i32, %arg1: i32) -> (i32, i32) {
    %c0_i32 = arith.constant 0 : i32
    %c0_i32_0 = arith.constant 0 : i32
    %c0_i32_1 = arith.constant 0 : i32
    return %c0_i32, %c0_i32_0 : i32, i32
  }
  func.func @transform_3(%arg0: i32, %arg1: i32) -> (i32, i32) {
    %c0_i32 = arith.constant 0 : i32
    %c0_i32_0 = arith.constant 0 : i32
    return %c0_i32, %arg0 : i32, i32
  }
  func.func @transform_4(%arg0: i32, %arg1: i32) -> (i32, i32) {
    %c0_i32 = arith.constant 0 : i32
    %c0_i32_0 = arith.constant 0 : i32
    return %c0_i32, %arg0 : i32, i32
  }
  func.func @transform_5(%arg0: i32, %arg1: i32) -> (i32, i32) {
    %c0_i32 = arith.constant 0 : i32
    return %arg1, %arg0 : i32, i32
  }
}

</mosaic_0001>

<llo_original>
// kernel: t5_decoder_lm_forward.7
$region0: #{t5_decoder_lm_forward.7}
  #allocation0 [shape = 'u32[]', space=smem, size = 0x4, offset = 0x4, fixed_abs, tag = 'smem constant byte address 0x4 - core index']
  #allocation1 [shape = 'u32[144,128]{1,0:T(1,128)}', space=vmem, size = 0x12000, scoped, tag = 'internal scratch']
  %s0 = inlined_call_operand.vmem [shape: bf16[256,256], index: 0, kind: input, shape index: {}]
  %s1 = inlined_call_operand.vmem [shape: f32[1,256], index: 1, kind: input, shape index: {}]
  %s2 = inlined_call_operand.vmem [shape: f32[1,256], index: 2, kind: input, shape index: {}]
  %s3 = inlined_call_operand.vmem [shape: bf16[256,768], index: 3, kind: input, shape index: {}]
  %s4 = inlined_call_operand.vmem [shape: f32[1,768], index: 4, kind: input, shape index: {}]
  %s5 = inlined_call_operand.vmem [shape: bf16[256,768], index: 5, kind: output, shape index: {}]
  %s6 = sld [smem:[#allocation0]]
  $region30: #{t5_decoder_lm_forward.7} parent=0
    _
  %s8 = ssub.s32 1, %s6
  %s9 = scalar_select 0, %s8, %s6
  // Predicated region
  $region2: #{t5_decoder_lm_forward.7} parent=0 // pred_check
    _
  $region3: #{t5_decoder_lm_forward.7} parent=0 // pred_check_branch
    %11 = sbr.rel (0) target = $region5
  $region4: #{t5_decoder_lm_forward.7} parent=0 // pred_region
    _
  $region5: #{t5_decoder_lm_forward.7} parent=0 // pred_fallthru
    _
  // Predicated region
  $region6: #{t5_decoder_lm_forward.7} parent=0 // pred_check
    _
  $region7: #{t5_decoder_lm_forward.7} parent=0 // pred_check_branch
    %13 = sbr.rel (0) target = $region9
  $region8: #{t5_decoder_lm_forward.7} parent=0 // pred_region
    _
  $region9: #{t5_decoder_lm_forward.7} parent=0 // pred_fallthru
    _
  // Predicated region
  $region10: #{t5_decoder_lm_forward.7} parent=0 // pred_check
    _
  $region11: #{t5_decoder_lm_forward.7} parent=0 // pred_check_branch
    %15 = sbr.rel (0) target = $region13
  $region12: #{t5_decoder_lm_forward.7} parent=0 // pred_region
    _
  $region13: #{t5_decoder_lm_forward.7} parent=0 // pred_fallthru
    _
  // Predicated region
  $region14: #{t5_decoder_lm_forward.7} parent=0 // pred_check
    _
  $region15: #{t5_decoder_lm_forward.7} parent=0 // pred_check_branch
    %17 = sbr.rel (0) target = $region17
  $region16: #{t5_decoder_lm_forward.7} parent=0 // pred_region
    _
  $region17: #{t5_decoder_lm_forward.7} parent=0 // pred_fallthru
    _
  // Predicated region
  $region18: #{t5_decoder_lm_forward.7} parent=0 // pred_check
    _
  $region19: #{t5_decoder_lm_forward.7} parent=0 // pred_check_branch
    %19 = sbr.rel (0) target = $region21
  $region20: #{t5_decoder_lm_forward.7} parent=0 // pred_region
    _
  $region21: #{t5_decoder_lm_forward.7} parent=0 // pred_fallthru
    _
  %v20 = vld [vmem:[%s0] sm:$0xff]
  %v21 = vld [vmem:[%s0 + $0x8] sm:$0xff]
  %v22 = vld [vmem:[%s0 + $0x10] sm:$0xff]
  %v23 = vld [vmem:[%s0 + $0x18] sm:$0xff]
  %v24 = vld [vmem:[%s0 + $0x20] sm:$0xff]
  %v25 = vld [vmem:[%s0 + $0x28] sm:$0xff]
  %v26 = vld [vmem:[%s0 + $0x30] sm:$0xff]
  %v27 = vld [vmem:[%s0 + $0x38] sm:$0xff]
  %v28 = vld [vmem:[%s0 + $0x40] sm:$0xff]
  %v29 = vld [vmem:[%s0 + $0x48] sm:$0xff]
  %v30 = vld [vmem:[%s0 + $0x50] sm:$0xff]
  %v31 = vld [vmem:[%s0 + $0x58] sm:$0xff]
  %v32 = vld [vmem:[%s0 + $0x60] sm:$0xff]
  %v33 = vld [vmem:[%s0 + $0x68] sm:$0xff]
  %v34 = vld [vmem:[%s0 + $0x70] sm:$0xff]
  %v35 = vld [vmem:[%s0 + $0x78] sm:$0xff]
  %v36 = vld [vmem:[%s0 + $0x80] sm:$0xff]
  %v37 = vld [vmem:[%s0 + $0x88] sm:$0xff]
  %v38 = vld [vmem:[%s0 + $0x90] sm:$0xff]
  %v39 = vld [vmem:[%s0 + $0x98] sm:$0xff]
  %v40 = vld [vmem:[%s0 + $0xa0] sm:$0xff]
  %v41 = vld [vmem:[%s0 + $0xa8] sm:$0xff]
  %v42 = vld [vmem:[%s0 + $0xb0] sm:$0xff]
  %v43 = vld [vmem:[%s0 + $0xb8] sm:$0xff]
  %v44 = vld [vmem:[%s0 + $0xc0] sm:$0xff]
  %v45 = vld [vmem:[%s0 + $0xc8] sm:$0xff]
  %v46 = vld [vmem:[%s0 + $0xd0] sm:$0xff]
  %v47 = vld [vmem:[%s0 + $0xd8] sm:$0xff]
  %v48 = vld [vmem:[%s0 + $0xe0] sm:$0xff]
  %v49 = vld [vmem:[%s0 + $0xe8] sm:$0xff]
  %v50 = vld [vmem:[%s0 + $0xf0] sm:$0xff]
  %v51 = vld [vmem:[%s0 + $0xf8] sm:$0xff]
  %v52 = vunpack.c.l.bf16 %v20
  %v53 = vunpack.c.h.bf16 %v20
  %v54 = vunpack.c.l.bf16 %v21
  %v55 = vunpack.c.h.bf16 %v21
  %v56 = vunpack.c.l.bf16 %v22
  %v57 = vunpack.c.h.bf16 %v22
  %v58 = vunpack.c.l.bf16 %v23
  %v59 = vunpack.c.h.bf16 %v23
  %v60 = vunpack.c.l.bf16 %v24
  %v61 = vunpack.c.h.bf16 %v24
  %v62 = vunpack.c.l.bf16 %v25
  %v63 = vunpack.c.h.bf16 %v25
  %v64 = vunpack.c.l.bf16 %v26
  %v65 = vunpack.c.h.bf16 %v26
  %v66 = vunpack.c.l.bf16 %v27
  %v67 = vunpack.c.h.bf16 %v27
  %v68 = vunpack.c.l.bf16 %v28
  %v69 = vunpack.c.h.bf16 %v28
  %v70 = vunpack.c.l.bf16 %v29
  %v71 = vunpack.c.h.bf16 %v29
  %v72 = vunpack.c.l.bf16 %v30
  %v73 = vunpack.c.h.bf16 %v30
  %v74 = vunpack.c.l.bf16 %v31
  %v75 = vunpack.c.h.bf16 %v31
  %v76 = vunpack.c.l.bf16 %v32
  %v77 = vunpack.c.h.bf16 %v32
  %v78 = vunpack.c.l.bf16 %v33
  %v79 = vunpack.c.h.bf16 %v33
  %v80 = vunpack.c.l.bf16 %v34
  %v81 = vunpack.c.h.bf16 %v34
  %v82 = vunpack.c.l.bf16 %v35
  %v83 = vunpack.c.h.bf16 %v35
  %v84 = vunpack.c.l.bf16 %v36
  %v85 = vunpack.c.h.bf16 %v36
  %v86 = vunpack.c.l.bf16 %v37
  %v87 = vunpack.c.h.bf16 %v37
  %v88 = vunpack.c.l.bf16 %v38
  %v89 = vunpack.c.h.bf16 %v38
  %v90 = vunpack.c.l.bf16 %v39
  %v91 = vunpack.c.h.bf16 %v39
  %v92 = vunpack.c.l.bf16 %v40
  %v93 = vunpack.c.h.bf16 %v40
  %v94 = vunpack.c.l.bf16 %v41
  %v95 = vunpack.c.h.bf16 %v41
  %v96 = vunpack.c.l.bf16 %v42
  %v97 = vunpack.c.h.bf16 %v42
  %v98 = vunpack.c.l.bf16 %v43
  %v99 = vunpack.c.h.bf16 %v43
  %v100 = vunpack.c.l.bf16 %v44
  %v101 = vunpack.c.h.bf16 %v44
  %v102 = vunpack.c.l.bf16 %v45
  %v103 = vunpack.c.h.bf16 %v45
  %v104 = vunpack.c.l.bf16 %v46
  %v105 = vunpack.c.h.bf16 %v46
  %v106 = vunpack.c.l.bf16 %v47
  %v107 = vunpack.c.h.bf16 %v47
  %v108 = vunpack.c.l.bf16 %v48
  %v109 = vunpack.c.h.bf16 %v48
  %v110 = vunpack.c.l.bf16 %v49
  %v111 = vunpack.c.h.bf16 %v49
  %v112 = vunpack.c.l.bf16 %v50
  %v113 = vunpack.c.h.bf16 %v50
  %v114 = vunpack.c.l.bf16 %v51
  %v115 = vunpack.c.h.bf16 %v51
  %v116 = vld [vmem:[%s1] sm:$0x3]
  %v117 = vld [vmem:[%s2] sm:$0x3]
  %v118 = vadd.f32 %v52, %v53
  %119 = vadd.xlane.f32.xlu0 %v118
  %v120 = vpop.xlane.xlu0 %119
  %v121 = vadd.f32 %v54, %v55
  %122 = vadd.xlane.f32.xlu0 %v121
  %v123 = vpop.xlane.xlu0 %122
  %v124 = vadd.f32 %v56, %v57
  %125 = vadd.xlane.f32.xlu0 %v124
  %v126 = vpop.xlane.xlu0 %125
  %v127 = vadd.f32 %v58, %v59
  %128 = vadd.xlane.f32.xlu0 %v127
  %v129 = vpop.xlane.xlu0 %128
  %v130 = vadd.f32 %v60, %v61
  %131 = vadd.xlane.f32.xlu0 %v130
  %v132 = vpop.xlane.xlu0 %131
  %v133 = vadd.f32 %v62, %v63
  %134 = vadd.xlane.f32.xlu0 %v133
  %v135 = vpop.xlane.xlu0 %134
  %v136 = vadd.f32 %v64, %v65
  %137 = vadd.xlane.f32.xlu0 %v136
  %v138 = vpop.xlane.xlu0 %137
  %v139 = vadd.f32 %v66, %v67
  %140 = vadd.xlane.f32.xlu0 %v139
  %v141 = vpop.xlane.xlu0 %140
  %v142 = vadd.f32 %v68, %v69
  %143 = vadd.xlane.f32.xlu0 %v142
  %v144 = vpop.xlane.xlu0 %143
  %v145 = vadd.f32 %v70, %v71
  %146 = vadd.xlane.f32.xlu0 %v145
  %v147 = vpop.xlane.xlu0 %146
  %v148 = vadd.f32 %v72, %v73
  %149 = vadd.xlane.f32.xlu0 %v148
  %v150 = vpop.xlane.xlu0 %149
  %v151 = vadd.f32 %v74, %v75
  %152 = vadd.xlane.f32.xlu0 %v151
  %v153 = vpop.xlane.xlu0 %152
  %v154 = vadd.f32 %v76, %v77
  %155 = vadd.xlane.f32.xlu0 %v154
  %v156 = vpop.xlane.xlu0 %155
  %v157 = vadd.f32 %v78, %v79
  %158 = vadd.xlane.f32.xlu0 %v157
  %v159 = vpop.xlane.xlu0 %158
  %v160 = vadd.f32 %v80, %v81
  %161 = vadd.xlane.f32.xlu0 %v160
  %v162 = vpop.xlane.xlu0 %161
  %v163 = vadd.f32 %v82, %v83
  %164 = vadd.xlane.f32.xlu0 %v163
  %v165 = vpop.xlane.xlu0 %164
  %v166 = vadd.f32 %v84, %v85
  %167 = vadd.xlane.f32.xlu0 %v166
  %v168 = vpop.xlane.xlu0 %167
  %v169 = vadd.f32 %v86, %v87
  %170 = vadd.xlane.f32.xlu0 %v169
  %v171 = vpop.xlane.xlu0 %170
  %v172 = vadd.f32 %v88, %v89
  %173 = vadd.xlane.f32.xlu0 %v172
  %v174 = vpop.xlane.xlu0 %173
  %v175 = vadd.f32 %v90, %v91
  %176 = vadd.xlane.f32.xlu0 %v175
  %v177 = vpop.xlane.xlu0 %176
  %v178 = vadd.f32 %v92, %v93
  %179 = vadd.xlane.f32.xlu0 %v178
  %v180 = vpop.xlane.xlu0 %179
  %v181 = vadd.f32 %v94, %v95
  %182 = vadd.xlane.f32.xlu0 %v181
  %v183 = vpop.xlane.xlu0 %182
  %v184 = vadd.f32 %v96, %v97
  %185 = vadd.xlane.f32.xlu0 %v184
  %v186 = vpop.xlane.xlu0 %185
  %v187 = vadd.f32 %v98, %v99
  %188 = vadd.xlane.f32.xlu0 %v187
  %v189 = vpop.xlane.xlu0 %188
  %v190 = vadd.f32 %v100, %v101
  %191 = vadd.xlane.f32.xlu0 %v190
  %v192 = vpop.xlane.xlu0 %191
  %v193 = vadd.f32 %v102, %v103
  %194 = vadd.xlane.f32.xlu0 %v193
  %v195 = vpop.xlane.xlu0 %194
  %v196 = vadd.f32 %v104, %v105
  %197 = vadd.xlane.f32.xlu0 %v196
  %v198 = vpop.xlane.xlu0 %197
  %v199 = vadd.f32 %v106, %v107
  %200 = vadd.xlane.f32.xlu0 %v199
  %v201 = vpop.xlane.xlu0 %200
  %v202 = vadd.f32 %v108, %v109
  %203 = vadd.xlane.f32.xlu0 %v202
  %v204 = vpop.xlane.xlu0 %203
  %v205 = vadd.f32 %v110, %v111
  %206 = vadd.xlane.f32.xlu0 %v205
  %v207 = vpop.xlane.xlu0 %206
  %v208 = vadd.f32 %v112, %v113
  %209 = vadd.xlane.f32.xlu0 %v208
  %v210 = vpop.xlane.xlu0 %209
  %v211 = vadd.f32 %v114, %v115
  %212 = vadd.xlane.f32.xlu0 %v211
  %v213 = vpop.xlane.xlu0 %212
  %v214 = vrcp.pop 256.0
  %v215 = vmul.f32 %v120, %v214
  %v216 = vmul.f32 %v123, %v214
  %v217 = vmul.f32 %v126, %v214
  %v218 = vmul.f32 %v129, %v214
  %v219 = vmul.f32 %v132, %v214
  %v220 = vmul.f32 %v135, %v214
  %v221 = vmul.f32 %v138, %v214
  %v222 = vmul.f32 %v141, %v214
  %v223 = vmul.f32 %v144, %v214
  %v224 = vmul.f32 %v147, %v214
  %v225 = vmul.f32 %v150, %v214
  %v226 = vmul.f32 %v153, %v214
  %v227 = vmul.f32 %v156, %v214
  %v228 = vmul.f32 %v159, %v214
  %v229 = vmul.f32 %v162, %v214
  %v230 = vmul.f32 %v165, %v214
  %v231 = vmul.f32 %v168, %v214
  %v232 = vmul.f32 %v171, %v214
  %v233 = vmul.f32 %v174, %v214
  %v234 = vmul.f32 %v177, %v214
  %v235 = vmul.f32 %v180, %v214
  %v236 = vmul.f32 %v183, %v214
  %v237 = vmul.f32 %v186, %v214
  %v238 = vmul.f32 %v189, %v214
  %v239 = vmul.f32 %v192, %v214
  %v240 = vmul.f32 %v195, %v214
  %v241 = vmul.f32 %v198, %v214
  %v242 = vmul.f32 %v201, %v214
  %v243 = vmul.f32 %v204, %v214
  %v244 = vmul.f32 %v207, %v214
  %v245 = vmul.f32 %v210, %v214
  %v246 = vmul.f32 %v213, %v214
  %v247 = vsub.f32 %v52, %v215
  %v248 = vsub.f32 %v53, %v215
  %v249 = vsub.f32 %v54, %v216
  %v250 = vsub.f32 %v55, %v216
  %v251 = vsub.f32 %v56, %v217
  %v252 = vsub.f32 %v57, %v217
  %v253 = vsub.f32 %v58, %v218
  %v254 = vsub.f32 %v59, %v218
  %v255 = vsub.f32 %v60, %v219
  %v256 = vsub.f32 %v61, %v219
  %v257 = vsub.f32 %v62, %v220
  %v258 = vsub.f32 %v63, %v220
  %v259 = vsub.f32 %v64, %v221
  %v260 = vsub.f32 %v65, %v221
  %v261 = vsub.f32 %v66, %v222
  %v262 = vsub.f32 %v67, %v222
  %v263 = vsub.f32 %v68, %v223
  %v264 = vsub.f32 %v69, %v223
  %v265 = vsub.f32 %v70, %v224
  %v266 = vsub.f32 %v71, %v224
  %v267 = vsub.f32 %v72, %v225
  %v268 = vsub.f32 %v73, %v225
  %v269 = vsub.f32 %v74, %v226
  %v270 = vsub.f32 %v75, %v226
  %v271 = vsub.f32 %v76, %v227
  %v272 = vsub.f32 %v77, %v227
  %v273 = vsub.f32 %v78, %v228
  %v274 = vsub.f32 %v79, %v228
  %v275 = vsub.f32 %v80, %v229
  %v276 = vsub.f32 %v81, %v229
  %v277 = vsub.f32 %v82, %v230
  %v278 = vsub.f32 %v83, %v230
  %v279 = vsub.f32 %v84, %v231
  %v280 = vsub.f32 %v85, %v231
  %v281 = vsub.f32 %v86, %v232
  %v282 = vsub.f32 %v87, %v232
  %v283 = vsub.f32 %v88, %v233
  %v284 = vsub.f32 %v89, %v233
  %v285 = vsub.f32 %v90, %v234
  %v286 = vsub.f32 %v91, %v234
  %v287 = vsub.f32 %v92, %v235
  %v288 = vsub.f32 %v93, %v235
  %v289 = vsub.f32 %v94, %v236
  %v290 = vsub.f32 %v95, %v236
  %v291 = vsub.f32 %v96, %v237
  %v292 = vsub.f32 %v97, %v237
  %v293 = vsub.f32 %v98, %v238
  %v294 = vsub.f32 %v99, %v238
  %v295 = vsub.f32 %v100, %v239
  %v296 = vsub.f32 %v101, %v239
  %v297 = vsub.f32 %v102, %v240
  %v298 = vsub.f32 %v103, %v240
  %v299 = vsub.f32 %v104, %v241
  %v300 = vsub.f32 %v105, %v241
  %v301 = vsub.f32 %v106, %v242
  %v302 = vsub.f32 %v107, %v242
  %v303 = vsub.f32 %v108, %v243
  %v304 = vsub.f32 %v109, %v243
  %v305 = vsub.f32 %v110, %v244
  %v306 = vsub.f32 %v111, %v244
  %v307 = vsub.f32 %v112, %v245
  %v308 = vsub.f32 %v113, %v245
  %v309 = vsub.f32 %v114, %v246
  %v310 = vsub.f32 %v115, %v246
  %v311 = vmul.f32 %v247, %v247
  %v312 = vmul.f32 %v248, %v248
  %v313 = vmul.f32 %v249, %v249
  %v314 = vmul.f32 %v250, %v250
  %v315 = vmul.f32 %v251, %v251
  %v316 = vmul.f32 %v252, %v252
  %v317 = vmul.f32 %v253, %v253
  %v318 = vmul.f32 %v254, %v254
  %v319 = vmul.f32 %v255, %v255
  %v320 = vmul.f32 %v256, %v256
  %v321 = vmul.f32 %v257, %v257
  %v322 = vmul.f32 %v258, %v258
  %v323 = vmul.f32 %v259, %v259
  %v324 = vmul.f32 %v260, %v260
  %v325 = vmul.f32 %v261, %v261
  %v326 = vmul.f32 %v262, %v262
  %v327 = vmul.f32 %v263, %v263
  %v328 = vmul.f32 %v264, %v264
  %v329 = vmul.f32 %v265, %v265
  %v330 = vmul.f32 %v266, %v266
  %v331 = vmul.f32 %v267, %v267
  %v332 = vmul.f32 %v268, %v268
  %v333 = vmul.f32 %v269, %v269
  %v334 = vmul.f32 %v270, %v270
  %v335 = vmul.f32 %v271, %v271
  %v336 = vmul.f32 %v272, %v272
  %v337 = vmul.f32 %v273, %v273
  %v338 = vmul.f32 %v274, %v274
  %v339 = vmul.f32 %v275, %v275
  %v340 = vmul.f32 %v276, %v276
  %v341 = vmul.f32 %v277, %v277
  %v342 = vmul.f32 %v278, %v278
  %v343 = vmul.f32 %v279, %v279
  %v344 = vmul.f32 %v280, %v280
  %v345 = vmul.f32 %v281, %v281
  %v346 = vmul.f32 %v282, %v282
  %v347 = vmul.f32 %v283, %v283
  %v348 = vmul.f32 %v284, %v284
  %v349 = vmul.f32 %v285, %v285
  %v350 = vmul.f32 %v286, %v286
  %v351 = vmul.f32 %v287, %v287
  %v352 = vmul.f32 %v288, %v288
  %v353 = vmul.f32 %v289, %v289
  %v354 = vmul.f32 %v290, %v290
  %v355 = vmul.f32 %v291, %v291
  %v356 = vmul.f32 %v292, %v292
  %v357 = vmul.f32 %v293, %v293
  %v358 = vmul.f32 %v294, %v294
  %v359 = vmul.f32 %v295, %v295
  %v360 = vmul.f32 %v296, %v296
  %v361 = vmul.f32 %v297, %v297
  %v362 = vmul.f32 %v298, %v298
  %v363 = vmul.f32 %v299, %v299
  %v364 = vmul.f32 %v300, %v300
  %v365 = vmul.f32 %v301, %v301
  %v366 = vmul.f32 %v302, %v302
  %v367 = vmul.f32 %v303, %v303
  %v368 = vmul.f32 %v304, %v304
  %v369 = vmul.f32 %v305, %v305
  %v370 = vmul.f32 %v306, %v306
  %v371 = vmul.f32 %v307, %v307
  %v372 = vmul.f32 %v308, %v308
  %v373 = vmul.f32 %v309, %v309
  %v374 = vmul.f32 %v310, %v310
  %v375 = vadd.f32 %v311, %v312
  %376 = vadd.xlane.f32.xlu0 %v375
  %v377 = vpop.xlane.xlu0 %376
  %v378 = vadd.f32 %v313, %v314
  %379 = vadd.xlane.f32.xlu0 %v378
  %v380 = vpop.xlane.xlu0 %379
  %v381 = vadd.f32 %v315, %v316
  %382 = vadd.xlane.f32.xlu0 %v381
  %v383 = vpop.xlane.xlu0 %382
  %v384 = vadd.f32 %v317, %v318
  %385 = vadd.xlane.f32.xlu0 %v384
  %v386 = vpop.xlane.xlu0 %385
  %v387 = vadd.f32 %v319, %v320
  %388 = vadd.xlane.f32.xlu0 %v387
  %v389 = vpop.xlane.xlu0 %388
  %v390 = vadd.f32 %v321, %v322
  %391 = vadd.xlane.f32.xlu0 %v390
  %v392 = vpop.xlane.xlu0 %391
  %v393 = vadd.f32 %v323, %v324
  %394 = vadd.xlane.f32.xlu0 %v393
  %v395 = vpop.xlane.xlu0 %394
  %v396 = vadd.f32 %v325, %v326
  %397 = vadd.xlane.f32.xlu0 %v396
  %v398 = vpop.xlane.xlu0 %397
  %v399 = vadd.f32 %v327, %v328
  %400 = vadd.xlane.f32.xlu0 %v399
  %v401 = vpop.xlane.xlu0 %400
  %v402 = vadd.f32 %v329, %v330
  %403 = vadd.xlane.f32.xlu0 %v402
  %v404 = vpop.xlane.xlu0 %403
  %v405 = vadd.f32 %v331, %v332
  %406 = vadd.xlane.f32.xlu0 %v405
  %v407 = vpop.xlane.xlu0 %406
  %v408 = vadd.f32 %v333, %v334
  %409 = vadd.xlane.f32.xlu0 %v408
  %v410 = vpop.xlane.xlu0 %409
  %v411 = vadd.f32 %v335, %v336
  %412 = vadd.xlane.f32.xlu0 %v411
  %v413 = vpop.xlane.xlu0 %412
  %v414 = vadd.f32 %v337, %v338
  %415 = vadd.xlane.f32.xlu0 %v414
  %v416 = vpop.xlane.xlu0 %415
  %v417 = vadd.f32 %v339, %v340
  %418 = vadd.xlane.f32.xlu0 %v417
  %v419 = vpop.xlane.xlu0 %418
  %v420 = vadd.f32 %v341, %v342
  %421 = vadd.xlane.f32.xlu0 %v420
  %v422 = vpop.xlane.xlu0 %421
  %v423 = vadd.f32 %v343, %v344
  %424 = vadd.xlane.f32.xlu0 %v423
  %v425 = vpop.xlane.xlu0 %424
  %v426 = vadd.f32 %v345, %v346
  %427 = vadd.xlane.f32.xlu0 %v426
  %v428 = vpop.xlane.xlu0 %427
  %v429 = vadd.f32 %v347, %v348
  %430 = vadd.xlane.f32.xlu0 %v429
  %v431 = vpop.xlane.xlu0 %430
  %v432 = vadd.f32 %v349, %v350
  %433 = vadd.xlane.f32.xlu0 %v432
  %v434 = vpop.xlane.xlu0 %433
  %v435 = vadd.f32 %v351, %v352
  %436 = vadd.xlane.f32.xlu0 %v435
  %v437 = vpop.xlane.xlu0 %436
  %v438 = vadd.f32 %v353, %v354
  %439 = vadd.xlane.f32.xlu0 %v438
  %v440 = vpop.xlane.xlu0 %439
  %v441 = vadd.f32 %v355, %v356
  %442 = vadd.xlane.f32.xlu0 %v441
  %v443 = vpop.xlane.xlu0 %442
  %v444 = vadd.f32 %v357, %v358
  %445 = vadd.xlane.f32.xlu0 %v444
  %v446 = vpop.xlane.xlu0 %445
  %v447 = vadd.f32 %v359, %v360
  %448 = vadd.xlane.f32.xlu0 %v447
  %v449 = vpop.xlane.xlu0 %448
  %v450 = vadd.f32 %v361, %v362
  %451 = vadd.xlane.f32.xlu0 %v450
  %v452 = vpop.xlane.xlu0 %451
  %v453 = vadd.f32 %v363, %v364
  %454 = vadd.xlane.f32.xlu0 %v453
  %v455 = vpop.xlane.xlu0 %454
  %v456 = vadd.f32 %v365, %v366
  %457 = vadd.xlane.f32.xlu0 %v456
  %v458 = vpop.xlane.xlu0 %457
  %v459 = vadd.f32 %v367, %v368
  %460 = vadd.xlane.f32.xlu0 %v459
  %v461 = vpop.xlane.xlu0 %460
  %v462 = vadd.f32 %v369, %v370
  %463 = vadd.xlane.f32.xlu0 %v462
  %v464 = vpop.xlane.xlu0 %463
  %v465 = vadd.f32 %v371, %v372
  %466 = vadd.xlane.f32.xlu0 %v465
  %v467 = vpop.xlane.xlu0 %466
  %v468 = vadd.f32 %v373, %v374
  %469 = vadd.xlane.f32.xlu0 %v468
  %v470 = vpop.xlane.xlu0 %469
  %v471 = vmul.f32 %v377, %v214
  %v472 = vmul.f32 %v380, %v214
  %v473 = vmul.f32 %v383, %v214
  %v474 = vmul.f32 %v386, %v214
  %v475 = vmul.f32 %v389, %v214
  %v476 = vmul.f32 %v392, %v214
  %v477 = vmul.f32 %v395, %v214
  %v478 = vmul.f32 %v398, %v214
  %v479 = vmul.f32 %v401, %v214
  %v480 = vmul.f32 %v404, %v214
  %v481 = vmul.f32 %v407, %v214
  %v482 = vmul.f32 %v410, %v214
  %v483 = vmul.f32 %v413, %v214
  %v484 = vmul.f32 %v416, %v214
  %v485 = vmul.f32 %v419, %v214
  %v486 = vmul.f32 %v422, %v214
  %v487 = vmul.f32 %v425, %v214
  %v488 = vmul.f32 %v428, %v214
  %v489 = vmul.f32 %v431, %v214
  %v490 = vmul.f32 %v434, %v214
  %v491 = vmul.f32 %v437, %v214
  %v492 = vmul.f32 %v440, %v214
  %v493 = vmul.f32 %v443, %v214
  %v494 = vmul.f32 %v446, %v214
  %v495 = vmul.f32 %v449, %v214
  %v496 = vmul.f32 %v452, %v214
  %v497 = vmul.f32 %v455, %v214
  %v498 = vmul.f32 %v458, %v214
  %v499 = vmul.f32 %v461, %v214
  %v500 = vmul.f32 %v464, %v214
  %v501 = vmul.f32 %v467, %v214
  %v502 = vmul.f32 %v470, %v214
  %v503 = vadd.f32 %v471, 1e-05
  %v504 = vadd.f32 %v472, 1e-05
  %v505 = vadd.f32 %v473, 1e-05
  %v506 = vadd.f32 %v474, 1e-05
  %v507 = vadd.f32 %v475, 1e-05
  %v508 = vadd.f32 %v476, 1e-05
  %v509 = vadd.f32 %v477, 1e-05
  %v510 = vadd.f32 %v478, 1e-05
  %v511 = vadd.f32 %v479, 1e-05
  %v512 = vadd.f32 %v480, 1e-05
  %v513 = vadd.f32 %v481, 1e-05
  %v514 = vadd.f32 %v482, 1e-05
  %v515 = vadd.f32 %v483, 1e-05
  %v516 = vadd.f32 %v484, 1e-05
  %v517 = vadd.f32 %v485, 1e-05
  %v518 = vadd.f32 %v486, 1e-05
  %v519 = vadd.f32 %v487, 1e-05
  %v520 = vadd.f32 %v488, 1e-05
  %v521 = vadd.f32 %v489, 1e-05
  %v522 = vadd.f32 %v490, 1e-05
  %v523 = vadd.f32 %v491, 1e-05
  %v524 = vadd.f32 %v492, 1e-05
  %v525 = vadd.f32 %v493, 1e-05
  %v526 = vadd.f32 %v494, 1e-05
  %v527 = vadd.f32 %v495, 1e-05
  %v528 = vadd.f32 %v496, 1e-05
  %v529 = vadd.f32 %v497, 1e-05
  %v530 = vadd.f32 %v498, 1e-05
  %v531 = vadd.f32 %v499, 1e-05
  %v532 = vadd.f32 %v500, 1e-05
  %v533 = vadd.f32 %v501, 1e-05
  %v534 = vadd.f32 %v502, 1e-05
  %v535 = vrsqrt.pop %v503
  %v536 = vrsqrt.pop %v504
  %v537 = vrsqrt.pop %v505
  %v538 = vrsqrt.pop %v506
  %v539 = vrsqrt.pop %v507
  %v540 = vrsqrt.pop %v508
  %v541 = vrsqrt.pop %v509
  %v542 = vrsqrt.pop %v510
  %v543 = vrsqrt.pop %v511
  %v544 = vrsqrt.pop %v512
  %v545 = vrsqrt.pop %v513
  %v546 = vrsqrt.pop %v514
  %v547 = vrsqrt.pop %v515
  %v548 = vrsqrt.pop %v516
  %v549 = vrsqrt.pop %v517
  %v550 = vrsqrt.pop %v518
  %v551 = vrsqrt.pop %v519
  %v552 = vrsqrt.pop %v520
  %v553 = vrsqrt.pop %v521
  %v554 = vrsqrt.pop %v522
  %v555 = vrsqrt.pop %v523
  %v556 = vrsqrt.pop %v524
  %v557 = vrsqrt.pop %v525
  %v558 = vrsqrt.pop %v526
  %v559 = vrsqrt.pop %v527
  %v560 = vrsqrt.pop %v528
  %v561 = vrsqrt.pop %v529
  %v562 = vrsqrt.pop %v530
  %v563 = vrsqrt.pop %v531
  %v564 = vrsqrt.pop %v532
  %v565 = vrsqrt.pop %v533
  %v566 = vrsqrt.pop %v534
  %v567 = vmul.f32 %v247, %v535
  %v568 = vmul.f32 %v248, %v535
  %v569 = vmul.f32 %v249, %v536
  %v570 = vmul.f32 %v250, %v536
  %v571 = vmul.f32 %v251, %v537
  %v572 = vmul.f32 %v252, %v537
  %v573 = vmul.f32 %v253, %v538
  %v574 = vmul.f32 %v254, %v538
  %v575 = vmul.f32 %v255, %v539
  %v576 = vmul.f32 %v256, %v539
  %v577 = vmul.f32 %v257, %v540
  %v578 = vmul.f32 %v258, %v540
  %v579 = vmul.f32 %v259, %v541
  %v580 = vmul.f32 %v260, %v541
  %v581 = vmul.f32 %v261, %v542
  %v582 = vmul.f32 %v262, %v542
  %v583 = vmul.f32 %v263, %v543
  %v584 = vmul.f32 %v264, %v543
  %v585 = vmul.f32 %v265, %v544
  %v586 = vmul.f32 %v266, %v544
  %v587 = vmul.f32 %v267, %v545
  %v588 = vmul.f32 %v268, %v545
  %v589 = vmul.f32 %v269, %v546
  %v590 = vmul.f32 %v270, %v546
  %v591 = vmul.f32 %v271, %v547
  %v592 = vmul.f32 %v272, %v547
  %v593 = vmul.f32 %v273, %v548
  %v594 = vmul.f32 %v274, %v548
  %v595 = vmul.f32 %v275, %v549
  %v596 = vmul.f32 %v276, %v549
  %v597 = vmul.f32 %v277, %v550
  %v598 = vmul.f32 %v278, %v550
  %v599 = vmul.f32 %v279, %v551
  %v600 = vmul.f32 %v280, %v551
  %v601 = vmul.f32 %v281, %v552
  %v602 = vmul.f32 %v282, %v552
  %v603 = vmul.f32 %v283, %v553
  %v604 = vmul.f32 %v284, %v553
  %v605 = vmul.f32 %v285, %v554
  %v606 = vmul.f32 %v286, %v554
  %v607 = vmul.f32 %v287, %v555
  %v608 = vmul.f32 %v288, %v555
  %v609 = vmul.f32 %v289, %v556
  %v610 = vmul.f32 %v290, %v556
  %v611 = vmul.f32 %v291, %v557
  %v612 = vmul.f32 %v292, %v557
  %v613 = vmul.f32 %v293, %v558
  %v614 = vmul.f32 %v294, %v558
  %v615 = vmul.f32 %v295, %v559
  %v616 = vmul.f32 %v296, %v559
  %v617 = vmul.f32 %v297, %v560
  %v618 = vmul.f32 %v298, %v560
  %v619 = vmul.f32 %v299, %v561
  %v620 = vmul.f32 %v300, %v561
  %v621 = vmul.f32 %v301, %v562
  %v622 = vmul.f32 %v302, %v562
  %v623 = vmul.f32 %v303, %v563
  %v624 = vmul.f32 %v304, %v563
  %v625 = vmul.f32 %v305, %v564
  %v626 = vmul.f32 %v306, %v564
  %v627 = vmul.f32 %v307, %v565
  %v628 = vmul.f32 %v308, %v565
  %v629 = vmul.f32 %v309, %v566
  %v630 = vmul.f32 %v310, %v566
  %v632 = vlaneseq
  %v633 = vshrl.u32 %v632, 7
  %v634 = vsub.s32 0, %v633
  %v635 = vrot.slane %v116, %v634
  %v636 = vlaneseq
  %v637 = vshrl.u32 %v636, 7
  %v638 = vsub.s32 1, %v637
  %v639 = vrot.slane %v116, %v638
  %v642 = vmul.f32 %v567, %v635
  %v643 = vmul.f32 %v568, %v639
  %v644 = vmul.f32 %v569, %v635
  %v645 = vmul.f32 %v570, %v639
  %v646 = vmul.f32 %v571, %v635
  %v647 = vmul.f32 %v572, %v639
  %v648 = vmul.f32 %v573, %v635
  %v649 = vmul.f32 %v574, %v639
  %v650 = vmul.f32 %v575, %v635
  %v651 = vmul.f32 %v576, %v639
  %v652 = vmul.f32 %v577, %v635
  %v653 = vmul.f32 %v578, %v639
  %v654 = vmul.f32 %v579, %v635
  %v655 = vmul.f32 %v580, %v639
  %v656 = vmul.f32 %v581, %v635
  %v657 = vmul.f32 %v582, %v639
  %v658 = vmul.f32 %v583, %v635
  %v659 = vmul.f32 %v584, %v639
  %v660 = vmul.f32 %v585, %v635
  %v661 = vmul.f32 %v586, %v639
  %v662 = vmul.f32 %v587, %v635
  %v663 = vmul.f32 %v588, %v639
  %v664 = vmul.f32 %v589, %v635
  %v665 = vmul.f32 %v590, %v639
  %v666 = vmul.f32 %v591, %v635
  %v667 = vmul.f32 %v592, %v639
  %v668 = vmul.f32 %v593, %v635
  %v669 = vmul.f32 %v594, %v639
  %v670 = vmul.f32 %v595, %v635
  %v671 = vmul.f32 %v596, %v639
  %v672 = vmul.f32 %v597, %v635
  %v673 = vmul.f32 %v598, %v639
  %v674 = vmul.f32 %v599, %v635
  %v675 = vmul.f32 %v600, %v639
  %v676 = vmul.f32 %v601, %v635
  %v677 = vmul.f32 %v602, %v639
  %v678 = vmul.f32 %v603, %v635
  %v679 = vmul.f32 %v604, %v639
  %v680 = vmul.f32 %v605, %v635
  %v681 = vmul.f32 %v606, %v639
  %v682 = vmul.f32 %v607, %v635
  %v683 = vmul.f32 %v608, %v639
  %v684 = vmul.f32 %v609, %v635
  %v685 = vmul.f32 %v610, %v639
  %v686 = vmul.f32 %v611, %v635
  %v687 = vmul.f32 %v612, %v639
  %v688 = vmul.f32 %v613, %v635
  %v689 = vmul.f32 %v614, %v639
  %v690 = vmul.f32 %v615, %v635
  %v691 = vmul.f32 %v616, %v639
  %v692 = vmul.f32 %v617, %v635
  %v693 = vmul.f32 %v618, %v639
  %v694 = vmul.f32 %v619, %v635
  %v695 = vmul.f32 %v620, %v639
  %v696 = vmul.f32 %v621, %v635
  %v697 = vmul.f32 %v622, %v639
  %v698 = vmul.f32 %v623, %v635
  %v699 = vmul.f32 %v624, %v639
  %v700 = vmul.f32 %v625, %v635
  %v701 = vmul.f32 %v626, %v639
  %v702 = vmul.f32 %v627, %v635
  %v703 = vmul.f32 %v628, %v639
  %v704 = vmul.f32 %v629, %v635
  %v705 = vmul.f32 %v630, %v639
  %v707 = vlaneseq
  %v708 = vshrl.u32 %v707, 7
  %v709 = vsub.s32 0, %v708
  %v710 = vrot.slane %v117, %v709
  %v711 = vlaneseq
  %v712 = vshrl.u32 %v711, 7
  %v713 = vsub.s32 1, %v712
  %v714 = vrot.slane %v117, %v713
  %v717 = vadd.f32 %v642, %v710
  %v718 = vadd.f32 %v643, %v714
  %v719 = vadd.f32 %v644, %v710
  %v720 = vadd.f32 %v645, %v714
  %v721 = vadd.f32 %v646, %v710
  %v722 = vadd.f32 %v647, %v714
  %v723 = vadd.f32 %v648, %v710
  %v724 = vadd.f32 %v649, %v714
  %v725 = vadd.f32 %v650, %v710
  %v726 = vadd.f32 %v651, %v714
  %v727 = vadd.f32 %v652, %v710
  %v728 = vadd.f32 %v653, %v714
  %v729 = vadd.f32 %v654, %v710
  %v730 = vadd.f32 %v655, %v714
  %v731 = vadd.f32 %v656, %v710
  %v732 = vadd.f32 %v657, %v714
  %v733 = vadd.f32 %v658, %v710
  %v734 = vadd.f32 %v659, %v714
  %v735 = vadd.f32 %v660, %v710
  %v736 = vadd.f32 %v661, %v714
  %v737 = vadd.f32 %v662, %v710
  %v738 = vadd.f32 %v663, %v714
  %v739 = vadd.f32 %v664, %v710
  %v740 = vadd.f32 %v665, %v714
  %v741 = vadd.f32 %v666, %v710
  %v742 = vadd.f32 %v667, %v714
  %v743 = vadd.f32 %v668, %v710
  %v744 = vadd.f32 %v669, %v714
  %v745 = vadd.f32 %v670, %v710
  %v746 = vadd.f32 %v671, %v714
  %v747 = vadd.f32 %v672, %v710
  %v748 = vadd.f32 %v673, %v714
  %v749 = vadd.f32 %v674, %v710
  %v750 = vadd.f32 %v675, %v714
  %v751 = vadd.f32 %v676, %v710
  %v752 = vadd.f32 %v677, %v714
  %v753 = vadd.f32 %v678, %v710
  %v754 = vadd.f32 %v679, %v714
  %v755 = vadd.f32 %v680, %v710
  %v756 = vadd.f32 %v681, %v714
  %v757 = vadd.f32 %v682, %v710
  %v758 = vadd.f32 %v683, %v714
  %v759 = vadd.f32 %v684, %v710
  %v760 = vadd.f32 %v685, %v714
  %v761 = vadd.f32 %v686, %v710
  %v762 = vadd.f32 %v687, %v714
  %v763 = vadd.f32 %v688, %v710
  %v764 = vadd.f32 %v689, %v714
  %v765 = vadd.f32 %v690, %v710
  %v766 = vadd.f32 %v691, %v714
  %v767 = vadd.f32 %v692, %v710
  %v768 = vadd.f32 %v693, %v714
  %v769 = vadd.f32 %v694, %v710
  %v770 = vadd.f32 %v695, %v714
  %v771 = vadd.f32 %v696, %v710
  %v772 = vadd.f32 %v697, %v714
  %v773 = vadd.f32 %v698, %v710
  %v774 = vadd.f32 %v699, %v714
  %v775 = vadd.f32 %v700, %v710
  %v776 = vadd.f32 %v701, %v714
  %v777 = vadd.f32 %v702, %v710
  %v778 = vadd.f32 %v703, %v714
  %v779 = vadd.f32 %v704, %v710
  %v780 = vadd.f32 %v705, %v714
  %v781 = vpack.c.bf16 %v719, %v717
  %v782 = vpack.c.bf16 %v720, %v718
  %v783 = vpack.c.bf16 %v723, %v721
  %v784 = vpack.c.bf16 %v724, %v722
  %v785 = vpack.c.bf16 %v727, %v725
  %v786 = vpack.c.bf16 %v728, %v726
  %v787 = vpack.c.bf16 %v731, %v729
  %v788 = vpack.c.bf16 %v732, %v730
  %v789 = vpack.c.bf16 %v735, %v733
  %v790 = vpack.c.bf16 %v736, %v734
  %v791 = vpack.c.bf16 %v739, %v737
  %v792 = vpack.c.bf16 %v740, %v738
  %v793 = vpack.c.bf16 %v743, %v741
  %v794 = vpack.c.bf16 %v744, %v742
  %v795 = vpack.c.bf16 %v747, %v745
  %v796 = vpack.c.bf16 %v748, %v746
  %v797 = vpack.c.bf16 %v751, %v749
  %v798 = vpack.c.bf16 %v752, %v750
  %v799 = vpack.c.bf16 %v755, %v753
  %v800 = vpack.c.bf16 %v756, %v754
  %v801 = vpack.c.bf16 %v759, %v757
  %v802 = vpack.c.bf16 %v760, %v758
  %v803 = vpack.c.bf16 %v763, %v761
  %v804 = vpack.c.bf16 %v764, %v762
  %v805 = vpack.c.bf16 %v767, %v765
  %v806 = vpack.c.bf16 %v768, %v766
  %v807 = vpack.c.bf16 %v771, %v769
  %v808 = vpack.c.bf16 %v772, %v770
  %v809 = vpack.c.bf16 %v775, %v773
  %v810 = vpack.c.bf16 %v776, %v774
  %v811 = vpack.c.bf16 %v779, %v777
  %v812 = vpack.c.bf16 %v780, %v778
  %v813 = vld [vmem:[%s3] sm:$0xff]
  %v814 = vld [vmem:[%s3 + $0x8] sm:$0xff]
  %v815 = vld [vmem:[%s3 + $0x10] sm:$0xff]
  %v816 = vld [vmem:[%s3 + $0x18] sm:$0xff]
  %v817 = vld [vmem:[%s3 + $0x20] sm:$0xff]
  %v818 = vld [vmem:[%s3 + $0x28] sm:$0xff]
  %v819 = vld [vmem:[%s3 + $0x30] sm:$0xff]
  %v820 = vld [vmem:[%s3 + $0x38] sm:$0xff]
  %v821 = vld [vmem:[%s3 + $0x40] sm:$0xff]
  %v822 = vld [vmem:[%s3 + $0x48] sm:$0xff]
  %v823 = vld [vmem:[%s3 + $0x50] sm:$0xff]
  %v824 = vld [vmem:[%s3 + $0x58] sm:$0xff]
  %v825 = vld [vmem:[%s3 + $0x60] sm:$0xff]
  %v826 = vld [vmem:[%s3 + $0x68] sm:$0xff]
  %v827 = vld [vmem:[%s3 + $0x70] sm:$0xff]
  %v828 = vld [vmem:[%s3 + $0x78] sm:$0xff]
  %v829 = vld [vmem:[%s3 + $0x80] sm:$0xff]
  %v830 = vld [vmem:[%s3 + $0x88] sm:$0xff]
  %v831 = vld [vmem:[%s3 + $0x90] sm:$0xff]
  %v832 = vld [vmem:[%s3 + $0x98] sm:$0xff]
  %v833 = vld [vmem:[%s3 + $0xa0] sm:$0xff]
  %v834 = vld [vmem:[%s3 + $0xa8] sm:$0xff]
  %v835 = vld [vmem:[%s3 + $0xb0] sm:$0xff]
  %v836 = vld [vmem:[%s3 + $0xb8] sm:$0xff]
  %v837 = vld [vmem:[%s3 + $0xc0] sm:$0xff]
  %v838 = vld [vmem:[%s3 + $0xc8] sm:$0xff]
  %v839 = vld [vmem:[%s3 + $0xd0] sm:$0xff]
  %v840 = vld [vmem:[%s3 + $0xd8] sm:$0xff]
  %v841 = vld [vmem:[%s3 + $0xe0] sm:$0xff]
  %v842 = vld [vmem:[%s3 + $0xe8] sm:$0xff]
  %v843 = vld [vmem:[%s3 + $0xf0] sm:$0xff]
  %v844 = vld [vmem:[%s3 + $0xf8] sm:$0xff]
  %v845 = vld [vmem:[%s3 + $0x100] sm:$0xff]
  %v846 = vld [vmem:[%s3 + $0x108] sm:$0xff]
  %v847 = vld [vmem:[%s3 + $0x110] sm:$0xff]
  %v848 = vld [vmem:[%s3 + $0x118] sm:$0xff]
  %v849 = vld [vmem:[%s3 + $0x120] sm:$0xff]
  %v850 = vld [vmem:[%s3 + $0x128] sm:$0xff]
  %v851 = vld [vmem:[%s3 + $0x130] sm:$0xff]
  %v852 = vld [vmem:[%s3 + $0x138] sm:$0xff]
  %v853 = vld [vmem:[%s3 + $0x140] sm:$0xff]
  %v854 = vld [vmem:[%s3 + $0x148] sm:$0xff]
  %v855 = vld [vmem:[%s3 + $0x150] sm:$0xff]
  %v856 = vld [vmem:[%s3 + $0x158] sm:$0xff]
  %v857 = vld [vmem:[%s3 + $0x160] sm:$0xff]
  %v858 = vld [vmem:[%s3 + $0x168] sm:$0xff]
  %v859 = vld [vmem:[%s3 + $0x170] sm:$0xff]
  %v860 = vld [vmem:[%s3 + $0x178] sm:$0xff]
  %v861 = vld [vmem:[%s3 + $0x180] sm:$0xff]
  %v862 = vld [vmem:[%s3 + $0x188] sm:$0xff]
  %v863 = vld [vmem:[%s3 + $0x190] sm:$0xff]
  %v864 = vld [vmem:[%s3 + $0x198] sm:$0xff]
  %v865 = vld [vmem:[%s3 + $0x1a0] sm:$0xff]
  %v866 = vld [vmem:[%s3 + $0x1a8] sm:$0xff]
  %v867 = vld [vmem:[%s3 + $0x1b0] sm:$0xff]
  %v868 = vld [vmem:[%s3 + $0x1b8] sm:$0xff]
  %v869 = vld [vmem:[%s3 + $0x1c0] sm:$0xff]
  %v870 = vld [vmem:[%s3 + $0x1c8] sm:$0xff]
  %v871 = vld [vmem:[%s3 + $0x1d0] sm:$0xff]
  %v872 = vld [vmem:[%s3 + $0x1d8] sm:$0xff]
  %v873 = vld [vmem:[%s3 + $0x1e0] sm:$0xff]
  %v874 = vld [vmem:[%s3 + $0x1e8] sm:$0xff]
  %v875 = vld [vmem:[%s3 + $0x1f0] sm:$0xff]
  %v876 = vld [vmem:[%s3 + $0x1f8] sm:$0xff]
  %v877 = vld [vmem:[%s3 + $0x200] sm:$0xff]
  %v878 = vld [vmem:[%s3 + $0x208] sm:$0xff]
  %v879 = vld [vmem:[%s3 + $0x210] sm:$0xff]
  %v880 = vld [vmem:[%s3 + $0x218] sm:$0xff]
  %v881 = vld [vmem:[%s3 + $0x220] sm:$0xff]
  %v882 = vld [vmem:[%s3 + $0x228] sm:$0xff]
  %v883 = vld [vmem:[%s3 + $0x230] sm:$0xff]
  %v884 = vld [vmem:[%s3 + $0x238] sm:$0xff]
  %v885 = vld [vmem:[%s3 + $0x240] sm:$0xff]
  %v886 = vld [vmem:[%s3 + $0x248] sm:$0xff]
  %v887 = vld [vmem:[%s3 + $0x250] sm:$0xff]
  %v888 = vld [vmem:[%s3 + $0x258] sm:$0xff]
  %v889 = vld [vmem:[%s3 + $0x260] sm:$0xff]
  %v890 = vld [vmem:[%s3 + $0x268] sm:$0xff]
  %v891 = vld [vmem:[%s3 + $0x270] sm:$0xff]
  %v892 = vld [vmem:[%s3 + $0x278] sm:$0xff]
  %v893 = vld [vmem:[%s3 + $0x280] sm:$0xff]
  %v894 = vld [vmem:[%s3 + $0x288] sm:$0xff]
  %v895 = vld [vmem:[%s3 + $0x290] sm:$0xff]
  %v896 = vld [vmem:[%s3 + $0x298] sm:$0xff]
  %v897 = vld [vmem:[%s3 + $0x2a0] sm:$0xff]
  %v898 = vld [vmem:[%s3 + $0x2a8] sm:$0xff]
  %v899 = vld [vmem:[%s3 + $0x2b0] sm:$0xff]
  %v900 = vld [vmem:[%s3 + $0x2b8] sm:$0xff]
  %v901 = vld [vmem:[%s3 + $0x2c0] sm:$0xff]
  %v902 = vld [vmem:[%s3 + $0x2c8] sm:$0xff]
  %v903 = vld [vmem:[%s3 + $0x2d0] sm:$0xff]
  %v904 = vld [vmem:[%s3 + $0x2d8] sm:$0xff]
  %v905 = vld [vmem:[%s3 + $0x2e0] sm:$0xff]
  %v906 = vld [vmem:[%s3 + $0x2e8] sm:$0xff]
  %v907 = vld [vmem:[%s3 + $0x2f0] sm:$0xff]
  %v908 = vld [vmem:[%s3 + $0x2f8] sm:$0xff]
  %v909 = vld [vmem:[%s4] sm:$0x3f]
  %v911 = vlaneseq
  %v912 = vshrl.u32 %v911, 7
  %v913 = vsub.s32 0, %v912
  %v914 = vrot.slane %v909, %v913
  %v915 = vlaneseq
  %v916 = vshrl.u32 %v915, 7
  %v917 = vsub.s32 1, %v916
  %v918 = vrot.slane %v909, %v917
  %v919 = vlaneseq
  %v920 = vshrl.u32 %v919, 7
  %v921 = vsub.s32 2, %v920
  %v922 = vrot.slane %v909, %v921
  %v923 = vlaneseq
  %v924 = vshrl.u32 %v923, 7
  %v925 = vsub.s32 3, %v924
  %v926 = vrot.slane %v909, %v925
  %v927 = vlaneseq
  %v928 = vshrl.u32 %v927, 7
  %v929 = vsub.s32 4, %v928
  %v930 = vrot.slane %v909, %v929
  %v931 = vlaneseq
  %v932 = vshrl.u32 %v931, 7
  %v933 = vsub.s32 5, %v932
  %v934 = vrot.slane %v909, %v933
  %v1037 = vunpack.c.l.b16 %v813
  %v1038 = vunpack.c.h.b16 %v813
  %v1039 = vunpack.c.l.b16 %v814
  %v1040 = vunpack.c.h.b16 %v814
  %v1041 = vunpack.c.l.b16 %v815
  %v1042 = vunpack.c.h.b16 %v815
  %v1043 = vunpack.c.l.b16 %v816
  %v1044 = vunpack.c.h.b16 %v816
  %v1045 = vunpack.c.l.b16 %v817
  %v1046 = vunpack.c.h.b16 %v817
  %v1047 = vunpack.c.l.b16 %v818
  %v1048 = vunpack.c.h.b16 %v818
  %v1049 = vunpack.c.l.b16 %v819
  %v1050 = vunpack.c.h.b16 %v819
  %v1051 = vunpack.c.l.b16 %v820
  %v1052 = vunpack.c.h.b16 %v820
  %v1053 = vunpack.c.l.b16 %v821
  %v1054 = vunpack.c.h.b16 %v821
  %v1055 = vunpack.c.l.b16 %v822
  %v1056 = vunpack.c.h.b16 %v822
  %v1057 = vunpack.c.l.b16 %v823
  %v1058 = vunpack.c.h.b16 %v823
  %v1059 = vunpack.c.l.b16 %v824
  %v1060 = vunpack.c.h.b16 %v824
  %v1061 = vunpack.c.l.b16 %v825
  %v1062 = vunpack.c.h.b16 %v825
  %v1063 = vunpack.c.l.b16 %v826
  %v1064 = vunpack.c.h.b16 %v826
  %v1065 = vunpack.c.l.b16 %v827
  %v1066 = vunpack.c.h.b16 %v827
  %v1067 = vunpack.c.l.b16 %v828
  %v1068 = vunpack.c.h.b16 %v828
  %v1069 = vunpack.c.l.b16 %v829
  %v1070 = vunpack.c.h.b16 %v829
  %v1071 = vunpack.c.l.b16 %v830
  %v1072 = vunpack.c.h.b16 %v830
  %v1073 = vunpack.c.l.b16 %v831
  %v1074 = vunpack.c.h.b16 %v831
  %v1075 = vunpack.c.l.b16 %v832
  %v1076 = vunpack.c.h.b16 %v832
  %v1077 = vunpack.c.l.b16 %v833
  %v1078 = vunpack.c.h.b16 %v833
  %v1079 = vunpack.c.l.b16 %v834
  %v1080 = vunpack.c.h.b16 %v834
  %v1081 = vunpack.c.l.b16 %v835
  %v1082 = vunpack.c.h.b16 %v835
  %v1083 = vunpack.c.l.b16 %v836
  %v1084 = vunpack.c.h.b16 %v836
  %v1085 = vunpack.c.l.b16 %v837
  %v1086 = vunpack.c.h.b16 %v837
  %v1087 = vunpack.c.l.b16 %v838
  %v1088 = vunpack.c.h.b16 %v838
  %v1089 = vunpack.c.l.b16 %v839
  %v1090 = vunpack.c.h.b16 %v839
  %v1091 = vunpack.c.l.b16 %v840
  %v1092 = vunpack.c.h.b16 %v840
  %v1093 = vunpack.c.l.b16 %v841
  %v1094 = vunpack.c.h.b16 %v841
  %v1095 = vunpack.c.l.b16 %v842
  %v1096 = vunpack.c.h.b16 %v842
  %v1097 = vunpack.c.l.b16 %v843
  %v1098 = vunpack.c.h.b16 %v843
  %v1099 = vunpack.c.l.b16 %v844
  %v1100 = vunpack.c.h.b16 %v844
  %v1101 = vunpack.c.l.b16 %v845
  %v1102 = vunpack.c.h.b16 %v845
  %v1103 = vunpack.c.l.b16 %v846
  %v1104 = vunpack.c.h.b16 %v846
  %v1105 = vunpack.c.l.b16 %v847
  %v1106 = vunpack.c.h.b16 %v847
  %v1107 = vunpack.c.l.b16 %v848
  %v1108 = vunpack.c.h.b16 %v848
  %v1109 = vunpack.c.l.b16 %v849
  %v1110 = vunpack.c.h.b16 %v849
  %v1111 = vunpack.c.l.b16 %v850
  %v1112 = vunpack.c.h.b16 %v850
  %v1113 = vunpack.c.l.b16 %v851
  %v1114 = vunpack.c.h.b16 %v851
  %v1115 = vunpack.c.l.b16 %v852
  %v1116 = vunpack.c.h.b16 %v852
  %v1117 = vunpack.c.l.b16 %v853
  %v1118 = vunpack.c.h.b16 %v853
  %v1119 = vunpack.c.l.b16 %v854
  %v1120 = vunpack.c.h.b16 %v854
  %v1121 = vunpack.c.l.b16 %v855
  %v1122 = vunpack.c.h.b16 %v855
  %v1123 = vunpack.c.l.b16 %v856
  %v1124 = vunpack.c.h.b16 %v856
  %v1125 = vunpack.c.l.b16 %v857
  %v1126 = vunpack.c.h.b16 %v857
  %v1127 = vunpack.c.l.b16 %v858
  %v1128 = vunpack.c.h.b16 %v858
  %v1129 = vunpack.c.l.b16 %v859
  %v1130 = vunpack.c.h.b16 %v859
  %v1131 = vunpack.c.l.b16 %v860
  %v1132 = vunpack.c.h.b16 %v860
  %v1133 = vunpack.c.l.b16 %v861
  %v1134 = vunpack.c.h.b16 %v861
  %v1135 = vunpack.c.l.b16 %v862
  %v1136 = vunpack.c.h.b16 %v862
  %v1137 = vunpack.c.l.b16 %v863
  %v1138 = vunpack.c.h.b16 %v863
  %v1139 = vunpack.c.l.b16 %v864
  %v1140 = vunpack.c.h.b16 %v864
  %v1141 = vunpack.c.l.b16 %v865
  %v1142 = vunpack.c.h.b16 %v865
  %v1143 = vunpack.c.l.b16 %v866
  %v1144 = vunpack.c.h.b16 %v866
  %v1145 = vunpack.c.l.b16 %v867
  %v1146 = vunpack.c.h.b16 %v867
  %v1147 = vunpack.c.l.b16 %v868
  %v1148 = vunpack.c.h.b16 %v868
  %v1149 = vunpack.c.l.b16 %v869
  %v1150 = vunpack.c.h.b16 %v869
  %v1151 = vunpack.c.l.b16 %v870
  %v1152 = vunpack.c.h.b16 %v870
  %v1153 = vunpack.c.l.b16 %v871
  %v1154 = vunpack.c.h.b16 %v871
  %v1155 = vunpack.c.l.b16 %v872
  %v1156 = vunpack.c.h.b16 %v872
  %v1157 = vunpack.c.l.b16 %v873
  %v1158 = vunpack.c.h.b16 %v873
  %v1159 = vunpack.c.l.b16 %v874
  %v1160 = vunpack.c.h.b16 %v874
  %v1161 = vunpack.c.l.b16 %v875
  %v1162 = vunpack.c.h.b16 %v875
  %v1163 = vunpack.c.l.b16 %v876
  %v1164 = vunpack.c.h.b16 %v876
  %v1165 = vunpack.c.l.b16 %v877
  %v1166 = vunpack.c.h.b16 %v877
  %v1167 = vunpack.c.l.b16 %v878
  %v1168 = vunpack.c.h.b16 %v878
  %v1169 = vunpack.c.l.b16 %v879
  %v1170 = vunpack.c.h.b16 %v879
  %v1171 = vunpack.c.l.b16 %v880
  %v1172 = vunpack.c.h.b16 %v880
  %v1173 = vunpack.c.l.b16 %v881
  %v1174 = vunpack.c.h.b16 %v881
  %v1175 = vunpack.c.l.b16 %v882
  %v1176 = vunpack.c.h.b16 %v882
  %v1177 = vunpack.c.l.b16 %v883
  %v1178 = vunpack.c.h.b16 %v883
  %v1179 = vunpack.c.l.b16 %v884
  %v1180 = vunpack.c.h.b16 %v884
  %v1181 = vunpack.c.l.b16 %v885
  %v1182 = vunpack.c.h.b16 %v885
  %v1183 = vunpack.c.l.b16 %v886
  %v1184 = vunpack.c.h.b16 %v886
  %v1185 = vunpack.c.l.b16 %v887
  %v1186 = vunpack.c.h.b16 %v887
  %v1187 = vunpack.c.l.b16 %v888
  %v1188 = vunpack.c.h.b16 %v888
  %v1189 = vunpack.c.l.b16 %v889
  %v1190 = vunpack.c.h.b16 %v889
  %v1191 = vunpack.c.l.b16 %v890
  %v1192 = vunpack.c.h.b16 %v890
  %v1193 = vunpack.c.l.b16 %v891
  %v1194 = vunpack.c.h.b16 %v891
  %v1195 = vunpack.c.l.b16 %v892
  %v1196 = vunpack.c.h.b16 %v892
  %v1197 = vunpack.c.l.b16 %v893
  %v1198 = vunpack.c.h.b16 %v893
  %v1199 = vunpack.c.l.b16 %v894
  %v1200 = vunpack.c.h.b16 %v894
  %v1201 = vunpack.c.l.b16 %v895
  %v1202 = vunpack.c.h.b16 %v895
  %v1203 = vunpack.c.l.b16 %v896
  %v1204 = vunpack.c.h.b16 %v896
  %v1205 = vunpack.c.l.b16 %v897
  %v1206 = vunpack.c.h.b16 %v897
  %v1207 = vunpack.c.l.b16 %v898
  %v1208 = vunpack.c.h.b16 %v898
  %v1209 = vunpack.c.l.b16 %v899
  %v1210 = vunpack.c.h.b16 %v899
  %v1211 = vunpack.c.l.b16 %v900
  %v1212 = vunpack.c.h.b16 %v900
  %v1213 = vunpack.c.l.b16 %v901
  %v1214 = vunpack.c.h.b16 %v901
  %v1215 = vunpack.c.l.b16 %v902
  %v1216 = vunpack.c.h.b16 %v902
  %v1217 = vunpack.c.l.b16 %v903
  %v1218 = vunpack.c.h.b16 %v903
  %v1219 = vunpack.c.l.b16 %v904
  %v1220 = vunpack.c.h.b16 %v904
  %v1221 = vunpack.c.l.b16 %v905
  %v1222 = vunpack.c.h.b16 %v905
  %v1223 = vunpack.c.l.b16 %v906
  %v1224 = vunpack.c.h.b16 %v906
  %v1225 = vunpack.c.l.b16 %v907
  %v1226 = vunpack.c.h.b16 %v907
  %v1227 = vunpack.c.l.b16 %v908
  %v1228 = vunpack.c.h.b16 %v908
  %v1229 = vpack.c.b16 %v1043, %v1037
  %v1230 = vpack.c.b16 %v1044, %v1038
  %v1231 = vpack.c.b16 %v1045, %v1039
  %v1232 = vpack.c.b16 %v1046, %v1040
  %v1233 = vpack.c.b16 %v1047, %v1041
  %v1234 = vpack.c.b16 %v1048, %v1042
  %v1235 = vpack.c.b16 %v1055, %v1049
  %v1236 = vpack.c.b16 %v1056, %v1050
  %v1237 = vpack.c.b16 %v1057, %v1051
  %v1238 = vpack.c.b16 %v1058, %v1052
  %v1239 = vpack.c.b16 %v1059, %v1053
  %v1240 = vpack.c.b16 %v1060, %v1054
  %v1241 = vpack.c.b16 %v1067, %v1061
  %v1242 = vpack.c.b16 %v1068, %v1062
  %v1243 = vpack.c.b16 %v1069, %v1063
  %v1244 = vpack.c.b16 %v1070, %v1064
  %v1245 = vpack.c.b16 %v1071, %v1065
  %v1246 = vpack.c.b16 %v1072, %v1066
  %v1247 = vpack.c.b16 %v1079, %v1073
  %v1248 = vpack.c.b16 %v1080, %v1074
  %v1249 = vpack.c.b16 %v1081, %v1075
  %v1250 = vpack.c.b16 %v1082, %v1076
  %v1251 = vpack.c.b16 %v1083, %v1077
  %v1252 = vpack.c.b16 %v1084, %v1078
  %v1253 = vpack.c.b16 %v1091, %v1085
  %v1254 = vpack.c.b16 %v1092, %v1086
  %v1255 = vpack.c.b16 %v1093, %v1087
  %v1256 = vpack.c.b16 %v1094, %v1088
  %v1257 = vpack.c.b16 %v1095, %v1089
  %v1258 = vpack.c.b16 %v1096, %v1090
  %v1259 = vpack.c.b16 %v1103, %v1097
  %v1260 = vpack.c.b16 %v1104, %v1098
  %v1261 = vpack.c.b16 %v1105, %v1099
  %v1262 = vpack.c.b16 %v1106, %v1100
  %v1263 = vpack.c.b16 %v1107, %v1101
  %v1264 = vpack.c.b16 %v1108, %v1102
  %v1265 = vpack.c.b16 %v1115, %v1109
  %v1266 = vpack.c.b16 %v1116, %v1110
  %v1267 = vpack.c.b16 %v1117, %v1111
  %v1268 = vpack.c.b16 %v1118, %v1112
  %v1269 = vpack.c.b16 %v1119, %v1113
  %v1270 = vpack.c.b16 %v1120, %v1114
  %v1271 = vpack.c.b16 %v1127, %v1121
  %v1272 = vpack.c.b16 %v1128, %v1122
  %v1273 = vpack.c.b16 %v1129, %v1123
  %v1274 = vpack.c.b16 %v1130, %v1124
  %v1275 = vpack.c.b16 %v1131, %v1125
  %v1276 = vpack.c.b16 %v1132, %v1126
  %v1277 = vpack.c.b16 %v1139, %v1133
  %v1278 = vpack.c.b16 %v1140, %v1134
  %v1279 = vpack.c.b16 %v1141, %v1135
  %v1280 = vpack.c.b16 %v1142, %v1136
  %v1281 = vpack.c.b16 %v1143, %v1137
  %v1282 = vpack.c.b16 %v1144, %v1138
  %v1283 = vpack.c.b16 %v1151, %v1145
  %v1284 = vpack.c.b16 %v1152, %v1146
  %v1285 = vpack.c.b16 %v1153, %v1147
  %v1286 = vpack.c.b16 %v1154, %v1148
  %v1287 = vpack.c.b16 %v1155, %v1149
  %v1288 = vpack.c.b16 %v1156, %v1150
  %v1289 = vpack.c.b16 %v1163, %v1157
  %v1290 = vpack.c.b16 %v1164, %v1158
  %v1291 = vpack.c.b16 %v1165, %v1159
  %v1292 = vpack.c.b16 %v1166, %v1160
  %v1293 = vpack.c.b16 %v1167, %v1161
  %v1294 = vpack.c.b16 %v1168, %v1162
  %v1295 = vpack.c.b16 %v1175, %v1169
  %v1296 = vpack.c.b16 %v1176, %v1170
  %v1297 = vpack.c.b16 %v1177, %v1171
  %v1298 = vpack.c.b16 %v1178, %v1172
  %v1299 = vpack.c.b16 %v1179, %v1173
  %v1300 = vpack.c.b16 %v1180, %v1174
  %v1301 = vpack.c.b16 %v1187, %v1181
  %v1302 = vpack.c.b16 %v1188, %v1182
  %v1303 = vpack.c.b16 %v1189, %v1183
  %v1304 = vpack.c.b16 %v1190, %v1184
  %v1305 = vpack.c.b16 %v1191, %v1185
  %v1306 = vpack.c.b16 %v1192, %v1186
  %v1307 = vpack.c.b16 %v1199, %v1193
  %v1308 = vpack.c.b16 %v1200, %v1194
  %v1309 = vpack.c.b16 %v1201, %v1195
  %v1310 = vpack.c.b16 %v1202, %v1196
  %v1311 = vpack.c.b16 %v1203, %v1197
  %v1312 = vpack.c.b16 %v1204, %v1198
  %v1313 = vpack.c.b16 %v1211, %v1205
  %v1314 = vpack.c.b16 %v1212, %v1206
  %v1315 = vpack.c.b16 %v1213, %v1207
  %v1316 = vpack.c.b16 %v1214, %v1208
  %v1317 = vpack.c.b16 %v1215, %v1209
  %v1318 = vpack.c.b16 %v1216, %v1210
  %v1319 = vpack.c.b16 %v1223, %v1217
  %v1320 = vpack.c.b16 %v1224, %v1218
  %v1321 = vpack.c.b16 %v1225, %v1219
  %v1322 = vpack.c.b16 %v1226, %v1220
  %v1323 = vpack.c.b16 %v1227, %v1221
  %v1324 = vpack.c.b16 %v1228, %v1222
  %1421 = vmatprep.subr.bf16.mxu0 %v1272
  %1422 = vmatpush1.bf16.msra.mxu0 %v1271
  %1423 = vmatprep.subr.bf16.mxu0 %v1266
  %1424 = vmatpush1.bf16.msra.mxu0 %v1265
  %1425 = vmatprep.subr.bf16.mxu0 %v1260
  %1426 = vmatpush1.bf16.msra.mxu0 %v1259
  %1427 = vmatprep.subr.bf16.mxu0 %v1254
  %1428 = vmatpush1.bf16.msra.mxu0 %v1253
  %1429 = vmatprep.subr.bf16.mxu0 %v1248
  %1430 = vmatpush1.bf16.msra.mxu0 %v1247
  %1431 = vmatprep.subr.bf16.mxu0 %v1242
  %1432 = vmatpush1.bf16.msra.mxu0 %v1241
  %1433 = vmatprep.subr.bf16.mxu0 %v1236
  %1434 = vmatpush1.bf16.msra.mxu0 %v1235
  %1435 = vmatprep.subr.bf16.mxu0 %v1230
  %1436 = vmatpush1.bf16.msra.mxu0 %v1229
  %1437 = vmatprep.subr.bf16.mxu0 %v1320
  %1438 = vmatpush2.bf16.msra.mxu0 %v1319
  %1439 = vmatprep.subr.bf16.mxu0 %v1314
  %1440 = vmatpush2.bf16.msra.mxu0 %v1313
  %1441 = vmatprep.subr.bf16.mxu0 %v1308
  %1442 = vmatpush2.bf16.msra.mxu0 %v1307
  %1443 = vmatprep.subr.bf16.mxu0 %v1302
  %1444 = vmatpush2.bf16.msra.mxu0 %v1301
  %1445 = vmatprep.subr.bf16.mxu0 %v1296
  %1446 = vmatpush2.bf16.msra.mxu0 %v1295
  %1447 = vmatprep.subr.bf16.mxu0 %v1290
  %1448 = vmatpush2.bf16.msra.mxu0 %v1289
  %1449 = vmatprep.subr.bf16.mxu0 %v1284
  %1450 = vmatpush2.bf16.msra.mxu0 %v1283
  %1451 = vmatprep.subr.bf16.mxu0 %v1278
  %1452 = vmatpush2.bf16.msra.mxu0 %v1277
  %1453 = vmatprep.mubr.bf16.mxu0 %v782
  %1454 = vmatmul.mubr.bf16.gmra.mxu0 %v781
  %v1455 = vpop.f32.mrf.mxu0
  %v1456 = vadd.f32 %v914, %v1455
  %v1457 = vpop.f32.mrf.mxu0
  %v1458 = vadd.f32 %v918, %v1457
  %v1459 = vpop.f32.mrf.mxu0
  %v1460 = vadd.f32 %v914, %v1459
  %v1461 = vpop.f32.mrf.mxu0
  %v1462 = vadd.f32 %v918, %v1461
  %1463 = vmatprep.mubr.bf16.mxu0 %v784
  %1464 = vmatmul.mubr.bf16.gmra.mxu0 %v783
  %v1465 = vpop.f32.mrf.mxu0
  %v1466 = vadd.f32 %v914, %v1465
  %v1467 = vpop.f32.mrf.mxu0
  %v1468 = vadd.f32 %v918, %v1467
  %v1469 = vpop.f32.mrf.mxu0
  %v1470 = vadd.f32 %v914, %v1469
  %v1471 = vpop.f32.mrf.mxu0
  %v1472 = vadd.f32 %v918, %v1471
  %1473 = vmatprep.mubr.bf16.mxu0 %v786
  %1474 = vmatmul.mubr.bf16.gmra.mxu0 %v785
  %v1475 = vpop.f32.mrf.mxu0
  %v1476 = vadd.f32 %v914, %v1475
  %v1477 = vpop.f32.mrf.mxu0
  %v1478 = vadd.f32 %v918, %v1477
  %v1479 = vpop.f32.mrf.mxu0
  %v1480 = vadd.f32 %v914, %v1479
  %v1481 = vpop.f32.mrf.mxu0
  %v1482 = vadd.f32 %v918, %v1481
  %1483 = vmatprep.mubr.bf16.mxu0 %v788
  %1484 = vmatmul.mubr.bf16.gmra.mxu0 %v787
  %v1485 = vpop.f32.mrf.mxu0
  %v1486 = vadd.f32 %v914, %v1485
  %v1487 = vpop.f32.mrf.mxu0
  %v1488 = vadd.f32 %v918, %v1487
  %v1489 = vpop.f32.mrf.mxu0
  %v1490 = vadd.f32 %v914, %v1489
  %v1491 = vpop.f32.mrf.mxu0
  %v1492 = vadd.f32 %v918, %v1491
  %1493 = vmatprep.mubr.bf16.mxu0 %v790
  %1494 = vmatmul.mubr.bf16.gmra.mxu0 %v789
  %v1495 = vpop.f32.mrf.mxu0
  %v1496 = vadd.f32 %v914, %v1495
  %v1497 = vpop.f32.mrf.mxu0
  %v1498 = vadd.f32 %v918, %v1497
  %v1499 = vpop.f32.mrf.mxu0
  %v1500 = vadd.f32 %v914, %v1499
  %v1501 = vpop.f32.mrf.mxu0
  %v1502 = vadd.f32 %v918, %v1501
  %1503 = vmatprep.mubr.bf16.mxu0 %v792
  %1504 = vmatmul.mubr.bf16.gmra.mxu0 %v791
  %v1505 = vpop.f32.mrf.mxu0
  %v1506 = vadd.f32 %v914, %v1505
  %v1507 = vpop.f32.mrf.mxu0
  %v1508 = vadd.f32 %v918, %v1507
  %v1509 = vpop.f32.mrf.mxu0
  %v1510 = vadd.f32 %v914, %v1509
  %v1511 = vpop.f32.mrf.mxu0
  %v1512 = vadd.f32 %v918, %v1511
  %1513 = vmatprep.mubr.bf16.mxu0 %v794
  %1514 = vmatmul.mubr.bf16.gmra.mxu0 %v793
  %v1515 = vpop.f32.mrf.mxu0
  %v1516 = vadd.f32 %v914, %v1515
  %v1517 = vpop.f32.mrf.mxu0
  %v1518 = vadd.f32 %v918, %v1517
  %v1519 = vpop.f32.mrf.mxu0
  %v1520 = vadd.f32 %v914, %v1519
  %v1521 = vpop.f32.mrf.mxu0
  %v1522 = vadd.f32 %v918, %v1521
  %1523 = vmatprep.mubr.bf16.mxu0 %v796
  %1524 = vmatmul.mubr.bf16.gmra.mxu0 %v795
  %v1525 = vpop.f32.mrf.mxu0
  %v1526 = vadd.f32 %v914, %v1525
  %v1527 = vpop.f32.mrf.mxu0
  %v1528 = vadd.f32 %v918, %v1527
  %v1529 = vpop.f32.mrf.mxu0
  %v1530 = vadd.f32 %v914, %v1529
  %v1531 = vpop.f32.mrf.mxu0
  %v1532 = vadd.f32 %v918, %v1531
  %1533 = vmatprep.mubr.bf16.mxu0 %v798
  %1534 = vmatmul.mubr.bf16.gmra.mxu0 %v797
  %v1535 = vpop.f32.mrf.mxu0
  %v1536 = vadd.f32 %v914, %v1535
  %v1537 = vpop.f32.mrf.mxu0
  %v1538 = vadd.f32 %v918, %v1537
  %v1539 = vpop.f32.mrf.mxu0
  %v1540 = vadd.f32 %v914, %v1539
  %v1541 = vpop.f32.mrf.mxu0
  %v1542 = vadd.f32 %v918, %v1541
  %1543 = vmatprep.mubr.bf16.mxu0 %v800
  %1544 = vmatmul.mubr.bf16.gmra.mxu0 %v799
  %v1545 = vpop.f32.mrf.mxu0
  %v1546 = vadd.f32 %v914, %v1545
  %v1547 = vpop.f32.mrf.mxu0
  %v1548 = vadd.f32 %v918, %v1547
  %v1549 = vpop.f32.mrf.mxu0
  %v1550 = vadd.f32 %v914, %v1549
  %v1551 = vpop.f32.mrf.mxu0
  %v1552 = vadd.f32 %v918, %v1551
  %1553 = vmatprep.mubr.bf16.mxu0 %v802
  %1554 = vmatmul.mubr.bf16.gmra.mxu0 %v801
  %v1555 = vpop.f32.mrf.mxu0
  %v1556 = vadd.f32 %v914, %v1555
  %v1557 = vpop.f32.mrf.mxu0
  %v1558 = vadd.f32 %v918, %v1557
  %v1559 = vpop.f32.mrf.mxu0
  %v1560 = vadd.f32 %v914, %v1559
  %v1561 = vpop.f32.mrf.mxu0
  %v1562 = vadd.f32 %v918, %v1561
  %1563 = vmatprep.mubr.bf16.mxu0 %v804
  %1564 = vmatmul.mubr.bf16.gmra.mxu0 %v803
  %v1565 = vpop.f32.mrf.mxu0
  %v1566 = vadd.f32 %v914, %v1565
  %v1567 = vpop.f32.mrf.mxu0
  %v1568 = vadd.f32 %v918, %v1567
  %v1569 = vpop.f32.mrf.mxu0
  %v1570 = vadd.f32 %v914, %v1569
  %v1571 = vpop.f32.mrf.mxu0
  %v1572 = vadd.f32 %v918, %v1571
  %1573 = vmatprep.mubr.bf16.mxu0 %v806
  %1574 = vmatmul.mubr.bf16.gmra.mxu0 %v805
  %v1575 = vpop.f32.mrf.mxu0
  %v1576 = vadd.f32 %v914, %v1575
  %v1577 = vpop.f32.mrf.mxu0
  %v1578 = vadd.f32 %v918, %v1577
  %v1579 = vpop.f32.mrf.mxu0
  %v1580 = vadd.f32 %v914, %v1579
  %v1581 = vpop.f32.mrf.mxu0
  %v1582 = vadd.f32 %v918, %v1581
  %1583 = vmatprep.mubr.bf16.mxu0 %v808
  %1584 = vmatmul.mubr.bf16.gmra.mxu0 %v807
  %v1585 = vpop.f32.mrf.mxu0
  %v1586 = vadd.f32 %v914, %v1585
  %v1587 = vpop.f32.mrf.mxu0
  %v1588 = vadd.f32 %v918, %v1587
  %v1589 = vpop.f32.mrf.mxu0
  %v1590 = vadd.f32 %v914, %v1589
  %v1591 = vpop.f32.mrf.mxu0
  %v1592 = vadd.f32 %v918, %v1591
  %1593 = vmatprep.mubr.bf16.mxu0 %v810
  %1594 = vmatmul.mubr.bf16.gmra.mxu0 %v809
  %v1595 = vpop.f32.mrf.mxu0
  %v1596 = vadd.f32 %v914, %v1595
  %v1597 = vpop.f32.mrf.mxu0
  %v1598 = vadd.f32 %v918, %v1597
  %v1599 = vpop.f32.mrf.mxu0
  %v1600 = vadd.f32 %v914, %v1599
  %v1601 = vpop.f32.mrf.mxu0
  %v1602 = vadd.f32 %v918, %v1601
  %1603 = vmatprep.mubr.bf16.mxu0 %v812
  %1604 = vmatmul.mubr.bf16.gmra.mxu0 %v811
  %v1605 = vpop.f32.mrf.mxu0
  %v1606 = vadd.f32 %v914, %v1605
  %v1607 = vpop.f32.mrf.mxu0
  %v1608 = vadd.f32 %v918, %v1607
  %v1609 = vpop.f32.mrf.mxu0
  %v1610 = vadd.f32 %v914, %v1609
  %v1611 = vpop.f32.mrf.mxu0
  %v1612 = vadd.f32 %v918, %v1611
  %1613 = vdwg.mxu0
  %1614 = vmatprep.subr.bf16.mxu0 %v1274
  %1615 = vmatpush1.bf16.msra.mxu0 %v1273
  %1616 = vmatprep.subr.bf16.mxu0 %v1268
  %1617 = vmatpush1.bf16.msra.mxu0 %v1267
  %1618 = vmatprep.subr.bf16.mxu0 %v1262
  %1619 = vmatpush1.bf16.msra.mxu0 %v1261
  %1620 = vmatprep.subr.bf16.mxu0 %v1256
  %1621 = vmatpush1.bf16.msra.mxu0 %v1255
  %1622 = vmatprep.subr.bf16.mxu0 %v1250
  %1623 = vmatpush1.bf16.msra.mxu0 %v1249
  %1624 = vmatprep.subr.bf16.mxu0 %v1244
  %1625 = vmatpush1.bf16.msra.mxu0 %v1243
  %1626 = vmatprep.subr.bf16.mxu0 %v1238
  %1627 = vmatpush1.bf16.msra.mxu0 %v1237
  %1628 = vmatprep.subr.bf16.mxu0 %v1232
  %1629 = vmatpush1.bf16.msra.mxu0 %v1231
  %1630 = vmatprep.subr.bf16.mxu0 %v1322
  %1631 = vmatpush2.bf16.msra.mxu0 %v1321
  %1632 = vmatprep.subr.bf16.mxu0 %v1316
  %1633 = vmatpush2.bf16.msra.mxu0 %v1315
  %1634 = vmatprep.subr.bf16.mxu0 %v1310
  %1635 = vmatpush2.bf16.msra.mxu0 %v1309
  %1636 = vmatprep.subr.bf16.mxu0 %v1304
  %1637 = vmatpush2.bf16.msra.mxu0 %v1303
  %1638 = vmatprep.subr.bf16.mxu0 %v1298
  %1639 = vmatpush2.bf16.msra.mxu0 %v1297
  %1640 = vmatprep.subr.bf16.mxu0 %v1292
  %1641 = vmatpush2.bf16.msra.mxu0 %v1291
  %1642 = vmatprep.subr.bf16.mxu0 %v1286
  %1643 = vmatpush2.bf16.msra.mxu0 %v1285
  %1644 = vmatprep.subr.bf16.mxu0 %v1280
  %1645 = vmatpush2.bf16.msra.mxu0 %v1279
  %1646 = vmatprep.mubr.bf16.mxu0 %v782
  %1647 = vmatmul.mubr.bf16.gmra.mxu0 %v781
  %v1648 = vpop.f32.mrf.mxu0
  %v1649 = vadd.f32 %v922, %v1648
  %v1650 = vpop.f32.mrf.mxu0
  %v1651 = vadd.f32 %v926, %v1650
  %v1652 = vpop.f32.mrf.mxu0
  %v1653 = vadd.f32 %v922, %v1652
  %v1654 = vpop.f32.mrf.mxu0
  %v1655 = vadd.f32 %v926, %v1654
  %1656 = vmatprep.mubr.bf16.mxu0 %v784
  %1657 = vmatmul.mubr.bf16.gmra.mxu0 %v783
  %v1658 = vpop.f32.mrf.mxu0
  %v1659 = vadd.f32 %v922, %v1658
  %v1660 = vpop.f32.mrf.mxu0
  %v1661 = vadd.f32 %v926, %v1660
  %v1662 = vpop.f32.mrf.mxu0
  %v1663 = vadd.f32 %v922, %v1662
  %v1664 = vpop.f32.mrf.mxu0
  %v1665 = vadd.f32 %v926, %v1664
  %1666 = vmatprep.mubr.bf16.mxu0 %v786
  %1667 = vmatmul.mubr.bf16.gmra.mxu0 %v785
  %v1668 = vpop.f32.mrf.mxu0
  %v1669 = vadd.f32 %v922, %v1668
  %v1670 = vpop.f32.mrf.mxu0
  %v1671 = vadd.f32 %v926, %v1670
  %v1672 = vpop.f32.mrf.mxu0
  %v1673 = vadd.f32 %v922, %v1672
  %v1674 = vpop.f32.mrf.mxu0
  %v1675 = vadd.f32 %v926, %v1674
  %1676 = vmatprep.mubr.bf16.mxu0 %v788
  %1677 = vmatmul.mubr.bf16.gmra.mxu0 %v787
  %v1678 = vpop.f32.mrf.mxu0
  %v1679 = vadd.f32 %v922, %v1678
  %v1680 = vpop.f32.mrf.mxu0
  %v1681 = vadd.f32 %v926, %v1680
  %v1682 = vpop.f32.mrf.mxu0
  %v1683 = vadd.f32 %v922, %v1682
  %v1684 = vpop.f32.mrf.mxu0
  %v1685 = vadd.f32 %v926, %v1684
  %1686 = vmatprep.mubr.bf16.mxu0 %v790
  %1687 = vmatmul.mubr.bf16.gmra.mxu0 %v789
  %v1688 = vpop.f32.mrf.mxu0
  %v1689 = vadd.f32 %v922, %v1688
  %v1690 = vpop.f32.mrf.mxu0
  %v1691 = vadd.f32 %v926, %v1690
  %v1692 = vpop.f32.mrf.mxu0
  %v1693 = vadd.f32 %v922, %v1692
  %v1694 = vpop.f32.mrf.mxu0
  %v1695 = vadd.f32 %v926, %v1694
  %1696 = vmatprep.mubr.bf16.mxu0 %v792
  %1697 = vmatmul.mubr.bf16.gmra.mxu0 %v791
  %v1698 = vpop.f32.mrf.mxu0
  %v1699 = vadd.f32 %v922, %v1698
  %v1700 = vpop.f32.mrf.mxu0
  %v1701 = vadd.f32 %v926, %v1700
  %v1702 = vpop.f32.mrf.mxu0
  %v1703 = vadd.f32 %v922, %v1702
  %v1704 = vpop.f32.mrf.mxu0
  %v1705 = vadd.f32 %v926, %v1704
  %1706 = vmatprep.mubr.bf16.mxu0 %v794
  %1707 = vmatmul.mubr.bf16.gmra.mxu0 %v793
  %v1708 = vpop.f32.mrf.mxu0
  %v1709 = vadd.f32 %v922, %v1708
  %v1710 = vpop.f32.mrf.mxu0
  %v1711 = vadd.f32 %v926, %v1710
  %v1712 = vpop.f32.mrf.mxu0
  %v1713 = vadd.f32 %v922, %v1712
  %v1714 = vpop.f32.mrf.mxu0
  %v1715 = vadd.f32 %v926, %v1714
  %1716 = vmatprep.mubr.bf16.mxu0 %v796
  %1717 = vmatmul.mubr.bf16.gmra.mxu0 %v795
  %v1718 = vpop.f32.mrf.mxu0
  %v1719 = vadd.f32 %v922, %v1718
  %v1720 = vpop.f32.mrf.mxu0
  %v1721 = vadd.f32 %v926, %v1720
  %v1722 = vpop.f32.mrf.mxu0
  %v1723 = vadd.f32 %v922, %v1722
  %v1724 = vpop.f32.mrf.mxu0
  %v1725 = vadd.f32 %v926, %v1724
  %1726 = vmatprep.mubr.bf16.mxu0 %v798
  %1727 = vmatmul.mubr.bf16.gmra.mxu0 %v797
  %v1728 = vpop.f32.mrf.mxu0
  %v1729 = vadd.f32 %v922, %v1728
  %v1730 = vpop.f32.mrf.mxu0
  %v1731 = vadd.f32 %v926, %v1730
  %v1732 = vpop.f32.mrf.mxu0
  %v1733 = vadd.f32 %v922, %v1732
  %v1734 = vpop.f32.mrf.mxu0
  %v1735 = vadd.f32 %v926, %v1734
  %1736 = vmatprep.mubr.bf16.mxu0 %v800
  %1737 = vmatmul.mubr.bf16.gmra.mxu0 %v799
  %v1738 = vpop.f32.mrf.mxu0
  %v1739 = vadd.f32 %v922, %v1738
  %v1740 = vpop.f32.mrf.mxu0
  %v1741 = vadd.f32 %v926, %v1740
  %v1742 = vpop.f32.mrf.mxu0
  %v1743 = vadd.f32 %v922, %v1742
  %v1744 = vpop.f32.mrf.mxu0
  %v1745 = vadd.f32 %v926, %v1744
  %1746 = vmatprep.mubr.bf16.mxu0 %v802
  %1747 = vmatmul.mubr.bf16.gmra.mxu0 %v801
  %v1748 = vpop.f32.mrf.mxu0
  %v1749 = vadd.f32 %v922, %v1748
  %v1750 = vpop.f32.mrf.mxu0
  %v1751 = vadd.f32 %v926, %v1750
  %v1752 = vpop.f32.mrf.mxu0
  %v1753 = vadd.f32 %v922, %v1752
  %v1754 = vpop.f32.mrf.mxu0
  %v1755 = vadd.f32 %v926, %v1754
  %1756 = vmatprep.mubr.bf16.mxu0 %v804
  %1757 = vmatmul.mubr.bf16.gmra.mxu0 %v803
  %v1758 = vpop.f32.mrf.mxu0
  %v1759 = vadd.f32 %v922, %v1758
  %v1760 = vpop.f32.mrf.mxu0
  %v1761 = vadd.f32 %v926, %v1760
  %v1762 = vpop.f32.mrf.mxu0
  %v1763 = vadd.f32 %v922, %v1762
  %v1764 = vpop.f32.mrf.mxu0
  %v1765 = vadd.f32 %v926, %v1764
  %1766 = vmatprep.mubr.bf16.mxu0 %v806
  %1767 = vmatmul.mubr.bf16.gmra.mxu0 %v805
  %v1768 = vpop.f32.mrf.mxu0
  %v1769 = vadd.f32 %v922, %v1768
  %v1770 = vpop.f32.mrf.mxu0
  %v1771 = vadd.f32 %v926, %v1770
  %v1772 = vpop.f32.mrf.mxu0
  %v1773 = vadd.f32 %v922, %v1772
  %v1774 = vpop.f32.mrf.mxu0
  %v1775 = vadd.f32 %v926, %v1774
  %1776 = vmatprep.mubr.bf16.mxu0 %v808
  %1777 = vmatmul.mubr.bf16.gmra.mxu0 %v807
  %v1778 = vpop.f32.mrf.mxu0
  %v1779 = vadd.f32 %v922, %v1778
  %v1780 = vpop.f32.mrf.mxu0
  %v1781 = vadd.f32 %v926, %v1780
  %v1782 = vpop.f32.mrf.mxu0
  %v1783 = vadd.f32 %v922, %v1782
  %v1784 = vpop.f32.mrf.mxu0
  %v1785 = vadd.f32 %v926, %v1784
  %1786 = vmatprep.mubr.bf16.mxu0 %v810
  %1787 = vmatmul.mubr.bf16.gmra.mxu0 %v809
  %v1788 = vpop.f32.mrf.mxu0
  %v1789 = vadd.f32 %v922, %v1788
  %v1790 = vpop.f32.mrf.mxu0
  %v1791 = vadd.f32 %v926, %v1790
  %v1792 = vpop.f32.mrf.mxu0
  %v1793 = vadd.f32 %v922, %v1792
  %v1794 = vpop.f32.mrf.mxu0
  %v1795 = vadd.f32 %v926, %v1794
  %1796 = vmatprep.mubr.bf16.mxu0 %v812
  %1797 = vmatmul.mubr.bf16.gmra.mxu0 %v811
  %v1798 = vpop.f32.mrf.mxu0
  %v1799 = vadd.f32 %v922, %v1798
  %v1800 = vpop.f32.mrf.mxu0
  %v1801 = vadd.f32 %v926, %v1800
  %v1802 = vpop.f32.mrf.mxu0
  %v1803 = vadd.f32 %v922, %v1802
  %v1804 = vpop.f32.mrf.mxu0
  %v1805 = vadd.f32 %v926, %v1804
  %1806 = vdwg.mxu0
  %1807 = vmatprep.subr.bf16.mxu0 %v1276
  %1808 = vmatpush1.bf16.msra.mxu0 %v1275
  %1809 = vmatprep.subr.bf16.mxu0 %v1270
  %1810 = vmatpush1.bf16.msra.mxu0 %v1269
  %1811 = vmatprep.subr.bf16.mxu0 %v1264
  %1812 = vmatpush1.bf16.msra.mxu0 %v1263
  %1813 = vmatprep.subr.bf16.mxu0 %v1258
  %1814 = vmatpush1.bf16.msra.mxu0 %v1257
  %1815 = vmatprep.subr.bf16.mxu0 %v1252
  %1816 = vmatpush1.bf16.msra.mxu0 %v1251
  %1817 = vmatprep.subr.bf16.mxu0 %v1246
  %1818 = vmatpush1.bf16.msra.mxu0 %v1245
  %1819 = vmatprep.subr.bf16.mxu0 %v1240
  %1820 = vmatpush1.bf16.msra.mxu0 %v1239
  %1821 = vmatprep.subr.bf16.mxu0 %v1234
  %1822 = vmatpush1.bf16.msra.mxu0 %v1233
  %1823 = vmatprep.subr.bf16.mxu0 %v1324
  %1824 = vmatpush2.bf16.msra.mxu0 %v1323
  %1825 = vmatprep.subr.bf16.mxu0 %v1318
  %1826 = vmatpush2.bf16.msra.mxu0 %v1317
  %1827 = vmatprep.subr.bf16.mxu0 %v1312
  %1828 = vmatpush2.bf16.msra.mxu0 %v1311
  %1829 = vmatprep.subr.bf16.mxu0 %v1306
  %1830 = vmatpush2.bf16.msra.mxu0 %v1305
  %1831 = vmatprep.subr.bf16.mxu0 %v1300
  %1832 = vmatpush2.bf16.msra.mxu0 %v1299
  %1833 = vmatprep.subr.bf16.mxu0 %v1294
  %1834 = vmatpush2.bf16.msra.mxu0 %v1293
  %1835 = vmatprep.subr.bf16.mxu0 %v1288
  %1836 = vmatpush2.bf16.msra.mxu0 %v1287
  %1837 = vmatprep.subr.bf16.mxu0 %v1282
  %1838 = vmatpush2.bf16.msra.mxu0 %v1281
  %1839 = vmatprep.mubr.bf16.mxu0 %v782
  %1840 = vmatmul.mubr.bf16.gmra.mxu0 %v781
  %v1841 = vpop.f32.mrf.mxu0
  %v1842 = vadd.f32 %v930, %v1841
  %v1843 = vpop.f32.mrf.mxu0
  %v1844 = vadd.f32 %v934, %v1843
  %v1845 = vpop.f32.mrf.mxu0
  %v1846 = vadd.f32 %v930, %v1845
  %v1847 = vpop.f32.mrf.mxu0
  %v1848 = vadd.f32 %v934, %v1847
  %1849 = vmatprep.mubr.bf16.mxu0 %v784
  %1850 = vmatmul.mubr.bf16.gmra.mxu0 %v783
  %v1851 = vpop.f32.mrf.mxu0
  %v1852 = vadd.f32 %v930, %v1851
  %v1853 = vpop.f32.mrf.mxu0
  %v1854 = vadd.f32 %v934, %v1853
  %v1855 = vpop.f32.mrf.mxu0
  %v1856 = vadd.f32 %v930, %v1855
  %v1857 = vpop.f32.mrf.mxu0
  %v1858 = vadd.f32 %v934, %v1857
  %1859 = vmatprep.mubr.bf16.mxu0 %v786
  %1860 = vmatmul.mubr.bf16.gmra.mxu0 %v785
  %v1861 = vpop.f32.mrf.mxu0
  %v1862 = vadd.f32 %v930, %v1861
  %v1863 = vpop.f32.mrf.mxu0
  %v1864 = vadd.f32 %v934, %v1863
  %v1865 = vpop.f32.mrf.mxu0
  %v1866 = vadd.f32 %v930, %v1865
  %v1867 = vpop.f32.mrf.mxu0
  %v1868 = vadd.f32 %v934, %v1867
  %1869 = vmatprep.mubr.bf16.mxu0 %v788
  %1870 = vmatmul.mubr.bf16.gmra.mxu0 %v787
  %v1871 = vpop.f32.mrf.mxu0
  %v1872 = vadd.f32 %v930, %v1871
  %v1873 = vpop.f32.mrf.mxu0
  %v1874 = vadd.f32 %v934, %v1873
  %v1875 = vpop.f32.mrf.mxu0
  %v1876 = vadd.f32 %v930, %v1875
  %v1877 = vpop.f32.mrf.mxu0
  %v1878 = vadd.f32 %v934, %v1877
  %1879 = vmatprep.mubr.bf16.mxu0 %v790
  %1880 = vmatmul.mubr.bf16.gmra.mxu0 %v789
  %v1881 = vpop.f32.mrf.mxu0
  %v1882 = vadd.f32 %v930, %v1881
  %v1883 = vpop.f32.mrf.mxu0
  %v1884 = vadd.f32 %v934, %v1883
  %v1885 = vpop.f32.mrf.mxu0
  %v1886 = vadd.f32 %v930, %v1885
  %v1887 = vpop.f32.mrf.mxu0
  %v1888 = vadd.f32 %v934, %v1887
  %1889 = vmatprep.mubr.bf16.mxu0 %v792
  %1890 = vmatmul.mubr.bf16.gmra.mxu0 %v791
  %v1891 = vpop.f32.mrf.mxu0
  %v1892 = vadd.f32 %v930, %v1891
  %v1893 = vpop.f32.mrf.mxu0
  %v1894 = vadd.f32 %v934, %v1893
  %v1895 = vpop.f32.mrf.mxu0
  %v1896 = vadd.f32 %v930, %v1895
  %v1897 = vpop.f32.mrf.mxu0
  %v1898 = vadd.f32 %v934, %v1897
  %1899 = vmatprep.mubr.bf16.mxu0 %v794
  %1900 = vmatmul.mubr.bf16.gmra.mxu0 %v793
  %v1901 = vpop.f32.mrf.mxu0
  %v1902 = vadd.f32 %v930, %v1901
  %v1903 = vpop.f32.mrf.mxu0
  %v1904 = vadd.f32 %v934, %v1903
  %v1905 = vpop.f32.mrf.mxu0
  %v1906 = vadd.f32 %v930, %v1905
  %v1907 = vpop.f32.mrf.mxu0
  %v1908 = vadd.f32 %v934, %v1907
  %1909 = vmatprep.mubr.bf16.mxu0 %v796
  %1910 = vmatmul.mubr.bf16.gmra.mxu0 %v795
  %v1911 = vpop.f32.mrf.mxu0
  %v1912 = vadd.f32 %v930, %v1911
  %v1913 = vpop.f32.mrf.mxu0
  %v1914 = vadd.f32 %v934, %v1913
  %v1915 = vpop.f32.mrf.mxu0
  %v1916 = vadd.f32 %v930, %v1915
  %v1917 = vpop.f32.mrf.mxu0
  %v1918 = vadd.f32 %v934, %v1917
  %1919 = vmatprep.mubr.bf16.mxu0 %v798
  %1920 = vmatmul.mubr.bf16.gmra.mxu0 %v797
  %v1921 = vpop.f32.mrf.mxu0
  %v1922 = vadd.f32 %v930, %v1921
  %v1923 = vpop.f32.mrf.mxu0
  %v1924 = vadd.f32 %v934, %v1923
  %v1925 = vpop.f32.mrf.mxu0
  %v1926 = vadd.f32 %v930, %v1925
  %v1927 = vpop.f32.mrf.mxu0
  %v1928 = vadd.f32 %v934, %v1927
  %1929 = vmatprep.mubr.bf16.mxu0 %v800
  %1930 = vmatmul.mubr.bf16.gmra.mxu0 %v799
  %v1931 = vpop.f32.mrf.mxu0
  %v1932 = vadd.f32 %v930, %v1931
  %v1933 = vpop.f32.mrf.mxu0
  %v1934 = vadd.f32 %v934, %v1933
  %v1935 = vpop.f32.mrf.mxu0
  %v1936 = vadd.f32 %v930, %v1935
  %v1937 = vpop.f32.mrf.mxu0
  %v1938 = vadd.f32 %v934, %v1937
  %1939 = vmatprep.mubr.bf16.mxu0 %v802
  %1940 = vmatmul.mubr.bf16.gmra.mxu0 %v801
  %v1941 = vpop.f32.mrf.mxu0
  %v1942 = vadd.f32 %v930, %v1941
  %v1943 = vpop.f32.mrf.mxu0
  %v1944 = vadd.f32 %v934, %v1943
  %v1945 = vpop.f32.mrf.mxu0
  %v1946 = vadd.f32 %v930, %v1945
  %v1947 = vpop.f32.mrf.mxu0
  %v1948 = vadd.f32 %v934, %v1947
  %1949 = vmatprep.mubr.bf16.mxu0 %v804
  %1950 = vmatmul.mubr.bf16.gmra.mxu0 %v803
  %v1951 = vpop.f32.mrf.mxu0
  %v1952 = vadd.f32 %v930, %v1951
  %v1953 = vpop.f32.mrf.mxu0
  %v1954 = vadd.f32 %v934, %v1953
  %v1955 = vpop.f32.mrf.mxu0
  %v1956 = vadd.f32 %v930, %v1955
  %v1957 = vpop.f32.mrf.mxu0
  %v1958 = vadd.f32 %v934, %v1957
  %1959 = vmatprep.mubr.bf16.mxu0 %v806
  %1960 = vmatmul.mubr.bf16.gmra.mxu0 %v805
  %v1961 = vpop.f32.mrf.mxu0
  %v1962 = vadd.f32 %v930, %v1961
  %v1963 = vpop.f32.mrf.mxu0
  %v1964 = vadd.f32 %v934, %v1963
  %v1965 = vpop.f32.mrf.mxu0
  %v1966 = vadd.f32 %v930, %v1965
  %v1967 = vpop.f32.mrf.mxu0
  %v1968 = vadd.f32 %v934, %v1967
  %1969 = vmatprep.mubr.bf16.mxu0 %v808
  %1970 = vmatmul.mubr.bf16.gmra.mxu0 %v807
  %v1971 = vpop.f32.mrf.mxu0
  %v1972 = vadd.f32 %v930, %v1971
  %v1973 = vpop.f32.mrf.mxu0
  %v1974 = vadd.f32 %v934, %v1973
  %v1975 = vpop.f32.mrf.mxu0
  %v1976 = vadd.f32 %v930, %v1975
  %v1977 = vpop.f32.mrf.mxu0
  %v1978 = vadd.f32 %v934, %v1977
  %1979 = vmatprep.mubr.bf16.mxu0 %v810
  %1980 = vmatmul.mubr.bf16.gmra.mxu0 %v809
  %v1981 = vpop.f32.mrf.mxu0
  %v1982 = vadd.f32 %v930, %v1981
  %v1983 = vpop.f32.mrf.mxu0
  %v1984 = vadd.f32 %v934, %v1983
  %v1985 = vpop.f32.mrf.mxu0
  %v1986 = vadd.f32 %v930, %v1985
  %v1987 = vpop.f32.mrf.mxu0
  %v1988 = vadd.f32 %v934, %v1987
  %1989 = vmatprep.mubr.bf16.mxu0 %v812
  %1990 = vmatmul.mubr.bf16.gmra.mxu0 %v811
  %v1991 = vpop.f32.mrf.mxu0
  %v1992 = vadd.f32 %v930, %v1991
  %v1993 = vpop.f32.mrf.mxu0
  %v1994 = vadd.f32 %v934, %v1993
  %v1995 = vpop.f32.mrf.mxu0
  %v1996 = vadd.f32 %v930, %v1995
  %v1997 = vpop.f32.mrf.mxu0
  %v1998 = vadd.f32 %v934, %v1997
  %1999 = vdwg.mxu0
  %v2000 = vpack.c.bf16 %v1460, %v1456
  %v2001 = vpack.c.bf16 %v1462, %v1458
  %v2002 = vpack.c.bf16 %v1653, %v1649
  %v2003 = vpack.c.bf16 %v1655, %v1651
  %v2004 = vpack.c.bf16 %v1846, %v1842
  %v2005 = vpack.c.bf16 %v1848, %v1844
  %v2006 = vpack.c.bf16 %v1470, %v1466
  %v2007 = vpack.c.bf16 %v1472, %v1468
  %v2008 = vpack.c.bf16 %v1663, %v1659
  %v2009 = vpack.c.bf16 %v1665, %v1661
  %v2010 = vpack.c.bf16 %v1856, %v1852
  %v2011 = vpack.c.bf16 %v1858, %v1854
  %v2012 = vpack.c.bf16 %v1480, %v1476
  %v2013 = vpack.c.bf16 %v1482, %v1478
  %v2014 = vpack.c.bf16 %v1673, %v1669
  %v2015 = vpack.c.bf16 %v1675, %v1671
  %v2016 = vpack.c.bf16 %v1866, %v1862
  %v2017 = vpack.c.bf16 %v1868, %v1864
  %v2018 = vpack.c.bf16 %v1490, %v1486
  %v2019 = vpack.c.bf16 %v1492, %v1488
  %v2020 = vpack.c.bf16 %v1683, %v1679
  %v2021 = vpack.c.bf16 %v1685, %v1681
  %v2022 = vpack.c.bf16 %v1876, %v1872
  %v2023 = vpack.c.bf16 %v1878, %v1874
  %v2024 = vpack.c.bf16 %v1500, %v1496
  %v2025 = vpack.c.bf16 %v1502, %v1498
  %v2026 = vpack.c.bf16 %v1693, %v1689
  %v2027 = vpack.c.bf16 %v1695, %v1691
  %v2028 = vpack.c.bf16 %v1886, %v1882
  %v2029 = vpack.c.bf16 %v1888, %v1884
  %v2030 = vpack.c.bf16 %v1510, %v1506
  %v2031 = vpack.c.bf16 %v1512, %v1508
  %v2032 = vpack.c.bf16 %v1703, %v1699
  %v2033 = vpack.c.bf16 %v1705, %v1701
  %v2034 = vpack.c.bf16 %v1896, %v1892
  %v2035 = vpack.c.bf16 %v1898, %v1894
  %v2036 = vpack.c.bf16 %v1520, %v1516
  %v2037 = vpack.c.bf16 %v1522, %v1518
  %v2038 = vpack.c.bf16 %v1713, %v1709
  %v2039 = vpack.c.bf16 %v1715, %v1711
  %v2040 = vpack.c.bf16 %v1906, %v1902
  %v2041 = vpack.c.bf16 %v1908, %v1904
  %v2042 = vpack.c.bf16 %v1530, %v1526
  %v2043 = vpack.c.bf16 %v1532, %v1528
  %v2044 = vpack.c.bf16 %v1723, %v1719
  %v2045 = vpack.c.bf16 %v1725, %v1721
  %v2046 = vpack.c.bf16 %v1916, %v1912
  %v2047 = vpack.c.bf16 %v1918, %v1914
  %v2048 = vpack.c.bf16 %v1540, %v1536
  %v2049 = vpack.c.bf16 %v1542, %v1538
  %v2050 = vpack.c.bf16 %v1733, %v1729
  %v2051 = vpack.c.bf16 %v1735, %v1731
  %v2052 = vpack.c.bf16 %v1926, %v1922
  %v2053 = vpack.c.bf16 %v1928, %v1924
  %v2054 = vpack.c.bf16 %v1550, %v1546
  %v2055 = vpack.c.bf16 %v1552, %v1548
  %v2056 = vpack.c.bf16 %v1743, %v1739
  %v2057 = vpack.c.bf16 %v1745, %v1741
  %v2058 = vpack.c.bf16 %v1936, %v1932
  %v2059 = vpack.c.bf16 %v1938, %v1934
  %v2060 = vpack.c.bf16 %v1560, %v1556
  %v2061 = vpack.c.bf16 %v1562, %v1558
  %v2062 = vpack.c.bf16 %v1753, %v1749
  %v2063 = vpack.c.bf16 %v1755, %v1751
  %v2064 = vpack.c.bf16 %v1946, %v1942
  %v2065 = vpack.c.bf16 %v1948, %v1944
  %v2066 = vpack.c.bf16 %v1570, %v1566
  %v2067 = vpack.c.bf16 %v1572, %v1568
  %v2068 = vpack.c.bf16 %v1763, %v1759
  %v2069 = vpack.c.bf16 %v1765, %v1761
  %v2070 = vpack.c.bf16 %v1956, %v1952
  %v2071 = vpack.c.bf16 %v1958, %v1954
  %v2072 = vpack.c.bf16 %v1580, %v1576
  %v2073 = vpack.c.bf16 %v1582, %v1578
  %v2074 = vpack.c.bf16 %v1773, %v1769
  %v2075 = vpack.c.bf16 %v1775, %v1771
  %v2076 = vpack.c.bf16 %v1966, %v1962
  %v2077 = vpack.c.bf16 %v1968, %v1964
  %v2078 = vpack.c.bf16 %v1590, %v1586
  %v2079 = vpack.c.bf16 %v1592, %v1588
  %v2080 = vpack.c.bf16 %v1783, %v1779
  %v2081 = vpack.c.bf16 %v1785, %v1781
  %v2082 = vpack.c.bf16 %v1976, %v1972
  %v2083 = vpack.c.bf16 %v1978, %v1974
  %v2084 = vpack.c.bf16 %v1600, %v1596
  %v2085 = vpack.c.bf16 %v1602, %v1598
  %v2086 = vpack.c.bf16 %v1793, %v1789
  %v2087 = vpack.c.bf16 %v1795, %v1791
  %v2088 = vpack.c.bf16 %v1986, %v1982
  %v2089 = vpack.c.bf16 %v1988, %v1984
  %v2090 = vpack.c.bf16 %v1610, %v1606
  %v2091 = vpack.c.bf16 %v1612, %v1608
  %v2092 = vpack.c.bf16 %v1803, %v1799
  %v2093 = vpack.c.bf16 %v1805, %v1801
  %v2094 = vpack.c.bf16 %v1996, %v1992
  %v2095 = vpack.c.bf16 %v1998, %v1994
  %v2192 = vunpack.c.l.b16 %v2000
  %v2193 = vunpack.c.l.b16 %v2001
  %v2194 = vunpack.c.l.b16 %v2002
  %v2195 = vunpack.c.l.b16 %v2003
  %v2196 = vunpack.c.l.b16 %v2004
  %v2197 = vunpack.c.l.b16 %v2005
  %v2198 = vunpack.c.h.b16 %v2000
  %v2199 = vunpack.c.h.b16 %v2001
  %v2200 = vunpack.c.h.b16 %v2002
  %v2201 = vunpack.c.h.b16 %v2003
  %v2202 = vunpack.c.h.b16 %v2004
  %v2203 = vunpack.c.h.b16 %v2005
  %v2204 = vunpack.c.l.b16 %v2006
  %v2205 = vunpack.c.l.b16 %v2007
  %v2206 = vunpack.c.l.b16 %v2008
  %v2207 = vunpack.c.l.b16 %v2009
  %v2208 = vunpack.c.l.b16 %v2010
  %v2209 = vunpack.c.l.b16 %v2011
  %v2210 = vunpack.c.h.b16 %v2006
  %v2211 = vunpack.c.h.b16 %v2007
  %v2212 = vunpack.c.h.b16 %v2008
  %v2213 = vunpack.c.h.b16 %v2009
  %v2214 = vunpack.c.h.b16 %v2010
  %v2215 = vunpack.c.h.b16 %v2011
  %v2216 = vunpack.c.l.b16 %v2012
  %v2217 = vunpack.c.l.b16 %v2013
  %v2218 = vunpack.c.l.b16 %v2014
  %v2219 = vunpack.c.l.b16 %v2015
  %v2220 = vunpack.c.l.b16 %v2016
  %v2221 = vunpack.c.l.b16 %v2017
  %v2222 = vunpack.c.h.b16 %v2012
  %v2223 = vunpack.c.h.b16 %v2013
  %v2224 = vunpack.c.h.b16 %v2014
  %v2225 = vunpack.c.h.b16 %v2015
  %v2226 = vunpack.c.h.b16 %v2016
  %v2227 = vunpack.c.h.b16 %v2017
  %v2228 = vunpack.c.l.b16 %v2018
  %v2229 = vunpack.c.l.b16 %v2019
  %v2230 = vunpack.c.l.b16 %v2020
  %v2231 = vunpack.c.l.b16 %v2021
  %v2232 = vunpack.c.l.b16 %v2022
  %v2233 = vunpack.c.l.b16 %v2023
  %v2234 = vunpack.c.h.b16 %v2018
  %v2235 = vunpack.c.h.b16 %v2019
  %v2236 = vunpack.c.h.b16 %v2020
  %v2237 = vunpack.c.h.b16 %v2021
  %v2238 = vunpack.c.h.b16 %v2022
  %v2239 = vunpack.c.h.b16 %v2023
  %v2240 = vunpack.c.l.b16 %v2024
  %v2241 = vunpack.c.l.b16 %v2025
  %v2242 = vunpack.c.l.b16 %v2026
  %v2243 = vunpack.c.l.b16 %v2027
  %v2244 = vunpack.c.l.b16 %v2028
  %v2245 = vunpack.c.l.b16 %v2029
  %v2246 = vunpack.c.h.b16 %v2024
  %v2247 = vunpack.c.h.b16 %v2025
  %v2248 = vunpack.c.h.b16 %v2026
  %v2249 = vunpack.c.h.b16 %v2027
  %v2250 = vunpack.c.h.b16 %v2028
  %v2251 = vunpack.c.h.b16 %v2029
  %v2252 = vunpack.c.l.b16 %v2030
  %v2253 = vunpack.c.l.b16 %v2031
  %v2254 = vunpack.c.l.b16 %v2032
  %v2255 = vunpack.c.l.b16 %v2033
  %v2256 = vunpack.c.l.b16 %v2034
  %v2257 = vunpack.c.l.b16 %v2035
  %v2258 = vunpack.c.h.b16 %v2030
  %v2259 = vunpack.c.h.b16 %v2031
  %v2260 = vunpack.c.h.b16 %v2032
  %v2261 = vunpack.c.h.b16 %v2033
  %v2262 = vunpack.c.h.b16 %v2034
  %v2263 = vunpack.c.h.b16 %v2035
  %v2264 = vunpack.c.l.b16 %v2036
  %v2265 = vunpack.c.l.b16 %v2037
  %v2266 = vunpack.c.l.b16 %v2038
  %v2267 = vunpack.c.l.b16 %v2039
  %v2268 = vunpack.c.l.b16 %v2040
  %v2269 = vunpack.c.l.b16 %v2041
  %v2270 = vunpack.c.h.b16 %v2036
  %v2271 = vunpack.c.h.b16 %v2037
  %v2272 = vunpack.c.h.b16 %v2038
  %v2273 = vunpack.c.h.b16 %v2039
  %v2274 = vunpack.c.h.b16 %v2040
  %v2275 = vunpack.c.h.b16 %v2041
  %v2276 = vunpack.c.l.b16 %v2042
  %v2277 = vunpack.c.l.b16 %v2043
  %v2278 = vunpack.c.l.b16 %v2044
  %v2279 = vunpack.c.l.b16 %v2045
  %v2280 = vunpack.c.l.b16 %v2046
  %v2281 = vunpack.c.l.b16 %v2047
  %v2282 = vunpack.c.h.b16 %v2042
  %v2283 = vunpack.c.h.b16 %v2043
  %v2284 = vunpack.c.h.b16 %v2044
  %v2285 = vunpack.c.h.b16 %v2045
  %v2286 = vunpack.c.h.b16 %v2046
  %v2287 = vunpack.c.h.b16 %v2047
  %v2288 = vunpack.c.l.b16 %v2048
  %v2289 = vunpack.c.l.b16 %v2049
  %v2290 = vunpack.c.l.b16 %v2050
  %v2291 = vunpack.c.l.b16 %v2051
  %v2292 = vunpack.c.l.b16 %v2052
  %v2293 = vunpack.c.l.b16 %v2053
  %v2294 = vunpack.c.h.b16 %v2048
  %v2295 = vunpack.c.h.b16 %v2049
  %v2296 = vunpack.c.h.b16 %v2050
  %v2297 = vunpack.c.h.b16 %v2051
  %v2298 = vunpack.c.h.b16 %v2052
  %v2299 = vunpack.c.h.b16 %v2053
  %v2300 = vunpack.c.l.b16 %v2054
  %v2301 = vunpack.c.l.b16 %v2055
  %v2302 = vunpack.c.l.b16 %v2056
  %v2303 = vunpack.c.l.b16 %v2057
  %v2304 = vunpack.c.l.b16 %v2058
  %v2305 = vunpack.c.l.b16 %v2059
  %v2306 = vunpack.c.h.b16 %v2054
  %v2307 = vunpack.c.h.b16 %v2055
  %v2308 = vunpack.c.h.b16 %v2056
  %v2309 = vunpack.c.h.b16 %v2057
  %v2310 = vunpack.c.h.b16 %v2058
  %v2311 = vunpack.c.h.b16 %v2059
  %v2312 = vunpack.c.l.b16 %v2060
  %v2313 = vunpack.c.l.b16 %v2061
  %v2314 = vunpack.c.l.b16 %v2062
  %v2315 = vunpack.c.l.b16 %v2063
  %v2316 = vunpack.c.l.b16 %v2064
  %v2317 = vunpack.c.l.b16 %v2065
  %v2318 = vunpack.c.h.b16 %v2060
  %v2319 = vunpack.c.h.b16 %v2061
  %v2320 = vunpack.c.h.b16 %v2062
  %v2321 = vunpack.c.h.b16 %v2063
  %v2322 = vunpack.c.h.b16 %v2064
  %v2323 = vunpack.c.h.b16 %v2065
  %v2324 = vunpack.c.l.b16 %v2066
  %v2325 = vunpack.c.l.b16 %v2067
  %v2326 = vunpack.c.l.b16 %v2068
  %v2327 = vunpack.c.l.b16 %v2069
  %v2328 = vunpack.c.l.b16 %v2070
  %v2329 = vunpack.c.l.b16 %v2071
  %v2330 = vunpack.c.h.b16 %v2066
  %v2331 = vunpack.c.h.b16 %v2067
  %v2332 = vunpack.c.h.b16 %v2068
  %v2333 = vunpack.c.h.b16 %v2069
  %v2334 = vunpack.c.h.b16 %v2070
  %v2335 = vunpack.c.h.b16 %v2071
  %v2336 = vunpack.c.l.b16 %v2072
  %v2337 = vunpack.c.l.b16 %v2073
  %v2338 = vunpack.c.l.b16 %v2074
  %v2339 = vunpack.c.l.b16 %v2075
  %v2340 = vunpack.c.l.b16 %v2076
  %v2341 = vunpack.c.l.b16 %v2077
  %v2342 = vunpack.c.h.b16 %v2072
  %v2343 = vunpack.c.h.b16 %v2073
  %v2344 = vunpack.c.h.b16 %v2074
  %v2345 = vunpack.c.h.b16 %v2075
  %v2346 = vunpack.c.h.b16 %v2076
  %v2347 = vunpack.c.h.b16 %v2077
  %v2348 = vunpack.c.l.b16 %v2078
  %v2349 = vunpack.c.l.b16 %v2079
  %v2350 = vunpack.c.l.b16 %v2080
  %v2351 = vunpack.c.l.b16 %v2081
  %v2352 = vunpack.c.l.b16 %v2082
  %v2353 = vunpack.c.l.b16 %v2083
  %v2354 = vunpack.c.h.b16 %v2078
  %v2355 = vunpack.c.h.b16 %v2079
  %v2356 = vunpack.c.h.b16 %v2080
  %v2357 = vunpack.c.h.b16 %v2081
  %v2358 = vunpack.c.h.b16 %v2082
  %v2359 = vunpack.c.h.b16 %v2083
  %v2360 = vunpack.c.l.b16 %v2084
  %v2361 = vunpack.c.l.b16 %v2085
  %v2362 = vunpack.c.l.b16 %v2086
  %v2363 = vunpack.c.l.b16 %v2087
  %v2364 = vunpack.c.l.b16 %v2088
  %v2365 = vunpack.c.l.b16 %v2089
  %v2366 = vunpack.c.h.b16 %v2084
  %v2367 = vunpack.c.h.b16 %v2085
  %v2368 = vunpack.c.h.b16 %v2086
  %v2369 = vunpack.c.h.b16 %v2087
  %v2370 = vunpack.c.h.b16 %v2088
  %v2371 = vunpack.c.h.b16 %v2089
  %v2372 = vunpack.c.l.b16 %v2090
  %v2373 = vunpack.c.l.b16 %v2091
  %v2374 = vunpack.c.l.b16 %v2092
  %v2375 = vunpack.c.l.b16 %v2093
  %v2376 = vunpack.c.l.b16 %v2094
  %v2377 = vunpack.c.l.b16 %v2095
  %v2378 = vunpack.c.h.b16 %v2090
  %v2379 = vunpack.c.h.b16 %v2091
  %v2380 = vunpack.c.h.b16 %v2092
  %v2381 = vunpack.c.h.b16 %v2093
  %v2382 = vunpack.c.h.b16 %v2094
  %v2383 = vunpack.c.h.b16 %v2095
  %v2384 = vpack.c.b16 %v2193, %v2192
  %v2385 = vpack.c.b16 %v2195, %v2194
  %v2386 = vpack.c.b16 %v2197, %v2196
  %v2387 = vpack.c.b16 %v2199, %v2198
  %v2388 = vpack.c.b16 %v2201, %v2200
  %v2389 = vpack.c.b16 %v2203, %v2202
  %v2390 = vpack.c.b16 %v2205, %v2204
  %v2391 = vpack.c.b16 %v2207, %v2206
  %v2392 = vpack.c.b16 %v2209, %v2208
  %v2393 = vpack.c.b16 %v2211, %v2210
  %v2394 = vpack.c.b16 %v2213, %v2212
  %v2395 = vpack.c.b16 %v2215, %v2214
  %v2396 = vpack.c.b16 %v2217, %v2216
  %v2397 = vpack.c.b16 %v2219, %v2218
  %v2398 = vpack.c.b16 %v2221, %v2220
  %v2399 = vpack.c.b16 %v2223, %v2222
  %v2400 = vpack.c.b16 %v2225, %v2224
  %v2401 = vpack.c.b16 %v2227, %v2226
  %v2402 = vpack.c.b16 %v2229, %v2228
  %v2403 = vpack.c.b16 %v2231, %v2230
  %v2404 = vpack.c.b16 %v2233, %v2232
  %v2405 = vpack.c.b16 %v2235, %v2234
  %v2406 = vpack.c.b16 %v2237, %v2236
  %v2407 = vpack.c.b16 %v2239, %v2238
  %v2408 = vpack.c.b16 %v2241, %v2240
  %v2409 = vpack.c.b16 %v2243, %v2242
  %v2410 = vpack.c.b16 %v2245, %v2244
  %v2411 = vpack.c.b16 %v2247, %v2246
  %v2412 = vpack.c.b16 %v2249, %v2248
  %v2413 = vpack.c.b16 %v2251, %v2250
  %v2414 = vpack.c.b16 %v2253, %v2252
  %v2415 = vpack.c.b16 %v2255, %v2254
  %v2416 = vpack.c.b16 %v2257, %v2256
  %v2417 = vpack.c.b16 %v2259, %v2258
  %v2418 = vpack.c.b16 %v2261, %v2260
  %v2419 = vpack.c.b16 %v2263, %v2262
  %v2420 = vpack.c.b16 %v2265, %v2264
  %v2421 = vpack.c.b16 %v2267, %v2266
  %v2422 = vpack.c.b16 %v2269, %v2268
  %v2423 = vpack.c.b16 %v2271, %v2270
  %v2424 = vpack.c.b16 %v2273, %v2272
  %v2425 = vpack.c.b16 %v2275, %v2274
  %v2426 = vpack.c.b16 %v2277, %v2276
  %v2427 = vpack.c.b16 %v2279, %v2278
  %v2428 = vpack.c.b16 %v2281, %v2280
  %v2429 = vpack.c.b16 %v2283, %v2282
  %v2430 = vpack.c.b16 %v2285, %v2284
  %v2431 = vpack.c.b16 %v2287, %v2286
  %v2432 = vpack.c.b16 %v2289, %v2288
  %v2433 = vpack.c.b16 %v2291, %v2290
  %v2434 = vpack.c.b16 %v2293, %v2292
  %v2435 = vpack.c.b16 %v2295, %v2294
  %v2436 = vpack.c.b16 %v2297, %v2296
  %v2437 = vpack.c.b16 %v2299, %v2298
  %v2438 = vpack.c.b16 %v2301, %v2300
  %v2439 = vpack.c.b16 %v2303, %v2302
  %v2440 = vpack.c.b16 %v2305, %v2304
  %v2441 = vpack.c.b16 %v2307, %v2306
  %v2442 = vpack.c.b16 %v2309, %v2308
  %v2443 = vpack.c.b16 %v2311, %v2310
  %v2444 = vpack.c.b16 %v2313, %v2312
  %v2445 = vpack.c.b16 %v2315, %v2314
  %v2446 = vpack.c.b16 %v2317, %v2316
  %v2447 = vpack.c.b16 %v2319, %v2318
  %v2448 = vpack.c.b16 %v2321, %v2320
  %v2449 = vpack.c.b16 %v2323, %v2322
  %v2450 = vpack.c.b16 %v2325, %v2324
  %v2451 = vpack.c.b16 %v2327, %v2326
  %v2452 = vpack.c.b16 %v2329, %v2328
  %v2453 = vpack.c.b16 %v2331, %v2330
  %v2454 = vpack.c.b16 %v2333, %v2332
  %v2455 = vpack.c.b16 %v2335, %v2334
  %v2456 = vpack.c.b16 %v2337, %v2336
  %v2457 = vpack.c.b16 %v2339, %v2338
  %v2458 = vpack.c.b16 %v2341, %v2340
  %v2459 = vpack.c.b16 %v2343, %v2342
  %v2460 = vpack.c.b16 %v2345, %v2344
  %v2461 = vpack.c.b16 %v2347, %v2346
  %v2462 = vpack.c.b16 %v2349, %v2348
  %v2463 = vpack.c.b16 %v2351, %v2350
  %v2464 = vpack.c.b16 %v2353, %v2352
  %v2465 = vpack.c.b16 %v2355, %v2354
  %v2466 = vpack.c.b16 %v2357, %v2356
  %v2467 = vpack.c.b16 %v2359, %v2358
  %v2468 = vpack.c.b16 %v2361, %v2360
  %v2469 = vpack.c.b16 %v2363, %v2362
  %v2470 = vpack.c.b16 %v2365, %v2364
  %v2471 = vpack.c.b16 %v2367, %v2366
  %v2472 = vpack.c.b16 %v2369, %v2368
  %v2473 = vpack.c.b16 %v2371, %v2370
  %v2474 = vpack.c.b16 %v2373, %v2372
  %v2475 = vpack.c.b16 %v2375, %v2374
  %v2476 = vpack.c.b16 %v2377, %v2376
  %v2477 = vpack.c.b16 %v2379, %v2378
  %v2478 = vpack.c.b16 %v2381, %v2380
  %v2479 = vpack.c.b16 %v2383, %v2382
  %2576 = vst [vmem:[%s5] sm:$0xff] %v2384
  %2577 = vst [vmem:[%s5 + $0x8] sm:$0xff] %v2385
  %2578 = vst [vmem:[%s5 + $0x10] sm:$0xff] %v2386
  %2579 = vst [vmem:[%s5 + $0x18] sm:$0xff] %v2387
  %2580 = vst [vmem:[%s5 + $0x20] sm:$0xff] %v2388
  %2581 = vst [vmem:[%s5 + $0x28] sm:$0xff] %v2389
  %2582 = vst [vmem:[%s5 + $0x30] sm:$0xff] %v2390
  %2583 = vst [vmem:[%s5 + $0x38] sm:$0xff] %v2391
  %2584 = vst [vmem:[%s5 + $0x40] sm:$0xff] %v2392
  %2585 = vst [vmem:[%s5 + $0x48] sm:$0xff] %v2393
  %2586 = vst [vmem:[%s5 + $0x50] sm:$0xff] %v2394
  %2587 = vst [vmem:[%s5 + $0x58] sm:$0xff] %v2395
  %2588 = vst [vmem:[%s5 + $0x60] sm:$0xff] %v2396
  %2589 = vst [vmem:[%s5 + $0x68] sm:$0xff] %v2397
  %2590 = vst [vmem:[%s5 + $0x70] sm:$0xff] %v2398
  %2591 = vst [vmem:[%s5 + $0x78] sm:$0xff] %v2399
  %2592 = vst [vmem:[%s5 + $0x80] sm:$0xff] %v2400
  %2593 = vst [vmem:[%s5 + $0x88] sm:$0xff] %v2401
  %2594 = vst [vmem:[%s5 + $0x90] sm:$0xff] %v2402
  %2595 = vst [vmem:[%s5 + $0x98] sm:$0xff] %v2403
  %2596 = vst [vmem:[%s5 + $0xa0] sm:$0xff] %v2404
  %2597 = vst [vmem:[%s5 + $0xa8] sm:$0xff] %v2405
  %2598 = vst [vmem:[%s5 + $0xb0] sm:$0xff] %v2406
  %2599 = vst [vmem:[%s5 + $0xb8] sm:$0xff] %v2407
  %2600 = vst [vmem:[%s5 + $0xc0] sm:$0xff] %v2408
  %2601 = vst [vmem:[%s5 + $0xc8] sm:$0xff] %v2409
  %2602 = vst [vmem:[%s5 + $0xd0] sm:$0xff] %v2410
  %2603 = vst [vmem:[%s5 + $0xd8] sm:$0xff] %v2411
  %2604 = vst [vmem:[%s5 + $0xe0] sm:$0xff] %v2412
  %2605 = vst [vmem:[%s5 + $0xe8] sm:$0xff] %v2413
  %2606 = vst [vmem:[%s5 + $0xf0] sm:$0xff] %v2414
  %2607 = vst [vmem:[%s5 + $0xf8] sm:$0xff] %v2415
  %2608 = vst [vmem:[%s5 + $0x100] sm:$0xff] %v2416
  %2609 = vst [vmem:[%s5 + $0x108] sm:$0xff] %v2417
  %2610 = vst [vmem:[%s5 + $0x110] sm:$0xff] %v2418
  %2611 = vst [vmem:[%s5 + $0x118] sm:$0xff] %v2419
  %2612 = vst [vmem:[%s5 + $0x120] sm:$0xff] %v2420
  %2613 = vst [vmem:[%s5 + $0x128] sm:$0xff] %v2421
  %2614 = vst [vmem:[%s5 + $0x130] sm:$0xff] %v2422
  %2615 = vst [vmem:[%s5 + $0x138] sm:$0xff] %v2423
  %2616 = vst [vmem:[%s5 + $0x140] sm:$0xff] %v2424
  %2617 = vst [vmem:[%s5 + $0x148] sm:$0xff] %v2425
  %2618 = vst [vmem:[%s5 + $0x150] sm:$0xff] %v2426
  %2619 = vst [vmem:[%s5 + $0x158] sm:$0xff] %v2427
  %2620 = vst [vmem:[%s5 + $0x160] sm:$0xff] %v2428
  %2621 = vst [vmem:[%s5 + $0x168] sm:$0xff] %v2429
  %2622 = vst [vmem:[%s5 + $0x170] sm:$0xff] %v2430
  %2623 = vst [vmem:[%s5 + $0x178] sm:$0xff] %v2431
  %2624 = vst [vmem:[%s5 + $0x180] sm:$0xff] %v2432
  %2625 = vst [vmem:[%s5 + $0x188] sm:$0xff] %v2433
  %2626 = vst [vmem:[%s5 + $0x190] sm:$0xff] %v2434
  %2627 = vst [vmem:[%s5 + $0x198] sm:$0xff] %v2435
  %2628 = vst [vmem:[%s5 + $0x1a0] sm:$0xff] %v2436
  %2629 = vst [vmem:[%s5 + $0x1a8] sm:$0xff] %v2437
  %2630 = vst [vmem:[%s5 + $0x1b0] sm:$0xff] %v2438
  %2631 = vst [vmem:[%s5 + $0x1b8] sm:$0xff] %v2439
  %2632 = vst [vmem:[%s5 + $0x1c0] sm:$0xff] %v2440
  %2633 = vst [vmem:[%s5 + $0x1c8] sm:$0xff] %v2441
  %2634 = vst [vmem:[%s5 + $0x1d0] sm:$0xff] %v2442
  %2635 = vst [vmem:[%s5 + $0x1d8] sm:$0xff] %v2443
  %2636 = vst [vmem:[%s5 + $0x1e0] sm:$0xff] %v2444
  %2637 = vst [vmem:[%s5 + $0x1e8] sm:$0xff] %v2445
  %2638 = vst [vmem:[%s5 + $0x1f0] sm:$0xff] %v2446
  %2639 = vst [vmem:[%s5 + $0x1f8] sm:$0xff] %v2447
  %2640 = vst [vmem:[%s5 + $0x200] sm:$0xff] %v2448
  %2641 = vst [vmem:[%s5 + $0x208] sm:$0xff] %v2449
  %2642 = vst [vmem:[%s5 + $0x210] sm:$0xff] %v2450
  %2643 = vst [vmem:[%s5 + $0x218] sm:$0xff] %v2451
  %2644 = vst [vmem:[%s5 + $0x220] sm:$0xff] %v2452
  %2645 = vst [vmem:[%s5 + $0x228] sm:$0xff] %v2453
  %2646 = vst [vmem:[%s5 + $0x230] sm:$0xff] %v2454
  %2647 = vst [vmem:[%s5 + $0x238] sm:$0xff] %v2455
  %2648 = vst [vmem:[%s5 + $0x240] sm:$0xff] %v2456
  %2649 = vst [vmem:[%s5 + $0x248] sm:$0xff] %v2457
  %2650 = vst [vmem:[%s5 + $0x250] sm:$0xff] %v2458
  %2651 = vst [vmem:[%s5 + $0x258] sm:$0xff] %v2459
  %2652 = vst [vmem:[%s5 + $0x260] sm:$0xff] %v2460
  %2653 = vst [vmem:[%s5 + $0x268] sm:$0xff] %v2461
  %2654 = vst [vmem:[%s5 + $0x270] sm:$0xff] %v2462
  %2655 = vst [vmem:[%s5 + $0x278] sm:$0xff] %v2463
  %2656 = vst [vmem:[%s5 + $0x280] sm:$0xff] %v2464
  %2657 = vst [vmem:[%s5 + $0x288] sm:$0xff] %v2465
  %2658 = vst [vmem:[%s5 + $0x290] sm:$0xff] %v2466
  %2659 = vst [vmem:[%s5 + $0x298] sm:$0xff] %v2467
  %2660 = vst [vmem:[%s5 + $0x2a0] sm:$0xff] %v2468
  %2661 = vst [vmem:[%s5 + $0x2a8] sm:$0xff] %v2469
  %2662 = vst [vmem:[%s5 + $0x2b0] sm:$0xff] %v2470
  %2663 = vst [vmem:[%s5 + $0x2b8] sm:$0xff] %v2471
  %2664 = vst [vmem:[%s5 + $0x2c0] sm:$0xff] %v2472
  %2665 = vst [vmem:[%s5 + $0x2c8] sm:$0xff] %v2473
  %2666 = vst [vmem:[%s5 + $0x2d0] sm:$0xff] %v2474
  %2667 = vst [vmem:[%s5 + $0x2d8] sm:$0xff] %v2475
  %2668 = vst [vmem:[%s5 + $0x2e0] sm:$0xff] %v2476
  %2669 = vst [vmem:[%s5 + $0x2e8] sm:$0xff] %v2477
  %2670 = vst [vmem:[%s5 + $0x2f0] sm:$0xff] %v2478
  %2671 = vst [vmem:[%s5 + $0x2f8] sm:$0xff] %v2479
  // Predicated region
  $region22: #{t5_decoder_lm_forward.7} parent=0 // pred_check
    _
  $region23: #{t5_decoder_lm_forward.7} parent=0 // pred_check_branch
    %2673 = sbr.rel (0) target = $region25
  $region24: #{t5_decoder_lm_forward.7} parent=0 // pred_region
    _
  $region25: #{t5_decoder_lm_forward.7} parent=0 // pred_fallthru
    _
  // Predicated region
  $region26: #{t5_decoder_lm_forward.7} parent=0 // pred_check
    _
  $region27: #{t5_decoder_lm_forward.7} parent=0 // pred_check_branch
    %2675 = sbr.rel (0) target = $region29
  $region28: #{t5_decoder_lm_forward.7} parent=0 // pred_region
    _
  $region29: #{t5_decoder_lm_forward.7} parent=0 // pred_fallthru
    _

// kernel: t5_decoder_lm_forward.8
$region0: #{t5_decoder_lm_forward.8}
  #allocation0 [shape = 'u32[]', space=smem, size = 0x4, offset = 0x4, fixed_abs, tag = 'smem constant byte address 0x4 - core index']
  #allocation1 [shape = 'u32[144,128]{1,0:T(1,128)}', space=vmem, size = 0x12000, scoped, tag = 'internal scratch']
  %s0 = inlined_call_operand.vmem [shape: f32[64], index: 0, kind: input, shape index: {}]
  %s1 = inlined_call_operand.vmem [shape: bf16[2,2,128,128], index: 1, kind: input, shape index: {}]
  %s2 = inlined_call_operand.vmem [shape: bf16[2,2,128,128], index: 2, kind: input, shape index: {}]
  %s3 = inlined_call_operand.vmem [shape: bf16[2,2,128,128], index: 3, kind: input, shape index: {}]
  %s4 = inlined_call_operand.vmem [shape: bf16[2,2,128,128], index: 4, kind: output, shape index: {}]
  %s5 = sld [smem:[#allocation0]]
  $region53: #{t5_decoder_lm_forward.8} parent=0
    _
  %s7 = ssub.s32 1, %s5
  %s8 = scalar_select 0, %s7, %s5
  $region1: #{t5_decoder_lm_forward.8} parent=0
    #allocation2 [shape = 'u8[512]{0}', space=smem, size = 0x200, scoped, tag = 'input window, operand 0, single buffered']
    #allocation3 [shape = 's32[2]{0}', space=sflag, size = 0x8, scoped, tag = 'scoped memory for t5_decoder_lm_forward.8']
    %9 = vsyncpa [#allocation3], 0
    loop: start=0, step=1, limit=6
    $region2: #{t5_decoder_lm_forward.8} parent=1 // loop_pre_header
      _
    $region3: #{t5_decoder_lm_forward.8} parent=1 // loop_header
      %s11 = sphi 0, %s15
      %p12 = scmp.ge.s32.totalorder %s11, 6
      %s18 = sphi 0, %s30
      %s19 = sphi 0, %s26
      %s20 = sphi 0, %s18
      %s21 = sphi 0, %s19
      %s22 = sphi 0, %s20
      %s23 = sphi 0, %s21
      %s31 = sphi 0, %s31
      %s33 = sphi 0, %s31
      %s34 = sphi 0, %s33
      %s48 = sphi 0, %s34
      %s56 = sphi 0, %s58
      %s59 = sphi 0, %s56
      %s60 = sphi 0, %s59
      %s76 = sphi 0, %s60
      %s84 = sphi 0, %s86
      %s87 = sphi 0, %s84
      %s88 = sphi 0, %s87
      %s104 = sphi 0, %s88
      %s112 = sphi 0, %s114
      %s115 = sphi 0, %s112
      %s116 = sphi 0, %s115
      %s132 = sphi 0, %s116
      %s140 = sphi 0, %s142
      %s143 = sphi 0, %s140
      %s144 = sphi 0, %s143
      %s160 = sphi 0, %s144
    $region4: #{t5_decoder_lm_forward.8} parent=1 // loop_header_branch
      %14 = sbr.rel (%p12) target = $region8
    $region5: #{t5_decoder_lm_forward.8} parent=1 // loop_body
      %s16 = ssub.s32 %s11, 1
      %s17 = ssub.s32 %s11, 2
      %s24 = sadd.s32 1, %s19
      %p25 = scmp.ge.s32.totalorder %s24, 2
      %s26 = scalar_select %p25, 0, %s24
      %s27 = sadd.s32 1, %s18
      %s28 = scalar_select %p25, %s27, %s18
      %p29 = scmp.ge.s32.totalorder %s28, 2
      %s30 = scalar_select %p29, 0, %s28
      %s32 = sadd.s32 %s31, 1
      %p35 = scmp.eq.s32.totalorder %s11, 3
      %p36 = scmp.ne.s32.totalorder %s31, %s33
      %p37 = scmp.eq.s32.totalorder %s11, 0
      %p38 = por %p36, %p37
      %p39 = scmp.ne.s32.totalorder %s31, %s33
      %p40 = scmp.eq.s32.totalorder %s16, 3
      %p41 = por %p39, %p40
      %p42 = scmp.ne.s32.totalorder %s33, %s34
      %p43 = scmp.eq.s32.totalorder %s16, 0
      %p44 = por %p42, %p43
      %p45 = scmp.ne.s32.totalorder %s33, %s34
      %p46 = scmp.eq.s32.totalorder %s17, 3
      %p47 = por %p45, %p46
      %p49 = scmp.ne.s32.totalorder %s34, %s48
      %p50 = scmp.eq.s32.totalorder %s17, 0
      %p51 = por %p49, %p50
      %s52 = ssub.s32 %s18, %s30
      %s53 = ssub.s32 %s19, %s26
      %s54 = sor.u32 %s52, %s53
      %p55 = scmp.eq.s32.totalorder %s54, 0
      %s57 = sadd.s32 %s56, 1
      %s58 = scalar_select %p55, %s56, %s57
      %p61 = pneg %p55
      %p62 = scmp.eq.s32.totalorder %s11, 3
      %p63 = por %p61, %p62
      %p64 = scmp.ne.s32.totalorder %s56, %s59
      %p65 = scmp.eq.s32.totalorder %s11, 0
      %p66 = por %p64, %p65
      %p67 = scmp.ne.s32.totalorder %s56, %s59
      %p68 = scmp.eq.s32.totalorder %s16, 3
      %p69 = por %p67, %p68
      %p70 = scmp.ne.s32.totalorder %s59, %s60
      %p71 = scmp.eq.s32.totalorder %s16, 0
      %p72 = por %p70, %p71
      %p73 = scmp.ne.s32.totalorder %s59, %s60
      %p74 = scmp.eq.s32.totalorder %s17, 3
      %p75 = por %p73, %p74
      %p77 = scmp.ne.s32.totalorder %s60, %s76
      %p78 = scmp.eq.s32.totalorder %s17, 0
      %p79 = por %p77, %p78
      %s80 = ssub.s32 %s18, %s30
      %s81 = ssub.s32 %s19, %s26
      %s82 = sor.u32 %s80, %s81
      %p83 = scmp.eq.s32.totalorder %s82, 0
      %s85 = sadd.s32 %s84, 1
      %s86 = scalar_select %p83, %s84, %s85
      %p89 = pneg %p83
      %p90 = scmp.eq.s32.totalorder %s11, 3
      %p91 = por %p89, %p90
      %p92 = scmp.ne.s32.totalorder %s84, %s87
      %p93 = scmp.eq.s32.totalorder %s11, 0
      %p94 = por %p92, %p93
      %p95 = scmp.ne.s32.totalorder %s84, %s87
      %p96 = scmp.eq.s32.totalorder %s16, 3
      %p97 = por %p95, %p96
      %p98 = scmp.ne.s32.totalorder %s87, %s88
      %p99 = scmp.eq.s32.totalorder %s16, 0
      %p100 = por %p98, %p99
      %p101 = scmp.ne.s32.totalorder %s87, %s88
      %p102 = scmp.eq.s32.totalorder %s17, 3
      %p103 = por %p101, %p102
      %p105 = scmp.ne.s32.totalorder %s88, %s104
      %p106 = scmp.eq.s32.totalorder %s17, 0
      %p107 = por %p105, %p106
      %s108 = ssub.s32 %s18, %s30
      %s109 = ssub.s32 %s19, %s26
      %s110 = sor.u32 %s108, %s109
      %p111 = scmp.eq.s32.totalorder %s110, 0
      %s113 = sadd.s32 %s112, 1
      %s114 = scalar_select %p111, %s112, %s113
      %p117 = pneg %p111
      %p118 = scmp.eq.s32.totalorder %s11, 3
      %p119 = por %p117, %p118
      %p120 = scmp.ne.s32.totalorder %s112, %s115
      %p121 = scmp.eq.s32.totalorder %s11, 0
      %p122 = por %p120, %p121
      %p123 = scmp.ne.s32.totalorder %s112, %s115
      %p124 = scmp.eq.s32.totalorder %s16, 3
      %p125 = por %p123, %p124
      %p126 = scmp.ne.s32.totalorder %s115, %s116
      %p127 = scmp.eq.s32.totalorder %s16, 0
      %p128 = por %p126, %p127
      %p129 = scmp.ne.s32.totalorder %s115, %s116
      %p130 = scmp.eq.s32.totalorder %s17, 3
      %p131 = por %p129, %p130
      %p133 = scmp.ne.s32.totalorder %s116, %s132
      %p134 = scmp.eq.s32.totalorder %s17, 0
      %p135 = por %p133, %p134
      %s136 = ssub.s32 %s18, %s30
      %s137 = ssub.s32 %s19, %s26
      %s138 = sor.u32 %s136, %s137
      %p139 = scmp.eq.s32.totalorder %s138, 0
      %s141 = sadd.s32 %s140, 1
      %s142 = scalar_select %p139, %s140, %s141
      %p145 = pneg %p139
      %p146 = scmp.eq.s32.totalorder %s11, 3
      %p147 = por %p145, %p146
      %p148 = scmp.ne.s32.totalorder %s140, %s143
      %p149 = scmp.eq.s32.totalorder %s11, 0
      %p150 = por %p148, %p149
      %p151 = scmp.ne.s32.totalorder %s140, %s143
      %p152 = scmp.eq.s32.totalorder %s16, 3
      %p153 = por %p151, %p152
      %p154 = scmp.ne.s32.totalorder %s143, %s144
      %p155 = scmp.eq.s32.totalorder %s16, 0
      %p156 = por %p154, %p155
      %p157 = scmp.ne.s32.totalorder %s143, %s144
      %p158 = scmp.eq.s32.totalorder %s17, 3
      %p159 = por %p157, %p158
      %p161 = scmp.ne.s32.totalorder %s144, %s160
      %p162 = scmp.eq.s32.totalorder %s17, 0
      %p163 = por %p161, %p162
      %p164 = scmp.le.s32.totalorder 1, %s11
      %p165 = scmp.lt.s32.totalorder %s11, 5
      %p166 = pnand %p164, %p165
      %p167 = pneg %p166
      // Predicated region
      $region9: #{t5_decoder_lm_forward.8} parent=5 // pred_check
        _
      $region10: #{t5_decoder_lm_forward.8} parent=5 // pred_check_branch
        %169 = sbr.rel (%p166) target = $region12
      $region11: #{t5_decoder_lm_forward.8} parent=5 // pred_region
        %s170 = ssub.s32 %s11, 1
        // Predicated region
        $region13: #{t5_decoder_lm_forward.8} parent=11 // pred_check
          %p171 = pneg %p44
        $region14: #{t5_decoder_lm_forward.8} parent=11 // pred_check_branch
          %173 = sbr.rel (%p171) target = $region16
        $region15: #{t5_decoder_lm_forward.8} parent=11 // pred_region
          %s175 = ssub.s32 16, 16
          %176 = vsyncadd [#allocation3], %s175
          %s178 = sshll.u32 %s0, 4
          %s179 = int_to_ptr.vmem [resolvable:$true] %s178
          %181 = dma.vmem_to_smem %s179, 16, [#allocation2], [#allocation3]
        $region16: #{t5_decoder_lm_forward.8} parent=11 // pred_fallthru
          _
      $region12: #{t5_decoder_lm_forward.8} parent=5 // pred_fallthru
        _
      %p182 = scmp.lt.s32.totalorder %s11, 4
      // Predicated region
      $region17: #{t5_decoder_lm_forward.8} parent=5 // pred_check
        %p183 = pneg %p182
      $region18: #{t5_decoder_lm_forward.8} parent=5 // pred_check_branch
        %185 = sbr.rel (%p183) target = $region20
      $region19: #{t5_decoder_lm_forward.8} parent=5 // pred_region
        // Predicated region
        $region21: #{t5_decoder_lm_forward.8} parent=19 // pred_check
          %p186 = pneg %p66
        $region22: #{t5_decoder_lm_forward.8} parent=19 // pred_check_branch
          %188 = sbr.rel (%p186) target = $region24
        $region23: #{t5_decoder_lm_forward.8} parent=19 // pred_region
          %p189 = scmp.lt.s32.totalorder %s18, 1
          %s190 = scalar_select %p189, %s18, 1
          %p191 = scmp.lt.s32.totalorder %s19, 1
          %s192 = scalar_select %p191, %s19, 1
          %s193 = smul.addr %s192, 16
          %s194 = smul.addr %s190, 32
          %s195 = sadd.s32 %s193, %s194
          %s196 = smul.addr %s195, 4
          %s197 = scalar_lea.vmem %s1, %s196
        $region24: #{t5_decoder_lm_forward.8} parent=19 // pred_fallthru
          _
        // Predicated region
        $region25: #{t5_decoder_lm_forward.8} parent=19 // pred_check
          %p198 = pneg %p94
        $region26: #{t5_decoder_lm_forward.8} parent=19 // pred_check_branch
          %200 = sbr.rel (%p198) target = $region28
        $region27: #{t5_decoder_lm_forward.8} parent=19 // pred_region
          %p201 = scmp.lt.s32.totalorder %s18, 1
          %s202 = scalar_select %p201, %s18, 1
          %p203 = scmp.lt.s32.totalorder %s19, 1
          %s204 = scalar_select %p203, %s19, 1
          %s205 = smul.addr %s204, 16
          %s206 = smul.addr %s202, 32
          %s207 = sadd.s32 %s205, %s206
          %s208 = smul.addr %s207, 4
          %s209 = scalar_lea.vmem %s2, %s208
        $region28: #{t5_decoder_lm_forward.8} parent=19 // pred_fallthru
          _
        // Predicated region
        $region29: #{t5_decoder_lm_forward.8} parent=19 // pred_check
          %p210 = pneg %p122
        $region30: #{t5_decoder_lm_forward.8} parent=19 // pred_check_branch
          %212 = sbr.rel (%p210) target = $region32
        $region31: #{t5_decoder_lm_forward.8} parent=19 // pred_region
          %p213 = scmp.lt.s32.totalorder %s18, 1
          %s214 = scalar_select %p213, %s18, 1
          %p215 = scmp.lt.s32.totalorder %s19, 1
          %s216 = scalar_select %p215, %s19, 1
          %s217 = smul.addr %s216, 16
          %s218 = smul.addr %s214, 32
          %s219 = sadd.s32 %s217, %s218
          %s220 = smul.addr %s219, 4
          %s221 = scalar_lea.vmem %s3, %s220
        $region32: #{t5_decoder_lm_forward.8} parent=19 // pred_fallthru
          _
      $region20: #{t5_decoder_lm_forward.8} parent=5 // pred_fallthru
        _
      %p222 = scmp.le.s32.totalorder 1, %s11
      %p223 = scmp.lt.s32.totalorder %s11, 5
      %p224 = pnand %p222, %p223
      %p225 = pneg %p224
      // Predicated region
      $region33: #{t5_decoder_lm_forward.8} parent=5 // pred_check
        _
      $region34: #{t5_decoder_lm_forward.8} parent=5 // pred_check_branch
        %227 = sbr.rel (%p224) target = $region36
      $region35: #{t5_decoder_lm_forward.8} parent=5 // pred_region
        %s228 = ssub.s32 %s11, 1
        // Predicated region
        $region37: #{t5_decoder_lm_forward.8} parent=35 // pred_check
          %p229 = pneg %p44
        $region38: #{t5_decoder_lm_forward.8} parent=35 // pred_check_branch
          %231 = sbr.rel (%p229) target = $region40
        $region39: #{t5_decoder_lm_forward.8} parent=35 // pred_region
          %232 = dma.done [#allocation3], 16
        $region40: #{t5_decoder_lm_forward.8} parent=35 // pred_fallthru
          _
        %233 = sfence
        %p234 = pneg %p44
        %p235 = pneg %p41
        %p236 = scmp.lt.s32.totalorder %s20, 1
        %s237 = scalar_select %p236, %s20, 1
        %p238 = scmp.lt.s32.totalorder %s21, 1
        %s239 = scalar_select %p238, %s21, 1
        %s240 = smul.addr %s239, 16
        %s241 = smul.addr %s237, 32
        %s242 = sadd.s32 %s240, %s241
        %s243 = smul.addr %s242, 4
        %s244 = scalar_lea.vmem %s1, %s243
        %p245 = pneg %p72
        %p246 = pneg %p69
        %p247 = scmp.lt.s32.totalorder %s20, 1
        %s248 = scalar_select %p247, %s20, 1
        %p249 = scmp.lt.s32.totalorder %s21, 1
        %s250 = scalar_select %p249, %s21, 1
        %s251 = smul.addr %s250, 16
        %s252 = smul.addr %s248, 32
        %s253 = sadd.s32 %s251, %s252
        %s254 = smul.addr %s253, 4
        %s255 = scalar_lea.vmem %s2, %s254
        %p256 = pneg %p100
        %p257 = pneg %p97
        %p258 = scmp.lt.s32.totalorder %s20, 1
        %s259 = scalar_select %p258, %s20, 1
        %p260 = scmp.lt.s32.totalorder %s21, 1
        %s261 = scalar_select %p260, %s21, 1
        %s262 = smul.addr %s261, 16
        %s263 = smul.addr %s259, 32
        %s264 = sadd.s32 %s262, %s263
        %s265 = smul.addr %s264, 4
        %s266 = scalar_lea.vmem %s3, %s265
        %p267 = pneg %p128
        %p268 = pneg %p125
        %p269 = pneg %p156
        %p270 = pneg %p153
        %p271 = scmp.lt.s32.totalorder %s20, 1
        %s272 = scalar_select %p271, %s20, 1
        %p273 = scmp.lt.s32.totalorder %s21, 1
        %s274 = scalar_select %p273, %s21, 1
        %s275 = smul.addr %s274, 16
        %s276 = smul.addr %s272, 32
        %s277 = sadd.s32 %s275, %s276
        %s278 = smul.addr %s277, 4
        %s279 = scalar_lea.vmem %s4, %s278
        %p280 = scmp.lt.s32.totalorder %s20, 1
        %s281 = scalar_select %p280, %s20, 1
        %p282 = scmp.lt.s32.totalorder %s21, 1
        %s283 = scalar_select %p282, %s21, 1
        %s284 = smul.addr %s283, 16
        %s285 = smul.addr %s281, 32
        %s286 = sadd.s32 %s284, %s285
        %s287 = smul.addr %s286, 4
        %s288 = scalar_lea.vmem %s1, %s287
        %p289 = scmp.lt.s32.totalorder %s20, 1
        %s290 = scalar_select %p289, %s20, 1
        %p291 = scmp.lt.s32.totalorder %s21, 1
        %s292 = scalar_select %p291, %s21, 1
        %s293 = smul.addr %s292, 16
        %s294 = smul.addr %s290, 32
        %s295 = sadd.s32 %s293, %s294
        %s296 = smul.addr %s295, 4
        %s297 = scalar_lea.vmem %s2, %s296
        %p298 = scmp.lt.s32.totalorder %s20, 1
        %s299 = scalar_select %p298, %s20, 1
        %p300 = scmp.lt.s32.totalorder %s21, 1
        %s301 = scalar_select %p300, %s21, 1
        %s302 = smul.addr %s301, 16
        %s303 = smul.addr %s299, 32
        %s304 = sadd.s32 %s302, %s303
        %s305 = smul.addr %s304, 4
        %s306 = scalar_lea.vmem %s3, %s305
        %p307 = scmp.lt.s32.totalorder %s20, 1
        %s308 = scalar_select %p307, %s20, 1
        %p309 = scmp.lt.s32.totalorder %s21, 1
        %s310 = scalar_select %p309, %s21, 1
        %s311 = smul.addr %s310, 16
        %s312 = smul.addr %s308, 32
        %s313 = sadd.s32 %s311, %s312
        %s314 = smul.addr %s313, 4
        %s315 = scalar_lea.vmem %s4, %s314
        %v317 = vld [vmem:[%s288] sm:$0xf]
        %v318 = vld [vmem:[%s288 + $0x4] sm:$0xf]
        %v319 = vld [vmem:[%s288 + $0x8] sm:$0xf]
        %v320 = vld [vmem:[%s288 + $0xc] sm:$0xf]
        %v321 = vld [vmem:[%s288 + $0x10] sm:$0xf]
        %v322 = vld [vmem:[%s288 + $0x14] sm:$0xf]
        %v323 = vld [vmem:[%s288 + $0x18] sm:$0xf]
        %v324 = vld [vmem:[%s288 + $0x1c] sm:$0xf]
        %v325 = vld [vmem:[%s288 + $0x20] sm:$0xf]
        %v326 = vld [vmem:[%s288 + $0x24] sm:$0xf]
        %v327 = vld [vmem:[%s288 + $0x28] sm:$0xf]
        %v328 = vld [vmem:[%s288 + $0x2c] sm:$0xf]
        %v329 = vld [vmem:[%s288 + $0x30] sm:$0xf]
        %v330 = vld [vmem:[%s288 + $0x34] sm:$0xf]
        %v331 = vld [vmem:[%s288 + $0x38] sm:$0xf]
        %v332 = vld [vmem:[%s288 + $0x3c] sm:$0xf]
        %v333 = vld [vmem:[%s297] sm:$0xf]
        %v334 = vld [vmem:[%s297 + $0x4] sm:$0xf]
        %v335 = vld [vmem:[%s297 + $0x8] sm:$0xf]
        %v336 = vld [vmem:[%s297 + $0xc] sm:$0xf]
        %v337 = vld [vmem:[%s297 + $0x10] sm:$0xf]
        %v338 = vld [vmem:[%s297 + $0x14] sm:$0xf]
        %v339 = vld [vmem:[%s297 + $0x18] sm:$0xf]
        %v340 = vld [vmem:[%s297 + $0x1c] sm:$0xf]
        %v341 = vld [vmem:[%s297 + $0x20] sm:$0xf]
        %v342 = vld [vmem:[%s297 + $0x24] sm:$0xf]
        %v343 = vld [vmem:[%s297 + $0x28] sm:$0xf]
        %v344 = vld [vmem:[%s297 + $0x2c] sm:$0xf]
        %v345 = vld [vmem:[%s297 + $0x30] sm:$0xf]
        %v346 = vld [vmem:[%s297 + $0x34] sm:$0xf]
        %v347 = vld [vmem:[%s297 + $0x38] sm:$0xf]
        %v348 = vld [vmem:[%s297 + $0x3c] sm:$0xf]
        %v349 = vld [vmem:[%s306] sm:$0xf]
        %v350 = vld [vmem:[%s306 + $0x4] sm:$0xf]
        %v351 = vld [vmem:[%s306 + $0x8] sm:$0xf]
        %v352 = vld [vmem:[%s306 + $0xc] sm:$0xf]
        %v353 = vld [vmem:[%s306 + $0x10] sm:$0xf]
        %v354 = vld [vmem:[%s306 + $0x14] sm:$0xf]
        %v355 = vld [vmem:[%s306 + $0x18] sm:$0xf]
        %v356 = vld [vmem:[%s306 + $0x1c] sm:$0xf]
        %v357 = vld [vmem:[%s306 + $0x20] sm:$0xf]
        %v358 = vld [vmem:[%s306 + $0x24] sm:$0xf]
        %v359 = vld [vmem:[%s306 + $0x28] sm:$0xf]
        %v360 = vld [vmem:[%s306 + $0x2c] sm:$0xf]
        %v361 = vld [vmem:[%s306 + $0x30] sm:$0xf]
        %v362 = vld [vmem:[%s306 + $0x34] sm:$0xf]
        %v363 = vld [vmem:[%s306 + $0x38] sm:$0xf]
        %v364 = vld [vmem:[%s306 + $0x3c] sm:$0xf]
        %v365 = vlaneseq
        %v366 = vshrl.u32 %v365, 7
        %v367 = vadd.s32 %v366, 8
        %v368 = vadd.s32 %v366, 16
        %v369 = vadd.s32 %v366, 24
        %v370 = vadd.s32 %v366, 32
        %v371 = vadd.s32 %v366, 40
        %v372 = vadd.s32 %v366, 48
        %v373 = vadd.s32 %v366, 56
        %v374 = vadd.s32 %v366, 64
        %v375 = vadd.s32 %v366, 72
        %v376 = vadd.s32 %v366, 80
        %v377 = vadd.s32 %v366, 88
        %v378 = vadd.s32 %v366, 96
        %v379 = vadd.s32 %v366, 104
        %v380 = vadd.s32 %v366, 112
        %v381 = vadd.s32 %v366, 120
        %v382 = vlaneseq
        %v383 = vand.u32 %v382, 127
        %v384 = vsub.s32 %v383, %v366
        %v385 = vsub.s32 %v383, %v367
        %v386 = vsub.s32 %v383, %v368
        %v387 = vsub.s32 %v383, %v369
        %v388 = vsub.s32 %v383, %v370
        %v389 = vsub.s32 %v383, %v371
        %v390 = vsub.s32 %v383, %v372
        %v391 = vsub.s32 %v383, %v373
        %v392 = vsub.s32 %v383, %v374
        %v393 = vsub.s32 %v383, %v375
        %v394 = vsub.s32 %v383, %v376
        %v395 = vsub.s32 %v383, %v377
        %v396 = vsub.s32 %v383, %v378
        %v397 = vsub.s32 %v383, %v379
        %v398 = vsub.s32 %v383, %v380
        %v399 = vsub.s32 %v383, %v381
        %vm400 = vcmp.lt.s32.totalorder %v384, 0
        %v401 = vsub.s32 0, %v384
        %v402 = vsel %vm400, %v401, %v384
        %vm403 = vcmp.lt.s32.totalorder %v385, 0
        %v404 = vsub.s32 0, %v385
        %v405 = vsel %vm403, %v404, %v385
        %vm406 = vcmp.lt.s32.totalorder %v386, 0
        %v407 = vsub.s32 0, %v386
        %v408 = vsel %vm406, %v407, %v386
        %vm409 = vcmp.lt.s32.totalorder %v387, 0
        %v410 = vsub.s32 0, %v387
        %v411 = vsel %vm409, %v410, %v387
        %vm412 = vcmp.lt.s32.totalorder %v388, 0
        %v413 = vsub.s32 0, %v388
        %v414 = vsel %vm412, %v413, %v388
        %vm415 = vcmp.lt.s32.totalorder %v389, 0
        %v416 = vsub.s32 0, %v389
        %v417 = vsel %vm415, %v416, %v389
        %vm418 = vcmp.lt.s32.totalorder %v390, 0
        %v419 = vsub.s32 0, %v390
        %v420 = vsel %vm418, %v419, %v390
        %vm421 = vcmp.lt.s32.totalorder %v391, 0
        %v422 = vsub.s32 0, %v391
        %v423 = vsel %vm421, %v422, %v391
        %vm424 = vcmp.lt.s32.totalorder %v392, 0
        %v425 = vsub.s32 0, %v392
        %v426 = vsel %vm424, %v425, %v392
        %vm427 = vcmp.lt.s32.totalorder %v393, 0
        %v428 = vsub.s32 0, %v393
        %v429 = vsel %vm427, %v428, %v393
        %vm430 = vcmp.lt.s32.totalorder %v394, 0
        %v431 = vsub.s32 0, %v394
        %v432 = vsel %vm430, %v431, %v394
        %vm433 = vcmp.lt.s32.totalorder %v395, 0
        %v434 = vsub.s32 0, %v395
        %v435 = vsel %vm433, %v434, %v395
        %vm436 = vcmp.lt.s32.totalorder %v396, 0
        %v437 = vsub.s32 0, %v396
        %v438 = vsel %vm436, %v437, %v396
        %vm439 = vcmp.lt.s32.totalorder %v397, 0
        %v440 = vsub.s32 0, %v397
        %v441 = vsel %vm439, %v440, %v397
        %vm442 = vcmp.lt.s32.totalorder %v398, 0
        %v443 = vsub.s32 0, %v398
        %v444 = vsel %vm442, %v443, %v398
        %vm445 = vcmp.lt.s32.totalorder %v399, 0
        %v446 = vsub.s32 0, %v399
        %v447 = vsel %vm445, %v446, %v399
        %vm448 = vcmp.lt.s32.totalorder %v402, 31
        %v449 = vsel %vm448, %v402, 31
        %vm450 = vcmp.lt.s32.totalorder %v405, 31
        %v451 = vsel %vm450, %v405, 31
        %vm452 = vcmp.lt.s32.totalorder %v408, 31
        %v453 = vsel %vm452, %v408, 31
        %vm454 = vcmp.lt.s32.totalorder %v411, 31
        %v455 = vsel %vm454, %v411, 31
        %vm456 = vcmp.lt.s32.totalorder %v414, 31
        %v457 = vsel %vm456, %v414, 31
        %vm458 = vcmp.lt.s32.totalorder %v417, 31
        %v459 = vsel %vm458, %v417, 31
        %vm460 = vcmp.lt.s32.totalorder %v420, 31
        %v461 = vsel %vm460, %v420, 31
        %vm462 = vcmp.lt.s32.totalorder %v423, 31
        %v463 = vsel %vm462, %v423, 31
        %vm464 = vcmp.lt.s32.totalorder %v426, 31
        %v465 = vsel %vm464, %v426, 31
        %vm466 = vcmp.lt.s32.totalorder %v429, 31
        %v467 = vsel %vm466, %v429, 31
        %vm468 = vcmp.lt.s32.totalorder %v432, 31
        %v469 = vsel %vm468, %v432, 31
        %vm470 = vcmp.lt.s32.totalorder %v435, 31
        %v471 = vsel %vm470, %v435, 31
        %vm472 = vcmp.lt.s32.totalorder %v438, 31
        %v473 = vsel %vm472, %v438, 31
        %vm474 = vcmp.lt.s32.totalorder %v441, 31
        %v475 = vsel %vm474, %v441, 31
        %vm476 = vcmp.lt.s32.totalorder %v444, 31
        %v477 = vsel %vm476, %v444, 31
        %vm478 = vcmp.lt.s32.totalorder %v447, 31
        %v479 = vsel %vm478, %v447, 31
        %s480 = sld [smem:[#allocation2 + %s21]]
        %vm481 = vcmp.eq.s32.totalorder %v449, 0
        %vm482 = vcmp.eq.s32.totalorder %v451, 0
        %vm483 = vcmp.eq.s32.totalorder %v453, 0
        %vm484 = vcmp.eq.s32.totalorder %v455, 0
        %vm485 = vcmp.eq.s32.totalorder %v457, 0
        %vm486 = vcmp.eq.s32.totalorder %v459, 0
        %vm487 = vcmp.eq.s32.totalorder %v461, 0
        %vm488 = vcmp.eq.s32.totalorder %v463, 0
        %vm489 = vcmp.eq.s32.totalorder %v465, 0
        %vm490 = vcmp.eq.s32.totalorder %v467, 0
        %vm491 = vcmp.eq.s32.totalorder %v469, 0
        %vm492 = vcmp.eq.s32.totalorder %v471, 0
        %vm493 = vcmp.eq.s32.totalorder %v473, 0
        %vm494 = vcmp.eq.s32.totalorder %v475, 0
        %vm495 = vcmp.eq.s32.totalorder %v477, 0
        %vm496 = vcmp.eq.s32.totalorder %v479, 0
        %v497 = vstv %s480
        %v498 = vsel %vm481, %v497, 0.0
        %v499 = vsel %vm482, %v497, 0.0
        %v500 = vsel %vm483, %v497, 0.0
        %v501 = vsel %vm484, %v497, 0.0
        %v502 = vsel %vm485, %v497, 0.0
        %v503 = vsel %vm486, %v497, 0.0
        %v504 = vsel %vm487, %v497, 0.0
        %v505 = vsel %vm488, %v497, 0.0
        %v506 = vsel %vm489, %v497, 0.0
        %v507 = vsel %vm490, %v497, 0.0
        %v508 = vsel %vm491, %v497, 0.0
        %v509 = vsel %vm492, %v497, 0.0
        %v510 = vsel %vm493, %v497, 0.0
        %v511 = vsel %vm494, %v497, 0.0
        %v512 = vsel %vm495, %v497, 0.0
        %v513 = vsel %vm496, %v497, 0.0
        %v514 = vadd.f32 %v498, 0.0
        %v515 = vadd.f32 %v499, 0.0
        %v516 = vadd.f32 %v500, 0.0
        %v517 = vadd.f32 %v501, 0.0
        %v518 = vadd.f32 %v502, 0.0
        %v519 = vadd.f32 %v503, 0.0
        %v520 = vadd.f32 %v504, 0.0
        %v521 = vadd.f32 %v505, 0.0
        %v522 = vadd.f32 %v506, 0.0
        %v523 = vadd.f32 %v507, 0.0
        %v524 = vadd.f32 %v508, 0.0
        %v525 = vadd.f32 %v509, 0.0
        %v526 = vadd.f32 %v510, 0.0
        %v527 = vadd.f32 %v511, 0.0
        %v528 = vadd.f32 %v512, 0.0
        %v529 = vadd.f32 %v513, 0.0
        %s530 = sadd.s32 %s21, 2
        %s531 = sld [smem:[#allocation2 + %s530]]
        %vm532 = vcmp.eq.s32.totalorder %v449, 1
        %vm533 = vcmp.eq.s32.totalorder %v451, 1
        %vm534 = vcmp.eq.s32.totalorder %v453, 1
        %vm535 = vcmp.eq.s32.totalorder %v455, 1
        %vm536 = vcmp.eq.s32.totalorder %v457, 1
        %vm537 = vcmp.eq.s32.totalorder %v459, 1
        %vm538 = vcmp.eq.s32.totalorder %v461, 1
        %vm539 = vcmp.eq.s32.totalorder %v463, 1
        %vm540 = vcmp.eq.s32.totalorder %v465, 1
        %vm541 = vcmp.eq.s32.totalorder %v467, 1
        %vm542 = vcmp.eq.s32.totalorder %v469, 1
        %vm543 = vcmp.eq.s32.totalorder %v471, 1
        %vm544 = vcmp.eq.s32.totalorder %v473, 1
        %vm545 = vcmp.eq.s32.totalorder %v475, 1
        %vm546 = vcmp.eq.s32.totalorder %v477, 1
        %vm547 = vcmp.eq.s32.totalorder %v479, 1
        %v548 = vstv %s531
        %v549 = vsel %vm532, %v548, 0.0
        %v550 = vsel %vm533, %v548, 0.0
        %v551 = vsel %vm534, %v548, 0.0
        %v552 = vsel %vm535, %v548, 0.0
        %v553 = vsel %vm536, %v548, 0.0
        %v554 = vsel %vm537, %v548, 0.0
        %v555 = vsel %vm538, %v548, 0.0
        %v556 = vsel %vm539, %v548, 0.0
        %v557 = vsel %vm540, %v548, 0.0
        %v558 = vsel %vm541, %v548, 0.0
        %v559 = vsel %vm542, %v548, 0.0
        %v560 = vsel %vm543, %v548, 0.0
        %v561 = vsel %vm544, %v548, 0.0
        %v562 = vsel %vm545, %v548, 0.0
        %v563 = vsel %vm546, %v548, 0.0
        %v564 = vsel %vm547, %v548, 0.0
        %v565 = vadd.f32 %v514, %v549
        %v566 = vadd.f32 %v515, %v550
        %v567 = vadd.f32 %v516, %v551
        %v568 = vadd.f32 %v517, %v552
        %v569 = vadd.f32 %v518, %v553
        %v570 = vadd.f32 %v519, %v554
        %v571 = vadd.f32 %v520, %v555
        %v572 = vadd.f32 %v521, %v556
        %v573 = vadd.f32 %v522, %v557
        %v574 = vadd.f32 %v523, %v558
        %v575 = vadd.f32 %v524, %v559
        %v576 = vadd.f32 %v525, %v560
        %v577 = vadd.f32 %v526, %v561
        %v578 = vadd.f32 %v527, %v562
        %v579 = vadd.f32 %v528, %v563
        %v580 = vadd.f32 %v529, %v564
        %s581 = sadd.s32 %s21, 4
        %s582 = sld [smem:[#allocation2 + %s581]]
        %vm583 = vcmp.eq.s32.totalorder %v449, 2
        %vm584 = vcmp.eq.s32.totalorder %v451, 2
        %vm585 = vcmp.eq.s32.totalorder %v453, 2
        %vm586 = vcmp.eq.s32.totalorder %v455, 2
        %vm587 = vcmp.eq.s32.totalorder %v457, 2
        %vm588 = vcmp.eq.s32.totalorder %v459, 2
        %vm589 = vcmp.eq.s32.totalorder %v461, 2
        %vm590 = vcmp.eq.s32.totalorder %v463, 2
        %vm591 = vcmp.eq.s32.totalorder %v465, 2
        %vm592 = vcmp.eq.s32.totalorder %v467, 2
        %vm593 = vcmp.eq.s32.totalorder %v469, 2
        %vm594 = vcmp.eq.s32.totalorder %v471, 2
        %vm595 = vcmp.eq.s32.totalorder %v473, 2
        %vm596 = vcmp.eq.s32.totalorder %v475, 2
        %vm597 = vcmp.eq.s32.totalorder %v477, 2
        %vm598 = vcmp.eq.s32.totalorder %v479, 2
        %v599 = vstv %s582
        %v600 = vsel %vm583, %v599, 0.0
        %v601 = vsel %vm584, %v599, 0.0
        %v602 = vsel %vm585, %v599, 0.0
        %v603 = vsel %vm586, %v599, 0.0
        %v604 = vsel %vm587, %v599, 0.0
        %v605 = vsel %vm588, %v599, 0.0
        %v606 = vsel %vm589, %v599, 0.0
        %v607 = vsel %vm590, %v599, 0.0
        %v608 = vsel %vm591, %v599, 0.0
        %v609 = vsel %vm592, %v599, 0.0
        %v610 = vsel %vm593, %v599, 0.0
        %v611 = vsel %vm594, %v599, 0.0
        %v612 = vsel %vm595, %v599, 0.0
        %v613 = vsel %vm596, %v599, 0.0
        %v614 = vsel %vm597, %v599, 0.0
        %v615 = vsel %vm598, %v599, 0.0
        %v616 = vadd.f32 %v565, %v600
        %v617 = vadd.f32 %v566, %v601
        %v618 = vadd.f32 %v567, %v602
        %v619 = vadd.f32 %v568, %v603
        %v620 = vadd.f32 %v569, %v604
        %v621 = vadd.f32 %v570, %v605
        %v622 = vadd.f32 %v571, %v606
        %v623 = vadd.f32 %v572, %v607
        %v624 = vadd.f32 %v573, %v608
        %v625 = vadd.f32 %v574, %v609
        %v626 = vadd.f32 %v575, %v610
        %v627 = vadd.f32 %v576, %v611
        %v628 = vadd.f32 %v577, %v612
        %v629 = vadd.f32 %v578, %v613
        %v630 = vadd.f32 %v579, %v614
        %v631 = vadd.f32 %v580, %v615
        %s632 = sadd.s32 %s21, 6
        %s633 = sld [smem:[#allocation2 + %s632]]
        %vm634 = vcmp.eq.s32.totalorder %v449, 3
        %vm635 = vcmp.eq.s32.totalorder %v451, 3
        %vm636 = vcmp.eq.s32.totalorder %v453, 3
        %vm637 = vcmp.eq.s32.totalorder %v455, 3
        %vm638 = vcmp.eq.s32.totalorder %v457, 3
        %vm639 = vcmp.eq.s32.totalorder %v459, 3
        %vm640 = vcmp.eq.s32.totalorder %v461, 3
        %vm641 = vcmp.eq.s32.totalorder %v463, 3
        %vm642 = vcmp.eq.s32.totalorder %v465, 3
        %vm643 = vcmp.eq.s32.totalorder %v467, 3
        %vm644 = vcmp.eq.s32.totalorder %v469, 3
        %vm645 = vcmp.eq.s32.totalorder %v471, 3
        %vm646 = vcmp.eq.s32.totalorder %v473, 3
        %vm647 = vcmp.eq.s32.totalorder %v475, 3
        %vm648 = vcmp.eq.s32.totalorder %v477, 3
        %vm649 = vcmp.eq.s32.totalorder %v479, 3
        %v650 = vstv %s633
        %v651 = vsel %vm634, %v650, 0.0
        %v652 = vsel %vm635, %v650, 0.0
        %v653 = vsel %vm636, %v650, 0.0
        %v654 = vsel %vm637, %v650, 0.0
        %v655 = vsel %vm638, %v650, 0.0
        %v656 = vsel %vm639, %v650, 0.0
        %v657 = vsel %vm640, %v650, 0.0
        %v658 = vsel %vm641, %v650, 0.0
        %v659 = vsel %vm642, %v650, 0.0
        %v660 = vsel %vm643, %v650, 0.0
        %v661 = vsel %vm644, %v650, 0.0
        %v662 = vsel %vm645, %v650, 0.0
        %v663 = vsel %vm646, %v650, 0.0
        %v664 = vsel %vm647, %v650, 0.0
        %v665 = vsel %vm648, %v650, 0.0
        %v666 = vsel %vm649, %v650, 0.0
        %v667 = vadd.f32 %v616, %v651
        %v668 = vadd.f32 %v617, %v652
        %v669 = vadd.f32 %v618, %v653
        %v670 = vadd.f32 %v619, %v654
        %v671 = vadd.f32 %v620, %v655
        %v672 = vadd.f32 %v621, %v656
        %v673 = vadd.f32 %v622, %v657
        %v674 = vadd.f32 %v623, %v658
        %v675 = vadd.f32 %v624, %v659
        %v676 = vadd.f32 %v625, %v660
        %v677 = vadd.f32 %v626, %v661
        %v678 = vadd.f32 %v627, %v662
        %v679 = vadd.f32 %v628, %v663
        %v680 = vadd.f32 %v629, %v664
        %v681 = vadd.f32 %v630, %v665
        %v682 = vadd.f32 %v631, %v666
        %s683 = sadd.s32 %s21, 8
        %s684 = sld [smem:[#allocation2 + %s683]]
        %vm685 = vcmp.eq.s32.totalorder %v449, 4
        %vm686 = vcmp.eq.s32.totalorder %v451, 4
        %vm687 = vcmp.eq.s32.totalorder %v453, 4
        %vm688 = vcmp.eq.s32.totalorder %v455, 4
        %vm689 = vcmp.eq.s32.totalorder %v457, 4
        %vm690 = vcmp.eq.s32.totalorder %v459, 4
        %vm691 = vcmp.eq.s32.totalorder %v461, 4
        %vm692 = vcmp.eq.s32.totalorder %v463, 4
        %vm693 = vcmp.eq.s32.totalorder %v465, 4
        %vm694 = vcmp.eq.s32.totalorder %v467, 4
        %vm695 = vcmp.eq.s32.totalorder %v469, 4
        %vm696 = vcmp.eq.s32.totalorder %v471, 4
        %vm697 = vcmp.eq.s32.totalorder %v473, 4
        %vm698 = vcmp.eq.s32.totalorder %v475, 4
        %vm699 = vcmp.eq.s32.totalorder %v477, 4
        %vm700 = vcmp.eq.s32.totalorder %v479, 4
        %v701 = vstv %s684
        %v702 = vsel %vm685, %v701, 0.0
        %v703 = vsel %vm686, %v701, 0.0
        %v704 = vsel %vm687, %v701, 0.0
        %v705 = vsel %vm688, %v701, 0.0
        %v706 = vsel %vm689, %v701, 0.0
        %v707 = vsel %vm690, %v701, 0.0
        %v708 = vsel %vm691, %v701, 0.0
        %v709 = vsel %vm692, %v701, 0.0
        %v710 = vsel %vm693, %v701, 0.0
        %v711 = vsel %vm694, %v701, 0.0
        %v712 = vsel %vm695, %v701, 0.0
        %v713 = vsel %vm696, %v701, 0.0
        %v714 = vsel %vm697, %v701, 0.0
        %v715 = vsel %vm698, %v701, 0.0
        %v716 = vsel %vm699, %v701, 0.0
        %v717 = vsel %vm700, %v701, 0.0
        %v718 = vadd.f32 %v667, %v702
        %v719 = vadd.f32 %v668, %v703
        %v720 = vadd.f32 %v669, %v704
        %v721 = vadd.f32 %v670, %v705
        %v722 = vadd.f32 %v671, %v706
        %v723 = vadd.f32 %v672, %v707
        %v724 = vadd.f32 %v673, %v708
        %v725 = vadd.f32 %v674, %v709
        %v726 = vadd.f32 %v675, %v710
        %v727 = vadd.f32 %v676, %v711
        %v728 = vadd.f32 %v677, %v712
        %v729 = vadd.f32 %v678, %v713
        %v730 = vadd.f32 %v679, %v714
        %v731 = vadd.f32 %v680, %v715
        %v732 = vadd.f32 %v681, %v716
        %v733 = vadd.f32 %v682, %v717
        %s734 = sadd.s32 %s21, 10
        %s735 = sld [smem:[#allocation2 + %s734]]
        %vm736 = vcmp.eq.s32.totalorder %v449, 5
        %vm737 = vcmp.eq.s32.totalorder %v451, 5
        %vm738 = vcmp.eq.s32.totalorder %v453, 5
        %vm739 = vcmp.eq.s32.totalorder %v455, 5
        %vm740 = vcmp.eq.s32.totalorder %v457, 5
        %vm741 = vcmp.eq.s32.totalorder %v459, 5
        %vm742 = vcmp.eq.s32.totalorder %v461, 5
        %vm743 = vcmp.eq.s32.totalorder %v463, 5
        %vm744 = vcmp.eq.s32.totalorder %v465, 5
        %vm745 = vcmp.eq.s32.totalorder %v467, 5
        %vm746 = vcmp.eq.s32.totalorder %v469, 5
        %vm747 = vcmp.eq.s32.totalorder %v471, 5
        %vm748 = vcmp.eq.s32.totalorder %v473, 5
        %vm749 = vcmp.eq.s32.totalorder %v475, 5
        %vm750 = vcmp.eq.s32.totalorder %v477, 5
        %vm751 = vcmp.eq.s32.totalorder %v479, 5
        %v752 = vstv %s735
        %v753 = vsel %vm736, %v752, 0.0
        %v754 = vsel %vm737, %v752, 0.0
        %v755 = vsel %vm738, %v752, 0.0
        %v756 = vsel %vm739, %v752, 0.0
        %v757 = vsel %vm740, %v752, 0.0
        %v758 = vsel %vm741, %v752, 0.0
        %v759 = vsel %vm742, %v752, 0.0
        %v760 = vsel %vm743, %v752, 0.0
        %v761 = vsel %vm744, %v752, 0.0
        %v762 = vsel %vm745, %v752, 0.0
        %v763 = vsel %vm746, %v752, 0.0
        %v764 = vsel %vm747, %v752, 0.0
        %v765 = vsel %vm748, %v752, 0.0
        %v766 = vsel %vm749, %v752, 0.0
        %v767 = vsel %vm750, %v752, 0.0
        %v768 = vsel %vm751, %v752, 0.0
        %v769 = vadd.f32 %v718, %v753
        %v770 = vadd.f32 %v719, %v754
        %v771 = vadd.f32 %v720, %v755
        %v772 = vadd.f32 %v721, %v756
        %v773 = vadd.f32 %v722, %v757
        %v774 = vadd.f32 %v723, %v758
        %v775 = vadd.f32 %v724, %v759
        %v776 = vadd.f32 %v725, %v760
        %v777 = vadd.f32 %v726, %v761
        %v778 = vadd.f32 %v727, %v762
        %v779 = vadd.f32 %v728, %v763
        %v780 = vadd.f32 %v729, %v764
        %v781 = vadd.f32 %v730, %v765
        %v782 = vadd.f32 %v731, %v766
        %v783 = vadd.f32 %v732, %v767
        %v784 = vadd.f32 %v733, %v768
        %s785 = sadd.s32 %s21, 12
        %s786 = sld [smem:[#allocation2 + %s785]]
        %vm787 = vcmp.eq.s32.totalorder %v449, 6
        %vm788 = vcmp.eq.s32.totalorder %v451, 6
        %vm789 = vcmp.eq.s32.totalorder %v453, 6
        %vm790 = vcmp.eq.s32.totalorder %v455, 6
        %vm791 = vcmp.eq.s32.totalorder %v457, 6
        %vm792 = vcmp.eq.s32.totalorder %v459, 6
        %vm793 = vcmp.eq.s32.totalorder %v461, 6
        %vm794 = vcmp.eq.s32.totalorder %v463, 6
        %vm795 = vcmp.eq.s32.totalorder %v465, 6
        %vm796 = vcmp.eq.s32.totalorder %v467, 6
        %vm797 = vcmp.eq.s32.totalorder %v469, 6
        %vm798 = vcmp.eq.s32.totalorder %v471, 6
        %vm799 = vcmp.eq.s32.totalorder %v473, 6
        %vm800 = vcmp.eq.s32.totalorder %v475, 6
        %vm801 = vcmp.eq.s32.totalorder %v477, 6
        %vm802 = vcmp.eq.s32.totalorder %v479, 6
        %v803 = vstv %s786
        %v804 = vsel %vm787, %v803, 0.0
        %v805 = vsel %vm788, %v803, 0.0
        %v806 = vsel %vm789, %v803, 0.0
        %v807 = vsel %vm790, %v803, 0.0
        %v808 = vsel %vm791, %v803, 0.0
        %v809 = vsel %vm792, %v803, 0.0
        %v810 = vsel %vm793, %v803, 0.0
        %v811 = vsel %vm794, %v803, 0.0
        %v812 = vsel %vm795, %v803, 0.0
        %v813 = vsel %vm796, %v803, 0.0
        %v814 = vsel %vm797, %v803, 0.0
        %v815 = vsel %vm798, %v803, 0.0
        %v816 = vsel %vm799, %v803, 0.0
        %v817 = vsel %vm800, %v803, 0.0
        %v818 = vsel %vm801, %v803, 0.0
        %v819 = vsel %vm802, %v803, 0.0
        %v820 = vadd.f32 %v769, %v804
        %v821 = vadd.f32 %v770, %v805
        %v822 = vadd.f32 %v771, %v806
        %v823 = vadd.f32 %v772, %v807
        %v824 = vadd.f32 %v773, %v808
        %v825 = vadd.f32 %v774, %v809
        %v826 = vadd.f32 %v775, %v810
        %v827 = vadd.f32 %v776, %v811
        %v828 = vadd.f32 %v777, %v812
        %v829 = vadd.f32 %v778, %v813
        %v830 = vadd.f32 %v779, %v814
        %v831 = vadd.f32 %v780, %v815
        %v832 = vadd.f32 %v781, %v816
        %v833 = vadd.f32 %v782, %v817
        %v834 = vadd.f32 %v783, %v818
        %v835 = vadd.f32 %v784, %v819
        %s836 = sadd.s32 %s21, 14
        %s837 = sld [smem:[#allocation2 + %s836]]
        %vm838 = vcmp.eq.s32.totalorder %v449, 7
        %vm839 = vcmp.eq.s32.totalorder %v451, 7
        %vm840 = vcmp.eq.s32.totalorder %v453, 7
        %vm841 = vcmp.eq.s32.totalorder %v455, 7
        %vm842 = vcmp.eq.s32.totalorder %v457, 7
        %vm843 = vcmp.eq.s32.totalorder %v459, 7
        %vm844 = vcmp.eq.s32.totalorder %v461, 7
        %vm845 = vcmp.eq.s32.totalorder %v463, 7
        %vm846 = vcmp.eq.s32.totalorder %v465, 7
        %vm847 = vcmp.eq.s32.totalorder %v467, 7
        %vm848 = vcmp.eq.s32.totalorder %v469, 7
        %vm849 = vcmp.eq.s32.totalorder %v471, 7
        %vm850 = vcmp.eq.s32.totalorder %v473, 7
        %vm851 = vcmp.eq.s32.totalorder %v475, 7
        %vm852 = vcmp.eq.s32.totalorder %v477, 7
        %vm853 = vcmp.eq.s32.totalorder %v479, 7
        %v854 = vstv %s837
        %v855 = vsel %vm838, %v854, 0.0
        %v856 = vsel %vm839, %v854, 0.0
        %v857 = vsel %vm840, %v854, 0.0
        %v858 = vsel %vm841, %v854, 0.0
        %v859 = vsel %vm842, %v854, 0.0
        %v860 = vsel %vm843, %v854, 0.0
        %v861 = vsel %vm844, %v854, 0.0
        %v862 = vsel %vm845, %v854, 0.0
        %v863 = vsel %vm846, %v854, 0.0
        %v864 = vsel %vm847, %v854, 0.0
        %v865 = vsel %vm848, %v854, 0.0
        %v866 = vsel %vm849, %v854, 0.0
        %v867 = vsel %vm850, %v854, 0.0
        %v868 = vsel %vm851, %v854, 0.0
        %v869 = vsel %vm852, %v854, 0.0
        %v870 = vsel %vm853, %v854, 0.0
        %v871 = vadd.f32 %v820, %v855
        %v872 = vadd.f32 %v821, %v856
        %v873 = vadd.f32 %v822, %v857
        %v874 = vadd.f32 %v823, %v858
        %v875 = vadd.f32 %v824, %v859
        %v876 = vadd.f32 %v825, %v860
        %v877 = vadd.f32 %v826, %v861
        %v878 = vadd.f32 %v827, %v862
        %v879 = vadd.f32 %v828, %v863
        %v880 = vadd.f32 %v829, %v864
        %v881 = vadd.f32 %v830, %v865
        %v882 = vadd.f32 %v831, %v866
        %v883 = vadd.f32 %v832, %v867
        %v884 = vadd.f32 %v833, %v868
        %v885 = vadd.f32 %v834, %v869
        %v886 = vadd.f32 %v835, %v870
        %s887 = sadd.s32 %s21, 16
        %s888 = sld [smem:[#allocation2 + %s887]]
        %vm889 = vcmp.eq.s32.totalorder %v449, 8
        %vm890 = vcmp.eq.s32.totalorder %v451, 8
        %vm891 = vcmp.eq.s32.totalorder %v453, 8
        %vm892 = vcmp.eq.s32.totalorder %v455, 8
        %vm893 = vcmp.eq.s32.totalorder %v457, 8
        %vm894 = vcmp.eq.s32.totalorder %v459, 8
        %vm895 = vcmp.eq.s32.totalorder %v461, 8
        %vm896 = vcmp.eq.s32.totalorder %v463, 8
        %vm897 = vcmp.eq.s32.totalorder %v465, 8
        %vm898 = vcmp.eq.s32.totalorder %v467, 8
        %vm899 = vcmp.eq.s32.totalorder %v469, 8
        %vm900 = vcmp.eq.s32.totalorder %v471, 8
        %vm901 = vcmp.eq.s32.totalorder %v473, 8
        %vm902 = vcmp.eq.s32.totalorder %v475, 8
        %vm903 = vcmp.eq.s32.totalorder %v477, 8
        %vm904 = vcmp.eq.s32.totalorder %v479, 8
        %v905 = vstv %s888
        %v906 = vsel %vm889, %v905, 0.0
        %v907 = vsel %vm890, %v905, 0.0
        %v908 = vsel %vm891, %v905, 0.0
        %v909 = vsel %vm892, %v905, 0.0
        %v910 = vsel %vm893, %v905, 0.0
        %v911 = vsel %vm894, %v905, 0.0
        %v912 = vsel %vm895, %v905, 0.0
        %v913 = vsel %vm896, %v905, 0.0
        %v914 = vsel %vm897, %v905, 0.0
        %v915 = vsel %vm898, %v905, 0.0
        %v916 = vsel %vm899, %v905, 0.0
        %v917 = vsel %vm900, %v905, 0.0
        %v918 = vsel %vm901, %v905, 0.0
        %v919 = vsel %vm902, %v905, 0.0
        %v920 = vsel %vm903, %v905, 0.0
        %v921 = vsel %vm904, %v905, 0.0
        %v922 = vadd.f32 %v871, %v906
        %v923 = vadd.f32 %v872, %v907
        %v924 = vadd.f32 %v873, %v908
        %v925 = vadd.f32 %v874, %v909
        %v926 = vadd.f32 %v875, %v910
        %v927 = vadd.f32 %v876, %v911
        %v928 = vadd.f32 %v877, %v912
        %v929 = vadd.f32 %v878, %v913
        %v930 = vadd.f32 %v879, %v914
        %v931 = vadd.f32 %v880, %v915
        %v932 = vadd.f32 %v881, %v916
        %v933 = vadd.f32 %v882, %v917
        %v934 = vadd.f32 %v883, %v918
        %v935 = vadd.f32 %v884, %v919
        %v936 = vadd.f32 %v885, %v920
        %v937 = vadd.f32 %v886, %v921
        %s938 = sadd.s32 %s21, 18
        %s939 = sld [smem:[#allocation2 + %s938]]
        %vm940 = vcmp.eq.s32.totalorder %v449, 9
        %vm941 = vcmp.eq.s32.totalorder %v451, 9
        %vm942 = vcmp.eq.s32.totalorder %v453, 9
        %vm943 = vcmp.eq.s32.totalorder %v455, 9
        %vm944 = vcmp.eq.s32.totalorder %v457, 9
        %vm945 = vcmp.eq.s32.totalorder %v459, 9
        %vm946 = vcmp.eq.s32.totalorder %v461, 9
        %vm947 = vcmp.eq.s32.totalorder %v463, 9
        %vm948 = vcmp.eq.s32.totalorder %v465, 9
        %vm949 = vcmp.eq.s32.totalorder %v467, 9
        %vm950 = vcmp.eq.s32.totalorder %v469, 9
        %vm951 = vcmp.eq.s32.totalorder %v471, 9
        %vm952 = vcmp.eq.s32.totalorder %v473, 9
        %vm953 = vcmp.eq.s32.totalorder %v475, 9
        %vm954 = vcmp.eq.s32.totalorder %v477, 9
        %vm955 = vcmp.eq.s32.totalorder %v479, 9
        %v956 = vstv %s939
        %v957 = vsel %vm940, %v956, 0.0
        %v958 = vsel %vm941, %v956, 0.0
        %v959 = vsel %vm942, %v956, 0.0
        %v960 = vsel %vm943, %v956, 0.0
        %v961 = vsel %vm944, %v956, 0.0
        %v962 = vsel %vm945, %v956, 0.0
        %v963 = vsel %vm946, %v956, 0.0
        %v964 = vsel %vm947, %v956, 0.0
        %v965 = vsel %vm948, %v956, 0.0
        %v966 = vsel %vm949, %v956, 0.0
        %v967 = vsel %vm950, %v956, 0.0
        %v968 = vsel %vm951, %v956, 0.0
        %v969 = vsel %vm952, %v956, 0.0
        %v970 = vsel %vm953, %v956, 0.0
        %v971 = vsel %vm954, %v956, 0.0
        %v972 = vsel %vm955, %v956, 0.0
        %v973 = vadd.f32 %v922, %v957
        %v974 = vadd.f32 %v923, %v958
        %v975 = vadd.f32 %v924, %v959
        %v976 = vadd.f32 %v925, %v960
        %v977 = vadd.f32 %v926, %v961
        %v978 = vadd.f32 %v927, %v962
        %v979 = vadd.f32 %v928, %v963
        %v980 = vadd.f32 %v929, %v964
        %v981 = vadd.f32 %v930, %v965
        %v982 = vadd.f32 %v931, %v966
        %v983 = vadd.f32 %v932, %v967
        %v984 = vadd.f32 %v933, %v968
        %v985 = vadd.f32 %v934, %v969
        %v986 = vadd.f32 %v935, %v970
        %v987 = vadd.f32 %v936, %v971
        %v988 = vadd.f32 %v937, %v972
        %s989 = sadd.s32 %s21, 20
        %s990 = sld [smem:[#allocation2 + %s989]]
        %vm991 = vcmp.eq.s32.totalorder %v449, 10
        %vm992 = vcmp.eq.s32.totalorder %v451, 10
        %vm993 = vcmp.eq.s32.totalorder %v453, 10
        %vm994 = vcmp.eq.s32.totalorder %v455, 10
        %vm995 = vcmp.eq.s32.totalorder %v457, 10
        %vm996 = vcmp.eq.s32.totalorder %v459, 10
        %vm997 = vcmp.eq.s32.totalorder %v461, 10
        %vm998 = vcmp.eq.s32.totalorder %v463, 10
        %vm999 = vcmp.eq.s32.totalorder %v465, 10
        %vm1000 = vcmp.eq.s32.totalorder %v467, 10
        %vm1001 = vcmp.eq.s32.totalorder %v469, 10
        %vm1002 = vcmp.eq.s32.totalorder %v471, 10
        %vm1003 = vcmp.eq.s32.totalorder %v473, 10
        %vm1004 = vcmp.eq.s32.totalorder %v475, 10
        %vm1005 = vcmp.eq.s32.totalorder %v477, 10
        %vm1006 = vcmp.eq.s32.totalorder %v479, 10
        %v1007 = vstv %s990
        %v1008 = vsel %vm991, %v1007, 0.0
        %v1009 = vsel %vm992, %v1007, 0.0
        %v1010 = vsel %vm993, %v1007, 0.0
        %v1011 = vsel %vm994, %v1007, 0.0
        %v1012 = vsel %vm995, %v1007, 0.0
        %v1013 = vsel %vm996, %v1007, 0.0
        %v1014 = vsel %vm997, %v1007, 0.0
        %v1015 = vsel %vm998, %v1007, 0.0
        %v1016 = vsel %vm999, %v1007, 0.0
        %v1017 = vsel %vm1000, %v1007, 0.0
        %v1018 = vsel %vm1001, %v1007, 0.0
        %v1019 = vsel %vm1002, %v1007, 0.0
        %v1020 = vsel %vm1003, %v1007, 0.0
        %v1021 = vsel %vm1004, %v1007, 0.0
        %v1022 = vsel %vm1005, %v1007, 0.0
        %v1023 = vsel %vm1006, %v1007, 0.0
        %v1024 = vadd.f32 %v973, %v1008
        %v1025 = vadd.f32 %v974, %v1009
        %v1026 = vadd.f32 %v975, %v1010
        %v1027 = vadd.f32 %v976, %v1011
        %v1028 = vadd.f32 %v977, %v1012
        %v1029 = vadd.f32 %v978, %v1013
        %v1030 = vadd.f32 %v979, %v1014
        %v1031 = vadd.f32 %v980, %v1015
        %v1032 = vadd.f32 %v981, %v1016
        %v1033 = vadd.f32 %v982, %v1017
        %v1034 = vadd.f32 %v983, %v1018
        %v1035 = vadd.f32 %v984, %v1019
        %v1036 = vadd.f32 %v985, %v1020
        %v1037 = vadd.f32 %v986, %v1021
        %v1038 = vadd.f32 %v987, %v1022
        %v1039 = vadd.f32 %v988, %v1023
        %s1040 = sadd.s32 %s21, 22
        %s1041 = sld [smem:[#allocation2 + %s1040]]
        %vm1042 = vcmp.eq.s32.totalorder %v449, 11
        %vm1043 = vcmp.eq.s32.totalorder %v451, 11
        %vm1044 = vcmp.eq.s32.totalorder %v453, 11
        %vm1045 = vcmp.eq.s32.totalorder %v455, 11
        %vm1046 = vcmp.eq.s32.totalorder %v457, 11
        %vm1047 = vcmp.eq.s32.totalorder %v459, 11
        %vm1048 = vcmp.eq.s32.totalorder %v461, 11
        %vm1049 = vcmp.eq.s32.totalorder %v463, 11
        %vm1050 = vcmp.eq.s32.totalorder %v465, 11
        %vm1051 = vcmp.eq.s32.totalorder %v467, 11
        %vm1052 = vcmp.eq.s32.totalorder %v469, 11
        %vm1053 = vcmp.eq.s32.totalorder %v471, 11
        %vm1054 = vcmp.eq.s32.totalorder %v473, 11
        %vm1055 = vcmp.eq.s32.totalorder %v475, 11
        %vm1056 = vcmp.eq.s32.totalorder %v477, 11
        %vm1057 = vcmp.eq.s32.totalorder %v479, 11
        %v1058 = vstv %s1041
        %v1059 = vsel %vm1042, %v1058, 0.0
        %v1060 = vsel %vm1043, %v1058, 0.0
        %v1061 = vsel %vm1044, %v1058, 0.0
        %v1062 = vsel %vm1045, %v1058, 0.0
        %v1063 = vsel %vm1046, %v1058, 0.0
        %v1064 = vsel %vm1047, %v1058, 0.0
        %v1065 = vsel %vm1048, %v1058, 0.0
        %v1066 = vsel %vm1049, %v1058, 0.0
        %v1067 = vsel %vm1050, %v1058, 0.0
        %v1068 = vsel %vm1051, %v1058, 0.0
        %v1069 = vsel %vm1052, %v1058, 0.0
        %v1070 = vsel %vm1053, %v1058, 0.0
        %v1071 = vsel %vm1054, %v1058, 0.0
        %v1072 = vsel %vm1055, %v1058, 0.0
        %v1073 = vsel %vm1056, %v1058, 0.0
        %v1074 = vsel %vm1057, %v1058, 0.0
        %v1075 = vadd.f32 %v1024, %v1059
        %v1076 = vadd.f32 %v1025, %v1060
        %v1077 = vadd.f32 %v1026, %v1061
        %v1078 = vadd.f32 %v1027, %v1062
        %v1079 = vadd.f32 %v1028, %v1063
        %v1080 = vadd.f32 %v1029, %v1064
        %v1081 = vadd.f32 %v1030, %v1065
        %v1082 = vadd.f32 %v1031, %v1066
        %v1083 = vadd.f32 %v1032, %v1067
        %v1084 = vadd.f32 %v1033, %v1068
        %v1085 = vadd.f32 %v1034, %v1069
        %v1086 = vadd.f32 %v1035, %v1070
        %v1087 = vadd.f32 %v1036, %v1071
        %v1088 = vadd.f32 %v1037, %v1072
        %v1089 = vadd.f32 %v1038, %v1073
        %v1090 = vadd.f32 %v1039, %v1074
        %s1091 = sadd.s32 %s21, 24
        %s1092 = sld [smem:[#allocation2 + %s1091]]
        %vm1093 = vcmp.eq.s32.totalorder %v449, 12
        %vm1094 = vcmp.eq.s32.totalorder %v451, 12
        %vm1095 = vcmp.eq.s32.totalorder %v453, 12
        %vm1096 = vcmp.eq.s32.totalorder %v455, 12
        %vm1097 = vcmp.eq.s32.totalorder %v457, 12
        %vm1098 = vcmp.eq.s32.totalorder %v459, 12
        %vm1099 = vcmp.eq.s32.totalorder %v461, 12
        %vm1100 = vcmp.eq.s32.totalorder %v463, 12
        %vm1101 = vcmp.eq.s32.totalorder %v465, 12
        %vm1102 = vcmp.eq.s32.totalorder %v467, 12
        %vm1103 = vcmp.eq.s32.totalorder %v469, 12
        %vm1104 = vcmp.eq.s32.totalorder %v471, 12
        %vm1105 = vcmp.eq.s32.totalorder %v473, 12
        %vm1106 = vcmp.eq.s32.totalorder %v475, 12
        %vm1107 = vcmp.eq.s32.totalorder %v477, 12
        %vm1108 = vcmp.eq.s32.totalorder %v479, 12
        %v1109 = vstv %s1092
        %v1110 = vsel %vm1093, %v1109, 0.0
        %v1111 = vsel %vm1094, %v1109, 0.0
        %v1112 = vsel %vm1095, %v1109, 0.0
        %v1113 = vsel %vm1096, %v1109, 0.0
        %v1114 = vsel %vm1097, %v1109, 0.0
        %v1115 = vsel %vm1098, %v1109, 0.0
        %v1116 = vsel %vm1099, %v1109, 0.0
        %v1117 = vsel %vm1100, %v1109, 0.0
        %v1118 = vsel %vm1101, %v1109, 0.0
        %v1119 = vsel %vm1102, %v1109, 0.0
        %v1120 = vsel %vm1103, %v1109, 0.0
        %v1121 = vsel %vm1104, %v1109, 0.0
        %v1122 = vsel %vm1105, %v1109, 0.0
        %v1123 = vsel %vm1106, %v1109, 0.0
        %v1124 = vsel %vm1107, %v1109, 0.0
        %v1125 = vsel %vm1108, %v1109, 0.0
        %v1126 = vadd.f32 %v1075, %v1110
        %v1127 = vadd.f32 %v1076, %v1111
        %v1128 = vadd.f32 %v1077, %v1112
        %v1129 = vadd.f32 %v1078, %v1113
        %v1130 = vadd.f32 %v1079, %v1114
        %v1131 = vadd.f32 %v1080, %v1115
        %v1132 = vadd.f32 %v1081, %v1116
        %v1133 = vadd.f32 %v1082, %v1117
        %v1134 = vadd.f32 %v1083, %v1118
        %v1135 = vadd.f32 %v1084, %v1119
        %v1136 = vadd.f32 %v1085, %v1120
        %v1137 = vadd.f32 %v1086, %v1121
        %v1138 = vadd.f32 %v1087, %v1122
        %v1139 = vadd.f32 %v1088, %v1123
        %v1140 = vadd.f32 %v1089, %v1124
        %v1141 = vadd.f32 %v1090, %v1125
        %s1142 = sadd.s32 %s21, 26
        %s1143 = sld [smem:[#allocation2 + %s1142]]
        %vm1144 = vcmp.eq.s32.totalorder %v449, 13
        %vm1145 = vcmp.eq.s32.totalorder %v451, 13
        %vm1146 = vcmp.eq.s32.totalorder %v453, 13
        %vm1147 = vcmp.eq.s32.totalorder %v455, 13
        %vm1148 = vcmp.eq.s32.totalorder %v457, 13
        %vm1149 = vcmp.eq.s32.totalorder %v459, 13
        %vm1150 = vcmp.eq.s32.totalorder %v461, 13
        %vm1151 = vcmp.eq.s32.totalorder %v463, 13
        %vm1152 = vcmp.eq.s32.totalorder %v465, 13
        %vm1153 = vcmp.eq.s32.totalorder %v467, 13
        %vm1154 = vcmp.eq.s32.totalorder %v469, 13
        %vm1155 = vcmp.eq.s32.totalorder %v471, 13
        %vm1156 = vcmp.eq.s32.totalorder %v473, 13
        %vm1157 = vcmp.eq.s32.totalorder %v475, 13
        %vm1158 = vcmp.eq.s32.totalorder %v477, 13
        %vm1159 = vcmp.eq.s32.totalorder %v479, 13
        %v1160 = vstv %s1143
        %v1161 = vsel %vm1144, %v1160, 0.0
        %v1162 = vsel %vm1145, %v1160, 0.0
        %v1163 = vsel %vm1146, %v1160, 0.0
        %v1164 = vsel %vm1147, %v1160, 0.0
        %v1165 = vsel %vm1148, %v1160, 0.0
        %v1166 = vsel %vm1149, %v1160, 0.0
        %v1167 = vsel %vm1150, %v1160, 0.0
        %v1168 = vsel %vm1151, %v1160, 0.0
        %v1169 = vsel %vm1152, %v1160, 0.0
        %v1170 = vsel %vm1153, %v1160, 0.0
        %v1171 = vsel %vm1154, %v1160, 0.0
        %v1172 = vsel %vm1155, %v1160, 0.0
        %v1173 = vsel %vm1156, %v1160, 0.0
        %v1174 = vsel %vm1157, %v1160, 0.0
        %v1175 = vsel %vm1158, %v1160, 0.0
        %v1176 = vsel %vm1159, %v1160, 0.0
        %v1177 = vadd.f32 %v1126, %v1161
        %v1178 = vadd.f32 %v1127, %v1162
        %v1179 = vadd.f32 %v1128, %v1163
        %v1180 = vadd.f32 %v1129, %v1164
        %v1181 = vadd.f32 %v1130, %v1165
        %v1182 = vadd.f32 %v1131, %v1166
        %v1183 = vadd.f32 %v1132, %v1167
        %v1184 = vadd.f32 %v1133, %v1168
        %v1185 = vadd.f32 %v1134, %v1169
        %v1186 = vadd.f32 %v1135, %v1170
        %v1187 = vadd.f32 %v1136, %v1171
        %v1188 = vadd.f32 %v1137, %v1172
        %v1189 = vadd.f32 %v1138, %v1173
        %v1190 = vadd.f32 %v1139, %v1174
        %v1191 = vadd.f32 %v1140, %v1175
        %v1192 = vadd.f32 %v1141, %v1176
        %s1193 = sadd.s32 %s21, 28
        %s1194 = sld [smem:[#allocation2 + %s1193]]
        %vm1195 = vcmp.eq.s32.totalorder %v449, 14
        %vm1196 = vcmp.eq.s32.totalorder %v451, 14
        %vm1197 = vcmp.eq.s32.totalorder %v453, 14
        %vm1198 = vcmp.eq.s32.totalorder %v455, 14
        %vm1199 = vcmp.eq.s32.totalorder %v457, 14
        %vm1200 = vcmp.eq.s32.totalorder %v459, 14
        %vm1201 = vcmp.eq.s32.totalorder %v461, 14
        %vm1202 = vcmp.eq.s32.totalorder %v463, 14
        %vm1203 = vcmp.eq.s32.totalorder %v465, 14
        %vm1204 = vcmp.eq.s32.totalorder %v467, 14
        %vm1205 = vcmp.eq.s32.totalorder %v469, 14
        %vm1206 = vcmp.eq.s32.totalorder %v471, 14
        %vm1207 = vcmp.eq.s32.totalorder %v473, 14
        %vm1208 = vcmp.eq.s32.totalorder %v475, 14
        %vm1209 = vcmp.eq.s32.totalorder %v477, 14
        %vm1210 = vcmp.eq.s32.totalorder %v479, 14
        %v1211 = vstv %s1194
        %v1212 = vsel %vm1195, %v1211, 0.0
        %v1213 = vsel %vm1196, %v1211, 0.0
        %v1214 = vsel %vm1197, %v1211, 0.0
        %v1215 = vsel %vm1198, %v1211, 0.0
        %v1216 = vsel %vm1199, %v1211, 0.0
        %v1217 = vsel %vm1200, %v1211, 0.0
        %v1218 = vsel %vm1201, %v1211, 0.0
        %v1219 = vsel %vm1202, %v1211, 0.0
        %v1220 = vsel %vm1203, %v1211, 0.0
        %v1221 = vsel %vm1204, %v1211, 0.0
        %v1222 = vsel %vm1205, %v1211, 0.0
        %v1223 = vsel %vm1206, %v1211, 0.0
        %v1224 = vsel %vm1207, %v1211, 0.0
        %v1225 = vsel %vm1208, %v1211, 0.0
        %v1226 = vsel %vm1209, %v1211, 0.0
        %v1227 = vsel %vm1210, %v1211, 0.0
        %v1228 = vadd.f32 %v1177, %v1212
        %v1229 = vadd.f32 %v1178, %v1213
        %v1230 = vadd.f32 %v1179, %v1214
        %v1231 = vadd.f32 %v1180, %v1215
        %v1232 = vadd.f32 %v1181, %v1216
        %v1233 = vadd.f32 %v1182, %v1217
        %v1234 = vadd.f32 %v1183, %v1218
        %v1235 = vadd.f32 %v1184, %v1219
        %v1236 = vadd.f32 %v1185, %v1220
        %v1237 = vadd.f32 %v1186, %v1221
        %v1238 = vadd.f32 %v1187, %v1222
        %v1239 = vadd.f32 %v1188, %v1223
        %v1240 = vadd.f32 %v1189, %v1224
        %v1241 = vadd.f32 %v1190, %v1225
        %v1242 = vadd.f32 %v1191, %v1226
        %v1243 = vadd.f32 %v1192, %v1227
        %s1244 = sadd.s32 %s21, 30
        %s1245 = sld [smem:[#allocation2 + %s1244]]
        %vm1246 = vcmp.eq.s32.totalorder %v449, 15
        %vm1247 = vcmp.eq.s32.totalorder %v451, 15
        %vm1248 = vcmp.eq.s32.totalorder %v453, 15
        %vm1249 = vcmp.eq.s32.totalorder %v455, 15
        %vm1250 = vcmp.eq.s32.totalorder %v457, 15
        %vm1251 = vcmp.eq.s32.totalorder %v459, 15
        %vm1252 = vcmp.eq.s32.totalorder %v461, 15
        %vm1253 = vcmp.eq.s32.totalorder %v463, 15
        %vm1254 = vcmp.eq.s32.totalorder %v465, 15
        %vm1255 = vcmp.eq.s32.totalorder %v467, 15
        %vm1256 = vcmp.eq.s32.totalorder %v469, 15
        %vm1257 = vcmp.eq.s32.totalorder %v471, 15
        %vm1258 = vcmp.eq.s32.totalorder %v473, 15
        %vm1259 = vcmp.eq.s32.totalorder %v475, 15
        %vm1260 = vcmp.eq.s32.totalorder %v477, 15
        %vm1261 = vcmp.eq.s32.totalorder %v479, 15
        %v1262 = vstv %s1245
        %v1263 = vsel %vm1246, %v1262, 0.0
        %v1264 = vsel %vm1247, %v1262, 0.0
        %v1265 = vsel %vm1248, %v1262, 0.0
        %v1266 = vsel %vm1249, %v1262, 0.0
        %v1267 = vsel %vm1250, %v1262, 0.0
        %v1268 = vsel %vm1251, %v1262, 0.0
        %v1269 = vsel %vm1252, %v1262, 0.0
        %v1270 = vsel %vm1253, %v1262, 0.0
        %v1271 = vsel %vm1254, %v1262, 0.0
        %v1272 = vsel %vm1255, %v1262, 0.0
        %v1273 = vsel %vm1256, %v1262, 0.0
        %v1274 = vsel %vm1257, %v1262, 0.0
        %v1275 = vsel %vm1258, %v1262, 0.0
        %v1276 = vsel %vm1259, %v1262, 0.0
        %v1277 = vsel %vm1260, %v1262, 0.0
        %v1278 = vsel %vm1261, %v1262, 0.0
        %v1279 = vadd.f32 %v1228, %v1263
        %v1280 = vadd.f32 %v1229, %v1264
        %v1281 = vadd.f32 %v1230, %v1265
        %v1282 = vadd.f32 %v1231, %v1266
        %v1283 = vadd.f32 %v1232, %v1267
        %v1284 = vadd.f32 %v1233, %v1268
        %v1285 = vadd.f32 %v1234, %v1269
        %v1286 = vadd.f32 %v1235, %v1270
        %v1287 = vadd.f32 %v1236, %v1271
        %v1288 = vadd.f32 %v1237, %v1272
        %v1289 = vadd.f32 %v1238, %v1273
        %v1290 = vadd.f32 %v1239, %v1274
        %v1291 = vadd.f32 %v1240, %v1275
        %v1292 = vadd.f32 %v1241, %v1276
        %v1293 = vadd.f32 %v1242, %v1277
        %v1294 = vadd.f32 %v1243, %v1278
        %s1295 = sadd.s32 %s21, 32
        %s1296 = sld [smem:[#allocation2 + %s1295]]
        %vm1297 = vcmp.eq.s32.totalorder %v449, 16
        %vm1298 = vcmp.eq.s32.totalorder %v451, 16
        %vm1299 = vcmp.eq.s32.totalorder %v453, 16
        %vm1300 = vcmp.eq.s32.totalorder %v455, 16
        %vm1301 = vcmp.eq.s32.totalorder %v457, 16
        %vm1302 = vcmp.eq.s32.totalorder %v459, 16
        %vm1303 = vcmp.eq.s32.totalorder %v461, 16
        %vm1304 = vcmp.eq.s32.totalorder %v463, 16
        %vm1305 = vcmp.eq.s32.totalorder %v465, 16
        %vm1306 = vcmp.eq.s32.totalorder %v467, 16
        %vm1307 = vcmp.eq.s32.totalorder %v469, 16
        %vm1308 = vcmp.eq.s32.totalorder %v471, 16
        %vm1309 = vcmp.eq.s32.totalorder %v473, 16
        %vm1310 = vcmp.eq.s32.totalorder %v475, 16
        %vm1311 = vcmp.eq.s32.totalorder %v477, 16
        %vm1312 = vcmp.eq.s32.totalorder %v479, 16
        %v1313 = vstv %s1296
        %v1314 = vsel %vm1297, %v1313, 0.0
        %v1315 = vsel %vm1298, %v1313, 0.0
        %v1316 = vsel %vm1299, %v1313, 0.0
        %v1317 = vsel %vm1300, %v1313, 0.0
        %v1318 = vsel %vm1301, %v1313, 0.0
        %v1319 = vsel %vm1302, %v1313, 0.0
        %v1320 = vsel %vm1303, %v1313, 0.0
        %v1321 = vsel %vm1304, %v1313, 0.0
        %v1322 = vsel %vm1305, %v1313, 0.0
        %v1323 = vsel %vm1306, %v1313, 0.0
        %v1324 = vsel %vm1307, %v1313, 0.0
        %v1325 = vsel %vm1308, %v1313, 0.0
        %v1326 = vsel %vm1309, %v1313, 0.0
        %v1327 = vsel %vm1310, %v1313, 0.0
        %v1328 = vsel %vm1311, %v1313, 0.0
        %v1329 = vsel %vm1312, %v1313, 0.0
        %v1330 = vadd.f32 %v1279, %v1314
        %v1331 = vadd.f32 %v1280, %v1315
        %v1332 = vadd.f32 %v1281, %v1316
        %v1333 = vadd.f32 %v1282, %v1317
        %v1334 = vadd.f32 %v1283, %v1318
        %v1335 = vadd.f32 %v1284, %v1319
        %v1336 = vadd.f32 %v1285, %v1320
        %v1337 = vadd.f32 %v1286, %v1321
        %v1338 = vadd.f32 %v1287, %v1322
        %v1339 = vadd.f32 %v1288, %v1323
        %v1340 = vadd.f32 %v1289, %v1324
        %v1341 = vadd.f32 %v1290, %v1325
        %v1342 = vadd.f32 %v1291, %v1326
        %v1343 = vadd.f32 %v1292, %v1327
        %v1344 = vadd.f32 %v1293, %v1328
        %v1345 = vadd.f32 %v1294, %v1329
        %s1346 = sadd.s32 %s21, 34
        %s1347 = sld [smem:[#allocation2 + %s1346]]
        %vm1348 = vcmp.eq.s32.totalorder %v449, 17
        %vm1349 = vcmp.eq.s32.totalorder %v451, 17
        %vm1350 = vcmp.eq.s32.totalorder %v453, 17
        %vm1351 = vcmp.eq.s32.totalorder %v455, 17
        %vm1352 = vcmp.eq.s32.totalorder %v457, 17
        %vm1353 = vcmp.eq.s32.totalorder %v459, 17
        %vm1354 = vcmp.eq.s32.totalorder %v461, 17
        %vm1355 = vcmp.eq.s32.totalorder %v463, 17
        %vm1356 = vcmp.eq.s32.totalorder %v465, 17
        %vm1357 = vcmp.eq.s32.totalorder %v467, 17
        %vm1358 = vcmp.eq.s32.totalorder %v469, 17
        %vm1359 = vcmp.eq.s32.totalorder %v471, 17
        %vm1360 = vcmp.eq.s32.totalorder %v473, 17
        %vm1361 = vcmp.eq.s32.totalorder %v475, 17
        %vm1362 = vcmp.eq.s32.totalorder %v477, 17
        %vm1363 = vcmp.eq.s32.totalorder %v479, 17
        %v1364 = vstv %s1347
        %v1365 = vsel %vm1348, %v1364, 0.0
        %v1366 = vsel %vm1349, %v1364, 0.0
        %v1367 = vsel %vm1350, %v1364, 0.0
        %v1368 = vsel %vm1351, %v1364, 0.0
        %v1369 = vsel %vm1352, %v1364, 0.0
        %v1370 = vsel %vm1353, %v1364, 0.0
        %v1371 = vsel %vm1354, %v1364, 0.0
        %v1372 = vsel %vm1355, %v1364, 0.0
        %v1373 = vsel %vm1356, %v1364, 0.0
        %v1374 = vsel %vm1357, %v1364, 0.0
        %v1375 = vsel %vm1358, %v1364, 0.0
        %v1376 = vsel %vm1359, %v1364, 0.0
        %v1377 = vsel %vm1360, %v1364, 0.0
        %v1378 = vsel %vm1361, %v1364, 0.0
        %v1379 = vsel %vm1362, %v1364, 0.0
        %v1380 = vsel %vm1363, %v1364, 0.0
        %v1381 = vadd.f32 %v1330, %v1365
        %v1382 = vadd.f32 %v1331, %v1366
        %v1383 = vadd.f32 %v1332, %v1367
        %v1384 = vadd.f32 %v1333, %v1368
        %v1385 = vadd.f32 %v1334, %v1369
        %v1386 = vadd.f32 %v1335, %v1370
        %v1387 = vadd.f32 %v1336, %v1371
        %v1388 = vadd.f32 %v1337, %v1372
        %v1389 = vadd.f32 %v1338, %v1373
        %v1390 = vadd.f32 %v1339, %v1374
        %v1391 = vadd.f32 %v1340, %v1375
        %v1392 = vadd.f32 %v1341, %v1376
        %v1393 = vadd.f32 %v1342, %v1377
        %v1394 = vadd.f32 %v1343, %v1378
        %v1395 = vadd.f32 %v1344, %v1379
        %v1396 = vadd.f32 %v1345, %v1380
        %s1397 = sadd.s32 %s21, 36
        %s1398 = sld [smem:[#allocation2 + %s1397]]
        %vm1399 = vcmp.eq.s32.totalorder %v449, 18
        %vm1400 = vcmp.eq.s32.totalorder %v451, 18
        %vm1401 = vcmp.eq.s32.totalorder %v453, 18
        %vm1402 = vcmp.eq.s32.totalorder %v455, 18
        %vm1403 = vcmp.eq.s32.totalorder %v457, 18
        %vm1404 = vcmp.eq.s32.totalorder %v459, 18
        %vm1405 = vcmp.eq.s32.totalorder %v461, 18
        %vm1406 = vcmp.eq.s32.totalorder %v463, 18
        %vm1407 = vcmp.eq.s32.totalorder %v465, 18
        %vm1408 = vcmp.eq.s32.totalorder %v467, 18
        %vm1409 = vcmp.eq.s32.totalorder %v469, 18
        %vm1410 = vcmp.eq.s32.totalorder %v471, 18
        %vm1411 = vcmp.eq.s32.totalorder %v473, 18
        %vm1412 = vcmp.eq.s32.totalorder %v475, 18
        %vm1413 = vcmp.eq.s32.totalorder %v477, 18
        %vm1414 = vcmp.eq.s32.totalorder %v479, 18
        %v1415 = vstv %s1398
        %v1416 = vsel %vm1399, %v1415, 0.0
        %v1417 = vsel %vm1400, %v1415, 0.0
        %v1418 = vsel %vm1401, %v1415, 0.0
        %v1419 = vsel %vm1402, %v1415, 0.0
        %v1420 = vsel %vm1403, %v1415, 0.0
        %v1421 = vsel %vm1404, %v1415, 0.0
        %v1422 = vsel %vm1405, %v1415, 0.0
        %v1423 = vsel %vm1406, %v1415, 0.0
        %v1424 = vsel %vm1407, %v1415, 0.0
        %v1425 = vsel %vm1408, %v1415, 0.0
        %v1426 = vsel %vm1409, %v1415, 0.0
        %v1427 = vsel %vm1410, %v1415, 0.0
        %v1428 = vsel %vm1411, %v1415, 0.0
        %v1429 = vsel %vm1412, %v1415, 0.0
        %v1430 = vsel %vm1413, %v1415, 0.0
        %v1431 = vsel %vm1414, %v1415, 0.0
        %v1432 = vadd.f32 %v1381, %v1416
        %v1433 = vadd.f32 %v1382, %v1417
        %v1434 = vadd.f32 %v1383, %v1418
        %v1435 = vadd.f32 %v1384, %v1419
        %v1436 = vadd.f32 %v1385, %v1420
        %v1437 = vadd.f32 %v1386, %v1421
        %v1438 = vadd.f32 %v1387, %v1422
        %v1439 = vadd.f32 %v1388, %v1423
        %v1440 = vadd.f32 %v1389, %v1424
        %v1441 = vadd.f32 %v1390, %v1425
        %v1442 = vadd.f32 %v1391, %v1426
        %v1443 = vadd.f32 %v1392, %v1427
        %v1444 = vadd.f32 %v1393, %v1428
        %v1445 = vadd.f32 %v1394, %v1429
        %v1446 = vadd.f32 %v1395, %v1430
        %v1447 = vadd.f32 %v1396, %v1431
        %s1448 = sadd.s32 %s21, 38
        %s1449 = sld [smem:[#allocation2 + %s1448]]
        %vm1450 = vcmp.eq.s32.totalorder %v449, 19
        %vm1451 = vcmp.eq.s32.totalorder %v451, 19
        %vm1452 = vcmp.eq.s32.totalorder %v453, 19
        %vm1453 = vcmp.eq.s32.totalorder %v455, 19
        %vm1454 = vcmp.eq.s32.totalorder %v457, 19
        %vm1455 = vcmp.eq.s32.totalorder %v459, 19
        %vm1456 = vcmp.eq.s32.totalorder %v461, 19
        %vm1457 = vcmp.eq.s32.totalorder %v463, 19
        %vm1458 = vcmp.eq.s32.totalorder %v465, 19
        %vm1459 = vcmp.eq.s32.totalorder %v467, 19
        %vm1460 = vcmp.eq.s32.totalorder %v469, 19
        %vm1461 = vcmp.eq.s32.totalorder %v471, 19
        %vm1462 = vcmp.eq.s32.totalorder %v473, 19
        %vm1463 = vcmp.eq.s32.totalorder %v475, 19
        %vm1464 = vcmp.eq.s32.totalorder %v477, 19
        %vm1465 = vcmp.eq.s32.totalorder %v479, 19
        %v1466 = vstv %s1449
        %v1467 = vsel %vm1450, %v1466, 0.0
        %v1468 = vsel %vm1451, %v1466, 0.0
        %v1469 = vsel %vm1452, %v1466, 0.0
        %v1470 = vsel %vm1453, %v1466, 0.0
        %v1471 = vsel %vm1454, %v1466, 0.0
        %v1472 = vsel %vm1455, %v1466, 0.0
        %v1473 = vsel %vm1456, %v1466, 0.0
        %v1474 = vsel %vm1457, %v1466, 0.0
        %v1475 = vsel %vm1458, %v1466, 0.0
        %v1476 = vsel %vm1459, %v1466, 0.0
        %v1477 = vsel %vm1460, %v1466, 0.0
        %v1478 = vsel %vm1461, %v1466, 0.0
        %v1479 = vsel %vm1462, %v1466, 0.0
        %v1480 = vsel %vm1463, %v1466, 0.0
        %v1481 = vsel %vm1464, %v1466, 0.0
        %v1482 = vsel %vm1465, %v1466, 0.0
        %v1483 = vadd.f32 %v1432, %v1467
        %v1484 = vadd.f32 %v1433, %v1468
        %v1485 = vadd.f32 %v1434, %v1469
        %v1486 = vadd.f32 %v1435, %v1470
        %v1487 = vadd.f32 %v1436, %v1471
        %v1488 = vadd.f32 %v1437, %v1472
        %v1489 = vadd.f32 %v1438, %v1473
        %v1490 = vadd.f32 %v1439, %v1474
        %v1491 = vadd.f32 %v1440, %v1475
        %v1492 = vadd.f32 %v1441, %v1476
        %v1493 = vadd.f32 %v1442, %v1477
        %v1494 = vadd.f32 %v1443, %v1478
        %v1495 = vadd.f32 %v1444, %v1479
        %v1496 = vadd.f32 %v1445, %v1480
        %v1497 = vadd.f32 %v1446, %v1481
        %v1498 = vadd.f32 %v1447, %v1482
        %s1499 = sadd.s32 %s21, 40
        %s1500 = sld [smem:[#allocation2 + %s1499]]
        %vm1501 = vcmp.eq.s32.totalorder %v449, 20
        %vm1502 = vcmp.eq.s32.totalorder %v451, 20
        %vm1503 = vcmp.eq.s32.totalorder %v453, 20
        %vm1504 = vcmp.eq.s32.totalorder %v455, 20
        %vm1505 = vcmp.eq.s32.totalorder %v457, 20
        %vm1506 = vcmp.eq.s32.totalorder %v459, 20
        %vm1507 = vcmp.eq.s32.totalorder %v461, 20
        %vm1508 = vcmp.eq.s32.totalorder %v463, 20
        %vm1509 = vcmp.eq.s32.totalorder %v465, 20
        %vm1510 = vcmp.eq.s32.totalorder %v467, 20
        %vm1511 = vcmp.eq.s32.totalorder %v469, 20
        %vm1512 = vcmp.eq.s32.totalorder %v471, 20
        %vm1513 = vcmp.eq.s32.totalorder %v473, 20
        %vm1514 = vcmp.eq.s32.totalorder %v475, 20
        %vm1515 = vcmp.eq.s32.totalorder %v477, 20
        %vm1516 = vcmp.eq.s32.totalorder %v479, 20
        %v1517 = vstv %s1500
        %v1518 = vsel %vm1501, %v1517, 0.0
        %v1519 = vsel %vm1502, %v1517, 0.0
        %v1520 = vsel %vm1503, %v1517, 0.0
        %v1521 = vsel %vm1504, %v1517, 0.0
        %v1522 = vsel %vm1505, %v1517, 0.0
        %v1523 = vsel %vm1506, %v1517, 0.0
        %v1524 = vsel %vm1507, %v1517, 0.0
        %v1525 = vsel %vm1508, %v1517, 0.0
        %v1526 = vsel %vm1509, %v1517, 0.0
        %v1527 = vsel %vm1510, %v1517, 0.0
        %v1528 = vsel %vm1511, %v1517, 0.0
        %v1529 = vsel %vm1512, %v1517, 0.0
        %v1530 = vsel %vm1513, %v1517, 0.0
        %v1531 = vsel %vm1514, %v1517, 0.0
        %v1532 = vsel %vm1515, %v1517, 0.0
        %v1533 = vsel %vm1516, %v1517, 0.0
        %v1534 = vadd.f32 %v1483, %v1518
        %v1535 = vadd.f32 %v1484, %v1519
        %v1536 = vadd.f32 %v1485, %v1520
        %v1537 = vadd.f32 %v1486, %v1521
        %v1538 = vadd.f32 %v1487, %v1522
        %v1539 = vadd.f32 %v1488, %v1523
        %v1540 = vadd.f32 %v1489, %v1524
        %v1541 = vadd.f32 %v1490, %v1525
        %v1542 = vadd.f32 %v1491, %v1526
        %v1543 = vadd.f32 %v1492, %v1527
        %v1544 = vadd.f32 %v1493, %v1528
        %v1545 = vadd.f32 %v1494, %v1529
        %v1546 = vadd.f32 %v1495, %v1530
        %v1547 = vadd.f32 %v1496, %v1531
        %v1548 = vadd.f32 %v1497, %v1532
        %v1549 = vadd.f32 %v1498, %v1533
        %s1550 = sadd.s32 %s21, 42
        %s1551 = sld [smem:[#allocation2 + %s1550]]
        %vm1552 = vcmp.eq.s32.totalorder %v449, 21
        %vm1553 = vcmp.eq.s32.totalorder %v451, 21
        %vm1554 = vcmp.eq.s32.totalorder %v453, 21
        %vm1555 = vcmp.eq.s32.totalorder %v455, 21
        %vm1556 = vcmp.eq.s32.totalorder %v457, 21
        %vm1557 = vcmp.eq.s32.totalorder %v459, 21
        %vm1558 = vcmp.eq.s32.totalorder %v461, 21
        %vm1559 = vcmp.eq.s32.totalorder %v463, 21
        %vm1560 = vcmp.eq.s32.totalorder %v465, 21
        %vm1561 = vcmp.eq.s32.totalorder %v467, 21
        %vm1562 = vcmp.eq.s32.totalorder %v469, 21
        %vm1563 = vcmp.eq.s32.totalorder %v471, 21
        %vm1564 = vcmp.eq.s32.totalorder %v473, 21
        %vm1565 = vcmp.eq.s32.totalorder %v475, 21
        %vm1566 = vcmp.eq.s32.totalorder %v477, 21
        %vm1567 = vcmp.eq.s32.totalorder %v479, 21
        %v1568 = vstv %s1551
        %v1569 = vsel %vm1552, %v1568, 0.0
        %v1570 = vsel %vm1553, %v1568, 0.0
        %v1571 = vsel %vm1554, %v1568, 0.0
        %v1572 = vsel %vm1555, %v1568, 0.0
        %v1573 = vsel %vm1556, %v1568, 0.0
        %v1574 = vsel %vm1557, %v1568, 0.0
        %v1575 = vsel %vm1558, %v1568, 0.0
        %v1576 = vsel %vm1559, %v1568, 0.0
        %v1577 = vsel %vm1560, %v1568, 0.0
        %v1578 = vsel %vm1561, %v1568, 0.0
        %v1579 = vsel %vm1562, %v1568, 0.0
        %v1580 = vsel %vm1563, %v1568, 0.0
        %v1581 = vsel %vm1564, %v1568, 0.0
        %v1582 = vsel %vm1565, %v1568, 0.0
        %v1583 = vsel %vm1566, %v1568, 0.0
        %v1584 = vsel %vm1567, %v1568, 0.0
        %v1585 = vadd.f32 %v1534, %v1569
        %v1586 = vadd.f32 %v1535, %v1570
        %v1587 = vadd.f32 %v1536, %v1571
        %v1588 = vadd.f32 %v1537, %v1572
        %v1589 = vadd.f32 %v1538, %v1573
        %v1590 = vadd.f32 %v1539, %v1574
        %v1591 = vadd.f32 %v1540, %v1575
        %v1592 = vadd.f32 %v1541, %v1576
        %v1593 = vadd.f32 %v1542, %v1577
        %v1594 = vadd.f32 %v1543, %v1578
        %v1595 = vadd.f32 %v1544, %v1579
        %v1596 = vadd.f32 %v1545, %v1580
        %v1597 = vadd.f32 %v1546, %v1581
        %v1598 = vadd.f32 %v1547, %v1582
        %v1599 = vadd.f32 %v1548, %v1583
        %v1600 = vadd.f32 %v1549, %v1584
        %s1601 = sadd.s32 %s21, 44
        %s1602 = sld [smem:[#allocation2 + %s1601]]
        %vm1603 = vcmp.eq.s32.totalorder %v449, 22
        %vm1604 = vcmp.eq.s32.totalorder %v451, 22
        %vm1605 = vcmp.eq.s32.totalorder %v453, 22
        %vm1606 = vcmp.eq.s32.totalorder %v455, 22
        %vm1607 = vcmp.eq.s32.totalorder %v457, 22
        %vm1608 = vcmp.eq.s32.totalorder %v459, 22
        %vm1609 = vcmp.eq.s32.totalorder %v461, 22
        %vm1610 = vcmp.eq.s32.totalorder %v463, 22
        %vm1611 = vcmp.eq.s32.totalorder %v465, 22
        %vm1612 = vcmp.eq.s32.totalorder %v467, 22
        %vm1613 = vcmp.eq.s32.totalorder %v469, 22
        %vm1614 = vcmp.eq.s32.totalorder %v471, 22
        %vm1615 = vcmp.eq.s32.totalorder %v473, 22
        %vm1616 = vcmp.eq.s32.totalorder %v475, 22
        %vm1617 = vcmp.eq.s32.totalorder %v477, 22
        %vm1618 = vcmp.eq.s32.totalorder %v479, 22
        %v1619 = vstv %s1602
        %v1620 = vsel %vm1603, %v1619, 0.0
        %v1621 = vsel %vm1604, %v1619, 0.0
        %v1622 = vsel %vm1605, %v1619, 0.0
        %v1623 = vsel %vm1606, %v1619, 0.0
        %v1624 = vsel %vm1607, %v1619, 0.0
        %v1625 = vsel %vm1608, %v1619, 0.0
        %v1626 = vsel %vm1609, %v1619, 0.0
        %v1627 = vsel %vm1610, %v1619, 0.0
        %v1628 = vsel %vm1611, %v1619, 0.0
        %v1629 = vsel %vm1612, %v1619, 0.0
        %v1630 = vsel %vm1613, %v1619, 0.0
        %v1631 = vsel %vm1614, %v1619, 0.0
        %v1632 = vsel %vm1615, %v1619, 0.0
        %v1633 = vsel %vm1616, %v1619, 0.0
        %v1634 = vsel %vm1617, %v1619, 0.0
        %v1635 = vsel %vm1618, %v1619, 0.0
        %v1636 = vadd.f32 %v1585, %v1620
        %v1637 = vadd.f32 %v1586, %v1621
        %v1638 = vadd.f32 %v1587, %v1622
        %v1639 = vadd.f32 %v1588, %v1623
        %v1640 = vadd.f32 %v1589, %v1624
        %v1641 = vadd.f32 %v1590, %v1625
        %v1642 = vadd.f32 %v1591, %v1626
        %v1643 = vadd.f32 %v1592, %v1627
        %v1644 = vadd.f32 %v1593, %v1628
        %v1645 = vadd.f32 %v1594, %v1629
        %v1646 = vadd.f32 %v1595, %v1630
        %v1647 = vadd.f32 %v1596, %v1631
        %v1648 = vadd.f32 %v1597, %v1632
        %v1649 = vadd.f32 %v1598, %v1633
        %v1650 = vadd.f32 %v1599, %v1634
        %v1651 = vadd.f32 %v1600, %v1635
        %s1652 = sadd.s32 %s21, 46
        %s1653 = sld [smem:[#allocation2 + %s1652]]
        %vm1654 = vcmp.eq.s32.totalorder %v449, 23
        %vm1655 = vcmp.eq.s32.totalorder %v451, 23
        %vm1656 = vcmp.eq.s32.totalorder %v453, 23
        %vm1657 = vcmp.eq.s32.totalorder %v455, 23
        %vm1658 = vcmp.eq.s32.totalorder %v457, 23
        %vm1659 = vcmp.eq.s32.totalorder %v459, 23
        %vm1660 = vcmp.eq.s32.totalorder %v461, 23
        %vm1661 = vcmp.eq.s32.totalorder %v463, 23
        %vm1662 = vcmp.eq.s32.totalorder %v465, 23
        %vm1663 = vcmp.eq.s32.totalorder %v467, 23
        %vm1664 = vcmp.eq.s32.totalorder %v469, 23
        %vm1665 = vcmp.eq.s32.totalorder %v471, 23
        %vm1666 = vcmp.eq.s32.totalorder %v473, 23
        %vm1667 = vcmp.eq.s32.totalorder %v475, 23
        %vm1668 = vcmp.eq.s32.totalorder %v477, 23
        %vm1669 = vcmp.eq.s32.totalorder %v479, 23
        %v1670 = vstv %s1653
        %v1671 = vsel %vm1654, %v1670, 0.0
        %v1672 = vsel %vm1655, %v1670, 0.0
        %v1673 = vsel %vm1656, %v1670, 0.0
        %v1674 = vsel %vm1657, %v1670, 0.0
        %v1675 = vsel %vm1658, %v1670, 0.0
        %v1676 = vsel %vm1659, %v1670, 0.0
        %v1677 = vsel %vm1660, %v1670, 0.0
        %v1678 = vsel %vm1661, %v1670, 0.0
        %v1679 = vsel %vm1662, %v1670, 0.0
        %v1680 = vsel %vm1663, %v1670, 0.0
        %v1681 = vsel %vm1664, %v1670, 0.0
        %v1682 = vsel %vm1665, %v1670, 0.0
        %v1683 = vsel %vm1666, %v1670, 0.0
        %v1684 = vsel %vm1667, %v1670, 0.0
        %v1685 = vsel %vm1668, %v1670, 0.0
        %v1686 = vsel %vm1669, %v1670, 0.0
        %v1687 = vadd.f32 %v1636, %v1671
        %v1688 = vadd.f32 %v1637, %v1672
        %v1689 = vadd.f32 %v1638, %v1673
        %v1690 = vadd.f32 %v1639, %v1674
        %v1691 = vadd.f32 %v1640, %v1675
        %v1692 = vadd.f32 %v1641, %v1676
        %v1693 = vadd.f32 %v1642, %v1677
        %v1694 = vadd.f32 %v1643, %v1678
        %v1695 = vadd.f32 %v1644, %v1679
        %v1696 = vadd.f32 %v1645, %v1680
        %v1697 = vadd.f32 %v1646, %v1681
        %v1698 = vadd.f32 %v1647, %v1682
        %v1699 = vadd.f32 %v1648, %v1683
        %v1700 = vadd.f32 %v1649, %v1684
        %v1701 = vadd.f32 %v1650, %v1685
        %v1702 = vadd.f32 %v1651, %v1686
        %s1703 = sadd.s32 %s21, 48
        %s1704 = sld [smem:[#allocation2 + %s1703]]
        %vm1705 = vcmp.eq.s32.totalorder %v449, 24
        %vm1706 = vcmp.eq.s32.totalorder %v451, 24
        %vm1707 = vcmp.eq.s32.totalorder %v453, 24
        %vm1708 = vcmp.eq.s32.totalorder %v455, 24
        %vm1709 = vcmp.eq.s32.totalorder %v457, 24
        %vm1710 = vcmp.eq.s32.totalorder %v459, 24
        %vm1711 = vcmp.eq.s32.totalorder %v461, 24
        %vm1712 = vcmp.eq.s32.totalorder %v463, 24
        %vm1713 = vcmp.eq.s32.totalorder %v465, 24
        %vm1714 = vcmp.eq.s32.totalorder %v467, 24
        %vm1715 = vcmp.eq.s32.totalorder %v469, 24
        %vm1716 = vcmp.eq.s32.totalorder %v471, 24
        %vm1717 = vcmp.eq.s32.totalorder %v473, 24
        %vm1718 = vcmp.eq.s32.totalorder %v475, 24
        %vm1719 = vcmp.eq.s32.totalorder %v477, 24
        %vm1720 = vcmp.eq.s32.totalorder %v479, 24
        %v1721 = vstv %s1704
        %v1722 = vsel %vm1705, %v1721, 0.0
        %v1723 = vsel %vm1706, %v1721, 0.0
        %v1724 = vsel %vm1707, %v1721, 0.0
        %v1725 = vsel %vm1708, %v1721, 0.0
        %v1726 = vsel %vm1709, %v1721, 0.0
        %v1727 = vsel %vm1710, %v1721, 0.0
        %v1728 = vsel %vm1711, %v1721, 0.0
        %v1729 = vsel %vm1712, %v1721, 0.0
        %v1730 = vsel %vm1713, %v1721, 0.0
        %v1731 = vsel %vm1714, %v1721, 0.0
        %v1732 = vsel %vm1715, %v1721, 0.0
        %v1733 = vsel %vm1716, %v1721, 0.0
        %v1734 = vsel %vm1717, %v1721, 0.0
        %v1735 = vsel %vm1718, %v1721, 0.0
        %v1736 = vsel %vm1719, %v1721, 0.0
        %v1737 = vsel %vm1720, %v1721, 0.0
        %v1738 = vadd.f32 %v1687, %v1722
        %v1739 = vadd.f32 %v1688, %v1723
        %v1740 = vadd.f32 %v1689, %v1724
        %v1741 = vadd.f32 %v1690, %v1725
        %v1742 = vadd.f32 %v1691, %v1726
        %v1743 = vadd.f32 %v1692, %v1727
        %v1744 = vadd.f32 %v1693, %v1728
        %v1745 = vadd.f32 %v1694, %v1729
        %v1746 = vadd.f32 %v1695, %v1730
        %v1747 = vadd.f32 %v1696, %v1731
        %v1748 = vadd.f32 %v1697, %v1732
        %v1749 = vadd.f32 %v1698, %v1733
        %v1750 = vadd.f32 %v1699, %v1734
        %v1751 = vadd.f32 %v1700, %v1735
        %v1752 = vadd.f32 %v1701, %v1736
        %v1753 = vadd.f32 %v1702, %v1737
        %s1754 = sadd.s32 %s21, 50
        %s1755 = sld [smem:[#allocation2 + %s1754]]
        %vm1756 = vcmp.eq.s32.totalorder %v449, 25
        %vm1757 = vcmp.eq.s32.totalorder %v451, 25
        %vm1758 = vcmp.eq.s32.totalorder %v453, 25
        %vm1759 = vcmp.eq.s32.totalorder %v455, 25
        %vm1760 = vcmp.eq.s32.totalorder %v457, 25
        %vm1761 = vcmp.eq.s32.totalorder %v459, 25
        %vm1762 = vcmp.eq.s32.totalorder %v461, 25
        %vm1763 = vcmp.eq.s32.totalorder %v463, 25
        %vm1764 = vcmp.eq.s32.totalorder %v465, 25
        %vm1765 = vcmp.eq.s32.totalorder %v467, 25
        %vm1766 = vcmp.eq.s32.totalorder %v469, 25
        %vm1767 = vcmp.eq.s32.totalorder %v471, 25
        %vm1768 = vcmp.eq.s32.totalorder %v473, 25
        %vm1769 = vcmp.eq.s32.totalorder %v475, 25
        %vm1770 = vcmp.eq.s32.totalorder %v477, 25
        %vm1771 = vcmp.eq.s32.totalorder %v479, 25
        %v1772 = vstv %s1755
        %v1773 = vsel %vm1756, %v1772, 0.0
        %v1774 = vsel %vm1757, %v1772, 0.0
        %v1775 = vsel %vm1758, %v1772, 0.0
        %v1776 = vsel %vm1759, %v1772, 0.0
        %v1777 = vsel %vm1760, %v1772, 0.0
        %v1778 = vsel %vm1761, %v1772, 0.0
        %v1779 = vsel %vm1762, %v1772, 0.0
        %v1780 = vsel %vm1763, %v1772, 0.0
        %v1781 = vsel %vm1764, %v1772, 0.0
        %v1782 = vsel %vm1765, %v1772, 0.0
        %v1783 = vsel %vm1766, %v1772, 0.0
        %v1784 = vsel %vm1767, %v1772, 0.0
        %v1785 = vsel %vm1768, %v1772, 0.0
        %v1786 = vsel %vm1769, %v1772, 0.0
        %v1787 = vsel %vm1770, %v1772, 0.0
        %v1788 = vsel %vm1771, %v1772, 0.0
        %v1789 = vadd.f32 %v1738, %v1773
        %v1790 = vadd.f32 %v1739, %v1774
        %v1791 = vadd.f32 %v1740, %v1775
        %v1792 = vadd.f32 %v1741, %v1776
        %v1793 = vadd.f32 %v1742, %v1777
        %v1794 = vadd.f32 %v1743, %v1778
        %v1795 = vadd.f32 %v1744, %v1779
        %v1796 = vadd.f32 %v1745, %v1780
        %v1797 = vadd.f32 %v1746, %v1781
        %v1798 = vadd.f32 %v1747, %v1782
        %v1799 = vadd.f32 %v1748, %v1783
        %v1800 = vadd.f32 %v1749, %v1784
        %v1801 = vadd.f32 %v1750, %v1785
        %v1802 = vadd.f32 %v1751, %v1786
        %v1803 = vadd.f32 %v1752, %v1787
        %v1804 = vadd.f32 %v1753, %v1788
        %s1805 = sadd.s32 %s21, 52
        %s1806 = sld [smem:[#allocation2 + %s1805]]
        %vm1807 = vcmp.eq.s32.totalorder %v449, 26
        %vm1808 = vcmp.eq.s32.totalorder %v451, 26
        %vm1809 = vcmp.eq.s32.totalorder %v453, 26
        %vm1810 = vcmp.eq.s32.totalorder %v455, 26
        %vm1811 = vcmp.eq.s32.totalorder %v457, 26
        %vm1812 = vcmp.eq.s32.totalorder %v459, 26
        %vm1813 = vcmp.eq.s32.totalorder %v461, 26
        %vm1814 = vcmp.eq.s32.totalorder %v463, 26
        %vm1815 = vcmp.eq.s32.totalorder %v465, 26
        %vm1816 = vcmp.eq.s32.totalorder %v467, 26
        %vm1817 = vcmp.eq.s32.totalorder %v469, 26
        %vm1818 = vcmp.eq.s32.totalorder %v471, 26
        %vm1819 = vcmp.eq.s32.totalorder %v473, 26
        %vm1820 = vcmp.eq.s32.totalorder %v475, 26
        %vm1821 = vcmp.eq.s32.totalorder %v477, 26
        %vm1822 = vcmp.eq.s32.totalorder %v479, 26
        %v1823 = vstv %s1806
        %v1824 = vsel %vm1807, %v1823, 0.0
        %v1825 = vsel %vm1808, %v1823, 0.0
        %v1826 = vsel %vm1809, %v1823, 0.0
        %v1827 = vsel %vm1810, %v1823, 0.0
        %v1828 = vsel %vm1811, %v1823, 0.0
        %v1829 = vsel %vm1812, %v1823, 0.0
        %v1830 = vsel %vm1813, %v1823, 0.0
        %v1831 = vsel %vm1814, %v1823, 0.0
        %v1832 = vsel %vm1815, %v1823, 0.0
        %v1833 = vsel %vm1816, %v1823, 0.0
        %v1834 = vsel %vm1817, %v1823, 0.0
        %v1835 = vsel %vm1818, %v1823, 0.0
        %v1836 = vsel %vm1819, %v1823, 0.0
        %v1837 = vsel %vm1820, %v1823, 0.0
        %v1838 = vsel %vm1821, %v1823, 0.0
        %v1839 = vsel %vm1822, %v1823, 0.0
        %v1840 = vadd.f32 %v1789, %v1824
        %v1841 = vadd.f32 %v1790, %v1825
        %v1842 = vadd.f32 %v1791, %v1826
        %v1843 = vadd.f32 %v1792, %v1827
        %v1844 = vadd.f32 %v1793, %v1828
        %v1845 = vadd.f32 %v1794, %v1829
        %v1846 = vadd.f32 %v1795, %v1830
        %v1847 = vadd.f32 %v1796, %v1831
        %v1848 = vadd.f32 %v1797, %v1832
        %v1849 = vadd.f32 %v1798, %v1833
        %v1850 = vadd.f32 %v1799, %v1834
        %v1851 = vadd.f32 %v1800, %v1835
        %v1852 = vadd.f32 %v1801, %v1836
        %v1853 = vadd.f32 %v1802, %v1837
        %v1854 = vadd.f32 %v1803, %v1838
        %v1855 = vadd.f32 %v1804, %v1839
        %s1856 = sadd.s32 %s21, 54
        %s1857 = sld [smem:[#allocation2 + %s1856]]
        %vm1858 = vcmp.eq.s32.totalorder %v449, 27
        %vm1859 = vcmp.eq.s32.totalorder %v451, 27
        %vm1860 = vcmp.eq.s32.totalorder %v453, 27
        %vm1861 = vcmp.eq.s32.totalorder %v455, 27
        %vm1862 = vcmp.eq.s32.totalorder %v457, 27
        %vm1863 = vcmp.eq.s32.totalorder %v459, 27
        %vm1864 = vcmp.eq.s32.totalorder %v461, 27
        %vm1865 = vcmp.eq.s32.totalorder %v463, 27
        %vm1866 = vcmp.eq.s32.totalorder %v465, 27
        %vm1867 = vcmp.eq.s32.totalorder %v467, 27
        %vm1868 = vcmp.eq.s32.totalorder %v469, 27
        %vm1869 = vcmp.eq.s32.totalorder %v471, 27
        %vm1870 = vcmp.eq.s32.totalorder %v473, 27
        %vm1871 = vcmp.eq.s32.totalorder %v475, 27
        %vm1872 = vcmp.eq.s32.totalorder %v477, 27
        %vm1873 = vcmp.eq.s32.totalorder %v479, 27
        %v1874 = vstv %s1857
        %v1875 = vsel %vm1858, %v1874, 0.0
        %v1876 = vsel %vm1859, %v1874, 0.0
        %v1877 = vsel %vm1860, %v1874, 0.0
        %v1878 = vsel %vm1861, %v1874, 0.0
        %v1879 = vsel %vm1862, %v1874, 0.0
        %v1880 = vsel %vm1863, %v1874, 0.0
        %v1881 = vsel %vm1864, %v1874, 0.0
        %v1882 = vsel %vm1865, %v1874, 0.0
        %v1883 = vsel %vm1866, %v1874, 0.0
        %v1884 = vsel %vm1867, %v1874, 0.0
        %v1885 = vsel %vm1868, %v1874, 0.0
        %v1886 = vsel %vm1869, %v1874, 0.0
        %v1887 = vsel %vm1870, %v1874, 0.0
        %v1888 = vsel %vm1871, %v1874, 0.0
        %v1889 = vsel %vm1872, %v1874, 0.0
        %v1890 = vsel %vm1873, %v1874, 0.0
        %v1891 = vadd.f32 %v1840, %v1875
        %v1892 = vadd.f32 %v1841, %v1876
        %v1893 = vadd.f32 %v1842, %v1877
        %v1894 = vadd.f32 %v1843, %v1878
        %v1895 = vadd.f32 %v1844, %v1879
        %v1896 = vadd.f32 %v1845, %v1880
        %v1897 = vadd.f32 %v1846, %v1881
        %v1898 = vadd.f32 %v1847, %v1882
        %v1899 = vadd.f32 %v1848, %v1883
        %v1900 = vadd.f32 %v1849, %v1884
        %v1901 = vadd.f32 %v1850, %v1885
        %v1902 = vadd.f32 %v1851, %v1886
        %v1903 = vadd.f32 %v1852, %v1887
        %v1904 = vadd.f32 %v1853, %v1888
        %v1905 = vadd.f32 %v1854, %v1889
        %v1906 = vadd.f32 %v1855, %v1890
        %s1907 = sadd.s32 %s21, 56
        %s1908 = sld [smem:[#allocation2 + %s1907]]
        %vm1909 = vcmp.eq.s32.totalorder %v449, 28
        %vm1910 = vcmp.eq.s32.totalorder %v451, 28
        %vm1911 = vcmp.eq.s32.totalorder %v453, 28
        %vm1912 = vcmp.eq.s32.totalorder %v455, 28
        %vm1913 = vcmp.eq.s32.totalorder %v457, 28
        %vm1914 = vcmp.eq.s32.totalorder %v459, 28
        %vm1915 = vcmp.eq.s32.totalorder %v461, 28
        %vm1916 = vcmp.eq.s32.totalorder %v463, 28
        %vm1917 = vcmp.eq.s32.totalorder %v465, 28
        %vm1918 = vcmp.eq.s32.totalorder %v467, 28
        %vm1919 = vcmp.eq.s32.totalorder %v469, 28
        %vm1920 = vcmp.eq.s32.totalorder %v471, 28
        %vm1921 = vcmp.eq.s32.totalorder %v473, 28
        %vm1922 = vcmp.eq.s32.totalorder %v475, 28
        %vm1923 = vcmp.eq.s32.totalorder %v477, 28
        %vm1924 = vcmp.eq.s32.totalorder %v479, 28
        %v1925 = vstv %s1908
        %v1926 = vsel %vm1909, %v1925, 0.0
        %v1927 = vsel %vm1910, %v1925, 0.0
        %v1928 = vsel %vm1911, %v1925, 0.0
        %v1929 = vsel %vm1912, %v1925, 0.0
        %v1930 = vsel %vm1913, %v1925, 0.0
        %v1931 = vsel %vm1914, %v1925, 0.0
        %v1932 = vsel %vm1915, %v1925, 0.0
        %v1933 = vsel %vm1916, %v1925, 0.0
        %v1934 = vsel %vm1917, %v1925, 0.0
        %v1935 = vsel %vm1918, %v1925, 0.0
        %v1936 = vsel %vm1919, %v1925, 0.0
        %v1937 = vsel %vm1920, %v1925, 0.0
        %v1938 = vsel %vm1921, %v1925, 0.0
        %v1939 = vsel %vm1922, %v1925, 0.0
        %v1940 = vsel %vm1923, %v1925, 0.0
        %v1941 = vsel %vm1924, %v1925, 0.0
        %v1942 = vadd.f32 %v1891, %v1926
        %v1943 = vadd.f32 %v1892, %v1927
        %v1944 = vadd.f32 %v1893, %v1928
        %v1945 = vadd.f32 %v1894, %v1929
        %v1946 = vadd.f32 %v1895, %v1930
        %v1947 = vadd.f32 %v1896, %v1931
        %v1948 = vadd.f32 %v1897, %v1932
        %v1949 = vadd.f32 %v1898, %v1933
        %v1950 = vadd.f32 %v1899, %v1934
        %v1951 = vadd.f32 %v1900, %v1935
        %v1952 = vadd.f32 %v1901, %v1936
        %v1953 = vadd.f32 %v1902, %v1937
        %v1954 = vadd.f32 %v1903, %v1938
        %v1955 = vadd.f32 %v1904, %v1939
        %v1956 = vadd.f32 %v1905, %v1940
        %v1957 = vadd.f32 %v1906, %v1941
        %s1958 = sadd.s32 %s21, 58
        %s1959 = sld [smem:[#allocation2 + %s1958]]
        %vm1960 = vcmp.eq.s32.totalorder %v449, 29
        %vm1961 = vcmp.eq.s32.totalorder %v451, 29
        %vm1962 = vcmp.eq.s32.totalorder %v453, 29
        %vm1963 = vcmp.eq.s32.totalorder %v455, 29
        %vm1964 = vcmp.eq.s32.totalorder %v457, 29
        %vm1965 = vcmp.eq.s32.totalorder %v459, 29
        %vm1966 = vcmp.eq.s32.totalorder %v461, 29
        %vm1967 = vcmp.eq.s32.totalorder %v463, 29
        %vm1968 = vcmp.eq.s32.totalorder %v465, 29
        %vm1969 = vcmp.eq.s32.totalorder %v467, 29
        %vm1970 = vcmp.eq.s32.totalorder %v469, 29
        %vm1971 = vcmp.eq.s32.totalorder %v471, 29
        %vm1972 = vcmp.eq.s32.totalorder %v473, 29
        %vm1973 = vcmp.eq.s32.totalorder %v475, 29
        %vm1974 = vcmp.eq.s32.totalorder %v477, 29
        %vm1975 = vcmp.eq.s32.totalorder %v479, 29
        %v1976 = vstv %s1959
        %v1977 = vsel %vm1960, %v1976, 0.0
        %v1978 = vsel %vm1961, %v1976, 0.0
        %v1979 = vsel %vm1962, %v1976, 0.0
        %v1980 = vsel %vm1963, %v1976, 0.0
        %v1981 = vsel %vm1964, %v1976, 0.0
        %v1982 = vsel %vm1965, %v1976, 0.0
        %v1983 = vsel %vm1966, %v1976, 0.0
        %v1984 = vsel %vm1967, %v1976, 0.0
        %v1985 = vsel %vm1968, %v1976, 0.0
        %v1986 = vsel %vm1969, %v1976, 0.0
        %v1987 = vsel %vm1970, %v1976, 0.0
        %v1988 = vsel %vm1971, %v1976, 0.0
        %v1989 = vsel %vm1972, %v1976, 0.0
        %v1990 = vsel %vm1973, %v1976, 0.0
        %v1991 = vsel %vm1974, %v1976, 0.0
        %v1992 = vsel %vm1975, %v1976, 0.0
        %v1993 = vadd.f32 %v1942, %v1977
        %v1994 = vadd.f32 %v1943, %v1978
        %v1995 = vadd.f32 %v1944, %v1979
        %v1996 = vadd.f32 %v1945, %v1980
        %v1997 = vadd.f32 %v1946, %v1981
        %v1998 = vadd.f32 %v1947, %v1982
        %v1999 = vadd.f32 %v1948, %v1983
        %v2000 = vadd.f32 %v1949, %v1984
        %v2001 = vadd.f32 %v1950, %v1985
        %v2002 = vadd.f32 %v1951, %v1986
        %v2003 = vadd.f32 %v1952, %v1987
        %v2004 = vadd.f32 %v1953, %v1988
        %v2005 = vadd.f32 %v1954, %v1989
        %v2006 = vadd.f32 %v1955, %v1990
        %v2007 = vadd.f32 %v1956, %v1991
        %v2008 = vadd.f32 %v1957, %v1992
        %s2009 = sadd.s32 %s21, 60
        %s2010 = sld [smem:[#allocation2 + %s2009]]
        %vm2011 = vcmp.eq.s32.totalorder %v449, 30
        %vm2012 = vcmp.eq.s32.totalorder %v451, 30
        %vm2013 = vcmp.eq.s32.totalorder %v453, 30
        %vm2014 = vcmp.eq.s32.totalorder %v455, 30
        %vm2015 = vcmp.eq.s32.totalorder %v457, 30
        %vm2016 = vcmp.eq.s32.totalorder %v459, 30
        %vm2017 = vcmp.eq.s32.totalorder %v461, 30
        %vm2018 = vcmp.eq.s32.totalorder %v463, 30
        %vm2019 = vcmp.eq.s32.totalorder %v465, 30
        %vm2020 = vcmp.eq.s32.totalorder %v467, 30
        %vm2021 = vcmp.eq.s32.totalorder %v469, 30
        %vm2022 = vcmp.eq.s32.totalorder %v471, 30
        %vm2023 = vcmp.eq.s32.totalorder %v473, 30
        %vm2024 = vcmp.eq.s32.totalorder %v475, 30
        %vm2025 = vcmp.eq.s32.totalorder %v477, 30
        %vm2026 = vcmp.eq.s32.totalorder %v479, 30
        %v2027 = vstv %s2010
        %v2028 = vsel %vm2011, %v2027, 0.0
        %v2029 = vsel %vm2012, %v2027, 0.0
        %v2030 = vsel %vm2013, %v2027, 0.0
        %v2031 = vsel %vm2014, %v2027, 0.0
        %v2032 = vsel %vm2015, %v2027, 0.0
        %v2033 = vsel %vm2016, %v2027, 0.0
        %v2034 = vsel %vm2017, %v2027, 0.0
        %v2035 = vsel %vm2018, %v2027, 0.0
        %v2036 = vsel %vm2019, %v2027, 0.0
        %v2037 = vsel %vm2020, %v2027, 0.0
        %v2038 = vsel %vm2021, %v2027, 0.0
        %v2039 = vsel %vm2022, %v2027, 0.0
        %v2040 = vsel %vm2023, %v2027, 0.0
        %v2041 = vsel %vm2024, %v2027, 0.0
        %v2042 = vsel %vm2025, %v2027, 0.0
        %v2043 = vsel %vm2026, %v2027, 0.0
        %v2044 = vadd.f32 %v1993, %v2028
        %v2045 = vadd.f32 %v1994, %v2029
        %v2046 = vadd.f32 %v1995, %v2030
        %v2047 = vadd.f32 %v1996, %v2031
        %v2048 = vadd.f32 %v1997, %v2032
        %v2049 = vadd.f32 %v1998, %v2033
        %v2050 = vadd.f32 %v1999, %v2034
        %v2051 = vadd.f32 %v2000, %v2035
        %v2052 = vadd.f32 %v2001, %v2036
        %v2053 = vadd.f32 %v2002, %v2037
        %v2054 = vadd.f32 %v2003, %v2038
        %v2055 = vadd.f32 %v2004, %v2039
        %v2056 = vadd.f32 %v2005, %v2040
        %v2057 = vadd.f32 %v2006, %v2041
        %v2058 = vadd.f32 %v2007, %v2042
        %v2059 = vadd.f32 %v2008, %v2043
        %s2060 = sadd.s32 %s21, 62
        %s2061 = sld [smem:[#allocation2 + %s2060]]
        %vm2062 = vcmp.eq.s32.totalorder %v449, 31
        %vm2063 = vcmp.eq.s32.totalorder %v451, 31
        %vm2064 = vcmp.eq.s32.totalorder %v453, 31
        %vm2065 = vcmp.eq.s32.totalorder %v455, 31
        %vm2066 = vcmp.eq.s32.totalorder %v457, 31
        %vm2067 = vcmp.eq.s32.totalorder %v459, 31
        %vm2068 = vcmp.eq.s32.totalorder %v461, 31
        %vm2069 = vcmp.eq.s32.totalorder %v463, 31
        %vm2070 = vcmp.eq.s32.totalorder %v465, 31
        %vm2071 = vcmp.eq.s32.totalorder %v467, 31
        %vm2072 = vcmp.eq.s32.totalorder %v469, 31
        %vm2073 = vcmp.eq.s32.totalorder %v471, 31
        %vm2074 = vcmp.eq.s32.totalorder %v473, 31
        %vm2075 = vcmp.eq.s32.totalorder %v475, 31
        %vm2076 = vcmp.eq.s32.totalorder %v477, 31
        %vm2077 = vcmp.eq.s32.totalorder %v479, 31
        %v2078 = vstv %s2061
        %v2079 = vsel %vm2062, %v2078, 0.0
        %v2080 = vsel %vm2063, %v2078, 0.0
        %v2081 = vsel %vm2064, %v2078, 0.0
        %v2082 = vsel %vm2065, %v2078, 0.0
        %v2083 = vsel %vm2066, %v2078, 0.0
        %v2084 = vsel %vm2067, %v2078, 0.0
        %v2085 = vsel %vm2068, %v2078, 0.0
        %v2086 = vsel %vm2069, %v2078, 0.0
        %v2087 = vsel %vm2070, %v2078, 0.0
        %v2088 = vsel %vm2071, %v2078, 0.0
        %v2089 = vsel %vm2072, %v2078, 0.0
        %v2090 = vsel %vm2073, %v2078, 0.0
        %v2091 = vsel %vm2074, %v2078, 0.0
        %v2092 = vsel %vm2075, %v2078, 0.0
        %v2093 = vsel %vm2076, %v2078, 0.0
        %v2094 = vsel %vm2077, %v2078, 0.0
        %v2095 = vadd.f32 %v2044, %v2079
        %v2096 = vadd.f32 %v2045, %v2080
        %v2097 = vadd.f32 %v2046, %v2081
        %v2098 = vadd.f32 %v2047, %v2082
        %v2099 = vadd.f32 %v2048, %v2083
        %v2100 = vadd.f32 %v2049, %v2084
        %v2101 = vadd.f32 %v2050, %v2085
        %v2102 = vadd.f32 %v2051, %v2086
        %v2103 = vadd.f32 %v2052, %v2087
        %v2104 = vadd.f32 %v2053, %v2088
        %v2105 = vadd.f32 %v2054, %v2089
        %v2106 = vadd.f32 %v2055, %v2090
        %v2107 = vadd.f32 %v2056, %v2091
        %v2108 = vadd.f32 %v2057, %v2092
        %v2109 = vadd.f32 %v2058, %v2093
        %v2110 = vadd.f32 %v2059, %v2094
        %vm2111 = vcmp.le.s32.totalorder %v383, %v366
        %vm2112 = vcmp.le.s32.totalorder %v383, %v367
        %vm2113 = vcmp.le.s32.totalorder %v383, %v368
        %vm2114 = vcmp.le.s32.totalorder %v383, %v369
        %vm2115 = vcmp.le.s32.totalorder %v383, %v370
        %vm2116 = vcmp.le.s32.totalorder %v383, %v371
        %vm2117 = vcmp.le.s32.totalorder %v383, %v372
        %vm2118 = vcmp.le.s32.totalorder %v383, %v373
        %vm2119 = vcmp.le.s32.totalorder %v383, %v374
        %vm2120 = vcmp.le.s32.totalorder %v383, %v375
        %vm2121 = vcmp.le.s32.totalorder %v383, %v376
        %vm2122 = vcmp.le.s32.totalorder %v383, %v377
        %vm2123 = vcmp.le.s32.totalorder %v383, %v378
        %vm2124 = vcmp.le.s32.totalorder %v383, %v379
        %vm2125 = vcmp.le.s32.totalorder %v383, %v380
        %vm2126 = vcmp.le.s32.totalorder %v383, %v381
        %v2143 = vunpack.c.l.b16 %v317
        %v2144 = vunpack.c.l.b16 %v318
        %v2145 = vunpack.c.l.b16 %v319
        %v2146 = vunpack.c.l.b16 %v320
        %v2147 = vunpack.c.l.b16 %v321
        %v2148 = vunpack.c.l.b16 %v322
        %v2149 = vunpack.c.l.b16 %v323
        %v2150 = vunpack.c.l.b16 %v324
        %v2151 = vunpack.c.l.b16 %v325
        %v2152 = vunpack.c.l.b16 %v326
        %v2153 = vunpack.c.l.b16 %v327
        %v2154 = vunpack.c.l.b16 %v328
        %v2155 = vunpack.c.l.b16 %v329
        %v2156 = vunpack.c.l.b16 %v330
        %v2157 = vunpack.c.l.b16 %v331
        %v2158 = vunpack.c.l.b16 %v332
        %v2159 = vpack.c.b16 %v2144, %v2143
        %v2160 = vpack.c.b16 %v2146, %v2145
        %v2161 = vpack.c.b16 %v2148, %v2147
        %v2162 = vpack.c.b16 %v2150, %v2149
        %v2163 = vpack.c.b16 %v2152, %v2151
        %v2164 = vpack.c.b16 %v2154, %v2153
        %v2165 = vpack.c.b16 %v2156, %v2155
        %v2166 = vpack.c.b16 %v2158, %v2157
        %v2191 = vunpack.c.l.b16 %v333
        %v2192 = vunpack.c.l.b16 %v334
        %v2193 = vunpack.c.l.b16 %v335
        %v2194 = vunpack.c.l.b16 %v336
        %v2195 = vunpack.c.l.b16 %v337
        %v2196 = vunpack.c.l.b16 %v338
        %v2197 = vunpack.c.l.b16 %v339
        %v2198 = vunpack.c.l.b16 %v340
        %v2199 = vunpack.c.l.b16 %v341
        %v2200 = vunpack.c.l.b16 %v342
        %v2201 = vunpack.c.l.b16 %v343
        %v2202 = vunpack.c.l.b16 %v344
        %v2203 = vunpack.c.l.b16 %v345
        %v2204 = vunpack.c.l.b16 %v346
        %v2205 = vunpack.c.l.b16 %v347
        %v2206 = vunpack.c.l.b16 %v348
        %v2207 = vpack.c.b16 %v2192, %v2191
        %v2208 = vpack.c.b16 %v2194, %v2193
        %v2209 = vpack.c.b16 %v2196, %v2195
        %v2210 = vpack.c.b16 %v2198, %v2197
        %v2211 = vpack.c.b16 %v2200, %v2199
        %v2212 = vpack.c.b16 %v2202, %v2201
        %v2213 = vpack.c.b16 %v2204, %v2203
        %v2214 = vpack.c.b16 %v2206, %v2205
        %2223 = vmatprep.subr.bf16.mxu0 0
        %2224 = vmatpush1.bf16.xpose.msra.mxu0 %v2214
        %2225 = vmatprep.subr.bf16.mxu0 0
        %2226 = vmatpush1.bf16.xpose.msra.mxu0 %v2213
        %2227 = vmatprep.subr.bf16.mxu0 0
        %2228 = vmatpush1.bf16.xpose.msra.mxu0 %v2212
        %2229 = vmatprep.subr.bf16.mxu0 0
        %2230 = vmatpush1.bf16.xpose.msra.mxu0 %v2211
        %2231 = vmatprep.subr.bf16.mxu0 0
        %2232 = vmatpush1.bf16.xpose.msra.mxu0 %v2210
        %2233 = vmatprep.subr.bf16.mxu0 0
        %2234 = vmatpush1.bf16.xpose.msra.mxu0 %v2209
        %2235 = vmatprep.subr.bf16.mxu0 0
        %2236 = vmatpush1.bf16.xpose.msra.mxu0 %v2208
        %2237 = vmatprep.subr.bf16.mxu0 0
        %2238 = vmatpush1.bf16.xpose.msra.mxu0 %v2207
        %2239 = vmatprep.subr.bf16.mxu0 0
        %2240 = vmatpush2.bf16.xpose.msra.mxu0 0
        %2241 = vmatprep.subr.bf16.mxu0 0
        %2242 = vmatpush2.bf16.xpose.msra.mxu0 0
        %2243 = vmatprep.subr.bf16.mxu0 0
        %2244 = vmatpush2.bf16.xpose.msra.mxu0 0
        %2245 = vmatprep.subr.bf16.mxu0 0
        %2246 = vmatpush2.bf16.xpose.msra.mxu0 0
        %2247 = vmatprep.subr.bf16.mxu0 0
        %2248 = vmatpush2.bf16.xpose.msra.mxu0 0
        %2249 = vmatprep.subr.bf16.mxu0 0
        %2250 = vmatpush2.bf16.xpose.msra.mxu0 0
        %2251 = vmatprep.subr.bf16.mxu0 0
        %2252 = vmatpush2.bf16.xpose.msra.mxu0 0
        %2253 = vmatprep.subr.bf16.mxu0 0
        %2254 = vmatpush2.bf16.xpose.msra.mxu0 0
        %2255 = vmatprep.mubr.bf16.mxu0 0
        %2256 = vmatmul.mubr.bf16.gmra.mxu0 %v2159
        %v2257 = vpop.f32.mrf.mxu0
        %v2258 = vadd.f32 %v2095, %v2257
        %v2259 = vpop.f32.mrf.mxu0
        %v2260 = vpop.f32.mrf.mxu0
        %v2261 = vadd.f32 %v2096, %v2260
        %v2262 = vpop.f32.mrf.mxu0
        %2263 = vmatprep.mubr.bf16.mxu0 0
        %2264 = vmatmul.mubr.bf16.gmra.mxu0 %v2160
        %v2265 = vpop.f32.mrf.mxu0
        %v2266 = vadd.f32 %v2097, %v2265
        %v2267 = vpop.f32.mrf.mxu0
        %v2268 = vpop.f32.mrf.mxu0
        %v2269 = vadd.f32 %v2098, %v2268
        %v2270 = vpop.f32.mrf.mxu0
        %2271 = vmatprep.mubr.bf16.mxu0 0
        %2272 = vmatmul.mubr.bf16.gmra.mxu0 %v2161
        %v2273 = vpop.f32.mrf.mxu0
        %v2274 = vadd.f32 %v2099, %v2273
        %v2275 = vpop.f32.mrf.mxu0
        %v2276 = vpop.f32.mrf.mxu0
        %v2277 = vadd.f32 %v2100, %v2276
        %v2278 = vpop.f32.mrf.mxu0
        %2279 = vmatprep.mubr.bf16.mxu0 0
        %2280 = vmatmul.mubr.bf16.gmra.mxu0 %v2162
        %v2281 = vpop.f32.mrf.mxu0
        %v2282 = vadd.f32 %v2101, %v2281
        %v2283 = vpop.f32.mrf.mxu0
        %v2284 = vpop.f32.mrf.mxu0
        %v2285 = vadd.f32 %v2102, %v2284
        %v2286 = vpop.f32.mrf.mxu0
        %2287 = vmatprep.mubr.bf16.mxu0 0
        %2288 = vmatmul.mubr.bf16.gmra.mxu0 %v2163
        %v2289 = vpop.f32.mrf.mxu0
        %v2290 = vadd.f32 %v2103, %v2289
        %v2291 = vpop.f32.mrf.mxu0
        %v2292 = vpop.f32.mrf.mxu0
        %v2293 = vadd.f32 %v2104, %v2292
        %v2294 = vpop.f32.mrf.mxu0
        %2295 = vmatprep.mubr.bf16.mxu0 0
        %2296 = vmatmul.mubr.bf16.gmra.mxu0 %v2164
        %v2297 = vpop.f32.mrf.mxu0
        %v2298 = vadd.f32 %v2105, %v2297
        %v2299 = vpop.f32.mrf.mxu0
        %v2300 = vpop.f32.mrf.mxu0
        %v2301 = vadd.f32 %v2106, %v2300
        %v2302 = vpop.f32.mrf.mxu0
        %2303 = vmatprep.mubr.bf16.mxu0 0
        %2304 = vmatmul.mubr.bf16.gmra.mxu0 %v2165
        %v2305 = vpop.f32.mrf.mxu0
        %v2306 = vadd.f32 %v2107, %v2305
        %v2307 = vpop.f32.mrf.mxu0
        %v2308 = vpop.f32.mrf.mxu0
        %v2309 = vadd.f32 %v2108, %v2308
        %v2310 = vpop.f32.mrf.mxu0
        %2311 = vmatprep.mubr.bf16.mxu0 0
        %2312 = vmatmul.mubr.bf16.gmra.mxu0 %v2166
        %v2313 = vpop.f32.mrf.mxu0
        %v2314 = vadd.f32 %v2109, %v2313
        %v2315 = vpop.f32.mrf.mxu0
        %v2316 = vpop.f32.mrf.mxu0
        %v2317 = vadd.f32 %v2110, %v2316
        %v2318 = vpop.f32.mrf.mxu0
        %2319 = vdwg.mxu0
        %v2320 = vsel %vm2111, %v2258, -1e+30
        %v2321 = vsel %vm2112, %v2261, -1e+30
        %v2322 = vsel %vm2113, %v2266, -1e+30
        %v2323 = vsel %vm2114, %v2269, -1e+30
        %v2324 = vsel %vm2115, %v2274, -1e+30
        %v2325 = vsel %vm2116, %v2277, -1e+30
        %v2326 = vsel %vm2117, %v2282, -1e+30
        %v2327 = vsel %vm2118, %v2285, -1e+30
        %v2328 = vsel %vm2119, %v2290, -1e+30
        %v2329 = vsel %vm2120, %v2293, -1e+30
        %v2330 = vsel %vm2121, %v2298, -1e+30
        %v2331 = vsel %vm2122, %v2301, -1e+30
        %v2332 = vsel %vm2123, %v2306, -1e+30
        %v2333 = vsel %vm2124, %v2309, -1e+30
        %v2334 = vsel %vm2125, %v2314, -1e+30
        %v2335 = vsel %vm2126, %v2317, -1e+30
        %2336 = vmax.xlane.f32.xlu0 %v2320
        %v2337 = vpop.xlane.xlu0 %2336
        %2338 = vmax.xlane.f32.xlu0 %v2321
        %v2339 = vpop.xlane.xlu0 %2338
        %2340 = vmax.xlane.f32.xlu0 %v2322
        %v2341 = vpop.xlane.xlu0 %2340
        %2342 = vmax.xlane.f32.xlu0 %v2323
        %v2343 = vpop.xlane.xlu0 %2342
        %2344 = vmax.xlane.f32.xlu0 %v2324
        %v2345 = vpop.xlane.xlu0 %2344
        %2346 = vmax.xlane.f32.xlu0 %v2325
        %v2347 = vpop.xlane.xlu0 %2346
        %2348 = vmax.xlane.f32.xlu0 %v2326
        %v2349 = vpop.xlane.xlu0 %2348
        %2350 = vmax.xlane.f32.xlu0 %v2327
        %v2351 = vpop.xlane.xlu0 %2350
        %2352 = vmax.xlane.f32.xlu0 %v2328
        %v2353 = vpop.xlane.xlu0 %2352
        %2354 = vmax.xlane.f32.xlu0 %v2329
        %v2355 = vpop.xlane.xlu0 %2354
        %2356 = vmax.xlane.f32.xlu0 %v2330
        %v2357 = vpop.xlane.xlu0 %2356
        %2358 = vmax.xlane.f32.xlu0 %v2331
        %v2359 = vpop.xlane.xlu0 %2358
        %2360 = vmax.xlane.f32.xlu0 %v2332
        %v2361 = vpop.xlane.xlu0 %2360
        %2362 = vmax.xlane.f32.xlu0 %v2333
        %v2363 = vpop.xlane.xlu0 %2362
        %2364 = vmax.xlane.f32.xlu0 %v2334
        %v2365 = vpop.xlane.xlu0 %2364
        %2366 = vmax.xlane.f32.xlu0 %v2335
        %v2367 = vpop.xlane.xlu0 %2366
        %v2368 = vsub.f32 %v2320, %v2337
        %v2369 = vsub.f32 %v2321, %v2339
        %v2370 = vsub.f32 %v2322, %v2341
        %v2371 = vsub.f32 %v2323, %v2343
        %v2372 = vsub.f32 %v2324, %v2345
        %v2373 = vsub.f32 %v2325, %v2347
        %v2374 = vsub.f32 %v2326, %v2349
        %v2375 = vsub.f32 %v2327, %v2351
        %v2376 = vsub.f32 %v2328, %v2353
        %v2377 = vsub.f32 %v2329, %v2355
        %v2378 = vsub.f32 %v2330, %v2357
        %v2379 = vsub.f32 %v2331, %v2359
        %v2380 = vsub.f32 %v2332, %v2361
        %v2381 = vsub.f32 %v2333, %v2363
        %v2382 = vsub.f32 %v2334, %v2365
        %v2383 = vsub.f32 %v2335, %v2367
        %v2384 = vmul.f32 %v2368, 1.442695
        %v2385 = vpow.pop %v2384
        %v2386 = vmul.f32 %v2369, 1.442695
        %v2387 = vpow.pop %v2386
        %v2388 = vmul.f32 %v2370, 1.442695
        %v2389 = vpow.pop %v2388
        %v2390 = vmul.f32 %v2371, 1.442695
        %v2391 = vpow.pop %v2390
        %v2392 = vmul.f32 %v2372, 1.442695
        %v2393 = vpow.pop %v2392
        %v2394 = vmul.f32 %v2373, 1.442695
        %v2395 = vpow.pop %v2394
        %v2396 = vmul.f32 %v2374, 1.442695
        %v2397 = vpow.pop %v2396
        %v2398 = vmul.f32 %v2375, 1.442695
        %v2399 = vpow.pop %v2398
        %v2400 = vmul.f32 %v2376, 1.442695
        %v2401 = vpow.pop %v2400
        %v2402 = vmul.f32 %v2377, 1.442695
        %v2403 = vpow.pop %v2402
        %v2404 = vmul.f32 %v2378, 1.442695
        %v2405 = vpow.pop %v2404
        %v2406 = vmul.f32 %v2379, 1.442695
        %v2407 = vpow.pop %v2406
        %v2408 = vmul.f32 %v2380, 1.442695
        %v2409 = vpow.pop %v2408
        %v2410 = vmul.f32 %v2381, 1.442695
        %v2411 = vpow.pop %v2410
        %v2412 = vmul.f32 %v2382, 1.442695
        %v2413 = vpow.pop %v2412
        %v2414 = vmul.f32 %v2383, 1.442695
        %v2415 = vpow.pop %v2414
        %2416 = vadd.xlane.f32.xlu0 %v2385
        %v2417 = vpop.xlane.xlu0 %2416
        %2418 = vadd.xlane.f32.xlu0 %v2387
        %v2419 = vpop.xlane.xlu0 %2418
        %2420 = vadd.xlane.f32.xlu0 %v2389
        %v2421 = vpop.xlane.xlu0 %2420
        %2422 = vadd.xlane.f32.xlu0 %v2391
        %v2423 = vpop.xlane.xlu0 %2422
        %2424 = vadd.xlane.f32.xlu0 %v2393
        %v2425 = vpop.xlane.xlu0 %2424
        %2426 = vadd.xlane.f32.xlu0 %v2395
        %v2427 = vpop.xlane.xlu0 %2426
        %2428 = vadd.xlane.f32.xlu0 %v2397
        %v2429 = vpop.xlane.xlu0 %2428
        %2430 = vadd.xlane.f32.xlu0 %v2399
        %v2431 = vpop.xlane.xlu0 %2430
        %2432 = vadd.xlane.f32.xlu0 %v2401
        %v2433 = vpop.xlane.xlu0 %2432
        %2434 = vadd.xlane.f32.xlu0 %v2403
        %v2435 = vpop.xlane.xlu0 %2434
        %2436 = vadd.xlane.f32.xlu0 %v2405
        %v2437 = vpop.xlane.xlu0 %2436
        %2438 = vadd.xlane.f32.xlu0 %v2407
        %v2439 = vpop.xlane.xlu0 %2438
        %2440 = vadd.xlane.f32.xlu0 %v2409
        %v2441 = vpop.xlane.xlu0 %2440
        %2442 = vadd.xlane.f32.xlu0 %v2411
        %v2443 = vpop.xlane.xlu0 %2442
        %2444 = vadd.xlane.f32.xlu0 %v2413
        %v2445 = vpop.xlane.xlu0 %2444
        %2446 = vadd.xlane.f32.xlu0 %v2415
        %v2447 = vpop.xlane.xlu0 %2446
        %v2448 = vrcp.pop %v2417
        %v2449 = vrcp.pop %v2419
        %v2450 = vrcp.pop %v2421
        %v2451 = vrcp.pop %v2423
        %v2452 = vrcp.pop %v2425
        %v2453 = vrcp.pop %v2427
        %v2454 = vrcp.pop %v2429
        %v2455 = vrcp.pop %v2431
        %v2456 = vrcp.pop %v2433
        %v2457 = vrcp.pop %v2435
        %v2458 = vrcp.pop %v2437
        %v2459 = vrcp.pop %v2439
        %v2460 = vrcp.pop %v2441
        %v2461 = vrcp.pop %v2443
        %v2462 = vrcp.pop %v2445
        %v2463 = vrcp.pop %v2447
        %v2464 = vmul.f32 %v2385, %v2448
        %v2465 = vmul.f32 %v2387, %v2449
        %v2466 = vmul.f32 %v2389, %v2450
        %v2467 = vmul.f32 %v2391, %v2451
        %v2468 = vmul.f32 %v2393, %v2452
        %v2469 = vmul.f32 %v2395, %v2453
        %v2470 = vmul.f32 %v2397, %v2454
        %v2471 = vmul.f32 %v2399, %v2455
        %v2472 = vmul.f32 %v2401, %v2456
        %v2473 = vmul.f32 %v2403, %v2457
        %v2474 = vmul.f32 %v2405, %v2458
        %v2475 = vmul.f32 %v2407, %v2459
        %v2476 = vmul.f32 %v2409, %v2460
        %v2477 = vmul.f32 %v2411, %v2461
        %v2478 = vmul.f32 %v2413, %v2462
        %v2479 = vmul.f32 %v2415, %v2463
        %v2480 = vpack.c.bf16 %v2465, %v2464
        %v2481 = vpack.c.bf16 %v2467, %v2466
        %v2482 = vpack.c.bf16 %v2469, %v2468
        %v2483 = vpack.c.bf16 %v2471, %v2470
        %v2484 = vpack.c.bf16 %v2473, %v2472
        %v2485 = vpack.c.bf16 %v2475, %v2474
        %v2486 = vpack.c.bf16 %v2477, %v2476
        %v2487 = vpack.c.bf16 %v2479, %v2478
        %v2504 = vunpack.c.l.b16 %v349
        %v2505 = vunpack.c.l.b16 %v350
        %v2506 = vunpack.c.l.b16 %v351
        %v2507 = vunpack.c.l.b16 %v352
        %v2508 = vunpack.c.l.b16 %v353
        %v2509 = vunpack.c.l.b16 %v354
        %v2510 = vunpack.c.l.b16 %v355
        %v2511 = vunpack.c.l.b16 %v356
        %v2512 = vunpack.c.l.b16 %v357
        %v2513 = vunpack.c.l.b16 %v358
        %v2514 = vunpack.c.l.b16 %v359
        %v2515 = vunpack.c.l.b16 %v360
        %v2516 = vunpack.c.l.b16 %v361
        %v2517 = vunpack.c.l.b16 %v362
        %v2518 = vunpack.c.l.b16 %v363
        %v2519 = vunpack.c.l.b16 %v364
        %v2520 = vpack.c.b16 %v2505, %v2504
        %v2521 = vpack.c.b16 %v2507, %v2506
        %v2522 = vpack.c.b16 %v2509, %v2508
        %v2523 = vpack.c.b16 %v2511, %v2510
        %v2524 = vpack.c.b16 %v2513, %v2512
        %v2525 = vpack.c.b16 %v2515, %v2514
        %v2526 = vpack.c.b16 %v2517, %v2516
        %v2527 = vpack.c.b16 %v2519, %v2518
        %2536 = vmatprep.subr.bf16.mxu0 0
        %2537 = vmatpush1.bf16.msra.mxu0 %v2527
        %2538 = vmatprep.subr.bf16.mxu0 0
        %2539 = vmatpush1.bf16.msra.mxu0 %v2526
        %2540 = vmatprep.subr.bf16.mxu0 0
        %2541 = vmatpush1.bf16.msra.mxu0 %v2525
        %2542 = vmatprep.subr.bf16.mxu0 0
        %2543 = vmatpush1.bf16.msra.mxu0 %v2524
        %2544 = vmatprep.subr.bf16.mxu0 0
        %2545 = vmatpush1.bf16.msra.mxu0 %v2523
        %2546 = vmatprep.subr.bf16.mxu0 0
        %2547 = vmatpush1.bf16.msra.mxu0 %v2522
        %2548 = vmatprep.subr.bf16.mxu0 0
        %2549 = vmatpush1.bf16.msra.mxu0 %v2521
        %2550 = vmatprep.subr.bf16.mxu0 0
        %2551 = vmatpush1.bf16.msra.mxu0 %v2520
        %2552 = vmatprep.subr.bf16.mxu0 0
        %2553 = vmatpush2.bf16.msra.mxu0 0
        %2554 = vmatprep.subr.bf16.mxu0 0
        %2555 = vmatpush2.bf16.msra.mxu0 0
        %2556 = vmatprep.subr.bf16.mxu0 0
        %2557 = vmatpush2.bf16.msra.mxu0 0
        %2558 = vmatprep.subr.bf16.mxu0 0
        %2559 = vmatpush2.bf16.msra.mxu0 0
        %2560 = vmatprep.subr.bf16.mxu0 0
        %2561 = vmatpush2.bf16.msra.mxu0 0
        %2562 = vmatprep.subr.bf16.mxu0 0
        %2563 = vmatpush2.bf16.msra.mxu0 0
        %2564 = vmatprep.subr.bf16.mxu0 0
        %2565 = vmatpush2.bf16.msra.mxu0 0
        %2566 = vmatprep.subr.bf16.mxu0 0
        %2567 = vmatpush2.bf16.msra.mxu0 0
        %2568 = vmatprep.mubr.bf16.mxu0 0
        %2569 = vmatmul.mubr.bf16.gmra.mxu0 %v2480
        %v2570 = vpop.f32.mrf.mxu0
        %v2571 = vadd.f32 0.0, %v2570
        %v2572 = vpop.f32.mrf.mxu0
        %v2573 = vpop.f32.mrf.mxu0
        %v2574 = vadd.f32 0.0, %v2573
        %v2575 = vpop.f32.mrf.mxu0
        %2576 = vmatprep.mubr.bf16.mxu0 0
        %2577 = vmatmul.mubr.bf16.gmra.mxu0 %v2481
        %v2578 = vpop.f32.mrf.mxu0
        %v2579 = vadd.f32 0.0, %v2578
        %v2580 = vpop.f32.mrf.mxu0
        %v2581 = vpop.f32.mrf.mxu0
        %v2582 = vadd.f32 0.0, %v2581
        %v2583 = vpop.f32.mrf.mxu0
        %2584 = vmatprep.mubr.bf16.mxu0 0
        %2585 = vmatmul.mubr.bf16.gmra.mxu0 %v2482
        %v2586 = vpop.f32.mrf.mxu0
        %v2587 = vadd.f32 0.0, %v2586
        %v2588 = vpop.f32.mrf.mxu0
        %v2589 = vpop.f32.mrf.mxu0
        %v2590 = vadd.f32 0.0, %v2589
        %v2591 = vpop.f32.mrf.mxu0
        %2592 = vmatprep.mubr.bf16.mxu0 0
        %2593 = vmatmul.mubr.bf16.gmra.mxu0 %v2483
        %v2594 = vpop.f32.mrf.mxu0
        %v2595 = vadd.f32 0.0, %v2594
        %v2596 = vpop.f32.mrf.mxu0
        %v2597 = vpop.f32.mrf.mxu0
        %v2598 = vadd.f32 0.0, %v2597
        %v2599 = vpop.f32.mrf.mxu0
        %2600 = vmatprep.mubr.bf16.mxu0 0
        %2601 = vmatmul.mubr.bf16.gmra.mxu0 %v2484
        %v2602 = vpop.f32.mrf.mxu0
        %v2603 = vadd.f32 0.0, %v2602
        %v2604 = vpop.f32.mrf.mxu0
        %v2605 = vpop.f32.mrf.mxu0
        %v2606 = vadd.f32 0.0, %v2605
        %v2607 = vpop.f32.mrf.mxu0
        %2608 = vmatprep.mubr.bf16.mxu0 0
        %2609 = vmatmul.mubr.bf16.gmra.mxu0 %v2485
        %v2610 = vpop.f32.mrf.mxu0
        %v2611 = vadd.f32 0.0, %v2610
        %v2612 = vpop.f32.mrf.mxu0
        %v2613 = vpop.f32.mrf.mxu0
        %v2614 = vadd.f32 0.0, %v2613
        %v2615 = vpop.f32.mrf.mxu0
        %2616 = vmatprep.mubr.bf16.mxu0 0
        %2617 = vmatmul.mubr.bf16.gmra.mxu0 %v2486
        %v2618 = vpop.f32.mrf.mxu0
        %v2619 = vadd.f32 0.0, %v2618
        %v2620 = vpop.f32.mrf.mxu0
        %v2621 = vpop.f32.mrf.mxu0
        %v2622 = vadd.f32 0.0, %v2621
        %v2623 = vpop.f32.mrf.mxu0
        %2624 = vmatprep.mubr.bf16.mxu0 0
        %2625 = vmatmul.mubr.bf16.gmra.mxu0 %v2487
        %v2626 = vpop.f32.mrf.mxu0
        %v2627 = vadd.f32 0.0, %v2626
        %v2628 = vpop.f32.mrf.mxu0
        %v2629 = vpop.f32.mrf.mxu0
        %v2630 = vadd.f32 0.0, %v2629
        %v2631 = vpop.f32.mrf.mxu0
        %2632 = vdwg.mxu0
        %v2633 = vpack.c.bf16 %v2574, %v2571
        %v2634 = vpack.c.bf16 %v2582, %v2579
        %v2635 = vpack.c.bf16 %v2590, %v2587
        %v2636 = vpack.c.bf16 %v2598, %v2595
        %v2637 = vpack.c.bf16 %v2606, %v2603
        %v2638 = vpack.c.bf16 %v2614, %v2611
        %v2639 = vpack.c.bf16 %v2622, %v2619
        %v2640 = vpack.c.bf16 %v2630, %v2627
        %v2649 = vunpack.c.l.b16 %v2633
        %v2650 = vunpack.c.h.b16 %v2633
        %v2651 = vunpack.c.l.b16 %v2634
        %v2652 = vunpack.c.h.b16 %v2634
        %v2653 = vunpack.c.l.b16 %v2635
        %v2654 = vunpack.c.h.b16 %v2635
        %v2655 = vunpack.c.l.b16 %v2636
        %v2656 = vunpack.c.h.b16 %v2636
        %v2657 = vunpack.c.l.b16 %v2637
        %v2658 = vunpack.c.h.b16 %v2637
        %v2659 = vunpack.c.l.b16 %v2638
        %v2660 = vunpack.c.h.b16 %v2638
        %v2661 = vunpack.c.l.b16 %v2639
        %v2662 = vunpack.c.h.b16 %v2639
        %v2663 = vunpack.c.l.b16 %v2640
        %v2664 = vunpack.c.h.b16 %v2640
        %v2665 = vpack.c.b16 %v2649, %v2649
        %v2666 = vpack.c.b16 %v2650, %v2650
        %v2667 = vpack.c.b16 %v2651, %v2651
        %v2668 = vpack.c.b16 %v2652, %v2652
        %v2669 = vpack.c.b16 %v2653, %v2653
        %v2670 = vpack.c.b16 %v2654, %v2654
        %v2671 = vpack.c.b16 %v2655, %v2655
        %v2672 = vpack.c.b16 %v2656, %v2656
        %v2673 = vpack.c.b16 %v2657, %v2657
        %v2674 = vpack.c.b16 %v2658, %v2658
        %v2675 = vpack.c.b16 %v2659, %v2659
        %v2676 = vpack.c.b16 %v2660, %v2660
        %v2677 = vpack.c.b16 %v2661, %v2661
        %v2678 = vpack.c.b16 %v2662, %v2662
        %v2679 = vpack.c.b16 %v2663, %v2663
        %v2680 = vpack.c.b16 %v2664, %v2664
        %2697 = vst [vmem:[%s315] sm:$0xf] %v2665
        %2698 = vst [vmem:[%s315 + $0x4] sm:$0xf] %v2666
        %2699 = vst [vmem:[%s315 + $0x8] sm:$0xf] %v2667
        %2700 = vst [vmem:[%s315 + $0xc] sm:$0xf] %v2668
        %2701 = vst [vmem:[%s315 + $0x10] sm:$0xf] %v2669
        %2702 = vst [vmem:[%s315 + $0x14] sm:$0xf] %v2670
        %2703 = vst [vmem:[%s315 + $0x18] sm:$0xf] %v2671
        %2704 = vst [vmem:[%s315 + $0x1c] sm:$0xf] %v2672
        %2705 = vst [vmem:[%s315 + $0x20] sm:$0xf] %v2673
        %2706 = vst [vmem:[%s315 + $0x24] sm:$0xf] %v2674
        %2707 = vst [vmem:[%s315 + $0x28] sm:$0xf] %v2675
        %2708 = vst [vmem:[%s315 + $0x2c] sm:$0xf] %v2676
        %2709 = vst [vmem:[%s315 + $0x30] sm:$0xf] %v2677
        %2710 = vst [vmem:[%s315 + $0x34] sm:$0xf] %v2678
        %2711 = vst [vmem:[%s315 + $0x38] sm:$0xf] %v2679
        %2712 = vst [vmem:[%s315 + $0x3c] sm:$0xf] %v2680
        %p2713 = scmp.lt.s32.totalorder %s20, 1
        %s2714 = scalar_select %p2713, %s20, 1
        %p2715 = scmp.lt.s32.totalorder %s21, 1
        %s2716 = scalar_select %p2715, %s21, 1
        %s2717 = smul.addr %s2716, 16
        %s2718 = smul.addr %s2714, 32
        %s2719 = sadd.s32 %s2717, %s2718
        %s2720 = smul.addr %s2719, 4
        %s2721 = scalar_lea.vmem %s4, %s2720
        // Predicated region
        $region41: #{t5_decoder_lm_forward.8} parent=35 // pred_check
          %p2722 = pneg %p153
        $region42: #{t5_decoder_lm_forward.8} parent=35 // pred_check_branch
          %2724 = sbr.rel (%p2722) target = $region44
        $region43: #{t5_decoder_lm_forward.8} parent=35 // pred_region
          _
        $region44: #{t5_decoder_lm_forward.8} parent=35 // pred_fallthru
          _
      $region36: #{t5_decoder_lm_forward.8} parent=5 // pred_fallthru
        _
      %p2725 = scmp.le.s32.totalorder 2, %s11
      // Predicated region
      $region45: #{t5_decoder_lm_forward.8} parent=5 // pred_check
        %p2726 = pneg %p2725
      $region46: #{t5_decoder_lm_forward.8} parent=5 // pred_check_branch
        %2728 = sbr.rel (%p2726) target = $region48
      $region47: #{t5_decoder_lm_forward.8} parent=5 // pred_region
        %s2729 = ssub.s32 %s11, 2
        // Predicated region
        $region49: #{t5_decoder_lm_forward.8} parent=47 // pred_check
          %p2730 = pneg %p159
        $region50: #{t5_decoder_lm_forward.8} parent=47 // pred_check_branch
          %2732 = sbr.rel (%p2730) target = $region52
        $region51: #{t5_decoder_lm_forward.8} parent=47 // pred_region
          %p2733 = scmp.lt.s32.totalorder %s22, 1
          %s2734 = scalar_select %p2733, %s22, 1
          %p2735 = scmp.lt.s32.totalorder %s23, 1
          %s2736 = scalar_select %p2735, %s23, 1
          %s2737 = smul.addr %s2736, 16
          %s2738 = smul.addr %s2734, 32
          %s2739 = sadd.s32 %s2737, %s2738
          %s2740 = smul.addr %s2739, 4
          %s2741 = scalar_lea.vmem %s4, %s2740
        $region52: #{t5_decoder_lm_forward.8} parent=47 // pred_fallthru
          _
      $region48: #{t5_decoder_lm_forward.8} parent=5 // pred_fallthru
        _
    $region6: #{t5_decoder_lm_forward.8} parent=1 // loop_footer
      %s15 = sadd.s32 1, %s11
    $region7: #{t5_decoder_lm_forward.8} parent=1 // loop_footer_branch
      %10 = sbr.rel target = $region3
    $region8: #{t5_decoder_lm_forward.8} parent=1 // loop_exit
      _
    %2742 = vsyncpa [#allocation3], 1
    %s2743 = scalar_lea.sflag [#allocation3], 1
    %2744 = vsyncpa %s2743, 1

// kernel: t5_decoder_lm_forward.13
$region0: #{t5_decoder_lm_forward.13}
  #allocation0 [shape = 'u32[]', space=smem, size = 0x4, offset = 0x4, fixed_abs, tag = 'smem constant byte address 0x4 - core index']
  #allocation1 [shape = 'u32[144,128]{1,0:T(1,128)}', space=vmem, size = 0x12000, scoped, tag = 'internal scratch']
  %s0 = inlined_call_operand.vmem [shape: bf16[256,256], index: 0, kind: input, shape index: {}]
  %s1 = inlined_call_operand.vmem [shape: f32[1,256], index: 1, kind: input, shape index: {}]
  %s2 = inlined_call_operand.vmem [shape: f32[1,256], index: 2, kind: input, shape index: {}]
  %s3 = inlined_call_operand.vmem [shape: bf16[256,512], index: 3, kind: input, shape index: {}]
  %s4 = inlined_call_operand.vmem [shape: f32[1,512], index: 4, kind: input, shape index: {}]
  %s5 = inlined_call_operand.hbm [shape: f32[256,512], index: 5, kind: output, shape index: {}]
  %s6 = sld [smem:[#allocation0]]
  $region30: #{t5_decoder_lm_forward.13} parent=0
    _
  %s8 = ssub.s32 1, %s6
  %s9 = scalar_select 0, %s8, %s6
  $region1: #{t5_decoder_lm_forward.13} parent=0
    #allocation2 [shape = 'u8[524288]{0}', space=vmem, size = 0x80000, scoped, tag = 'output window, operand 0, single buffered']
    #allocation3 [shape = 's32[1]{0}', space=sflag, size = 0x4, scoped, tag = 'scoped memory for t5_decoder_lm_forward.13']
    %10 = vsyncpa [#allocation3], 0
    // Predicated region
    $region2: #{t5_decoder_lm_forward.13} parent=1 // pred_check
      _
    $region3: #{t5_decoder_lm_forward.13} parent=1 // pred_check_branch
      %12 = sbr.rel (0) target = $region5
    $region4: #{t5_decoder_lm_forward.13} parent=1 // pred_region
      _
    $region5: #{t5_decoder_lm_forward.13} parent=1 // pred_fallthru
      _
    // Predicated region
    $region6: #{t5_decoder_lm_forward.13} parent=1 // pred_check
      _
    $region7: #{t5_decoder_lm_forward.13} parent=1 // pred_check_branch
      %14 = sbr.rel (0) target = $region9
    $region8: #{t5_decoder_lm_forward.13} parent=1 // pred_region
      _
    $region9: #{t5_decoder_lm_forward.13} parent=1 // pred_fallthru
      _
    // Predicated region
    $region10: #{t5_decoder_lm_forward.13} parent=1 // pred_check
      _
    $region11: #{t5_decoder_lm_forward.13} parent=1 // pred_check_branch
      %16 = sbr.rel (0) target = $region13
    $region12: #{t5_decoder_lm_forward.13} parent=1 // pred_region
      _
    $region13: #{t5_decoder_lm_forward.13} parent=1 // pred_fallthru
      _
    // Predicated region
    $region14: #{t5_decoder_lm_forward.13} parent=1 // pred_check
      _
    $region15: #{t5_decoder_lm_forward.13} parent=1 // pred_check_branch
      %18 = sbr.rel (0) target = $region17
    $region16: #{t5_decoder_lm_forward.13} parent=1 // pred_region
      _
    $region17: #{t5_decoder_lm_forward.13} parent=1 // pred_fallthru
      _
    // Predicated region
    $region18: #{t5_decoder_lm_forward.13} parent=1 // pred_check
      _
    $region19: #{t5_decoder_lm_forward.13} parent=1 // pred_check_branch
      %20 = sbr.rel (0) target = $region21
    $region20: #{t5_decoder_lm_forward.13} parent=1 // pred_region
      _
    $region21: #{t5_decoder_lm_forward.13} parent=1 // pred_fallthru
      _
    %v21 = vld [vmem:[%s0] sm:$0xff]
    %v22 = vld [vmem:[%s0 + $0x8] sm:$0xff]
    %v23 = vld [vmem:[%s0 + $0x10] sm:$0xff]
    %v24 = vld [vmem:[%s0 + $0x18] sm:$0xff]
    %v25 = vld [vmem:[%s0 + $0x20] sm:$0xff]
    %v26 = vld [vmem:[%s0 + $0x28] sm:$0xff]
    %v27 = vld [vmem:[%s0 + $0x30] sm:$0xff]
    %v28 = vld [vmem:[%s0 + $0x38] sm:$0xff]
    %v29 = vld [vmem:[%s0 + $0x40] sm:$0xff]
    %v30 = vld [vmem:[%s0 + $0x48] sm:$0xff]
    %v31 = vld [vmem:[%s0 + $0x50] sm:$0xff]
    %v32 = vld [vmem:[%s0 + $0x58] sm:$0xff]
    %v33 = vld [vmem:[%s0 + $0x60] sm:$0xff]
    %v34 = vld [vmem:[%s0 + $0x68] sm:$0xff]
    %v35 = vld [vmem:[%s0 + $0x70] sm:$0xff]
    %v36 = vld [vmem:[%s0 + $0x78] sm:$0xff]
    %v37 = vld [vmem:[%s0 + $0x80] sm:$0xff]
    %v38 = vld [vmem:[%s0 + $0x88] sm:$0xff]
    %v39 = vld [vmem:[%s0 + $0x90] sm:$0xff]
    %v40 = vld [vmem:[%s0 + $0x98] sm:$0xff]
    %v41 = vld [vmem:[%s0 + $0xa0] sm:$0xff]
    %v42 = vld [vmem:[%s0 + $0xa8] sm:$0xff]
    %v43 = vld [vmem:[%s0 + $0xb0] sm:$0xff]
    %v44 = vld [vmem:[%s0 + $0xb8] sm:$0xff]
    %v45 = vld [vmem:[%s0 + $0xc0] sm:$0xff]
    %v46 = vld [vmem:[%s0 + $0xc8] sm:$0xff]
    %v47 = vld [vmem:[%s0 + $0xd0] sm:$0xff]
    %v48 = vld [vmem:[%s0 + $0xd8] sm:$0xff]
    %v49 = vld [vmem:[%s0 + $0xe0] sm:$0xff]
    %v50 = vld [vmem:[%s0 + $0xe8] sm:$0xff]
    %v51 = vld [vmem:[%s0 + $0xf0] sm:$0xff]
    %v52 = vld [vmem:[%s0 + $0xf8] sm:$0xff]
    %v53 = vunpack.c.l.bf16 %v21
    %v54 = vunpack.c.h.bf16 %v21
    %v55 = vunpack.c.l.bf16 %v22
    %v56 = vunpack.c.h.bf16 %v22
    %v57 = vunpack.c.l.bf16 %v23
    %v58 = vunpack.c.h.bf16 %v23
    %v59 = vunpack.c.l.bf16 %v24
    %v60 = vunpack.c.h.bf16 %v24
    %v61 = vunpack.c.l.bf16 %v25
    %v62 = vunpack.c.h.bf16 %v25
    %v63 = vunpack.c.l.bf16 %v26
    %v64 = vunpack.c.h.bf16 %v26
    %v65 = vunpack.c.l.bf16 %v27
    %v66 = vunpack.c.h.bf16 %v27
    %v67 = vunpack.c.l.bf16 %v28
    %v68 = vunpack.c.h.bf16 %v28
    %v69 = vunpack.c.l.bf16 %v29
    %v70 = vunpack.c.h.bf16 %v29
    %v71 = vunpack.c.l.bf16 %v30
    %v72 = vunpack.c.h.bf16 %v30
    %v73 = vunpack.c.l.bf16 %v31
    %v74 = vunpack.c.h.bf16 %v31
    %v75 = vunpack.c.l.bf16 %v32
    %v76 = vunpack.c.h.bf16 %v32
    %v77 = vunpack.c.l.bf16 %v33
    %v78 = vunpack.c.h.bf16 %v33
    %v79 = vunpack.c.l.bf16 %v34
    %v80 = vunpack.c.h.bf16 %v34
    %v81 = vunpack.c.l.bf16 %v35
    %v82 = vunpack.c.h.bf16 %v35
    %v83 = vunpack.c.l.bf16 %v36
    %v84 = vunpack.c.h.bf16 %v36
    %v85 = vunpack.c.l.bf16 %v37
    %v86 = vunpack.c.h.bf16 %v37
    %v87 = vunpack.c.l.bf16 %v38
    %v88 = vunpack.c.h.bf16 %v38
    %v89 = vunpack.c.l.bf16 %v39
    %v90 = vunpack.c.h.bf16 %v39
    %v91 = vunpack.c.l.bf16 %v40
    %v92 = vunpack.c.h.bf16 %v40
    %v93 = vunpack.c.l.bf16 %v41
    %v94 = vunpack.c.h.bf16 %v41
    %v95 = vunpack.c.l.bf16 %v42
    %v96 = vunpack.c.h.bf16 %v42
    %v97 = vunpack.c.l.bf16 %v43
    %v98 = vunpack.c.h.bf16 %v43
    %v99 = vunpack.c.l.bf16 %v44
    %v100 = vunpack.c.h.bf16 %v44
    %v101 = vunpack.c.l.bf16 %v45
    %v102 = vunpack.c.h.bf16 %v45
    %v103 = vunpack.c.l.bf16 %v46
    %v104 = vunpack.c.h.bf16 %v46
    %v105 = vunpack.c.l.bf16 %v47
    %v106 = vunpack.c.h.bf16 %v47
    %v107 = vunpack.c.l.bf16 %v48
    %v108 = vunpack.c.h.bf16 %v48
    %v109 = vunpack.c.l.bf16 %v49
    %v110 = vunpack.c.h.bf16 %v49
    %v111 = vunpack.c.l.bf16 %v50
    %v112 = vunpack.c.h.bf16 %v50
    %v113 = vunpack.c.l.bf16 %v51
    %v114 = vunpack.c.h.bf16 %v51
    %v115 = vunpack.c.l.bf16 %v52
    %v116 = vunpack.c.h.bf16 %v52
    %v117 = vld [vmem:[%s1] sm:$0x3]
    %v118 = vld [vmem:[%s2] sm:$0x3]
    %v119 = vadd.f32 %v53, %v54
    %120 = vadd.xlane.f32.xlu0 %v119
    %v121 = vpop.xlane.xlu0 %120
    %v122 = vadd.f32 %v55, %v56
    %123 = vadd.xlane.f32.xlu0 %v122
    %v124 = vpop.xlane.xlu0 %123
    %v125 = vadd.f32 %v57, %v58
    %126 = vadd.xlane.f32.xlu0 %v125
    %v127 = vpop.xlane.xlu0 %126
    %v128 = vadd.f32 %v59, %v60
    %129 = vadd.xlane.f32.xlu0 %v128
    %v130 = vpop.xlane.xlu0 %129
    %v131 = vadd.f32 %v61, %v62
    %132 = vadd.xlane.f32.xlu0 %v131
    %v133 = vpop.xlane.xlu0 %132
    %v134 = vadd.f32 %v63, %v64
    %135 = vadd.xlane.f32.xlu0 %v134
    %v136 = vpop.xlane.xlu0 %135
    %v137 = vadd.f32 %v65, %v66
    %138 = vadd.xlane.f32.xlu0 %v137
    %v139 = vpop.xlane.xlu0 %138
    %v140 = vadd.f32 %v67, %v68
    %141 = vadd.xlane.f32.xlu0 %v140
    %v142 = vpop.xlane.xlu0 %141
    %v143 = vadd.f32 %v69, %v70
    %144 = vadd.xlane.f32.xlu0 %v143
    %v145 = vpop.xlane.xlu0 %144
    %v146 = vadd.f32 %v71, %v72
    %147 = vadd.xlane.f32.xlu0 %v146
    %v148 = vpop.xlane.xlu0 %147
    %v149 = vadd.f32 %v73, %v74
    %150 = vadd.xlane.f32.xlu0 %v149
    %v151 = vpop.xlane.xlu0 %150
    %v152 = vadd.f32 %v75, %v76
    %153 = vadd.xlane.f32.xlu0 %v152
    %v154 = vpop.xlane.xlu0 %153
    %v155 = vadd.f32 %v77, %v78
    %156 = vadd.xlane.f32.xlu0 %v155
    %v157 = vpop.xlane.xlu0 %156
    %v158 = vadd.f32 %v79, %v80
    %159 = vadd.xlane.f32.xlu0 %v158
    %v160 = vpop.xlane.xlu0 %159
    %v161 = vadd.f32 %v81, %v82
    %162 = vadd.xlane.f32.xlu0 %v161
    %v163 = vpop.xlane.xlu0 %162
    %v164 = vadd.f32 %v83, %v84
    %165 = vadd.xlane.f32.xlu0 %v164
    %v166 = vpop.xlane.xlu0 %165
    %v167 = vadd.f32 %v85, %v86
    %168 = vadd.xlane.f32.xlu0 %v167
    %v169 = vpop.xlane.xlu0 %168
    %v170 = vadd.f32 %v87, %v88
    %171 = vadd.xlane.f32.xlu0 %v170
    %v172 = vpop.xlane.xlu0 %171
    %v173 = vadd.f32 %v89, %v90
    %174 = vadd.xlane.f32.xlu0 %v173
    %v175 = vpop.xlane.xlu0 %174
    %v176 = vadd.f32 %v91, %v92
    %177 = vadd.xlane.f32.xlu0 %v176
    %v178 = vpop.xlane.xlu0 %177
    %v179 = vadd.f32 %v93, %v94
    %180 = vadd.xlane.f32.xlu0 %v179
    %v181 = vpop.xlane.xlu0 %180
    %v182 = vadd.f32 %v95, %v96
    %183 = vadd.xlane.f32.xlu0 %v182
    %v184 = vpop.xlane.xlu0 %183
    %v185 = vadd.f32 %v97, %v98
    %186 = vadd.xlane.f32.xlu0 %v185
    %v187 = vpop.xlane.xlu0 %186
    %v188 = vadd.f32 %v99, %v100
    %189 = vadd.xlane.f32.xlu0 %v188
    %v190 = vpop.xlane.xlu0 %189
    %v191 = vadd.f32 %v101, %v102
    %192 = vadd.xlane.f32.xlu0 %v191
    %v193 = vpop.xlane.xlu0 %192
    %v194 = vadd.f32 %v103, %v104
    %195 = vadd.xlane.f32.xlu0 %v194
    %v196 = vpop.xlane.xlu0 %195
    %v197 = vadd.f32 %v105, %v106
    %198 = vadd.xlane.f32.xlu0 %v197
    %v199 = vpop.xlane.xlu0 %198
    %v200 = vadd.f32 %v107, %v108
    %201 = vadd.xlane.f32.xlu0 %v200
    %v202 = vpop.xlane.xlu0 %201
    %v203 = vadd.f32 %v109, %v110
    %204 = vadd.xlane.f32.xlu0 %v203
    %v205 = vpop.xlane.xlu0 %204
    %v206 = vadd.f32 %v111, %v112
    %207 = vadd.xlane.f32.xlu0 %v206
    %v208 = vpop.xlane.xlu0 %207
    %v209 = vadd.f32 %v113, %v114
    %210 = vadd.xlane.f32.xlu0 %v209
    %v211 = vpop.xlane.xlu0 %210
    %v212 = vadd.f32 %v115, %v116
    %213 = vadd.xlane.f32.xlu0 %v212
    %v214 = vpop.xlane.xlu0 %213
    %v215 = vrcp.pop 256.0
    %v216 = vmul.f32 %v121, %v215
    %v217 = vmul.f32 %v124, %v215
    %v218 = vmul.f32 %v127, %v215
    %v219 = vmul.f32 %v130, %v215
    %v220 = vmul.f32 %v133, %v215
    %v221 = vmul.f32 %v136, %v215
    %v222 = vmul.f32 %v139, %v215
    %v223 = vmul.f32 %v142, %v215
    %v224 = vmul.f32 %v145, %v215
    %v225 = vmul.f32 %v148, %v215
    %v226 = vmul.f32 %v151, %v215
    %v227 = vmul.f32 %v154, %v215
    %v228 = vmul.f32 %v157, %v215
    %v229 = vmul.f32 %v160, %v215
    %v230 = vmul.f32 %v163, %v215
    %v231 = vmul.f32 %v166, %v215
    %v232 = vmul.f32 %v169, %v215
    %v233 = vmul.f32 %v172, %v215
    %v234 = vmul.f32 %v175, %v215
    %v235 = vmul.f32 %v178, %v215
    %v236 = vmul.f32 %v181, %v215
    %v237 = vmul.f32 %v184, %v215
    %v238 = vmul.f32 %v187, %v215
    %v239 = vmul.f32 %v190, %v215
    %v240 = vmul.f32 %v193, %v215
    %v241 = vmul.f32 %v196, %v215
    %v242 = vmul.f32 %v199, %v215
    %v243 = vmul.f32 %v202, %v215
    %v244 = vmul.f32 %v205, %v215
    %v245 = vmul.f32 %v208, %v215
    %v246 = vmul.f32 %v211, %v215
    %v247 = vmul.f32 %v214, %v215
    %v248 = vsub.f32 %v53, %v216
    %v249 = vsub.f32 %v54, %v216
    %v250 = vsub.f32 %v55, %v217
    %v251 = vsub.f32 %v56, %v217
    %v252 = vsub.f32 %v57, %v218
    %v253 = vsub.f32 %v58, %v218
    %v254 = vsub.f32 %v59, %v219
    %v255 = vsub.f32 %v60, %v219
    %v256 = vsub.f32 %v61, %v220
    %v257 = vsub.f32 %v62, %v220
    %v258 = vsub.f32 %v63, %v221
    %v259 = vsub.f32 %v64, %v221
    %v260 = vsub.f32 %v65, %v222
    %v261 = vsub.f32 %v66, %v222
    %v262 = vsub.f32 %v67, %v223
    %v263 = vsub.f32 %v68, %v223
    %v264 = vsub.f32 %v69, %v224
    %v265 = vsub.f32 %v70, %v224
    %v266 = vsub.f32 %v71, %v225
    %v267 = vsub.f32 %v72, %v225
    %v268 = vsub.f32 %v73, %v226
    %v269 = vsub.f32 %v74, %v226
    %v270 = vsub.f32 %v75, %v227
    %v271 = vsub.f32 %v76, %v227
    %v272 = vsub.f32 %v77, %v228
    %v273 = vsub.f32 %v78, %v228
    %v274 = vsub.f32 %v79, %v229
    %v275 = vsub.f32 %v80, %v229
    %v276 = vsub.f32 %v81, %v230
    %v277 = vsub.f32 %v82, %v230
    %v278 = vsub.f32 %v83, %v231
    %v279 = vsub.f32 %v84, %v231
    %v280 = vsub.f32 %v85, %v232
    %v281 = vsub.f32 %v86, %v232
    %v282 = vsub.f32 %v87, %v233
    %v283 = vsub.f32 %v88, %v233
    %v284 = vsub.f32 %v89, %v234
    %v285 = vsub.f32 %v90, %v234
    %v286 = vsub.f32 %v91, %v235
    %v287 = vsub.f32 %v92, %v235
    %v288 = vsub.f32 %v93, %v236
    %v289 = vsub.f32 %v94, %v236
    %v290 = vsub.f32 %v95, %v237
    %v291 = vsub.f32 %v96, %v237
    %v292 = vsub.f32 %v97, %v238
    %v293 = vsub.f32 %v98, %v238
    %v294 = vsub.f32 %v99, %v239
    %v295 = vsub.f32 %v100, %v239
    %v296 = vsub.f32 %v101, %v240
    %v297 = vsub.f32 %v102, %v240
    %v298 = vsub.f32 %v103, %v241
    %v299 = vsub.f32 %v104, %v241
    %v300 = vsub.f32 %v105, %v242
    %v301 = vsub.f32 %v106, %v242
    %v302 = vsub.f32 %v107, %v243
    %v303 = vsub.f32 %v108, %v243
    %v304 = vsub.f32 %v109, %v244
    %v305 = vsub.f32 %v110, %v244
    %v306 = vsub.f32 %v111, %v245
    %v307 = vsub.f32 %v112, %v245
    %v308 = vsub.f32 %v113, %v246
    %v309 = vsub.f32 %v114, %v246
    %v310 = vsub.f32 %v115, %v247
    %v311 = vsub.f32 %v116, %v247
    %v312 = vmul.f32 %v248, %v248
    %v313 = vmul.f32 %v249, %v249
    %v314 = vmul.f32 %v250, %v250
    %v315 = vmul.f32 %v251, %v251
    %v316 = vmul.f32 %v252, %v252
    %v317 = vmul.f32 %v253, %v253
    %v318 = vmul.f32 %v254, %v254
    %v319 = vmul.f32 %v255, %v255
    %v320 = vmul.f32 %v256, %v256
    %v321 = vmul.f32 %v257, %v257
    %v322 = vmul.f32 %v258, %v258
    %v323 = vmul.f32 %v259, %v259
    %v324 = vmul.f32 %v260, %v260
    %v325 = vmul.f32 %v261, %v261
    %v326 = vmul.f32 %v262, %v262
    %v327 = vmul.f32 %v263, %v263
    %v328 = vmul.f32 %v264, %v264
    %v329 = vmul.f32 %v265, %v265
    %v330 = vmul.f32 %v266, %v266
    %v331 = vmul.f32 %v267, %v267
    %v332 = vmul.f32 %v268, %v268
    %v333 = vmul.f32 %v269, %v269
    %v334 = vmul.f32 %v270, %v270
    %v335 = vmul.f32 %v271, %v271
    %v336 = vmul.f32 %v272, %v272
    %v337 = vmul.f32 %v273, %v273
    %v338 = vmul.f32 %v274, %v274
    %v339 = vmul.f32 %v275, %v275
    %v340 = vmul.f32 %v276, %v276
    %v341 = vmul.f32 %v277, %v277
    %v342 = vmul.f32 %v278, %v278
    %v343 = vmul.f32 %v279, %v279
    %v344 = vmul.f32 %v280, %v280
    %v345 = vmul.f32 %v281, %v281
    %v346 = vmul.f32 %v282, %v282
    %v347 = vmul.f32 %v283, %v283
    %v348 = vmul.f32 %v284, %v284
    %v349 = vmul.f32 %v285, %v285
    %v350 = vmul.f32 %v286, %v286
    %v351 = vmul.f32 %v287, %v287
    %v352 = vmul.f32 %v288, %v288
    %v353 = vmul.f32 %v289, %v289
    %v354 = vmul.f32 %v290, %v290
    %v355 = vmul.f32 %v291, %v291
    %v356 = vmul.f32 %v292, %v292
    %v357 = vmul.f32 %v293, %v293
    %v358 = vmul.f32 %v294, %v294
    %v359 = vmul.f32 %v295, %v295
    %v360 = vmul.f32 %v296, %v296
    %v361 = vmul.f32 %v297, %v297
    %v362 = vmul.f32 %v298, %v298
    %v363 = vmul.f32 %v299, %v299
    %v364 = vmul.f32 %v300, %v300
    %v365 = vmul.f32 %v301, %v301
    %v366 = vmul.f32 %v302, %v302
    %v367 = vmul.f32 %v303, %v303
    %v368 = vmul.f32 %v304, %v304
    %v369 = vmul.f32 %v305, %v305
    %v370 = vmul.f32 %v306, %v306
    %v371 = vmul.f32 %v307, %v307
    %v372 = vmul.f32 %v308, %v308
    %v373 = vmul.f32 %v309, %v309
    %v374 = vmul.f32 %v310, %v310
    %v375 = vmul.f32 %v311, %v311
    %v376 = vadd.f32 %v312, %v313
    %377 = vadd.xlane.f32.xlu0 %v376
    %v378 = vpop.xlane.xlu0 %377
    %v379 = vadd.f32 %v314, %v315
    %380 = vadd.xlane.f32.xlu0 %v379
    %v381 = vpop.xlane.xlu0 %380
    %v382 = vadd.f32 %v316, %v317
    %383 = vadd.xlane.f32.xlu0 %v382
    %v384 = vpop.xlane.xlu0 %383
    %v385 = vadd.f32 %v318, %v319
    %386 = vadd.xlane.f32.xlu0 %v385
    %v387 = vpop.xlane.xlu0 %386
    %v388 = vadd.f32 %v320, %v321
    %389 = vadd.xlane.f32.xlu0 %v388
    %v390 = vpop.xlane.xlu0 %389
    %v391 = vadd.f32 %v322, %v323
    %392 = vadd.xlane.f32.xlu0 %v391
    %v393 = vpop.xlane.xlu0 %392
    %v394 = vadd.f32 %v324, %v325
    %395 = vadd.xlane.f32.xlu0 %v394
    %v396 = vpop.xlane.xlu0 %395
    %v397 = vadd.f32 %v326, %v327
    %398 = vadd.xlane.f32.xlu0 %v397
    %v399 = vpop.xlane.xlu0 %398
    %v400 = vadd.f32 %v328, %v329
    %401 = vadd.xlane.f32.xlu0 %v400
    %v402 = vpop.xlane.xlu0 %401
    %v403 = vadd.f32 %v330, %v331
    %404 = vadd.xlane.f32.xlu0 %v403
    %v405 = vpop.xlane.xlu0 %404
    %v406 = vadd.f32 %v332, %v333
    %407 = vadd.xlane.f32.xlu0 %v406
    %v408 = vpop.xlane.xlu0 %407
    %v409 = vadd.f32 %v334, %v335
    %410 = vadd.xlane.f32.xlu0 %v409
    %v411 = vpop.xlane.xlu0 %410
    %v412 = vadd.f32 %v336, %v337
    %413 = vadd.xlane.f32.xlu0 %v412
    %v414 = vpop.xlane.xlu0 %413
    %v415 = vadd.f32 %v338, %v339
    %416 = vadd.xlane.f32.xlu0 %v415
    %v417 = vpop.xlane.xlu0 %416
    %v418 = vadd.f32 %v340, %v341
    %419 = vadd.xlane.f32.xlu0 %v418
    %v420 = vpop.xlane.xlu0 %419
    %v421 = vadd.f32 %v342, %v343
    %422 = vadd.xlane.f32.xlu0 %v421
    %v423 = vpop.xlane.xlu0 %422
    %v424 = vadd.f32 %v344, %v345
    %425 = vadd.xlane.f32.xlu0 %v424
    %v426 = vpop.xlane.xlu0 %425
    %v427 = vadd.f32 %v346, %v347
    %428 = vadd.xlane.f32.xlu0 %v427
    %v429 = vpop.xlane.xlu0 %428
    %v430 = vadd.f32 %v348, %v349
    %431 = vadd.xlane.f32.xlu0 %v430
    %v432 = vpop.xlane.xlu0 %431
    %v433 = vadd.f32 %v350, %v351
    %434 = vadd.xlane.f32.xlu0 %v433
    %v435 = vpop.xlane.xlu0 %434
    %v436 = vadd.f32 %v352, %v353
    %437 = vadd.xlane.f32.xlu0 %v436
    %v438 = vpop.xlane.xlu0 %437
    %v439 = vadd.f32 %v354, %v355
    %440 = vadd.xlane.f32.xlu0 %v439
    %v441 = vpop.xlane.xlu0 %440
    %v442 = vadd.f32 %v356, %v357
    %443 = vadd.xlane.f32.xlu0 %v442
    %v444 = vpop.xlane.xlu0 %443
    %v445 = vadd.f32 %v358, %v359
    %446 = vadd.xlane.f32.xlu0 %v445
    %v447 = vpop.xlane.xlu0 %446
    %v448 = vadd.f32 %v360, %v361
    %449 = vadd.xlane.f32.xlu0 %v448
    %v450 = vpop.xlane.xlu0 %449
    %v451 = vadd.f32 %v362, %v363
    %452 = vadd.xlane.f32.xlu0 %v451
    %v453 = vpop.xlane.xlu0 %452
    %v454 = vadd.f32 %v364, %v365
    %455 = vadd.xlane.f32.xlu0 %v454
    %v456 = vpop.xlane.xlu0 %455
    %v457 = vadd.f32 %v366, %v367
    %458 = vadd.xlane.f32.xlu0 %v457
    %v459 = vpop.xlane.xlu0 %458
    %v460 = vadd.f32 %v368, %v369
    %461 = vadd.xlane.f32.xlu0 %v460
    %v462 = vpop.xlane.xlu0 %461
    %v463 = vadd.f32 %v370, %v371
    %464 = vadd.xlane.f32.xlu0 %v463
    %v465 = vpop.xlane.xlu0 %464
    %v466 = vadd.f32 %v372, %v373
    %467 = vadd.xlane.f32.xlu0 %v466
    %v468 = vpop.xlane.xlu0 %467
    %v469 = vadd.f32 %v374, %v375
    %470 = vadd.xlane.f32.xlu0 %v469
    %v471 = vpop.xlane.xlu0 %470
    %v472 = vmul.f32 %v378, %v215
    %v473 = vmul.f32 %v381, %v215
    %v474 = vmul.f32 %v384, %v215
    %v475 = vmul.f32 %v387, %v215
    %v476 = vmul.f32 %v390, %v215
    %v477 = vmul.f32 %v393, %v215
    %v478 = vmul.f32 %v396, %v215
    %v479 = vmul.f32 %v399, %v215
    %v480 = vmul.f32 %v402, %v215
    %v481 = vmul.f32 %v405, %v215
    %v482 = vmul.f32 %v408, %v215
    %v483 = vmul.f32 %v411, %v215
    %v484 = vmul.f32 %v414, %v215
    %v485 = vmul.f32 %v417, %v215
    %v486 = vmul.f32 %v420, %v215
    %v487 = vmul.f32 %v423, %v215
    %v488 = vmul.f32 %v426, %v215
    %v489 = vmul.f32 %v429, %v215
    %v490 = vmul.f32 %v432, %v215
    %v491 = vmul.f32 %v435, %v215
    %v492 = vmul.f32 %v438, %v215
    %v493 = vmul.f32 %v441, %v215
    %v494 = vmul.f32 %v444, %v215
    %v495 = vmul.f32 %v447, %v215
    %v496 = vmul.f32 %v450, %v215
    %v497 = vmul.f32 %v453, %v215
    %v498 = vmul.f32 %v456, %v215
    %v499 = vmul.f32 %v459, %v215
    %v500 = vmul.f32 %v462, %v215
    %v501 = vmul.f32 %v465, %v215
    %v502 = vmul.f32 %v468, %v215
    %v503 = vmul.f32 %v471, %v215
    %v504 = vadd.f32 %v472, 1e-05
    %v505 = vadd.f32 %v473, 1e-05
    %v506 = vadd.f32 %v474, 1e-05
    %v507 = vadd.f32 %v475, 1e-05
    %v508 = vadd.f32 %v476, 1e-05
    %v509 = vadd.f32 %v477, 1e-05
    %v510 = vadd.f32 %v478, 1e-05
    %v511 = vadd.f32 %v479, 1e-05
    %v512 = vadd.f32 %v480, 1e-05
    %v513 = vadd.f32 %v481, 1e-05
    %v514 = vadd.f32 %v482, 1e-05
    %v515 = vadd.f32 %v483, 1e-05
    %v516 = vadd.f32 %v484, 1e-05
    %v517 = vadd.f32 %v485, 1e-05
    %v518 = vadd.f32 %v486, 1e-05
    %v519 = vadd.f32 %v487, 1e-05
    %v520 = vadd.f32 %v488, 1e-05
    %v521 = vadd.f32 %v489, 1e-05
    %v522 = vadd.f32 %v490, 1e-05
    %v523 = vadd.f32 %v491, 1e-05
    %v524 = vadd.f32 %v492, 1e-05
    %v525 = vadd.f32 %v493, 1e-05
    %v526 = vadd.f32 %v494, 1e-05
    %v527 = vadd.f32 %v495, 1e-05
    %v528 = vadd.f32 %v496, 1e-05
    %v529 = vadd.f32 %v497, 1e-05
    %v530 = vadd.f32 %v498, 1e-05
    %v531 = vadd.f32 %v499, 1e-05
    %v532 = vadd.f32 %v500, 1e-05
    %v533 = vadd.f32 %v501, 1e-05
    %v534 = vadd.f32 %v502, 1e-05
    %v535 = vadd.f32 %v503, 1e-05
    %v536 = vrsqrt.pop %v504
    %v537 = vrsqrt.pop %v505
    %v538 = vrsqrt.pop %v506
    %v539 = vrsqrt.pop %v507
    %v540 = vrsqrt.pop %v508
    %v541 = vrsqrt.pop %v509
    %v542 = vrsqrt.pop %v510
    %v543 = vrsqrt.pop %v511
    %v544 = vrsqrt.pop %v512
    %v545 = vrsqrt.pop %v513
    %v546 = vrsqrt.pop %v514
    %v547 = vrsqrt.pop %v515
    %v548 = vrsqrt.pop %v516
    %v549 = vrsqrt.pop %v517
    %v550 = vrsqrt.pop %v518
    %v551 = vrsqrt.pop %v519
    %v552 = vrsqrt.pop %v520
    %v553 = vrsqrt.pop %v521
    %v554 = vrsqrt.pop %v522
    %v555 = vrsqrt.pop %v523
    %v556 = vrsqrt.pop %v524
    %v557 = vrsqrt.pop %v525
    %v558 = vrsqrt.pop %v526
    %v559 = vrsqrt.pop %v527
    %v560 = vrsqrt.pop %v528
    %v561 = vrsqrt.pop %v529
    %v562 = vrsqrt.pop %v530
    %v563 = vrsqrt.pop %v531
    %v564 = vrsqrt.pop %v532
    %v565 = vrsqrt.pop %v533
    %v566 = vrsqrt.pop %v534
    %v567 = vrsqrt.pop %v535
    %v568 = vmul.f32 %v248, %v536
    %v569 = vmul.f32 %v249, %v536
    %v570 = vmul.f32 %v250, %v537
    %v571 = vmul.f32 %v251, %v537
    %v572 = vmul.f32 %v252, %v538
    %v573 = vmul.f32 %v253, %v538
    %v574 = vmul.f32 %v254, %v539
    %v575 = vmul.f32 %v255, %v539
    %v576 = vmul.f32 %v256, %v540
    %v577 = vmul.f32 %v257, %v540
    %v578 = vmul.f32 %v258, %v541
    %v579 = vmul.f32 %v259, %v541
    %v580 = vmul.f32 %v260, %v542
    %v581 = vmul.f32 %v261, %v542
    %v582 = vmul.f32 %v262, %v543
    %v583 = vmul.f32 %v263, %v543
    %v584 = vmul.f32 %v264, %v544
    %v585 = vmul.f32 %v265, %v544
    %v586 = vmul.f32 %v266, %v545
    %v587 = vmul.f32 %v267, %v545
    %v588 = vmul.f32 %v268, %v546
    %v589 = vmul.f32 %v269, %v546
    %v590 = vmul.f32 %v270, %v547
    %v591 = vmul.f32 %v271, %v547
    %v592 = vmul.f32 %v272, %v548
    %v593 = vmul.f32 %v273, %v548
    %v594 = vmul.f32 %v274, %v549
    %v595 = vmul.f32 %v275, %v549
    %v596 = vmul.f32 %v276, %v550
    %v597 = vmul.f32 %v277, %v550
    %v598 = vmul.f32 %v278, %v551
    %v599 = vmul.f32 %v279, %v551
    %v600 = vmul.f32 %v280, %v552
    %v601 = vmul.f32 %v281, %v552
    %v602 = vmul.f32 %v282, %v553
    %v603 = vmul.f32 %v283, %v553
    %v604 = vmul.f32 %v284, %v554
    %v605 = vmul.f32 %v285, %v554
    %v606 = vmul.f32 %v286, %v555
    %v607 = vmul.f32 %v287, %v555
    %v608 = vmul.f32 %v288, %v556
    %v609 = vmul.f32 %v289, %v556
    %v610 = vmul.f32 %v290, %v557
    %v611 = vmul.f32 %v291, %v557
    %v612 = vmul.f32 %v292, %v558
    %v613 = vmul.f32 %v293, %v558
    %v614 = vmul.f32 %v294, %v559
    %v615 = vmul.f32 %v295, %v559
    %v616 = vmul.f32 %v296, %v560
    %v617 = vmul.f32 %v297, %v560
    %v618 = vmul.f32 %v298, %v561
    %v619 = vmul.f32 %v299, %v561
    %v620 = vmul.f32 %v300, %v562
    %v621 = vmul.f32 %v301, %v562
    %v622 = vmul.f32 %v302, %v563
    %v623 = vmul.f32 %v303, %v563
    %v624 = vmul.f32 %v304, %v564
    %v625 = vmul.f32 %v305, %v564
    %v626 = vmul.f32 %v306, %v565
    %v627 = vmul.f32 %v307, %v565
    %v628 = vmul.f32 %v308, %v566
    %v629 = vmul.f32 %v309, %v566
    %v630 = vmul.f32 %v310, %v567
    %v631 = vmul.f32 %v311, %v567
    %v633 = vlaneseq
    %v634 = vshrl.u32 %v633, 7
    %v635 = vsub.s32 0, %v634
    %v636 = vrot.slane %v117, %v635
    %v637 = vlaneseq
    %v638 = vshrl.u32 %v637, 7
    %v639 = vsub.s32 1, %v638
    %v640 = vrot.slane %v117, %v639
    %v643 = vmul.f32 %v568, %v636
    %v644 = vmul.f32 %v569, %v640
    %v645 = vmul.f32 %v570, %v636
    %v646 = vmul.f32 %v571, %v640
    %v647 = vmul.f32 %v572, %v636
    %v648 = vmul.f32 %v573, %v640
    %v649 = vmul.f32 %v574, %v636
    %v650 = vmul.f32 %v575, %v640
    %v651 = vmul.f32 %v576, %v636
    %v652 = vmul.f32 %v577, %v640
    %v653 = vmul.f32 %v578, %v636
    %v654 = vmul.f32 %v579, %v640
    %v655 = vmul.f32 %v580, %v636
    %v656 = vmul.f32 %v581, %v640
    %v657 = vmul.f32 %v582, %v636
    %v658 = vmul.f32 %v583, %v640
    %v659 = vmul.f32 %v584, %v636
    %v660 = vmul.f32 %v585, %v640
    %v661 = vmul.f32 %v586, %v636
    %v662 = vmul.f32 %v587, %v640
    %v663 = vmul.f32 %v588, %v636
    %v664 = vmul.f32 %v589, %v640
    %v665 = vmul.f32 %v590, %v636
    %v666 = vmul.f32 %v591, %v640
    %v667 = vmul.f32 %v592, %v636
    %v668 = vmul.f32 %v593, %v640
    %v669 = vmul.f32 %v594, %v636
    %v670 = vmul.f32 %v595, %v640
    %v671 = vmul.f32 %v596, %v636
    %v672 = vmul.f32 %v597, %v640
    %v673 = vmul.f32 %v598, %v636
    %v674 = vmul.f32 %v599, %v640
    %v675 = vmul.f32 %v600, %v636
    %v676 = vmul.f32 %v601, %v640
    %v677 = vmul.f32 %v602, %v636
    %v678 = vmul.f32 %v603, %v640
    %v679 = vmul.f32 %v604, %v636
    %v680 = vmul.f32 %v605, %v640
    %v681 = vmul.f32 %v606, %v636
    %v682 = vmul.f32 %v607, %v640
    %v683 = vmul.f32 %v608, %v636
    %v684 = vmul.f32 %v609, %v640
    %v685 = vmul.f32 %v610, %v636
    %v686 = vmul.f32 %v611, %v640
    %v687 = vmul.f32 %v612, %v636
    %v688 = vmul.f32 %v613, %v640
    %v689 = vmul.f32 %v614, %v636
    %v690 = vmul.f32 %v615, %v640
    %v691 = vmul.f32 %v616, %v636
    %v692 = vmul.f32 %v617, %v640
    %v693 = vmul.f32 %v618, %v636
    %v694 = vmul.f32 %v619, %v640
    %v695 = vmul.f32 %v620, %v636
    %v696 = vmul.f32 %v621, %v640
    %v697 = vmul.f32 %v622, %v636
    %v698 = vmul.f32 %v623, %v640
    %v699 = vmul.f32 %v624, %v636
    %v700 = vmul.f32 %v625, %v640
    %v701 = vmul.f32 %v626, %v636
    %v702 = vmul.f32 %v627, %v640
    %v703 = vmul.f32 %v628, %v636
    %v704 = vmul.f32 %v629, %v640
    %v705 = vmul.f32 %v630, %v636
    %v706 = vmul.f32 %v631, %v640
    %v708 = vlaneseq
    %v709 = vshrl.u32 %v708, 7
    %v710 = vsub.s32 0, %v709
    %v711 = vrot.slane %v118, %v710
    %v712 = vlaneseq
    %v713 = vshrl.u32 %v712, 7
    %v714 = vsub.s32 1, %v713
    %v715 = vrot.slane %v118, %v714
    %v718 = vadd.f32 %v643, %v711
    %v719 = vadd.f32 %v644, %v715
    %v720 = vadd.f32 %v645, %v711
    %v721 = vadd.f32 %v646, %v715
    %v722 = vadd.f32 %v647, %v711
    %v723 = vadd.f32 %v648, %v715
    %v724 = vadd.f32 %v649, %v711
    %v725 = vadd.f32 %v650, %v715
    %v726 = vadd.f32 %v651, %v711
    %v727 = vadd.f32 %v652, %v715
    %v728 = vadd.f32 %v653, %v711
    %v729 = vadd.f32 %v654, %v715
    %v730 = vadd.f32 %v655, %v711
    %v731 = vadd.f32 %v656, %v715
    %v732 = vadd.f32 %v657, %v711
    %v733 = vadd.f32 %v658, %v715
    %v734 = vadd.f32 %v659, %v711
    %v735 = vadd.f32 %v660, %v715
    %v736 = vadd.f32 %v661, %v711
    %v737 = vadd.f32 %v662, %v715
    %v738 = vadd.f32 %v663, %v711
    %v739 = vadd.f32 %v664, %v715
    %v740 = vadd.f32 %v665, %v711
    %v741 = vadd.f32 %v666, %v715
    %v742 = vadd.f32 %v667, %v711
    %v743 = vadd.f32 %v668, %v715
    %v744 = vadd.f32 %v669, %v711
    %v745 = vadd.f32 %v670, %v715
    %v746 = vadd.f32 %v671, %v711
    %v747 = vadd.f32 %v672, %v715
    %v748 = vadd.f32 %v673, %v711
    %v749 = vadd.f32 %v674, %v715
    %v750 = vadd.f32 %v675, %v711
    %v751 = vadd.f32 %v676, %v715
    %v752 = vadd.f32 %v677, %v711
    %v753 = vadd.f32 %v678, %v715
    %v754 = vadd.f32 %v679, %v711
    %v755 = vadd.f32 %v680, %v715
    %v756 = vadd.f32 %v681, %v711
    %v757 = vadd.f32 %v682, %v715
    %v758 = vadd.f32 %v683, %v711
    %v759 = vadd.f32 %v684, %v715
    %v760 = vadd.f32 %v685, %v711
    %v761 = vadd.f32 %v686, %v715
    %v762 = vadd.f32 %v687, %v711
    %v763 = vadd.f32 %v688, %v715
    %v764 = vadd.f32 %v689, %v711
    %v765 = vadd.f32 %v690, %v715
    %v766 = vadd.f32 %v691, %v711
    %v767 = vadd.f32 %v692, %v715
    %v768 = vadd.f32 %v693, %v711
    %v769 = vadd.f32 %v694, %v715
    %v770 = vadd.f32 %v695, %v711
    %v771 = vadd.f32 %v696, %v715
    %v772 = vadd.f32 %v697, %v711
    %v773 = vadd.f32 %v698, %v715
    %v774 = vadd.f32 %v699, %v711
    %v775 = vadd.f32 %v700, %v715
    %v776 = vadd.f32 %v701, %v711
    %v777 = vadd.f32 %v702, %v715
    %v778 = vadd.f32 %v703, %v711
    %v779 = vadd.f32 %v704, %v715
    %v780 = vadd.f32 %v705, %v711
    %v781 = vadd.f32 %v706, %v715
    %v782 = vpack.c.bf16 %v720, %v718
    %v783 = vpack.c.bf16 %v721, %v719
    %v784 = vpack.c.bf16 %v724, %v722
    %v785 = vpack.c.bf16 %v725, %v723
    %v786 = vpack.c.bf16 %v728, %v726
    %v787 = vpack.c.bf16 %v729, %v727
    %v788 = vpack.c.bf16 %v732, %v730
    %v789 = vpack.c.bf16 %v733, %v731
    %v790 = vpack.c.bf16 %v736, %v734
    %v791 = vpack.c.bf16 %v737, %v735
    %v792 = vpack.c.bf16 %v740, %v738
    %v793 = vpack.c.bf16 %v741, %v739
    %v794 = vpack.c.bf16 %v744, %v742
    %v795 = vpack.c.bf16 %v745, %v743
    %v796 = vpack.c.bf16 %v748, %v746
    %v797 = vpack.c.bf16 %v749, %v747
    %v798 = vpack.c.bf16 %v752, %v750
    %v799 = vpack.c.bf16 %v753, %v751
    %v800 = vpack.c.bf16 %v756, %v754
    %v801 = vpack.c.bf16 %v757, %v755
    %v802 = vpack.c.bf16 %v760, %v758
    %v803 = vpack.c.bf16 %v761, %v759
    %v804 = vpack.c.bf16 %v764, %v762
    %v805 = vpack.c.bf16 %v765, %v763
    %v806 = vpack.c.bf16 %v768, %v766
    %v807 = vpack.c.bf16 %v769, %v767
    %v808 = vpack.c.bf16 %v772, %v770
    %v809 = vpack.c.bf16 %v773, %v771
    %v810 = vpack.c.bf16 %v776, %v774
    %v811 = vpack.c.bf16 %v777, %v775
    %v812 = vpack.c.bf16 %v780, %v778
    %v813 = vpack.c.bf16 %v781, %v779
    %v814 = vld [vmem:[%s3] sm:$0xff]
    %v815 = vld [vmem:[%s3 + $0x8] sm:$0xff]
    %v816 = vld [vmem:[%s3 + $0x10] sm:$0xff]
    %v817 = vld [vmem:[%s3 + $0x18] sm:$0xff]
    %v818 = vld [vmem:[%s3 + $0x20] sm:$0xff]
    %v819 = vld [vmem:[%s3 + $0x28] sm:$0xff]
    %v820 = vld [vmem:[%s3 + $0x30] sm:$0xff]
    %v821 = vld [vmem:[%s3 + $0x38] sm:$0xff]
    %v822 = vld [vmem:[%s3 + $0x40] sm:$0xff]
    %v823 = vld [vmem:[%s3 + $0x48] sm:$0xff]
    %v824 = vld [vmem:[%s3 + $0x50] sm:$0xff]
    %v825 = vld [vmem:[%s3 + $0x58] sm:$0xff]
    %v826 = vld [vmem:[%s3 + $0x60] sm:$0xff]
    %v827 = vld [vmem:[%s3 + $0x68] sm:$0xff]
    %v828 = vld [vmem:[%s3 + $0x70] sm:$0xff]
    %v829 = vld [vmem:[%s3 + $0x78] sm:$0xff]
    %v830 = vld [vmem:[%s3 + $0x80] sm:$0xff]
    %v831 = vld [vmem:[%s3 + $0x88] sm:$0xff]
    %v832 = vld [vmem:[%s3 + $0x90] sm:$0xff]
    %v833 = vld [vmem:[%s3 + $0x98] sm:$0xff]
    %v834 = vld [vmem:[%s3 + $0xa0] sm:$0xff]
    %v835 = vld [vmem:[%s3 + $0xa8] sm:$0xff]
    %v836 = vld [vmem:[%s3 + $0xb0] sm:$0xff]
    %v837 = vld [vmem:[%s3 + $0xb8] sm:$0xff]
    %v838 = vld [vmem:[%s3 + $0xc0] sm:$0xff]
    %v839 = vld [vmem:[%s3 + $0xc8] sm:$0xff]
    %v840 = vld [vmem:[%s3 + $0xd0] sm:$0xff]
    %v841 = vld [vmem:[%s3 + $0xd8] sm:$0xff]
    %v842 = vld [vmem:[%s3 + $0xe0] sm:$0xff]
    %v843 = vld [vmem:[%s3 + $0xe8] sm:$0xff]
    %v844 = vld [vmem:[%s3 + $0xf0] sm:$0xff]
    %v845 = vld [vmem:[%s3 + $0xf8] sm:$0xff]
    %v846 = vld [vmem:[%s3 + $0x100] sm:$0xff]
    %v847 = vld [vmem:[%s3 + $0x108] sm:$0xff]
    %v848 = vld [vmem:[%s3 + $0x110] sm:$0xff]
    %v849 = vld [vmem:[%s3 + $0x118] sm:$0xff]
    %v850 = vld [vmem:[%s3 + $0x120] sm:$0xff]
    %v851 = vld [vmem:[%s3 + $0x128] sm:$0xff]
    %v852 = vld [vmem:[%s3 + $0x130] sm:$0xff]
    %v853 = vld [vmem:[%s3 + $0x138] sm:$0xff]
    %v854 = vld [vmem:[%s3 + $0x140] sm:$0xff]
    %v855 = vld [vmem:[%s3 + $0x148] sm:$0xff]
    %v856 = vld [vmem:[%s3 + $0x150] sm:$0xff]
    %v857 = vld [vmem:[%s3 + $0x158] sm:$0xff]
    %v858 = vld [vmem:[%s3 + $0x160] sm:$0xff]
    %v859 = vld [vmem:[%s3 + $0x168] sm:$0xff]
    %v860 = vld [vmem:[%s3 + $0x170] sm:$0xff]
    %v861 = vld [vmem:[%s3 + $0x178] sm:$0xff]
    %v862 = vld [vmem:[%s3 + $0x180] sm:$0xff]
    %v863 = vld [vmem:[%s3 + $0x188] sm:$0xff]
    %v864 = vld [vmem:[%s3 + $0x190] sm:$0xff]
    %v865 = vld [vmem:[%s3 + $0x198] sm:$0xff]
    %v866 = vld [vmem:[%s3 + $0x1a0] sm:$0xff]
    %v867 = vld [vmem:[%s3 + $0x1a8] sm:$0xff]
    %v868 = vld [vmem:[%s3 + $0x1b0] sm:$0xff]
    %v869 = vld [vmem:[%s3 + $0x1b8] sm:$0xff]
    %v870 = vld [vmem:[%s3 + $0x1c0] sm:$0xff]
    %v871 = vld [vmem:[%s3 + $0x1c8] sm:$0xff]
    %v872 = vld [vmem:[%s3 + $0x1d0] sm:$0xff]
    %v873 = vld [vmem:[%s3 + $0x1d8] sm:$0xff]
    %v874 = vld [vmem:[%s3 + $0x1e0] sm:$0xff]
    %v875 = vld [vmem:[%s3 + $0x1e8] sm:$0xff]
    %v876 = vld [vmem:[%s3 + $0x1f0] sm:$0xff]
    %v877 = vld [vmem:[%s3 + $0x1f8] sm:$0xff]
    %v878 = vld [vmem:[%s4] sm:$0xf]
    %v880 = vlaneseq
    %v881 = vshrl.u32 %v880, 7
    %v882 = vsub.s32 0, %v881
    %v883 = vrot.slane %v878, %v882
    %v884 = vlaneseq
    %v885 = vshrl.u32 %v884, 7
    %v886 = vsub.s32 1, %v885
    %v887 = vrot.slane %v878, %v886
    %v888 = vlaneseq
    %v889 = vshrl.u32 %v888, 7
    %v890 = vsub.s32 2, %v889
    %v891 = vrot.slane %v878, %v890
    %v892 = vlaneseq
    %v893 = vshrl.u32 %v892, 7
    %v894 = vsub.s32 3, %v893
    %v895 = vrot.slane %v878, %v894
    %v964 = vunpack.c.l.b16 %v814
    %v965 = vunpack.c.h.b16 %v814
    %v966 = vunpack.c.l.b16 %v815
    %v967 = vunpack.c.h.b16 %v815
    %v968 = vunpack.c.l.b16 %v816
    %v969 = vunpack.c.h.b16 %v816
    %v970 = vunpack.c.l.b16 %v817
    %v971 = vunpack.c.h.b16 %v817
    %v972 = vunpack.c.l.b16 %v818
    %v973 = vunpack.c.h.b16 %v818
    %v974 = vunpack.c.l.b16 %v819
    %v975 = vunpack.c.h.b16 %v819
    %v976 = vunpack.c.l.b16 %v820
    %v977 = vunpack.c.h.b16 %v820
    %v978 = vunpack.c.l.b16 %v821
    %v979 = vunpack.c.h.b16 %v821
    %v980 = vunpack.c.l.b16 %v822
    %v981 = vunpack.c.h.b16 %v822
    %v982 = vunpack.c.l.b16 %v823
    %v983 = vunpack.c.h.b16 %v823
    %v984 = vunpack.c.l.b16 %v824
    %v985 = vunpack.c.h.b16 %v824
    %v986 = vunpack.c.l.b16 %v825
    %v987 = vunpack.c.h.b16 %v825
    %v988 = vunpack.c.l.b16 %v826
    %v989 = vunpack.c.h.b16 %v826
    %v990 = vunpack.c.l.b16 %v827
    %v991 = vunpack.c.h.b16 %v827
    %v992 = vunpack.c.l.b16 %v828
    %v993 = vunpack.c.h.b16 %v828
    %v994 = vunpack.c.l.b16 %v829
    %v995 = vunpack.c.h.b16 %v829
    %v996 = vunpack.c.l.b16 %v830
    %v997 = vunpack.c.h.b16 %v830
    %v998 = vunpack.c.l.b16 %v831
    %v999 = vunpack.c.h.b16 %v831
    %v1000 = vunpack.c.l.b16 %v832
    %v1001 = vunpack.c.h.b16 %v832
    %v1002 = vunpack.c.l.b16 %v833
    %v1003 = vunpack.c.h.b16 %v833
    %v1004 = vunpack.c.l.b16 %v834
    %v1005 = vunpack.c.h.b16 %v834
    %v1006 = vunpack.c.l.b16 %v835
    %v1007 = vunpack.c.h.b16 %v835
    %v1008 = vunpack.c.l.b16 %v836
    %v1009 = vunpack.c.h.b16 %v836
    %v1010 = vunpack.c.l.b16 %v837
    %v1011 = vunpack.c.h.b16 %v837
    %v1012 = vunpack.c.l.b16 %v838
    %v1013 = vunpack.c.h.b16 %v838
    %v1014 = vunpack.c.l.b16 %v839
    %v1015 = vunpack.c.h.b16 %v839
    %v1016 = vunpack.c.l.b16 %v840
    %v1017 = vunpack.c.h.b16 %v840
    %v1018 = vunpack.c.l.b16 %v841
    %v1019 = vunpack.c.h.b16 %v841
    %v1020 = vunpack.c.l.b16 %v842
    %v1021 = vunpack.c.h.b16 %v842
    %v1022 = vunpack.c.l.b16 %v843
    %v1023 = vunpack.c.h.b16 %v843
    %v1024 = vunpack.c.l.b16 %v844
    %v1025 = vunpack.c.h.b16 %v844
    %v1026 = vunpack.c.l.b16 %v845
    %v1027 = vunpack.c.h.b16 %v845
    %v1028 = vunpack.c.l.b16 %v846
    %v1029 = vunpack.c.h.b16 %v846
    %v1030 = vunpack.c.l.b16 %v847
    %v1031 = vunpack.c.h.b16 %v847
    %v1032 = vunpack.c.l.b16 %v848
    %v1033 = vunpack.c.h.b16 %v848
    %v1034 = vunpack.c.l.b16 %v849
    %v1035 = vunpack.c.h.b16 %v849
    %v1036 = vunpack.c.l.b16 %v850
    %v1037 = vunpack.c.h.b16 %v850
    %v1038 = vunpack.c.l.b16 %v851
    %v1039 = vunpack.c.h.b16 %v851
    %v1040 = vunpack.c.l.b16 %v852
    %v1041 = vunpack.c.h.b16 %v852
    %v1042 = vunpack.c.l.b16 %v853
    %v1043 = vunpack.c.h.b16 %v853
    %v1044 = vunpack.c.l.b16 %v854
    %v1045 = vunpack.c.h.b16 %v854
    %v1046 = vunpack.c.l.b16 %v855
    %v1047 = vunpack.c.h.b16 %v855
    %v1048 = vunpack.c.l.b16 %v856
    %v1049 = vunpack.c.h.b16 %v856
    %v1050 = vunpack.c.l.b16 %v857
    %v1051 = vunpack.c.h.b16 %v857
    %v1052 = vunpack.c.l.b16 %v858
    %v1053 = vunpack.c.h.b16 %v858
    %v1054 = vunpack.c.l.b16 %v859
    %v1055 = vunpack.c.h.b16 %v859
    %v1056 = vunpack.c.l.b16 %v860
    %v1057 = vunpack.c.h.b16 %v860
    %v1058 = vunpack.c.l.b16 %v861
    %v1059 = vunpack.c.h.b16 %v861
    %v1060 = vunpack.c.l.b16 %v862
    %v1061 = vunpack.c.h.b16 %v862
    %v1062 = vunpack.c.l.b16 %v863
    %v1063 = vunpack.c.h.b16 %v863
    %v1064 = vunpack.c.l.b16 %v864
    %v1065 = vunpack.c.h.b16 %v864
    %v1066 = vunpack.c.l.b16 %v865
    %v1067 = vunpack.c.h.b16 %v865
    %v1068 = vunpack.c.l.b16 %v866
    %v1069 = vunpack.c.h.b16 %v866
    %v1070 = vunpack.c.l.b16 %v867
    %v1071 = vunpack.c.h.b16 %v867
    %v1072 = vunpack.c.l.b16 %v868
    %v1073 = vunpack.c.h.b16 %v868
    %v1074 = vunpack.c.l.b16 %v869
    %v1075 = vunpack.c.h.b16 %v869
    %v1076 = vunpack.c.l.b16 %v870
    %v1077 = vunpack.c.h.b16 %v870
    %v1078 = vunpack.c.l.b16 %v871
    %v1079 = vunpack.c.h.b16 %v871
    %v1080 = vunpack.c.l.b16 %v872
    %v1081 = vunpack.c.h.b16 %v872
    %v1082 = vunpack.c.l.b16 %v873
    %v1083 = vunpack.c.h.b16 %v873
    %v1084 = vunpack.c.l.b16 %v874
    %v1085 = vunpack.c.h.b16 %v874
    %v1086 = vunpack.c.l.b16 %v875
    %v1087 = vunpack.c.h.b16 %v875
    %v1088 = vunpack.c.l.b16 %v876
    %v1089 = vunpack.c.h.b16 %v876
    %v1090 = vunpack.c.l.b16 %v877
    %v1091 = vunpack.c.h.b16 %v877
    %v1092 = vpack.c.b16 %v968, %v964
    %v1093 = vpack.c.b16 %v969, %v965
    %v1094 = vpack.c.b16 %v970, %v966
    %v1095 = vpack.c.b16 %v971, %v967
    %v1096 = vpack.c.b16 %v976, %v972
    %v1097 = vpack.c.b16 %v977, %v973
    %v1098 = vpack.c.b16 %v978, %v974
    %v1099 = vpack.c.b16 %v979, %v975
    %v1100 = vpack.c.b16 %v984, %v980
    %v1101 = vpack.c.b16 %v985, %v981
    %v1102 = vpack.c.b16 %v986, %v982
    %v1103 = vpack.c.b16 %v987, %v983
    %v1104 = vpack.c.b16 %v992, %v988
    %v1105 = vpack.c.b16 %v993, %v989
    %v1106 = vpack.c.b16 %v994, %v990
    %v1107 = vpack.c.b16 %v995, %v991
    %v1108 = vpack.c.b16 %v1000, %v996
    %v1109 = vpack.c.b16 %v1001, %v997
    %v1110 = vpack.c.b16 %v1002, %v998
    %v1111 = vpack.c.b16 %v1003, %v999
    %v1112 = vpack.c.b16 %v1008, %v1004
    %v1113 = vpack.c.b16 %v1009, %v1005
    %v1114 = vpack.c.b16 %v1010, %v1006
    %v1115 = vpack.c.b16 %v1011, %v1007
    %v1116 = vpack.c.b16 %v1016, %v1012
    %v1117 = vpack.c.b16 %v1017, %v1013
    %v1118 = vpack.c.b16 %v1018, %v1014
    %v1119 = vpack.c.b16 %v1019, %v1015
    %v1120 = vpack.c.b16 %v1024, %v1020
    %v1121 = vpack.c.b16 %v1025, %v1021
    %v1122 = vpack.c.b16 %v1026, %v1022
    %v1123 = vpack.c.b16 %v1027, %v1023
    %v1124 = vpack.c.b16 %v1032, %v1028
    %v1125 = vpack.c.b16 %v1033, %v1029
    %v1126 = vpack.c.b16 %v1034, %v1030
    %v1127 = vpack.c.b16 %v1035, %v1031
    %v1128 = vpack.c.b16 %v1040, %v1036
    %v1129 = vpack.c.b16 %v1041, %v1037
    %v1130 = vpack.c.b16 %v1042, %v1038
    %v1131 = vpack.c.b16 %v1043, %v1039
    %v1132 = vpack.c.b16 %v1048, %v1044
    %v1133 = vpack.c.b16 %v1049, %v1045
    %v1134 = vpack.c.b16 %v1050, %v1046
    %v1135 = vpack.c.b16 %v1051, %v1047
    %v1136 = vpack.c.b16 %v1056, %v1052
    %v1137 = vpack.c.b16 %v1057, %v1053
    %v1138 = vpack.c.b16 %v1058, %v1054
    %v1139 = vpack.c.b16 %v1059, %v1055
    %v1140 = vpack.c.b16 %v1064, %v1060
    %v1141 = vpack.c.b16 %v1065, %v1061
    %v1142 = vpack.c.b16 %v1066, %v1062
    %v1143 = vpack.c.b16 %v1067, %v1063
    %v1144 = vpack.c.b16 %v1072, %v1068
    %v1145 = vpack.c.b16 %v1073, %v1069
    %v1146 = vpack.c.b16 %v1074, %v1070
    %v1147 = vpack.c.b16 %v1075, %v1071
    %v1148 = vpack.c.b16 %v1080, %v1076
    %v1149 = vpack.c.b16 %v1081, %v1077
    %v1150 = vpack.c.b16 %v1082, %v1078
    %v1151 = vpack.c.b16 %v1083, %v1079
    %v1152 = vpack.c.b16 %v1088, %v1084
    %v1153 = vpack.c.b16 %v1089, %v1085
    %v1154 = vpack.c.b16 %v1090, %v1086
    %v1155 = vpack.c.b16 %v1091, %v1087
    %1220 = vmatprep.subr.bf16.mxu0 %v1121
    %1221 = vmatpush1.bf16.msra.mxu0 %v1120
    %1222 = vmatprep.subr.bf16.mxu0 %v1117
    %1223 = vmatpush1.bf16.msra.mxu0 %v1116
    %1224 = vmatprep.subr.bf16.mxu0 %v1113
    %1225 = vmatpush1.bf16.msra.mxu0 %v1112
    %1226 = vmatprep.subr.bf16.mxu0 %v1109
    %1227 = vmatpush1.bf16.msra.mxu0 %v1108
    %1228 = vmatprep.subr.bf16.mxu0 %v1105
    %1229 = vmatpush1.bf16.msra.mxu0 %v1104
    %1230 = vmatprep.subr.bf16.mxu0 %v1101
    %1231 = vmatpush1.bf16.msra.mxu0 %v1100
    %1232 = vmatprep.subr.bf16.mxu0 %v1097
    %1233 = vmatpush1.bf16.msra.mxu0 %v1096
    %1234 = vmatprep.subr.bf16.mxu0 %v1093
    %1235 = vmatpush1.bf16.msra.mxu0 %v1092
    %1236 = vmatprep.subr.bf16.mxu0 %v1153
    %1237 = vmatpush2.bf16.msra.mxu0 %v1152
    %1238 = vmatprep.subr.bf16.mxu0 %v1149
    %1239 = vmatpush2.bf16.msra.mxu0 %v1148
    %1240 = vmatprep.subr.bf16.mxu0 %v1145
    %1241 = vmatpush2.bf16.msra.mxu0 %v1144
    %1242 = vmatprep.subr.bf16.mxu0 %v1141
    %1243 = vmatpush2.bf16.msra.mxu0 %v1140
    %1244 = vmatprep.subr.bf16.mxu0 %v1137
    %1245 = vmatpush2.bf16.msra.mxu0 %v1136
    %1246 = vmatprep.subr.bf16.mxu0 %v1133
    %1247 = vmatpush2.bf16.msra.mxu0 %v1132
    %1248 = vmatprep.subr.bf16.mxu0 %v1129
    %1249 = vmatpush2.bf16.msra.mxu0 %v1128
    %1250 = vmatprep.subr.bf16.mxu0 %v1125
    %1251 = vmatpush2.bf16.msra.mxu0 %v1124
    %1252 = vmatprep.mubr.bf16.mxu0 %v783
    %1253 = vmatmul.mubr.bf16.gmra.mxu0 %v782
    %v1254 = vpop.f32.mrf.mxu0
    %v1255 = vadd.f32 %v883, %v1254
    %v1256 = vpop.f32.mrf.mxu0
    %v1257 = vadd.f32 %v887, %v1256
    %v1258 = vpop.f32.mrf.mxu0
    %v1259 = vadd.f32 %v883, %v1258
    %v1260 = vpop.f32.mrf.mxu0
    %v1261 = vadd.f32 %v887, %v1260
    %1262 = vmatprep.mubr.bf16.mxu0 %v785
    %1263 = vmatmul.mubr.bf16.gmra.mxu0 %v784
    %v1264 = vpop.f32.mrf.mxu0
    %v1265 = vadd.f32 %v883, %v1264
    %v1266 = vpop.f32.mrf.mxu0
    %v1267 = vadd.f32 %v887, %v1266
    %v1268 = vpop.f32.mrf.mxu0
    %v1269 = vadd.f32 %v883, %v1268
    %v1270 = vpop.f32.mrf.mxu0
    %v1271 = vadd.f32 %v887, %v1270
    %1272 = vmatprep.mubr.bf16.mxu0 %v787
    %1273 = vmatmul.mubr.bf16.gmra.mxu0 %v786
    %v1274 = vpop.f32.mrf.mxu0
    %v1275 = vadd.f32 %v883, %v1274
    %v1276 = vpop.f32.mrf.mxu0
    %v1277 = vadd.f32 %v887, %v1276
    %v1278 = vpop.f32.mrf.mxu0
    %v1279 = vadd.f32 %v883, %v1278
    %v1280 = vpop.f32.mrf.mxu0
    %v1281 = vadd.f32 %v887, %v1280
    %1282 = vmatprep.mubr.bf16.mxu0 %v789
    %1283 = vmatmul.mubr.bf16.gmra.mxu0 %v788
    %v1284 = vpop.f32.mrf.mxu0
    %v1285 = vadd.f32 %v883, %v1284
    %v1286 = vpop.f32.mrf.mxu0
    %v1287 = vadd.f32 %v887, %v1286
    %v1288 = vpop.f32.mrf.mxu0
    %v1289 = vadd.f32 %v883, %v1288
    %v1290 = vpop.f32.mrf.mxu0
    %v1291 = vadd.f32 %v887, %v1290
    %1292 = vmatprep.mubr.bf16.mxu0 %v791
    %1293 = vmatmul.mubr.bf16.gmra.mxu0 %v790
    %v1294 = vpop.f32.mrf.mxu0
    %v1295 = vadd.f32 %v883, %v1294
    %v1296 = vpop.f32.mrf.mxu0
    %v1297 = vadd.f32 %v887, %v1296
    %v1298 = vpop.f32.mrf.mxu0
    %v1299 = vadd.f32 %v883, %v1298
    %v1300 = vpop.f32.mrf.mxu0
    %v1301 = vadd.f32 %v887, %v1300
    %1302 = vmatprep.mubr.bf16.mxu0 %v793
    %1303 = vmatmul.mubr.bf16.gmra.mxu0 %v792
    %v1304 = vpop.f32.mrf.mxu0
    %v1305 = vadd.f32 %v883, %v1304
    %v1306 = vpop.f32.mrf.mxu0
    %v1307 = vadd.f32 %v887, %v1306
    %v1308 = vpop.f32.mrf.mxu0
    %v1309 = vadd.f32 %v883, %v1308
    %v1310 = vpop.f32.mrf.mxu0
    %v1311 = vadd.f32 %v887, %v1310
    %1312 = vmatprep.mubr.bf16.mxu0 %v795
    %1313 = vmatmul.mubr.bf16.gmra.mxu0 %v794
    %v1314 = vpop.f32.mrf.mxu0
    %v1315 = vadd.f32 %v883, %v1314
    %v1316 = vpop.f32.mrf.mxu0
    %v1317 = vadd.f32 %v887, %v1316
    %v1318 = vpop.f32.mrf.mxu0
    %v1319 = vadd.f32 %v883, %v1318
    %v1320 = vpop.f32.mrf.mxu0
    %v1321 = vadd.f32 %v887, %v1320
    %1322 = vmatprep.mubr.bf16.mxu0 %v797
    %1323 = vmatmul.mubr.bf16.gmra.mxu0 %v796
    %v1324 = vpop.f32.mrf.mxu0
    %v1325 = vadd.f32 %v883, %v1324
    %v1326 = vpop.f32.mrf.mxu0
    %v1327 = vadd.f32 %v887, %v1326
    %v1328 = vpop.f32.mrf.mxu0
    %v1329 = vadd.f32 %v883, %v1328
    %v1330 = vpop.f32.mrf.mxu0
    %v1331 = vadd.f32 %v887, %v1330
    %1332 = vmatprep.mubr.bf16.mxu0 %v799
    %1333 = vmatmul.mubr.bf16.gmra.mxu0 %v798
    %v1334 = vpop.f32.mrf.mxu0
    %v1335 = vadd.f32 %v883, %v1334
    %v1336 = vpop.f32.mrf.mxu0
    %v1337 = vadd.f32 %v887, %v1336
    %v1338 = vpop.f32.mrf.mxu0
    %v1339 = vadd.f32 %v883, %v1338
    %v1340 = vpop.f32.mrf.mxu0
    %v1341 = vadd.f32 %v887, %v1340
    %1342 = vmatprep.mubr.bf16.mxu0 %v801
    %1343 = vmatmul.mubr.bf16.gmra.mxu0 %v800
    %v1344 = vpop.f32.mrf.mxu0
    %v1345 = vadd.f32 %v883, %v1344
    %v1346 = vpop.f32.mrf.mxu0
    %v1347 = vadd.f32 %v887, %v1346
    %v1348 = vpop.f32.mrf.mxu0
    %v1349 = vadd.f32 %v883, %v1348
    %v1350 = vpop.f32.mrf.mxu0
    %v1351 = vadd.f32 %v887, %v1350
    %1352 = vmatprep.mubr.bf16.mxu0 %v803
    %1353 = vmatmul.mubr.bf16.gmra.mxu0 %v802
    %v1354 = vpop.f32.mrf.mxu0
    %v1355 = vadd.f32 %v883, %v1354
    %v1356 = vpop.f32.mrf.mxu0
    %v1357 = vadd.f32 %v887, %v1356
    %v1358 = vpop.f32.mrf.mxu0
    %v1359 = vadd.f32 %v883, %v1358
    %v1360 = vpop.f32.mrf.mxu0
    %v1361 = vadd.f32 %v887, %v1360
    %1362 = vmatprep.mubr.bf16.mxu0 %v805
    %1363 = vmatmul.mubr.bf16.gmra.mxu0 %v804
    %v1364 = vpop.f32.mrf.mxu0
    %v1365 = vadd.f32 %v883, %v1364
    %v1366 = vpop.f32.mrf.mxu0
    %v1367 = vadd.f32 %v887, %v1366
    %v1368 = vpop.f32.mrf.mxu0
    %v1369 = vadd.f32 %v883, %v1368
    %v1370 = vpop.f32.mrf.mxu0
    %v1371 = vadd.f32 %v887, %v1370
    %1372 = vmatprep.mubr.bf16.mxu0 %v807
    %1373 = vmatmul.mubr.bf16.gmra.mxu0 %v806
    %v1374 = vpop.f32.mrf.mxu0
    %v1375 = vadd.f32 %v883, %v1374
    %v1376 = vpop.f32.mrf.mxu0
    %v1377 = vadd.f32 %v887, %v1376
    %v1378 = vpop.f32.mrf.mxu0
    %v1379 = vadd.f32 %v883, %v1378
    %v1380 = vpop.f32.mrf.mxu0
    %v1381 = vadd.f32 %v887, %v1380
    %1382 = vmatprep.mubr.bf16.mxu0 %v809
    %1383 = vmatmul.mubr.bf16.gmra.mxu0 %v808
    %v1384 = vpop.f32.mrf.mxu0
    %v1385 = vadd.f32 %v883, %v1384
    %v1386 = vpop.f32.mrf.mxu0
    %v1387 = vadd.f32 %v887, %v1386
    %v1388 = vpop.f32.mrf.mxu0
    %v1389 = vadd.f32 %v883, %v1388
    %v1390 = vpop.f32.mrf.mxu0
    %v1391 = vadd.f32 %v887, %v1390
    %1392 = vmatprep.mubr.bf16.mxu0 %v811
    %1393 = vmatmul.mubr.bf16.gmra.mxu0 %v810
    %v1394 = vpop.f32.mrf.mxu0
    %v1395 = vadd.f32 %v883, %v1394
    %v1396 = vpop.f32.mrf.mxu0
    %v1397 = vadd.f32 %v887, %v1396
    %v1398 = vpop.f32.mrf.mxu0
    %v1399 = vadd.f32 %v883, %v1398
    %v1400 = vpop.f32.mrf.mxu0
    %v1401 = vadd.f32 %v887, %v1400
    %1402 = vmatprep.mubr.bf16.mxu0 %v813
    %1403 = vmatmul.mubr.bf16.gmra.mxu0 %v812
    %v1404 = vpop.f32.mrf.mxu0
    %v1405 = vadd.f32 %v883, %v1404
    %v1406 = vpop.f32.mrf.mxu0
    %v1407 = vadd.f32 %v887, %v1406
    %v1408 = vpop.f32.mrf.mxu0
    %v1409 = vadd.f32 %v883, %v1408
    %v1410 = vpop.f32.mrf.mxu0
    %v1411 = vadd.f32 %v887, %v1410
    %1412 = vdwg.mxu0
    %1413 = vmatprep.subr.bf16.mxu0 %v1123
    %1414 = vmatpush1.bf16.msra.mxu0 %v1122
    %1415 = vmatprep.subr.bf16.mxu0 %v1119
    %1416 = vmatpush1.bf16.msra.mxu0 %v1118
    %1417 = vmatprep.subr.bf16.mxu0 %v1115
    %1418 = vmatpush1.bf16.msra.mxu0 %v1114
    %1419 = vmatprep.subr.bf16.mxu0 %v1111
    %1420 = vmatpush1.bf16.msra.mxu0 %v1110
    %1421 = vmatprep.subr.bf16.mxu0 %v1107
    %1422 = vmatpush1.bf16.msra.mxu0 %v1106
    %1423 = vmatprep.subr.bf16.mxu0 %v1103
    %1424 = vmatpush1.bf16.msra.mxu0 %v1102
    %1425 = vmatprep.subr.bf16.mxu0 %v1099
    %1426 = vmatpush1.bf16.msra.mxu0 %v1098
    %1427 = vmatprep.subr.bf16.mxu0 %v1095
    %1428 = vmatpush1.bf16.msra.mxu0 %v1094
    %1429 = vmatprep.subr.bf16.mxu0 %v1155
    %1430 = vmatpush2.bf16.msra.mxu0 %v1154
    %1431 = vmatprep.subr.bf16.mxu0 %v1151
    %1432 = vmatpush2.bf16.msra.mxu0 %v1150
    %1433 = vmatprep.subr.bf16.mxu0 %v1147
    %1434 = vmatpush2.bf16.msra.mxu0 %v1146
    %1435 = vmatprep.subr.bf16.mxu0 %v1143
    %1436 = vmatpush2.bf16.msra.mxu0 %v1142
    %1437 = vmatprep.subr.bf16.mxu0 %v1139
    %1438 = vmatpush2.bf16.msra.mxu0 %v1138
    %1439 = vmatprep.subr.bf16.mxu0 %v1135
    %1440 = vmatpush2.bf16.msra.mxu0 %v1134
    %1441 = vmatprep.subr.bf16.mxu0 %v1131
    %1442 = vmatpush2.bf16.msra.mxu0 %v1130
    %1443 = vmatprep.subr.bf16.mxu0 %v1127
    %1444 = vmatpush2.bf16.msra.mxu0 %v1126
    %1445 = vmatprep.mubr.bf16.mxu0 %v783
    %1446 = vmatmul.mubr.bf16.gmra.mxu0 %v782
    %v1447 = vpop.f32.mrf.mxu0
    %v1448 = vadd.f32 %v891, %v1447
    %v1449 = vpop.f32.mrf.mxu0
    %v1450 = vadd.f32 %v895, %v1449
    %v1451 = vpop.f32.mrf.mxu0
    %v1452 = vadd.f32 %v891, %v1451
    %v1453 = vpop.f32.mrf.mxu0
    %v1454 = vadd.f32 %v895, %v1453
    %1455 = vmatprep.mubr.bf16.mxu0 %v785
    %1456 = vmatmul.mubr.bf16.gmra.mxu0 %v784
    %v1457 = vpop.f32.mrf.mxu0
    %v1458 = vadd.f32 %v891, %v1457
    %v1459 = vpop.f32.mrf.mxu0
    %v1460 = vadd.f32 %v895, %v1459
    %v1461 = vpop.f32.mrf.mxu0
    %v1462 = vadd.f32 %v891, %v1461
    %v1463 = vpop.f32.mrf.mxu0
    %v1464 = vadd.f32 %v895, %v1463
    %1465 = vmatprep.mubr.bf16.mxu0 %v787
    %1466 = vmatmul.mubr.bf16.gmra.mxu0 %v786
    %v1467 = vpop.f32.mrf.mxu0
    %v1468 = vadd.f32 %v891, %v1467
    %v1469 = vpop.f32.mrf.mxu0
    %v1470 = vadd.f32 %v895, %v1469
    %v1471 = vpop.f32.mrf.mxu0
    %v1472 = vadd.f32 %v891, %v1471
    %v1473 = vpop.f32.mrf.mxu0
    %v1474 = vadd.f32 %v895, %v1473
    %1475 = vmatprep.mubr.bf16.mxu0 %v789
    %1476 = vmatmul.mubr.bf16.gmra.mxu0 %v788
    %v1477 = vpop.f32.mrf.mxu0
    %v1478 = vadd.f32 %v891, %v1477
    %v1479 = vpop.f32.mrf.mxu0
    %v1480 = vadd.f32 %v895, %v1479
    %v1481 = vpop.f32.mrf.mxu0
    %v1482 = vadd.f32 %v891, %v1481
    %v1483 = vpop.f32.mrf.mxu0
    %v1484 = vadd.f32 %v895, %v1483
    %1485 = vmatprep.mubr.bf16.mxu0 %v791
    %1486 = vmatmul.mubr.bf16.gmra.mxu0 %v790
    %v1487 = vpop.f32.mrf.mxu0
    %v1488 = vadd.f32 %v891, %v1487
    %v1489 = vpop.f32.mrf.mxu0
    %v1490 = vadd.f32 %v895, %v1489
    %v1491 = vpop.f32.mrf.mxu0
    %v1492 = vadd.f32 %v891, %v1491
    %v1493 = vpop.f32.mrf.mxu0
    %v1494 = vadd.f32 %v895, %v1493
    %1495 = vmatprep.mubr.bf16.mxu0 %v793
    %1496 = vmatmul.mubr.bf16.gmra.mxu0 %v792
    %v1497 = vpop.f32.mrf.mxu0
    %v1498 = vadd.f32 %v891, %v1497
    %v1499 = vpop.f32.mrf.mxu0
    %v1500 = vadd.f32 %v895, %v1499
    %v1501 = vpop.f32.mrf.mxu0
    %v1502 = vadd.f32 %v891, %v1501
    %v1503 = vpop.f32.mrf.mxu0
    %v1504 = vadd.f32 %v895, %v1503
    %1505 = vmatprep.mubr.bf16.mxu0 %v795
    %1506 = vmatmul.mubr.bf16.gmra.mxu0 %v794
    %v1507 = vpop.f32.mrf.mxu0
    %v1508 = vadd.f32 %v891, %v1507
    %v1509 = vpop.f32.mrf.mxu0
    %v1510 = vadd.f32 %v895, %v1509
    %v1511 = vpop.f32.mrf.mxu0
    %v1512 = vadd.f32 %v891, %v1511
    %v1513 = vpop.f32.mrf.mxu0
    %v1514 = vadd.f32 %v895, %v1513
    %1515 = vmatprep.mubr.bf16.mxu0 %v797
    %1516 = vmatmul.mubr.bf16.gmra.mxu0 %v796
    %v1517 = vpop.f32.mrf.mxu0
    %v1518 = vadd.f32 %v891, %v1517
    %v1519 = vpop.f32.mrf.mxu0
    %v1520 = vadd.f32 %v895, %v1519
    %v1521 = vpop.f32.mrf.mxu0
    %v1522 = vadd.f32 %v891, %v1521
    %v1523 = vpop.f32.mrf.mxu0
    %v1524 = vadd.f32 %v895, %v1523
    %1525 = vmatprep.mubr.bf16.mxu0 %v799
    %1526 = vmatmul.mubr.bf16.gmra.mxu0 %v798
    %v1527 = vpop.f32.mrf.mxu0
    %v1528 = vadd.f32 %v891, %v1527
    %v1529 = vpop.f32.mrf.mxu0
    %v1530 = vadd.f32 %v895, %v1529
    %v1531 = vpop.f32.mrf.mxu0
    %v1532 = vadd.f32 %v891, %v1531
    %v1533 = vpop.f32.mrf.mxu0
    %v1534 = vadd.f32 %v895, %v1533
    %1535 = vmatprep.mubr.bf16.mxu0 %v801
    %1536 = vmatmul.mubr.bf16.gmra.mxu0 %v800
    %v1537 = vpop.f32.mrf.mxu0
    %v1538 = vadd.f32 %v891, %v1537
    %v1539 = vpop.f32.mrf.mxu0
    %v1540 = vadd.f32 %v895, %v1539
    %v1541 = vpop.f32.mrf.mxu0
    %v1542 = vadd.f32 %v891, %v1541
    %v1543 = vpop.f32.mrf.mxu0
    %v1544 = vadd.f32 %v895, %v1543
    %1545 = vmatprep.mubr.bf16.mxu0 %v803
    %1546 = vmatmul.mubr.bf16.gmra.mxu0 %v802
    %v1547 = vpop.f32.mrf.mxu0
    %v1548 = vadd.f32 %v891, %v1547
    %v1549 = vpop.f32.mrf.mxu0
    %v1550 = vadd.f32 %v895, %v1549
    %v1551 = vpop.f32.mrf.mxu0
    %v1552 = vadd.f32 %v891, %v1551
    %v1553 = vpop.f32.mrf.mxu0
    %v1554 = vadd.f32 %v895, %v1553
    %1555 = vmatprep.mubr.bf16.mxu0 %v805
    %1556 = vmatmul.mubr.bf16.gmra.mxu0 %v804
    %v1557 = vpop.f32.mrf.mxu0
    %v1558 = vadd.f32 %v891, %v1557
    %v1559 = vpop.f32.mrf.mxu0
    %v1560 = vadd.f32 %v895, %v1559
    %v1561 = vpop.f32.mrf.mxu0
    %v1562 = vadd.f32 %v891, %v1561
    %v1563 = vpop.f32.mrf.mxu0
    %v1564 = vadd.f32 %v895, %v1563
    %1565 = vmatprep.mubr.bf16.mxu0 %v807
    %1566 = vmatmul.mubr.bf16.gmra.mxu0 %v806
    %v1567 = vpop.f32.mrf.mxu0
    %v1568 = vadd.f32 %v891, %v1567
    %v1569 = vpop.f32.mrf.mxu0
    %v1570 = vadd.f32 %v895, %v1569
    %v1571 = vpop.f32.mrf.mxu0
    %v1572 = vadd.f32 %v891, %v1571
    %v1573 = vpop.f32.mrf.mxu0
    %v1574 = vadd.f32 %v895, %v1573
    %1575 = vmatprep.mubr.bf16.mxu0 %v809
    %1576 = vmatmul.mubr.bf16.gmra.mxu0 %v808
    %v1577 = vpop.f32.mrf.mxu0
    %v1578 = vadd.f32 %v891, %v1577
    %v1579 = vpop.f32.mrf.mxu0
    %v1580 = vadd.f32 %v895, %v1579
    %v1581 = vpop.f32.mrf.mxu0
    %v1582 = vadd.f32 %v891, %v1581
    %v1583 = vpop.f32.mrf.mxu0
    %v1584 = vadd.f32 %v895, %v1583
    %1585 = vmatprep.mubr.bf16.mxu0 %v811
    %1586 = vmatmul.mubr.bf16.gmra.mxu0 %v810
    %v1587 = vpop.f32.mrf.mxu0
    %v1588 = vadd.f32 %v891, %v1587
    %v1589 = vpop.f32.mrf.mxu0
    %v1590 = vadd.f32 %v895, %v1589
    %v1591 = vpop.f32.mrf.mxu0
    %v1592 = vadd.f32 %v891, %v1591
    %v1593 = vpop.f32.mrf.mxu0
    %v1594 = vadd.f32 %v895, %v1593
    %1595 = vmatprep.mubr.bf16.mxu0 %v813
    %1596 = vmatmul.mubr.bf16.gmra.mxu0 %v812
    %v1597 = vpop.f32.mrf.mxu0
    %v1598 = vadd.f32 %v891, %v1597
    %v1599 = vpop.f32.mrf.mxu0
    %v1600 = vadd.f32 %v895, %v1599
    %v1601 = vpop.f32.mrf.mxu0
    %v1602 = vadd.f32 %v891, %v1601
    %v1603 = vpop.f32.mrf.mxu0
    %v1604 = vadd.f32 %v895, %v1603
    %1605 = vdwg.mxu0
    %1606 = vst [vmem:[#allocation2] sm:$0xff] %v1255
    %1607 = vst [vmem:[#allocation2 + $0x8] sm:$0xff] %v1257
    %1608 = vst [vmem:[#allocation2 + $0x10] sm:$0xff] %v1448
    %1609 = vst [vmem:[#allocation2 + $0x18] sm:$0xff] %v1450
    %1610 = vst [vmem:[#allocation2 + $0x20] sm:$0xff] %v1259
    %1611 = vst [vmem:[#allocation2 + $0x28] sm:$0xff] %v1261
    %1612 = vst [vmem:[#allocation2 + $0x30] sm:$0xff] %v1452
    %1613 = vst [vmem:[#allocation2 + $0x38] sm:$0xff] %v1454
    %1614 = vst [vmem:[#allocation2 + $0x40] sm:$0xff] %v1265
    %1615 = vst [vmem:[#allocation2 + $0x48] sm:$0xff] %v1267
    %1616 = vst [vmem:[#allocation2 + $0x50] sm:$0xff] %v1458
    %1617 = vst [vmem:[#allocation2 + $0x58] sm:$0xff] %v1460
    %1618 = vst [vmem:[#allocation2 + $0x60] sm:$0xff] %v1269
    %1619 = vst [vmem:[#allocation2 + $0x68] sm:$0xff] %v1271
    %1620 = vst [vmem:[#allocation2 + $0x70] sm:$0xff] %v1462
    %1621 = vst [vmem:[#allocation2 + $0x78] sm:$0xff] %v1464
    %1622 = vst [vmem:[#allocation2 + $0x80] sm:$0xff] %v1275
    %1623 = vst [vmem:[#allocation2 + $0x88] sm:$0xff] %v1277
    %1624 = vst [vmem:[#allocation2 + $0x90] sm:$0xff] %v1468
    %1625 = vst [vmem:[#allocation2 + $0x98] sm:$0xff] %v1470
    %1626 = vst [vmem:[#allocation2 + $0xa0] sm:$0xff] %v1279
    %1627 = vst [vmem:[#allocation2 + $0xa8] sm:$0xff] %v1281
    %1628 = vst [vmem:[#allocation2 + $0xb0] sm:$0xff] %v1472
    %1629 = vst [vmem:[#allocation2 + $0xb8] sm:$0xff] %v1474
    %1630 = vst [vmem:[#allocation2 + $0xc0] sm:$0xff] %v1285
    %1631 = vst [vmem:[#allocation2 + $0xc8] sm:$0xff] %v1287
    %1632 = vst [vmem:[#allocation2 + $0xd0] sm:$0xff] %v1478
    %1633 = vst [vmem:[#allocation2 + $0xd8] sm:$0xff] %v1480
    %1634 = vst [vmem:[#allocation2 + $0xe0] sm:$0xff] %v1289
    %1635 = vst [vmem:[#allocation2 + $0xe8] sm:$0xff] %v1291
    %1636 = vst [vmem:[#allocation2 + $0xf0] sm:$0xff] %v1482
    %1637 = vst [vmem:[#allocation2 + $0xf8] sm:$0xff] %v1484
    %1638 = vst [vmem:[#allocation2 + $0x100] sm:$0xff] %v1295
    %1639 = vst [vmem:[#allocation2 + $0x108] sm:$0xff] %v1297
    %1640 = vst [vmem:[#allocation2 + $0x110] sm:$0xff] %v1488
    %1641 = vst [vmem:[#allocation2 + $0x118] sm:$0xff] %v1490
    %1642 = vst [vmem:[#allocation2 + $0x120] sm:$0xff] %v1299
    %1643 = vst [vmem:[#allocation2 + $0x128] sm:$0xff] %v1301
    %1644 = vst [vmem:[#allocation2 + $0x130] sm:$0xff] %v1492
    %1645 = vst [vmem:[#allocation2 + $0x138] sm:$0xff] %v1494
    %1646 = vst [vmem:[#allocation2 + $0x140] sm:$0xff] %v1305
    %1647 = vst [vmem:[#allocation2 + $0x148] sm:$0xff] %v1307
    %1648 = vst [vmem:[#allocation2 + $0x150] sm:$0xff] %v1498
    %1649 = vst [vmem:[#allocation2 + $0x158] sm:$0xff] %v1500
    %1650 = vst [vmem:[#allocation2 + $0x160] sm:$0xff] %v1309
    %1651 = vst [vmem:[#allocation2 + $0x168] sm:$0xff] %v1311
    %1652 = vst [vmem:[#allocation2 + $0x170] sm:$0xff] %v1502
    %1653 = vst [vmem:[#allocation2 + $0x178] sm:$0xff] %v1504
    %1654 = vst [vmem:[#allocation2 + $0x180] sm:$0xff] %v1315
    %1655 = vst [vmem:[#allocation2 + $0x188] sm:$0xff] %v1317
    %1656 = vst [vmem:[#allocation2 + $0x190] sm:$0xff] %v1508
    %1657 = vst [vmem:[#allocation2 + $0x198] sm:$0xff] %v1510
    %1658 = vst [vmem:[#allocation2 + $0x1a0] sm:$0xff] %v1319
    %1659 = vst [vmem:[#allocation2 + $0x1a8] sm:$0xff] %v1321
    %1660 = vst [vmem:[#allocation2 + $0x1b0] sm:$0xff] %v1512
    %1661 = vst [vmem:[#allocation2 + $0x1b8] sm:$0xff] %v1514
    %1662 = vst [vmem:[#allocation2 + $0x1c0] sm:$0xff] %v1325
    %1663 = vst [vmem:[#allocation2 + $0x1c8] sm:$0xff] %v1327
    %1664 = vst [vmem:[#allocation2 + $0x1d0] sm:$0xff] %v1518
    %1665 = vst [vmem:[#allocation2 + $0x1d8] sm:$0xff] %v1520
    %1666 = vst [vmem:[#allocation2 + $0x1e0] sm:$0xff] %v1329
    %1667 = vst [vmem:[#allocation2 + $0x1e8] sm:$0xff] %v1331
    %1668 = vst [vmem:[#allocation2 + $0x1f0] sm:$0xff] %v1522
    %1669 = vst [vmem:[#allocation2 + $0x1f8] sm:$0xff] %v1524
    %1670 = vst [vmem:[#allocation2 + $0x200] sm:$0xff] %v1335
    %1671 = vst [vmem:[#allocation2 + $0x208] sm:$0xff] %v1337
    %1672 = vst [vmem:[#allocation2 + $0x210] sm:$0xff] %v1528
    %1673 = vst [vmem:[#allocation2 + $0x218] sm:$0xff] %v1530
    %1674 = vst [vmem:[#allocation2 + $0x220] sm:$0xff] %v1339
    %1675 = vst [vmem:[#allocation2 + $0x228] sm:$0xff] %v1341
    %1676 = vst [vmem:[#allocation2 + $0x230] sm:$0xff] %v1532
    %1677 = vst [vmem:[#allocation2 + $0x238] sm:$0xff] %v1534
    %1678 = vst [vmem:[#allocation2 + $0x240] sm:$0xff] %v1345
    %1679 = vst [vmem:[#allocation2 + $0x248] sm:$0xff] %v1347
    %1680 = vst [vmem:[#allocation2 + $0x250] sm:$0xff] %v1538
    %1681 = vst [vmem:[#allocation2 + $0x258] sm:$0xff] %v1540
    %1682 = vst [vmem:[#allocation2 + $0x260] sm:$0xff] %v1349
    %1683 = vst [vmem:[#allocation2 + $0x268] sm:$0xff] %v1351
    %1684 = vst [vmem:[#allocation2 + $0x270] sm:$0xff] %v1542
    %1685 = vst [vmem:[#allocation2 + $0x278] sm:$0xff] %v1544
    %1686 = vst [vmem:[#allocation2 + $0x280] sm:$0xff] %v1355
    %1687 = vst [vmem:[#allocation2 + $0x288] sm:$0xff] %v1357
    %1688 = vst [vmem:[#allocation2 + $0x290] sm:$0xff] %v1548
    %1689 = vst [vmem:[#allocation2 + $0x298] sm:$0xff] %v1550
    %1690 = vst [vmem:[#allocation2 + $0x2a0] sm:$0xff] %v1359
    %1691 = vst [vmem:[#allocation2 + $0x2a8] sm:$0xff] %v1361
    %1692 = vst [vmem:[#allocation2 + $0x2b0] sm:$0xff] %v1552
    %1693 = vst [vmem:[#allocation2 + $0x2b8] sm:$0xff] %v1554
    %1694 = vst [vmem:[#allocation2 + $0x2c0] sm:$0xff] %v1365
    %1695 = vst [vmem:[#allocation2 + $0x2c8] sm:$0xff] %v1367
    %1696 = vst [vmem:[#allocation2 + $0x2d0] sm:$0xff] %v1558
    %1697 = vst [vmem:[#allocation2 + $0x2d8] sm:$0xff] %v1560
    %1698 = vst [vmem:[#allocation2 + $0x2e0] sm:$0xff] %v1369
    %1699 = vst [vmem:[#allocation2 + $0x2e8] sm:$0xff] %v1371
    %1700 = vst [vmem:[#allocation2 + $0x2f0] sm:$0xff] %v1562
    %1701 = vst [vmem:[#allocation2 + $0x2f8] sm:$0xff] %v1564
    %1702 = vst [vmem:[#allocation2 + $0x300] sm:$0xff] %v1375
    %1703 = vst [vmem:[#allocation2 + $0x308] sm:$0xff] %v1377
    %1704 = vst [vmem:[#allocation2 + $0x310] sm:$0xff] %v1568
    %1705 = vst [vmem:[#allocation2 + $0x318] sm:$0xff] %v1570
    %1706 = vst [vmem:[#allocation2 + $0x320] sm:$0xff] %v1379
    %1707 = vst [vmem:[#allocation2 + $0x328] sm:$0xff] %v1381
    %1708 = vst [vmem:[#allocation2 + $0x330] sm:$0xff] %v1572
    %1709 = vst [vmem:[#allocation2 + $0x338] sm:$0xff] %v1574
    %1710 = vst [vmem:[#allocation2 + $0x340] sm:$0xff] %v1385
    %1711 = vst [vmem:[#allocation2 + $0x348] sm:$0xff] %v1387
    %1712 = vst [vmem:[#allocation2 + $0x350] sm:$0xff] %v1578
    %1713 = vst [vmem:[#allocation2 + $0x358] sm:$0xff] %v1580
    %1714 = vst [vmem:[#allocation2 + $0x360] sm:$0xff] %v1389
    %1715 = vst [vmem:[#allocation2 + $0x368] sm:$0xff] %v1391
    %1716 = vst [vmem:[#allocation2 + $0x370] sm:$0xff] %v1582
    %1717 = vst [vmem:[#allocation2 + $0x378] sm:$0xff] %v1584
    %1718 = vst [vmem:[#allocation2 + $0x380] sm:$0xff] %v1395
    %1719 = vst [vmem:[#allocation2 + $0x388] sm:$0xff] %v1397
    %1720 = vst [vmem:[#allocation2 + $0x390] sm:$0xff] %v1588
    %1721 = vst [vmem:[#allocation2 + $0x398] sm:$0xff] %v1590
    %1722 = vst [vmem:[#allocation2 + $0x3a0] sm:$0xff] %v1399
    %1723 = vst [vmem:[#allocation2 + $0x3a8] sm:$0xff] %v1401
    %1724 = vst [vmem:[#allocation2 + $0x3b0] sm:$0xff] %v1592
    %1725 = vst [vmem:[#allocation2 + $0x3b8] sm:$0xff] %v1594
    %1726 = vst [vmem:[#allocation2 + $0x3c0] sm:$0xff] %v1405
    %1727 = vst [vmem:[#allocation2 + $0x3c8] sm:$0xff] %v1407
    %1728 = vst [vmem:[#allocation2 + $0x3d0] sm:$0xff] %v1598
    %1729 = vst [vmem:[#allocation2 + $0x3d8] sm:$0xff] %v1600
    %1730 = vst [vmem:[#allocation2 + $0x3e0] sm:$0xff] %v1409
    %1731 = vst [vmem:[#allocation2 + $0x3e8] sm:$0xff] %v1411
    %1732 = vst [vmem:[#allocation2 + $0x3f0] sm:$0xff] %v1602
    %1733 = vst [vmem:[#allocation2 + $0x3f8] sm:$0xff] %v1604
    // Predicated region
    $region22: #{t5_decoder_lm_forward.13} parent=1 // pred_check
      _
    $region23: #{t5_decoder_lm_forward.13} parent=1 // pred_check_branch
      %1735 = sbr.rel (0) target = $region25
    $region24: #{t5_decoder_lm_forward.13} parent=1 // pred_region
      %s1737 = ssub.s32 16384, 16384
      %1738 = vsyncadd [#allocation3], %s1737
      %s1739 = sshll.u32 [#allocation2], 4
      %s1740 = int_to_ptr.vmem [resolvable:$true] %s1739
      %1745 = dma.vmem_to_hbm [thread:$0]  %s1740, 16384, %s5, [#allocation3], 512, 512, 32
    $region25: #{t5_decoder_lm_forward.13} parent=1 // pred_fallthru
      _
    // Predicated region
    $region26: #{t5_decoder_lm_forward.13} parent=1 // pred_check
      _
    $region27: #{t5_decoder_lm_forward.13} parent=1 // pred_check_branch
      %1747 = sbr.rel (0) target = $region29
    $region28: #{t5_decoder_lm_forward.13} parent=1 // pred_region
      %1748 = dma.done [#allocation3], 16384
    $region29: #{t5_decoder_lm_forward.13} parent=1 // pred_fallthru
      _
    %1749 = vsyncpa [#allocation3], 1

// kernel: t5_decoder_lm_forward.9
$region0: #{t5_decoder_lm_forward.9}
  #allocation0 [shape = 'u32[]', space=smem, size = 0x4, offset = 0x4, fixed_abs, tag = 'smem constant byte address 0x4 - core index']
  #allocation1 [shape = 'u32[144,128]{1,0:T(1,128)}', space=vmem, size = 0x12000, scoped, tag = 'internal scratch']
  %s0 = inlined_call_operand.vmem [shape: bf16[256,256], index: 0, kind: input, shape index: {}]
  %s1 = inlined_call_operand.vmem [shape: bf16[256,256], index: 1, kind: input, shape index: {}]
  %s2 = inlined_call_operand.vmem [shape: bf16[256,256], index: 2, kind: input, shape index: {}]
  %s3 = inlined_call_operand.vmem [shape: f32[1,256], index: 3, kind: input, shape index: {}]
  %s4 = inlined_call_operand.vmem [shape: f32[1,256], index: 4, kind: input, shape index: {}]
  %s5 = inlined_call_operand.vmem [shape: f32[1,256], index: 5, kind: input, shape index: {}]
  %s6 = inlined_call_operand.vmem [shape: bf16[256,512], index: 6, kind: input, shape index: {}]
  %s7 = inlined_call_operand.vmem [shape: f32[1,512], index: 7, kind: input, shape index: {}]
  %s8 = inlined_call_operand.vmem [shape: bf16[512,256], index: 8, kind: input, shape index: {}]
  %s9 = inlined_call_operand.vmem [shape: f32[1,256], index: 9, kind: input, shape index: {}]
  %s10 = inlined_call_operand.vmem [shape: bf16[256,256], index: 10, kind: output, shape index: {}]
  %s11 = sld [smem:[#allocation0]]
  $region50: #{t5_decoder_lm_forward.9} parent=0
    _
  %s13 = ssub.s32 1, %s11
  %s14 = scalar_select 0, %s13, %s11
  // Predicated region
  $region2: #{t5_decoder_lm_forward.9} parent=0 // pred_check
    _
  $region3: #{t5_decoder_lm_forward.9} parent=0 // pred_check_branch
    %16 = sbr.rel (0) target = $region5
  $region4: #{t5_decoder_lm_forward.9} parent=0 // pred_region
    _
  $region5: #{t5_decoder_lm_forward.9} parent=0 // pred_fallthru
    _
  // Predicated region
  $region6: #{t5_decoder_lm_forward.9} parent=0 // pred_check
    _
  $region7: #{t5_decoder_lm_forward.9} parent=0 // pred_check_branch
    %18 = sbr.rel (0) target = $region9
  $region8: #{t5_decoder_lm_forward.9} parent=0 // pred_region
    _
  $region9: #{t5_decoder_lm_forward.9} parent=0 // pred_fallthru
    _
  // Predicated region
  $region10: #{t5_decoder_lm_forward.9} parent=0 // pred_check
    _
  $region11: #{t5_decoder_lm_forward.9} parent=0 // pred_check_branch
    %20 = sbr.rel (0) target = $region13
  $region12: #{t5_decoder_lm_forward.9} parent=0 // pred_region
    _
  $region13: #{t5_decoder_lm_forward.9} parent=0 // pred_fallthru
    _
  // Predicated region
  $region14: #{t5_decoder_lm_forward.9} parent=0 // pred_check
    _
  $region15: #{t5_decoder_lm_forward.9} parent=0 // pred_check_branch
    %22 = sbr.rel (0) target = $region17
  $region16: #{t5_decoder_lm_forward.9} parent=0 // pred_region
    _
  $region17: #{t5_decoder_lm_forward.9} parent=0 // pred_fallthru
    _
  // Predicated region
  $region18: #{t5_decoder_lm_forward.9} parent=0 // pred_check
    _
  $region19: #{t5_decoder_lm_forward.9} parent=0 // pred_check_branch
    %24 = sbr.rel (0) target = $region21
  $region20: #{t5_decoder_lm_forward.9} parent=0 // pred_region
    _
  $region21: #{t5_decoder_lm_forward.9} parent=0 // pred_fallthru
    _
  // Predicated region
  $region22: #{t5_decoder_lm_forward.9} parent=0 // pred_check
    _
  $region23: #{t5_decoder_lm_forward.9} parent=0 // pred_check_branch
    %26 = sbr.rel (0) target = $region25
  $region24: #{t5_decoder_lm_forward.9} parent=0 // pred_region
    _
  $region25: #{t5_decoder_lm_forward.9} parent=0 // pred_fallthru
    _
  // Predicated region
  $region26: #{t5_decoder_lm_forward.9} parent=0 // pred_check
    _
  $region27: #{t5_decoder_lm_forward.9} parent=0 // pred_check_branch
    %28 = sbr.rel (0) target = $region29
  $region28: #{t5_decoder_lm_forward.9} parent=0 // pred_region
    _
  $region29: #{t5_decoder_lm_forward.9} parent=0 // pred_fallthru
    _
  // Predicated region
  $region30: #{t5_decoder_lm_forward.9} parent=0 // pred_check
    _
  $region31: #{t5_decoder_lm_forward.9} parent=0 // pred_check_branch
    %30 = sbr.rel (0) target = $region33
  $region32: #{t5_decoder_lm_forward.9} parent=0 // pred_region
    _
  $region33: #{t5_decoder_lm_forward.9} parent=0 // pred_fallthru
    _
  // Predicated region
  $region34: #{t5_decoder_lm_forward.9} parent=0 // pred_check
    _
  $region35: #{t5_decoder_lm_forward.9} parent=0 // pred_check_branch
    %32 = sbr.rel (0) target = $region37
  $region36: #{t5_decoder_lm_forward.9} parent=0 // pred_region
    _
  $region37: #{t5_decoder_lm_forward.9} parent=0 // pred_fallthru
    _
  // Predicated region
  $region38: #{t5_decoder_lm_forward.9} parent=0 // pred_check
    _
  $region39: #{t5_decoder_lm_forward.9} parent=0 // pred_check_branch
    %34 = sbr.rel (0) target = $region41
  $region40: #{t5_decoder_lm_forward.9} parent=0 // pred_region
    _
  $region41: #{t5_decoder_lm_forward.9} parent=0 // pred_fallthru
    _
  %v35 = vld [vmem:[%s0] sm:$0xff]
  %v36 = vld [vmem:[%s0 + $0x8] sm:$0xff]
  %v37 = vld [vmem:[%s0 + $0x10] sm:$0xff]
  %v38 = vld [vmem:[%s0 + $0x18] sm:$0xff]
  %v39 = vld [vmem:[%s0 + $0x20] sm:$0xff]
  %v40 = vld [vmem:[%s0 + $0x28] sm:$0xff]
  %v41 = vld [vmem:[%s0 + $0x30] sm:$0xff]
  %v42 = vld [vmem:[%s0 + $0x38] sm:$0xff]
  %v43 = vld [vmem:[%s0 + $0x40] sm:$0xff]
  %v44 = vld [vmem:[%s0 + $0x48] sm:$0xff]
  %v45 = vld [vmem:[%s0 + $0x50] sm:$0xff]
  %v46 = vld [vmem:[%s0 + $0x58] sm:$0xff]
  %v47 = vld [vmem:[%s0 + $0x60] sm:$0xff]
  %v48 = vld [vmem:[%s0 + $0x68] sm:$0xff]
  %v49 = vld [vmem:[%s0 + $0x70] sm:$0xff]
  %v50 = vld [vmem:[%s0 + $0x78] sm:$0xff]
  %v51 = vld [vmem:[%s0 + $0x80] sm:$0xff]
  %v52 = vld [vmem:[%s0 + $0x88] sm:$0xff]
  %v53 = vld [vmem:[%s0 + $0x90] sm:$0xff]
  %v54 = vld [vmem:[%s0 + $0x98] sm:$0xff]
  %v55 = vld [vmem:[%s0 + $0xa0] sm:$0xff]
  %v56 = vld [vmem:[%s0 + $0xa8] sm:$0xff]
  %v57 = vld [vmem:[%s0 + $0xb0] sm:$0xff]
  %v58 = vld [vmem:[%s0 + $0xb8] sm:$0xff]
  %v59 = vld [vmem:[%s0 + $0xc0] sm:$0xff]
  %v60 = vld [vmem:[%s0 + $0xc8] sm:$0xff]
  %v61 = vld [vmem:[%s0 + $0xd0] sm:$0xff]
  %v62 = vld [vmem:[%s0 + $0xd8] sm:$0xff]
  %v63 = vld [vmem:[%s0 + $0xe0] sm:$0xff]
  %v64 = vld [vmem:[%s0 + $0xe8] sm:$0xff]
  %v65 = vld [vmem:[%s0 + $0xf0] sm:$0xff]
  %v66 = vld [vmem:[%s0 + $0xf8] sm:$0xff]
  %v67 = vld [vmem:[%s2] sm:$0xff]
  %v68 = vld [vmem:[%s2 + $0x8] sm:$0xff]
  %v69 = vld [vmem:[%s2 + $0x10] sm:$0xff]
  %v70 = vld [vmem:[%s2 + $0x18] sm:$0xff]
  %v71 = vld [vmem:[%s2 + $0x20] sm:$0xff]
  %v72 = vld [vmem:[%s2 + $0x28] sm:$0xff]
  %v73 = vld [vmem:[%s2 + $0x30] sm:$0xff]
  %v74 = vld [vmem:[%s2 + $0x38] sm:$0xff]
  %v75 = vld [vmem:[%s2 + $0x40] sm:$0xff]
  %v76 = vld [vmem:[%s2 + $0x48] sm:$0xff]
  %v77 = vld [vmem:[%s2 + $0x50] sm:$0xff]
  %v78 = vld [vmem:[%s2 + $0x58] sm:$0xff]
  %v79 = vld [vmem:[%s2 + $0x60] sm:$0xff]
  %v80 = vld [vmem:[%s2 + $0x68] sm:$0xff]
  %v81 = vld [vmem:[%s2 + $0x70] sm:$0xff]
  %v82 = vld [vmem:[%s2 + $0x78] sm:$0xff]
  %v83 = vld [vmem:[%s2 + $0x80] sm:$0xff]
  %v84 = vld [vmem:[%s2 + $0x88] sm:$0xff]
  %v85 = vld [vmem:[%s2 + $0x90] sm:$0xff]
  %v86 = vld [vmem:[%s2 + $0x98] sm:$0xff]
  %v87 = vld [vmem:[%s2 + $0xa0] sm:$0xff]
  %v88 = vld [vmem:[%s2 + $0xa8] sm:$0xff]
  %v89 = vld [vmem:[%s2 + $0xb0] sm:$0xff]
  %v90 = vld [vmem:[%s2 + $0xb8] sm:$0xff]
  %v91 = vld [vmem:[%s2 + $0xc0] sm:$0xff]
  %v92 = vld [vmem:[%s2 + $0xc8] sm:$0xff]
  %v93 = vld [vmem:[%s2 + $0xd0] sm:$0xff]
  %v94 = vld [vmem:[%s2 + $0xd8] sm:$0xff]
  %v95 = vld [vmem:[%s2 + $0xe0] sm:$0xff]
  %v96 = vld [vmem:[%s2 + $0xe8] sm:$0xff]
  %v97 = vld [vmem:[%s2 + $0xf0] sm:$0xff]
  %v98 = vld [vmem:[%s2 + $0xf8] sm:$0xff]
  %v99 = vld [vmem:[%s3] sm:$0x3]
  %v101 = vlaneseq
  %v102 = vshrl.u32 %v101, 7
  %v103 = vsub.s32 0, %v102
  %v104 = vrot.slane %v99, %v103
  %v105 = vlaneseq
  %v106 = vshrl.u32 %v105, 7
  %v107 = vsub.s32 1, %v106
  %v108 = vrot.slane %v99, %v107
  %v143 = vunpack.c.l.b16 %v35
  %v144 = vunpack.c.h.b16 %v35
  %v145 = vunpack.c.l.b16 %v36
  %v146 = vunpack.c.h.b16 %v36
  %v147 = vunpack.c.l.b16 %v37
  %v148 = vunpack.c.h.b16 %v37
  %v149 = vunpack.c.l.b16 %v38
  %v150 = vunpack.c.h.b16 %v38
  %v151 = vunpack.c.l.b16 %v39
  %v152 = vunpack.c.h.b16 %v39
  %v153 = vunpack.c.l.b16 %v40
  %v154 = vunpack.c.h.b16 %v40
  %v155 = vunpack.c.l.b16 %v41
  %v156 = vunpack.c.h.b16 %v41
  %v157 = vunpack.c.l.b16 %v42
  %v158 = vunpack.c.h.b16 %v42
  %v159 = vunpack.c.l.b16 %v43
  %v160 = vunpack.c.h.b16 %v43
  %v161 = vunpack.c.l.b16 %v44
  %v162 = vunpack.c.h.b16 %v44
  %v163 = vunpack.c.l.b16 %v45
  %v164 = vunpack.c.h.b16 %v45
  %v165 = vunpack.c.l.b16 %v46
  %v166 = vunpack.c.h.b16 %v46
  %v167 = vunpack.c.l.b16 %v47
  %v168 = vunpack.c.h.b16 %v47
  %v169 = vunpack.c.l.b16 %v48
  %v170 = vunpack.c.h.b16 %v48
  %v171 = vunpack.c.l.b16 %v49
  %v172 = vunpack.c.h.b16 %v49
  %v173 = vunpack.c.l.b16 %v50
  %v174 = vunpack.c.h.b16 %v50
  %v175 = vunpack.c.l.b16 %v51
  %v176 = vunpack.c.h.b16 %v51
  %v177 = vunpack.c.l.b16 %v52
  %v178 = vunpack.c.h.b16 %v52
  %v179 = vunpack.c.l.b16 %v53
  %v180 = vunpack.c.h.b16 %v53
  %v181 = vunpack.c.l.b16 %v54
  %v182 = vunpack.c.h.b16 %v54
  %v183 = vunpack.c.l.b16 %v55
  %v184 = vunpack.c.h.b16 %v55
  %v185 = vunpack.c.l.b16 %v56
  %v186 = vunpack.c.h.b16 %v56
  %v187 = vunpack.c.l.b16 %v57
  %v188 = vunpack.c.h.b16 %v57
  %v189 = vunpack.c.l.b16 %v58
  %v190 = vunpack.c.h.b16 %v58
  %v191 = vunpack.c.l.b16 %v59
  %v192 = vunpack.c.h.b16 %v59
  %v193 = vunpack.c.l.b16 %v60
  %v194 = vunpack.c.h.b16 %v60
  %v195 = vunpack.c.l.b16 %v61
  %v196 = vunpack.c.h.b16 %v61
  %v197 = vunpack.c.l.b16 %v62
  %v198 = vunpack.c.h.b16 %v62
  %v199 = vunpack.c.l.b16 %v63
  %v200 = vunpack.c.h.b16 %v63
  %v201 = vunpack.c.l.b16 %v64
  %v202 = vunpack.c.h.b16 %v64
  %v203 = vunpack.c.l.b16 %v65
  %v204 = vunpack.c.h.b16 %v65
  %v205 = vunpack.c.l.b16 %v66
  %v206 = vunpack.c.h.b16 %v66
  %v207 = vpack.c.b16 %v145, %v143
  %v208 = vpack.c.b16 %v146, %v144
  %v209 = vpack.c.b16 %v149, %v147
  %v210 = vpack.c.b16 %v150, %v148
  %v211 = vpack.c.b16 %v153, %v151
  %v212 = vpack.c.b16 %v154, %v152
  %v213 = vpack.c.b16 %v157, %v155
  %v214 = vpack.c.b16 %v158, %v156
  %v215 = vpack.c.b16 %v161, %v159
  %v216 = vpack.c.b16 %v162, %v160
  %v217 = vpack.c.b16 %v165, %v163
  %v218 = vpack.c.b16 %v166, %v164
  %v219 = vpack.c.b16 %v169, %v167
  %v220 = vpack.c.b16 %v170, %v168
  %v221 = vpack.c.b16 %v173, %v171
  %v222 = vpack.c.b16 %v174, %v172
  %v223 = vpack.c.b16 %v177, %v175
  %v224 = vpack.c.b16 %v178, %v176
  %v225 = vpack.c.b16 %v181, %v179
  %v226 = vpack.c.b16 %v182, %v180
  %v227 = vpack.c.b16 %v185, %v183
  %v228 = vpack.c.b16 %v186, %v184
  %v229 = vpack.c.b16 %v189, %v187
  %v230 = vpack.c.b16 %v190, %v188
  %v231 = vpack.c.b16 %v193, %v191
  %v232 = vpack.c.b16 %v194, %v192
  %v233 = vpack.c.b16 %v197, %v195
  %v234 = vpack.c.b16 %v198, %v196
  %v235 = vpack.c.b16 %v201, %v199
  %v236 = vpack.c.b16 %v202, %v200
  %v237 = vpack.c.b16 %v205, %v203
  %v238 = vpack.c.b16 %v206, %v204
  %v303 = vunpack.c.l.b16 %v67
  %v304 = vunpack.c.h.b16 %v67
  %v305 = vunpack.c.l.b16 %v68
  %v306 = vunpack.c.h.b16 %v68
  %v307 = vunpack.c.l.b16 %v69
  %v308 = vunpack.c.h.b16 %v69
  %v309 = vunpack.c.l.b16 %v70
  %v310 = vunpack.c.h.b16 %v70
  %v311 = vunpack.c.l.b16 %v71
  %v312 = vunpack.c.h.b16 %v71
  %v313 = vunpack.c.l.b16 %v72
  %v314 = vunpack.c.h.b16 %v72
  %v315 = vunpack.c.l.b16 %v73
  %v316 = vunpack.c.h.b16 %v73
  %v317 = vunpack.c.l.b16 %v74
  %v318 = vunpack.c.h.b16 %v74
  %v319 = vunpack.c.l.b16 %v75
  %v320 = vunpack.c.h.b16 %v75
  %v321 = vunpack.c.l.b16 %v76
  %v322 = vunpack.c.h.b16 %v76
  %v323 = vunpack.c.l.b16 %v77
  %v324 = vunpack.c.h.b16 %v77
  %v325 = vunpack.c.l.b16 %v78
  %v326 = vunpack.c.h.b16 %v78
  %v327 = vunpack.c.l.b16 %v79
  %v328 = vunpack.c.h.b16 %v79
  %v329 = vunpack.c.l.b16 %v80
  %v330 = vunpack.c.h.b16 %v80
  %v331 = vunpack.c.l.b16 %v81
  %v332 = vunpack.c.h.b16 %v81
  %v333 = vunpack.c.l.b16 %v82
  %v334 = vunpack.c.h.b16 %v82
  %v335 = vunpack.c.l.b16 %v83
  %v336 = vunpack.c.h.b16 %v83
  %v337 = vunpack.c.l.b16 %v84
  %v338 = vunpack.c.h.b16 %v84
  %v339 = vunpack.c.l.b16 %v85
  %v340 = vunpack.c.h.b16 %v85
  %v341 = vunpack.c.l.b16 %v86
  %v342 = vunpack.c.h.b16 %v86
  %v343 = vunpack.c.l.b16 %v87
  %v344 = vunpack.c.h.b16 %v87
  %v345 = vunpack.c.l.b16 %v88
  %v346 = vunpack.c.h.b16 %v88
  %v347 = vunpack.c.l.b16 %v89
  %v348 = vunpack.c.h.b16 %v89
  %v349 = vunpack.c.l.b16 %v90
  %v350 = vunpack.c.h.b16 %v90
  %v351 = vunpack.c.l.b16 %v91
  %v352 = vunpack.c.h.b16 %v91
  %v353 = vunpack.c.l.b16 %v92
  %v354 = vunpack.c.h.b16 %v92
  %v355 = vunpack.c.l.b16 %v93
  %v356 = vunpack.c.h.b16 %v93
  %v357 = vunpack.c.l.b16 %v94
  %v358 = vunpack.c.h.b16 %v94
  %v359 = vunpack.c.l.b16 %v95
  %v360 = vunpack.c.h.b16 %v95
  %v361 = vunpack.c.l.b16 %v96
  %v362 = vunpack.c.h.b16 %v96
  %v363 = vunpack.c.l.b16 %v97
  %v364 = vunpack.c.h.b16 %v97
  %v365 = vunpack.c.l.b16 %v98
  %v366 = vunpack.c.h.b16 %v98
  %v367 = vpack.c.b16 %v305, %v303
  %v368 = vpack.c.b16 %v306, %v304
  %v369 = vpack.c.b16 %v309, %v307
  %v370 = vpack.c.b16 %v310, %v308
  %v371 = vpack.c.b16 %v313, %v311
  %v372 = vpack.c.b16 %v314, %v312
  %v373 = vpack.c.b16 %v317, %v315
  %v374 = vpack.c.b16 %v318, %v316
  %v375 = vpack.c.b16 %v321, %v319
  %v376 = vpack.c.b16 %v322, %v320
  %v377 = vpack.c.b16 %v325, %v323
  %v378 = vpack.c.b16 %v326, %v324
  %v379 = vpack.c.b16 %v329, %v327
  %v380 = vpack.c.b16 %v330, %v328
  %v381 = vpack.c.b16 %v333, %v331
  %v382 = vpack.c.b16 %v334, %v332
  %v383 = vpack.c.b16 %v337, %v335
  %v384 = vpack.c.b16 %v338, %v336
  %v385 = vpack.c.b16 %v341, %v339
  %v386 = vpack.c.b16 %v342, %v340
  %v387 = vpack.c.b16 %v345, %v343
  %v388 = vpack.c.b16 %v346, %v344
  %v389 = vpack.c.b16 %v349, %v347
  %v390 = vpack.c.b16 %v350, %v348
  %v391 = vpack.c.b16 %v353, %v351
  %v392 = vpack.c.b16 %v354, %v352
  %v393 = vpack.c.b16 %v357, %v355
  %v394 = vpack.c.b16 %v358, %v356
  %v395 = vpack.c.b16 %v361, %v359
  %v396 = vpack.c.b16 %v362, %v360
  %v397 = vpack.c.b16 %v365, %v363
  %v398 = vpack.c.b16 %v366, %v364
  %431 = vmatprep.subr.bf16.mxu0 %v382
  %432 = vmatpush1.bf16.msra.mxu0 %v381
  %433 = vmatprep.subr.bf16.mxu0 %v380
  %434 = vmatpush1.bf16.msra.mxu0 %v379
  %435 = vmatprep.subr.bf16.mxu0 %v378
  %436 = vmatpush1.bf16.msra.mxu0 %v377
  %437 = vmatprep.subr.bf16.mxu0 %v376
  %438 = vmatpush1.bf16.msra.mxu0 %v375
  %439 = vmatprep.subr.bf16.mxu0 %v374
  %440 = vmatpush1.bf16.msra.mxu0 %v373
  %441 = vmatprep.subr.bf16.mxu0 %v372
  %442 = vmatpush1.bf16.msra.mxu0 %v371
  %443 = vmatprep.subr.bf16.mxu0 %v370
  %444 = vmatpush1.bf16.msra.mxu0 %v369
  %445 = vmatprep.subr.bf16.mxu0 %v368
  %446 = vmatpush1.bf16.msra.mxu0 %v367
  %447 = vmatprep.subr.bf16.mxu0 %v398
  %448 = vmatpush2.bf16.msra.mxu0 %v397
  %449 = vmatprep.subr.bf16.mxu0 %v396
  %450 = vmatpush2.bf16.msra.mxu0 %v395
  %451 = vmatprep.subr.bf16.mxu0 %v394
  %452 = vmatpush2.bf16.msra.mxu0 %v393
  %453 = vmatprep.subr.bf16.mxu0 %v392
  %454 = vmatpush2.bf16.msra.mxu0 %v391
  %455 = vmatprep.subr.bf16.mxu0 %v390
  %456 = vmatpush2.bf16.msra.mxu0 %v389
  %457 = vmatprep.subr.bf16.mxu0 %v388
  %458 = vmatpush2.bf16.msra.mxu0 %v387
  %459 = vmatprep.subr.bf16.mxu0 %v386
  %460 = vmatpush2.bf16.msra.mxu0 %v385
  %461 = vmatprep.subr.bf16.mxu0 %v384
  %462 = vmatpush2.bf16.msra.mxu0 %v383
  %463 = vmatprep.mubr.bf16.mxu0 %v208
  %464 = vmatmul.mubr.bf16.gmra.mxu0 %v207
  %v465 = vpop.f32.mrf.mxu0
  %v466 = vadd.f32 %v104, %v465
  %v467 = vpop.f32.mrf.mxu0
  %v468 = vadd.f32 %v108, %v467
  %v469 = vpop.f32.mrf.mxu0
  %v470 = vadd.f32 %v104, %v469
  %v471 = vpop.f32.mrf.mxu0
  %v472 = vadd.f32 %v108, %v471
  %473 = vmatprep.mubr.bf16.mxu0 %v210
  %474 = vmatmul.mubr.bf16.gmra.mxu0 %v209
  %v475 = vpop.f32.mrf.mxu0
  %v476 = vadd.f32 %v104, %v475
  %v477 = vpop.f32.mrf.mxu0
  %v478 = vadd.f32 %v108, %v477
  %v479 = vpop.f32.mrf.mxu0
  %v480 = vadd.f32 %v104, %v479
  %v481 = vpop.f32.mrf.mxu0
  %v482 = vadd.f32 %v108, %v481
  %483 = vmatprep.mubr.bf16.mxu0 %v212
  %484 = vmatmul.mubr.bf16.gmra.mxu0 %v211
  %v485 = vpop.f32.mrf.mxu0
  %v486 = vadd.f32 %v104, %v485
  %v487 = vpop.f32.mrf.mxu0
  %v488 = vadd.f32 %v108, %v487
  %v489 = vpop.f32.mrf.mxu0
  %v490 = vadd.f32 %v104, %v489
  %v491 = vpop.f32.mrf.mxu0
  %v492 = vadd.f32 %v108, %v491
  %493 = vmatprep.mubr.bf16.mxu0 %v214
  %494 = vmatmul.mubr.bf16.gmra.mxu0 %v213
  %v495 = vpop.f32.mrf.mxu0
  %v496 = vadd.f32 %v104, %v495
  %v497 = vpop.f32.mrf.mxu0
  %v498 = vadd.f32 %v108, %v497
  %v499 = vpop.f32.mrf.mxu0
  %v500 = vadd.f32 %v104, %v499
  %v501 = vpop.f32.mrf.mxu0
  %v502 = vadd.f32 %v108, %v501
  %503 = vmatprep.mubr.bf16.mxu0 %v216
  %504 = vmatmul.mubr.bf16.gmra.mxu0 %v215
  %v505 = vpop.f32.mrf.mxu0
  %v506 = vadd.f32 %v104, %v505
  %v507 = vpop.f32.mrf.mxu0
  %v508 = vadd.f32 %v108, %v507
  %v509 = vpop.f32.mrf.mxu0
  %v510 = vadd.f32 %v104, %v509
  %v511 = vpop.f32.mrf.mxu0
  %v512 = vadd.f32 %v108, %v511
  %513 = vmatprep.mubr.bf16.mxu0 %v218
  %514 = vmatmul.mubr.bf16.gmra.mxu0 %v217
  %v515 = vpop.f32.mrf.mxu0
  %v516 = vadd.f32 %v104, %v515
  %v517 = vpop.f32.mrf.mxu0
  %v518 = vadd.f32 %v108, %v517
  %v519 = vpop.f32.mrf.mxu0
  %v520 = vadd.f32 %v104, %v519
  %v521 = vpop.f32.mrf.mxu0
  %v522 = vadd.f32 %v108, %v521
  %523 = vmatprep.mubr.bf16.mxu0 %v220
  %524 = vmatmul.mubr.bf16.gmra.mxu0 %v219
  %v525 = vpop.f32.mrf.mxu0
  %v526 = vadd.f32 %v104, %v525
  %v527 = vpop.f32.mrf.mxu0
  %v528 = vadd.f32 %v108, %v527
  %v529 = vpop.f32.mrf.mxu0
  %v530 = vadd.f32 %v104, %v529
  %v531 = vpop.f32.mrf.mxu0
  %v532 = vadd.f32 %v108, %v531
  %533 = vmatprep.mubr.bf16.mxu0 %v222
  %534 = vmatmul.mubr.bf16.gmra.mxu0 %v221
  %v535 = vpop.f32.mrf.mxu0
  %v536 = vadd.f32 %v104, %v535
  %v537 = vpop.f32.mrf.mxu0
  %v538 = vadd.f32 %v108, %v537
  %v539 = vpop.f32.mrf.mxu0
  %v540 = vadd.f32 %v104, %v539
  %v541 = vpop.f32.mrf.mxu0
  %v542 = vadd.f32 %v108, %v541
  %543 = vmatprep.mubr.bf16.mxu0 %v224
  %544 = vmatmul.mubr.bf16.gmra.mxu0 %v223
  %v545 = vpop.f32.mrf.mxu0
  %v546 = vadd.f32 %v104, %v545
  %v547 = vpop.f32.mrf.mxu0
  %v548 = vadd.f32 %v108, %v547
  %v549 = vpop.f32.mrf.mxu0
  %v550 = vadd.f32 %v104, %v549
  %v551 = vpop.f32.mrf.mxu0
  %v552 = vadd.f32 %v108, %v551
  %553 = vmatprep.mubr.bf16.mxu0 %v226
  %554 = vmatmul.mubr.bf16.gmra.mxu0 %v225
  %v555 = vpop.f32.mrf.mxu0
  %v556 = vadd.f32 %v104, %v555
  %v557 = vpop.f32.mrf.mxu0
  %v558 = vadd.f32 %v108, %v557
  %v559 = vpop.f32.mrf.mxu0
  %v560 = vadd.f32 %v104, %v559
  %v561 = vpop.f32.mrf.mxu0
  %v562 = vadd.f32 %v108, %v561
  %563 = vmatprep.mubr.bf16.mxu0 %v228
  %564 = vmatmul.mubr.bf16.gmra.mxu0 %v227
  %v565 = vpop.f32.mrf.mxu0
  %v566 = vadd.f32 %v104, %v565
  %v567 = vpop.f32.mrf.mxu0
  %v568 = vadd.f32 %v108, %v567
  %v569 = vpop.f32.mrf.mxu0
  %v570 = vadd.f32 %v104, %v569
  %v571 = vpop.f32.mrf.mxu0
  %v572 = vadd.f32 %v108, %v571
  %573 = vmatprep.mubr.bf16.mxu0 %v230
  %574 = vmatmul.mubr.bf16.gmra.mxu0 %v229
  %v575 = vpop.f32.mrf.mxu0
  %v576 = vadd.f32 %v104, %v575
  %v577 = vpop.f32.mrf.mxu0
  %v578 = vadd.f32 %v108, %v577
  %v579 = vpop.f32.mrf.mxu0
  %v580 = vadd.f32 %v104, %v579
  %v581 = vpop.f32.mrf.mxu0
  %v582 = vadd.f32 %v108, %v581
  %583 = vmatprep.mubr.bf16.mxu0 %v232
  %584 = vmatmul.mubr.bf16.gmra.mxu0 %v231
  %v585 = vpop.f32.mrf.mxu0
  %v586 = vadd.f32 %v104, %v585
  %v587 = vpop.f32.mrf.mxu0
  %v588 = vadd.f32 %v108, %v587
  %v589 = vpop.f32.mrf.mxu0
  %v590 = vadd.f32 %v104, %v589
  %v591 = vpop.f32.mrf.mxu0
  %v592 = vadd.f32 %v108, %v591
  %593 = vmatprep.mubr.bf16.mxu0 %v234
  %594 = vmatmul.mubr.bf16.gmra.mxu0 %v233
  %v595 = vpop.f32.mrf.mxu0
  %v596 = vadd.f32 %v104, %v595
  %v597 = vpop.f32.mrf.mxu0
  %v598 = vadd.f32 %v108, %v597
  %v599 = vpop.f32.mrf.mxu0
  %v600 = vadd.f32 %v104, %v599
  %v601 = vpop.f32.mrf.mxu0
  %v602 = vadd.f32 %v108, %v601
  %603 = vmatprep.mubr.bf16.mxu0 %v236
  %604 = vmatmul.mubr.bf16.gmra.mxu0 %v235
  %v605 = vpop.f32.mrf.mxu0
  %v606 = vadd.f32 %v104, %v605
  %v607 = vpop.f32.mrf.mxu0
  %v608 = vadd.f32 %v108, %v607
  %v609 = vpop.f32.mrf.mxu0
  %v610 = vadd.f32 %v104, %v609
  %v611 = vpop.f32.mrf.mxu0
  %v612 = vadd.f32 %v108, %v611
  %613 = vmatprep.mubr.bf16.mxu0 %v238
  %614 = vmatmul.mubr.bf16.gmra.mxu0 %v237
  %v615 = vpop.f32.mrf.mxu0
  %v616 = vadd.f32 %v104, %v615
  %v617 = vpop.f32.mrf.mxu0
  %v618 = vadd.f32 %v108, %v617
  %v619 = vpop.f32.mrf.mxu0
  %v620 = vadd.f32 %v104, %v619
  %v621 = vpop.f32.mrf.mxu0
  %v622 = vadd.f32 %v108, %v621
  %623 = vdwg.mxu0
  %v624 = vld [vmem:[%s1] sm:$0xff]
  %v625 = vld [vmem:[%s1 + $0x8] sm:$0xff]
  %v626 = vld [vmem:[%s1 + $0x10] sm:$0xff]
  %v627 = vld [vmem:[%s1 + $0x18] sm:$0xff]
  %v628 = vld [vmem:[%s1 + $0x20] sm:$0xff]
  %v629 = vld [vmem:[%s1 + $0x28] sm:$0xff]
  %v630 = vld [vmem:[%s1 + $0x30] sm:$0xff]
  %v631 = vld [vmem:[%s1 + $0x38] sm:$0xff]
  %v632 = vld [vmem:[%s1 + $0x40] sm:$0xff]
  %v633 = vld [vmem:[%s1 + $0x48] sm:$0xff]
  %v634 = vld [vmem:[%s1 + $0x50] sm:$0xff]
  %v635 = vld [vmem:[%s1 + $0x58] sm:$0xff]
  %v636 = vld [vmem:[%s1 + $0x60] sm:$0xff]
  %v637 = vld [vmem:[%s1 + $0x68] sm:$0xff]
  %v638 = vld [vmem:[%s1 + $0x70] sm:$0xff]
  %v639 = vld [vmem:[%s1 + $0x78] sm:$0xff]
  %v640 = vld [vmem:[%s1 + $0x80] sm:$0xff]
  %v641 = vld [vmem:[%s1 + $0x88] sm:$0xff]
  %v642 = vld [vmem:[%s1 + $0x90] sm:$0xff]
  %v643 = vld [vmem:[%s1 + $0x98] sm:$0xff]
  %v644 = vld [vmem:[%s1 + $0xa0] sm:$0xff]
  %v645 = vld [vmem:[%s1 + $0xa8] sm:$0xff]
  %v646 = vld [vmem:[%s1 + $0xb0] sm:$0xff]
  %v647 = vld [vmem:[%s1 + $0xb8] sm:$0xff]
  %v648 = vld [vmem:[%s1 + $0xc0] sm:$0xff]
  %v649 = vld [vmem:[%s1 + $0xc8] sm:$0xff]
  %v650 = vld [vmem:[%s1 + $0xd0] sm:$0xff]
  %v651 = vld [vmem:[%s1 + $0xd8] sm:$0xff]
  %v652 = vld [vmem:[%s1 + $0xe0] sm:$0xff]
  %v653 = vld [vmem:[%s1 + $0xe8] sm:$0xff]
  %v654 = vld [vmem:[%s1 + $0xf0] sm:$0xff]
  %v655 = vld [vmem:[%s1 + $0xf8] sm:$0xff]
  %v656 = vunpack.c.l.bf16 %v624
  %v657 = vunpack.c.h.bf16 %v624
  %v658 = vunpack.c.l.bf16 %v625
  %v659 = vunpack.c.h.bf16 %v625
  %v660 = vunpack.c.l.bf16 %v626
  %v661 = vunpack.c.h.bf16 %v626
  %v662 = vunpack.c.l.bf16 %v627
  %v663 = vunpack.c.h.bf16 %v627
  %v664 = vunpack.c.l.bf16 %v628
  %v665 = vunpack.c.h.bf16 %v628
  %v666 = vunpack.c.l.bf16 %v629
  %v667 = vunpack.c.h.bf16 %v629
  %v668 = vunpack.c.l.bf16 %v630
  %v669 = vunpack.c.h.bf16 %v630
  %v670 = vunpack.c.l.bf16 %v631
  %v671 = vunpack.c.h.bf16 %v631
  %v672 = vunpack.c.l.bf16 %v632
  %v673 = vunpack.c.h.bf16 %v632
  %v674 = vunpack.c.l.bf16 %v633
  %v675 = vunpack.c.h.bf16 %v633
  %v676 = vunpack.c.l.bf16 %v634
  %v677 = vunpack.c.h.bf16 %v634
  %v678 = vunpack.c.l.bf16 %v635
  %v679 = vunpack.c.h.bf16 %v635
  %v680 = vunpack.c.l.bf16 %v636
  %v681 = vunpack.c.h.bf16 %v636
  %v682 = vunpack.c.l.bf16 %v637
  %v683 = vunpack.c.h.bf16 %v637
  %v684 = vunpack.c.l.bf16 %v638
  %v685 = vunpack.c.h.bf16 %v638
  %v686 = vunpack.c.l.bf16 %v639
  %v687 = vunpack.c.h.bf16 %v639
  %v688 = vunpack.c.l.bf16 %v640
  %v689 = vunpack.c.h.bf16 %v640
  %v690 = vunpack.c.l.bf16 %v641
  %v691 = vunpack.c.h.bf16 %v641
  %v692 = vunpack.c.l.bf16 %v642
  %v693 = vunpack.c.h.bf16 %v642
  %v694 = vunpack.c.l.bf16 %v643
  %v695 = vunpack.c.h.bf16 %v643
  %v696 = vunpack.c.l.bf16 %v644
  %v697 = vunpack.c.h.bf16 %v644
  %v698 = vunpack.c.l.bf16 %v645
  %v699 = vunpack.c.h.bf16 %v645
  %v700 = vunpack.c.l.bf16 %v646
  %v701 = vunpack.c.h.bf16 %v646
  %v702 = vunpack.c.l.bf16 %v647
  %v703 = vunpack.c.h.bf16 %v647
  %v704 = vunpack.c.l.bf16 %v648
  %v705 = vunpack.c.h.bf16 %v648
  %v706 = vunpack.c.l.bf16 %v649
  %v707 = vunpack.c.h.bf16 %v649
  %v708 = vunpack.c.l.bf16 %v650
  %v709 = vunpack.c.h.bf16 %v650
  %v710 = vunpack.c.l.bf16 %v651
  %v711 = vunpack.c.h.bf16 %v651
  %v712 = vunpack.c.l.bf16 %v652
  %v713 = vunpack.c.h.bf16 %v652
  %v714 = vunpack.c.l.bf16 %v653
  %v715 = vunpack.c.h.bf16 %v653
  %v716 = vunpack.c.l.bf16 %v654
  %v717 = vunpack.c.h.bf16 %v654
  %v718 = vunpack.c.l.bf16 %v655
  %v719 = vunpack.c.h.bf16 %v655
  %v720 = vadd.f32 %v656, %v466
  %v721 = vadd.f32 %v657, %v468
  %v722 = vadd.f32 %v658, %v470
  %v723 = vadd.f32 %v659, %v472
  %v724 = vadd.f32 %v660, %v476
  %v725 = vadd.f32 %v661, %v478
  %v726 = vadd.f32 %v662, %v480
  %v727 = vadd.f32 %v663, %v482
  %v728 = vadd.f32 %v664, %v486
  %v729 = vadd.f32 %v665, %v488
  %v730 = vadd.f32 %v666, %v490
  %v731 = vadd.f32 %v667, %v492
  %v732 = vadd.f32 %v668, %v496
  %v733 = vadd.f32 %v669, %v498
  %v734 = vadd.f32 %v670, %v500
  %v735 = vadd.f32 %v671, %v502
  %v736 = vadd.f32 %v672, %v506
  %v737 = vadd.f32 %v673, %v508
  %v738 = vadd.f32 %v674, %v510
  %v739 = vadd.f32 %v675, %v512
  %v740 = vadd.f32 %v676, %v516
  %v741 = vadd.f32 %v677, %v518
  %v742 = vadd.f32 %v678, %v520
  %v743 = vadd.f32 %v679, %v522
  %v744 = vadd.f32 %v680, %v526
  %v745 = vadd.f32 %v681, %v528
  %v746 = vadd.f32 %v682, %v530
  %v747 = vadd.f32 %v683, %v532
  %v748 = vadd.f32 %v684, %v536
  %v749 = vadd.f32 %v685, %v538
  %v750 = vadd.f32 %v686, %v540
  %v751 = vadd.f32 %v687, %v542
  %v752 = vadd.f32 %v688, %v546
  %v753 = vadd.f32 %v689, %v548
  %v754 = vadd.f32 %v690, %v550
  %v755 = vadd.f32 %v691, %v552
  %v756 = vadd.f32 %v692, %v556
  %v757 = vadd.f32 %v693, %v558
  %v758 = vadd.f32 %v694, %v560
  %v759 = vadd.f32 %v695, %v562
  %v760 = vadd.f32 %v696, %v566
  %v761 = vadd.f32 %v697, %v568
  %v762 = vadd.f32 %v698, %v570
  %v763 = vadd.f32 %v699, %v572
  %v764 = vadd.f32 %v700, %v576
  %v765 = vadd.f32 %v701, %v578
  %v766 = vadd.f32 %v702, %v580
  %v767 = vadd.f32 %v703, %v582
  %v768 = vadd.f32 %v704, %v586
  %v769 = vadd.f32 %v705, %v588
  %v770 = vadd.f32 %v706, %v590
  %v771 = vadd.f32 %v707, %v592
  %v772 = vadd.f32 %v708, %v596
  %v773 = vadd.f32 %v709, %v598
  %v774 = vadd.f32 %v710, %v600
  %v775 = vadd.f32 %v711, %v602
  %v776 = vadd.f32 %v712, %v606
  %v777 = vadd.f32 %v713, %v608
  %v778 = vadd.f32 %v714, %v610
  %v779 = vadd.f32 %v715, %v612
  %v780 = vadd.f32 %v716, %v616
  %v781 = vadd.f32 %v717, %v618
  %v782 = vadd.f32 %v718, %v620
  %v783 = vadd.f32 %v719, %v622
  %v784 = vld [vmem:[%s4] sm:$0x3]
  %v785 = vld [vmem:[%s5] sm:$0x3]
  %v786 = vadd.f32 %v720, %v721
  %787 = vadd.xlane.f32.xlu0 %v786
  %v788 = vpop.xlane.xlu0 %787
  %v789 = vadd.f32 %v722, %v723
  %790 = vadd.xlane.f32.xlu0 %v789
  %v791 = vpop.xlane.xlu0 %790
  %v792 = vadd.f32 %v724, %v725
  %793 = vadd.xlane.f32.xlu0 %v792
  %v794 = vpop.xlane.xlu0 %793
  %v795 = vadd.f32 %v726, %v727
  %796 = vadd.xlane.f32.xlu0 %v795
  %v797 = vpop.xlane.xlu0 %796
  %v798 = vadd.f32 %v728, %v729
  %799 = vadd.xlane.f32.xlu0 %v798
  %v800 = vpop.xlane.xlu0 %799
  %v801 = vadd.f32 %v730, %v731
  %802 = vadd.xlane.f32.xlu0 %v801
  %v803 = vpop.xlane.xlu0 %802
  %v804 = vadd.f32 %v732, %v733
  %805 = vadd.xlane.f32.xlu0 %v804
  %v806 = vpop.xlane.xlu0 %805
  %v807 = vadd.f32 %v734, %v735
  %808 = vadd.xlane.f32.xlu0 %v807
  %v809 = vpop.xlane.xlu0 %808
  %v810 = vadd.f32 %v736, %v737
  %811 = vadd.xlane.f32.xlu0 %v810
  %v812 = vpop.xlane.xlu0 %811
  %v813 = vadd.f32 %v738, %v739
  %814 = vadd.xlane.f32.xlu0 %v813
  %v815 = vpop.xlane.xlu0 %814
  %v816 = vadd.f32 %v740, %v741
  %817 = vadd.xlane.f32.xlu0 %v816
  %v818 = vpop.xlane.xlu0 %817
  %v819 = vadd.f32 %v742, %v743
  %820 = vadd.xlane.f32.xlu0 %v819
  %v821 = vpop.xlane.xlu0 %820
  %v822 = vadd.f32 %v744, %v745
  %823 = vadd.xlane.f32.xlu0 %v822
  %v824 = vpop.xlane.xlu0 %823
  %v825 = vadd.f32 %v746, %v747
  %826 = vadd.xlane.f32.xlu0 %v825
  %v827 = vpop.xlane.xlu0 %826
  %v828 = vadd.f32 %v748, %v749
  %829 = vadd.xlane.f32.xlu0 %v828
  %v830 = vpop.xlane.xlu0 %829
  %v831 = vadd.f32 %v750, %v751
  %832 = vadd.xlane.f32.xlu0 %v831
  %v833 = vpop.xlane.xlu0 %832
  %v834 = vadd.f32 %v752, %v753
  %835 = vadd.xlane.f32.xlu0 %v834
  %v836 = vpop.xlane.xlu0 %835
  %v837 = vadd.f32 %v754, %v755
  %838 = vadd.xlane.f32.xlu0 %v837
  %v839 = vpop.xlane.xlu0 %838
  %v840 = vadd.f32 %v756, %v757
  %841 = vadd.xlane.f32.xlu0 %v840
  %v842 = vpop.xlane.xlu0 %841
  %v843 = vadd.f32 %v758, %v759
  %844 = vadd.xlane.f32.xlu0 %v843
  %v845 = vpop.xlane.xlu0 %844
  %v846 = vadd.f32 %v760, %v761
  %847 = vadd.xlane.f32.xlu0 %v846
  %v848 = vpop.xlane.xlu0 %847
  %v849 = vadd.f32 %v762, %v763
  %850 = vadd.xlane.f32.xlu0 %v849
  %v851 = vpop.xlane.xlu0 %850
  %v852 = vadd.f32 %v764, %v765
  %853 = vadd.xlane.f32.xlu0 %v852
  %v854 = vpop.xlane.xlu0 %853
  %v855 = vadd.f32 %v766, %v767
  %856 = vadd.xlane.f32.xlu0 %v855
  %v857 = vpop.xlane.xlu0 %856
  %v858 = vadd.f32 %v768, %v769
  %859 = vadd.xlane.f32.xlu0 %v858
  %v860 = vpop.xlane.xlu0 %859
  %v861 = vadd.f32 %v770, %v771
  %862 = vadd.xlane.f32.xlu0 %v861
  %v863 = vpop.xlane.xlu0 %862
  %v864 = vadd.f32 %v772, %v773
  %865 = vadd.xlane.f32.xlu0 %v864
  %v866 = vpop.xlane.xlu0 %865
  %v867 = vadd.f32 %v774, %v775
  %868 = vadd.xlane.f32.xlu0 %v867
  %v869 = vpop.xlane.xlu0 %868
  %v870 = vadd.f32 %v776, %v777
  %871 = vadd.xlane.f32.xlu0 %v870
  %v872 = vpop.xlane.xlu0 %871
  %v873 = vadd.f32 %v778, %v779
  %874 = vadd.xlane.f32.xlu0 %v873
  %v875 = vpop.xlane.xlu0 %874
  %v876 = vadd.f32 %v780, %v781
  %877 = vadd.xlane.f32.xlu0 %v876
  %v878 = vpop.xlane.xlu0 %877
  %v879 = vadd.f32 %v782, %v783
  %880 = vadd.xlane.f32.xlu0 %v879
  %v881 = vpop.xlane.xlu0 %880
  %v882 = vrcp.pop 256.0
  %v883 = vmul.f32 %v788, %v882
  %v884 = vmul.f32 %v791, %v882
  %v885 = vmul.f32 %v794, %v882
  %v886 = vmul.f32 %v797, %v882
  %v887 = vmul.f32 %v800, %v882
  %v888 = vmul.f32 %v803, %v882
  %v889 = vmul.f32 %v806, %v882
  %v890 = vmul.f32 %v809, %v882
  %v891 = vmul.f32 %v812, %v882
  %v892 = vmul.f32 %v815, %v882
  %v893 = vmul.f32 %v818, %v882
  %v894 = vmul.f32 %v821, %v882
  %v895 = vmul.f32 %v824, %v882
  %v896 = vmul.f32 %v827, %v882
  %v897 = vmul.f32 %v830, %v882
  %v898 = vmul.f32 %v833, %v882
  %v899 = vmul.f32 %v836, %v882
  %v900 = vmul.f32 %v839, %v882
  %v901 = vmul.f32 %v842, %v882
  %v902 = vmul.f32 %v845, %v882
  %v903 = vmul.f32 %v848, %v882
  %v904 = vmul.f32 %v851, %v882
  %v905 = vmul.f32 %v854, %v882
  %v906 = vmul.f32 %v857, %v882
  %v907 = vmul.f32 %v860, %v882
  %v908 = vmul.f32 %v863, %v882
  %v909 = vmul.f32 %v866, %v882
  %v910 = vmul.f32 %v869, %v882
  %v911 = vmul.f32 %v872, %v882
  %v912 = vmul.f32 %v875, %v882
  %v913 = vmul.f32 %v878, %v882
  %v914 = vmul.f32 %v881, %v882
  %v915 = vsub.f32 %v720, %v883
  %v916 = vsub.f32 %v721, %v883
  %v917 = vsub.f32 %v722, %v884
  %v918 = vsub.f32 %v723, %v884
  %v919 = vsub.f32 %v724, %v885
  %v920 = vsub.f32 %v725, %v885
  %v921 = vsub.f32 %v726, %v886
  %v922 = vsub.f32 %v727, %v886
  %v923 = vsub.f32 %v728, %v887
  %v924 = vsub.f32 %v729, %v887
  %v925 = vsub.f32 %v730, %v888
  %v926 = vsub.f32 %v731, %v888
  %v927 = vsub.f32 %v732, %v889
  %v928 = vsub.f32 %v733, %v889
  %v929 = vsub.f32 %v734, %v890
  %v930 = vsub.f32 %v735, %v890
  %v931 = vsub.f32 %v736, %v891
  %v932 = vsub.f32 %v737, %v891
  %v933 = vsub.f32 %v738, %v892
  %v934 = vsub.f32 %v739, %v892
  %v935 = vsub.f32 %v740, %v893
  %v936 = vsub.f32 %v741, %v893
  %v937 = vsub.f32 %v742, %v894
  %v938 = vsub.f32 %v743, %v894
  %v939 = vsub.f32 %v744, %v895
  %v940 = vsub.f32 %v745, %v895
  %v941 = vsub.f32 %v746, %v896
  %v942 = vsub.f32 %v747, %v896
  %v943 = vsub.f32 %v748, %v897
  %v944 = vsub.f32 %v749, %v897
  %v945 = vsub.f32 %v750, %v898
  %v946 = vsub.f32 %v751, %v898
  %v947 = vsub.f32 %v752, %v899
  %v948 = vsub.f32 %v753, %v899
  %v949 = vsub.f32 %v754, %v900
  %v950 = vsub.f32 %v755, %v900
  %v951 = vsub.f32 %v756, %v901
  %v952 = vsub.f32 %v757, %v901
  %v953 = vsub.f32 %v758, %v902
  %v954 = vsub.f32 %v759, %v902
  %v955 = vsub.f32 %v760, %v903
  %v956 = vsub.f32 %v761, %v903
  %v957 = vsub.f32 %v762, %v904
  %v958 = vsub.f32 %v763, %v904
  %v959 = vsub.f32 %v764, %v905
  %v960 = vsub.f32 %v765, %v905
  %v961 = vsub.f32 %v766, %v906
  %v962 = vsub.f32 %v767, %v906
  %v963 = vsub.f32 %v768, %v907
  %v964 = vsub.f32 %v769, %v907
  %v965 = vsub.f32 %v770, %v908
  %v966 = vsub.f32 %v771, %v908
  %v967 = vsub.f32 %v772, %v909
  %v968 = vsub.f32 %v773, %v909
  %v969 = vsub.f32 %v774, %v910
  %v970 = vsub.f32 %v775, %v910
  %v971 = vsub.f32 %v776, %v911
  %v972 = vsub.f32 %v777, %v911
  %v973 = vsub.f32 %v778, %v912
  %v974 = vsub.f32 %v779, %v912
  %v975 = vsub.f32 %v780, %v913
  %v976 = vsub.f32 %v781, %v913
  %v977 = vsub.f32 %v782, %v914
  %v978 = vsub.f32 %v783, %v914
  %v979 = vmul.f32 %v915, %v915
  %v980 = vmul.f32 %v916, %v916
  %v981 = vmul.f32 %v917, %v917
  %v982 = vmul.f32 %v918, %v918
  %v983 = vmul.f32 %v919, %v919
  %v984 = vmul.f32 %v920, %v920
  %v985 = vmul.f32 %v921, %v921
  %v986 = vmul.f32 %v922, %v922
  %v987 = vmul.f32 %v923, %v923
  %v988 = vmul.f32 %v924, %v924
  %v989 = vmul.f32 %v925, %v925
  %v990 = vmul.f32 %v926, %v926
  %v991 = vmul.f32 %v927, %v927
  %v992 = vmul.f32 %v928, %v928
  %v993 = vmul.f32 %v929, %v929
  %v994 = vmul.f32 %v930, %v930
  %v995 = vmul.f32 %v931, %v931
  %v996 = vmul.f32 %v932, %v932
  %v997 = vmul.f32 %v933, %v933
  %v998 = vmul.f32 %v934, %v934
  %v999 = vmul.f32 %v935, %v935
  %v1000 = vmul.f32 %v936, %v936
  %v1001 = vmul.f32 %v937, %v937
  %v1002 = vmul.f32 %v938, %v938
  %v1003 = vmul.f32 %v939, %v939
  %v1004 = vmul.f32 %v940, %v940
  %v1005 = vmul.f32 %v941, %v941
  %v1006 = vmul.f32 %v942, %v942
  %v1007 = vmul.f32 %v943, %v943
  %v1008 = vmul.f32 %v944, %v944
  %v1009 = vmul.f32 %v945, %v945
  %v1010 = vmul.f32 %v946, %v946
  %v1011 = vmul.f32 %v947, %v947
  %v1012 = vmul.f32 %v948, %v948
  %v1013 = vmul.f32 %v949, %v949
  %v1014 = vmul.f32 %v950, %v950
  %v1015 = vmul.f32 %v951, %v951
  %v1016 = vmul.f32 %v952, %v952
  %v1017 = vmul.f32 %v953, %v953
  %v1018 = vmul.f32 %v954, %v954
  %v1019 = vmul.f32 %v955, %v955
  %v1020 = vmul.f32 %v956, %v956
  %v1021 = vmul.f32 %v957, %v957
  %v1022 = vmul.f32 %v958, %v958
  %v1023 = vmul.f32 %v959, %v959
  %v1024 = vmul.f32 %v960, %v960
  %v1025 = vmul.f32 %v961, %v961
  %v1026 = vmul.f32 %v962, %v962
  %v1027 = vmul.f32 %v963, %v963
  %v1028 = vmul.f32 %v964, %v964
  %v1029 = vmul.f32 %v965, %v965
  %v1030 = vmul.f32 %v966, %v966
  %v1031 = vmul.f32 %v967, %v967
  %v1032 = vmul.f32 %v968, %v968
  %v1033 = vmul.f32 %v969, %v969
  %v1034 = vmul.f32 %v970, %v970
  %v1035 = vmul.f32 %v971, %v971
  %v1036 = vmul.f32 %v972, %v972
  %v1037 = vmul.f32 %v973, %v973
  %v1038 = vmul.f32 %v974, %v974
  %v1039 = vmul.f32 %v975, %v975
  %v1040 = vmul.f32 %v976, %v976
  %v1041 = vmul.f32 %v977, %v977
  %v1042 = vmul.f32 %v978, %v978
  %v1043 = vadd.f32 %v979, %v980
  %1044 = vadd.xlane.f32.xlu0 %v1043
  %v1045 = vpop.xlane.xlu0 %1044
  %v1046 = vadd.f32 %v981, %v982
  %1047 = vadd.xlane.f32.xlu0 %v1046
  %v1048 = vpop.xlane.xlu0 %1047
  %v1049 = vadd.f32 %v983, %v984
  %1050 = vadd.xlane.f32.xlu0 %v1049
  %v1051 = vpop.xlane.xlu0 %1050
  %v1052 = vadd.f32 %v985, %v986
  %1053 = vadd.xlane.f32.xlu0 %v1052
  %v1054 = vpop.xlane.xlu0 %1053
  %v1055 = vadd.f32 %v987, %v988
  %1056 = vadd.xlane.f32.xlu0 %v1055
  %v1057 = vpop.xlane.xlu0 %1056
  %v1058 = vadd.f32 %v989, %v990
  %1059 = vadd.xlane.f32.xlu0 %v1058
  %v1060 = vpop.xlane.xlu0 %1059
  %v1061 = vadd.f32 %v991, %v992
  %1062 = vadd.xlane.f32.xlu0 %v1061
  %v1063 = vpop.xlane.xlu0 %1062
  %v1064 = vadd.f32 %v993, %v994
  %1065 = vadd.xlane.f32.xlu0 %v1064
  %v1066 = vpop.xlane.xlu0 %1065
  %v1067 = vadd.f32 %v995, %v996
  %1068 = vadd.xlane.f32.xlu0 %v1067
  %v1069 = vpop.xlane.xlu0 %1068
  %v1070 = vadd.f32 %v997, %v998
  %1071 = vadd.xlane.f32.xlu0 %v1070
  %v1072 = vpop.xlane.xlu0 %1071
  %v1073 = vadd.f32 %v999, %v1000
  %1074 = vadd.xlane.f32.xlu0 %v1073
  %v1075 = vpop.xlane.xlu0 %1074
  %v1076 = vadd.f32 %v1001, %v1002
  %1077 = vadd.xlane.f32.xlu0 %v1076
  %v1078 = vpop.xlane.xlu0 %1077
  %v1079 = vadd.f32 %v1003, %v1004
  %1080 = vadd.xlane.f32.xlu0 %v1079
  %v1081 = vpop.xlane.xlu0 %1080
  %v1082 = vadd.f32 %v1005, %v1006
  %1083 = vadd.xlane.f32.xlu0 %v1082
  %v1084 = vpop.xlane.xlu0 %1083
  %v1085 = vadd.f32 %v1007, %v1008
  %1086 = vadd.xlane.f32.xlu0 %v1085
  %v1087 = vpop.xlane.xlu0 %1086
  %v1088 = vadd.f32 %v1009, %v1010
  %1089 = vadd.xlane.f32.xlu0 %v1088
  %v1090 = vpop.xlane.xlu0 %1089
  %v1091 = vadd.f32 %v1011, %v1012
  %1092 = vadd.xlane.f32.xlu0 %v1091
  %v1093 = vpop.xlane.xlu0 %1092
  %v1094 = vadd.f32 %v1013, %v1014
  %1095 = vadd.xlane.f32.xlu0 %v1094
  %v1096 = vpop.xlane.xlu0 %1095
  %v1097 = vadd.f32 %v1015, %v1016
  %1098 = vadd.xlane.f32.xlu0 %v1097
  %v1099 = vpop.xlane.xlu0 %1098
  %v1100 = vadd.f32 %v1017, %v1018
  %1101 = vadd.xlane.f32.xlu0 %v1100
  %v1102 = vpop.xlane.xlu0 %1101
  %v1103 = vadd.f32 %v1019, %v1020
  %1104 = vadd.xlane.f32.xlu0 %v1103
  %v1105 = vpop.xlane.xlu0 %1104
  %v1106 = vadd.f32 %v1021, %v1022
  %1107 = vadd.xlane.f32.xlu0 %v1106
  %v1108 = vpop.xlane.xlu0 %1107
  %v1109 = vadd.f32 %v1023, %v1024
  %1110 = vadd.xlane.f32.xlu0 %v1109
  %v1111 = vpop.xlane.xlu0 %1110
  %v1112 = vadd.f32 %v1025, %v1026
  %1113 = vadd.xlane.f32.xlu0 %v1112
  %v1114 = vpop.xlane.xlu0 %1113
  %v1115 = vadd.f32 %v1027, %v1028
  %1116 = vadd.xlane.f32.xlu0 %v1115
  %v1117 = vpop.xlane.xlu0 %1116
  %v1118 = vadd.f32 %v1029, %v1030
  %1119 = vadd.xlane.f32.xlu0 %v1118
  %v1120 = vpop.xlane.xlu0 %1119
  %v1121 = vadd.f32 %v1031, %v1032
  %1122 = vadd.xlane.f32.xlu0 %v1121
  %v1123 = vpop.xlane.xlu0 %1122
  %v1124 = vadd.f32 %v1033, %v1034
  %1125 = vadd.xlane.f32.xlu0 %v1124
  %v1126 = vpop.xlane.xlu0 %1125
  %v1127 = vadd.f32 %v1035, %v1036
  %1128 = vadd.xlane.f32.xlu0 %v1127
  %v1129 = vpop.xlane.xlu0 %1128
  %v1130 = vadd.f32 %v1037, %v1038
  %1131 = vadd.xlane.f32.xlu0 %v1130
  %v1132 = vpop.xlane.xlu0 %1131
  %v1133 = vadd.f32 %v1039, %v1040
  %1134 = vadd.xlane.f32.xlu0 %v1133
  %v1135 = vpop.xlane.xlu0 %1134
  %v1136 = vadd.f32 %v1041, %v1042
  %1137 = vadd.xlane.f32.xlu0 %v1136
  %v1138 = vpop.xlane.xlu0 %1137
  %v1139 = vmul.f32 %v1045, %v882
  %v1140 = vmul.f32 %v1048, %v882
  %v1141 = vmul.f32 %v1051, %v882
  %v1142 = vmul.f32 %v1054, %v882
  %v1143 = vmul.f32 %v1057, %v882
  %v1144 = vmul.f32 %v1060, %v882
  %v1145 = vmul.f32 %v1063, %v882
  %v1146 = vmul.f32 %v1066, %v882
  %v1147 = vmul.f32 %v1069, %v882
  %v1148 = vmul.f32 %v1072, %v882
  %v1149 = vmul.f32 %v1075, %v882
  %v1150 = vmul.f32 %v1078, %v882
  %v1151 = vmul.f32 %v1081, %v882
  %v1152 = vmul.f32 %v1084, %v882
  %v1153 = vmul.f32 %v1087, %v882
  %v1154 = vmul.f32 %v1090, %v882
  %v1155 = vmul.f32 %v1093, %v882
  %v1156 = vmul.f32 %v1096, %v882
  %v1157 = vmul.f32 %v1099, %v882
  %v1158 = vmul.f32 %v1102, %v882
  %v1159 = vmul.f32 %v1105, %v882
  %v1160 = vmul.f32 %v1108, %v882
  %v1161 = vmul.f32 %v1111, %v882
  %v1162 = vmul.f32 %v1114, %v882
  %v1163 = vmul.f32 %v1117, %v882
  %v1164 = vmul.f32 %v1120, %v882
  %v1165 = vmul.f32 %v1123, %v882
  %v1166 = vmul.f32 %v1126, %v882
  %v1167 = vmul.f32 %v1129, %v882
  %v1168 = vmul.f32 %v1132, %v882
  %v1169 = vmul.f32 %v1135, %v882
  %v1170 = vmul.f32 %v1138, %v882
  %v1171 = vadd.f32 %v1139, 1e-05
  %v1172 = vadd.f32 %v1140, 1e-05
  %v1173 = vadd.f32 %v1141, 1e-05
  %v1174 = vadd.f32 %v1142, 1e-05
  %v1175 = vadd.f32 %v1143, 1e-05
  %v1176 = vadd.f32 %v1144, 1e-05
  %v1177 = vadd.f32 %v1145, 1e-05
  %v1178 = vadd.f32 %v1146, 1e-05
  %v1179 = vadd.f32 %v1147, 1e-05
  %v1180 = vadd.f32 %v1148, 1e-05
  %v1181 = vadd.f32 %v1149, 1e-05
  %v1182 = vadd.f32 %v1150, 1e-05
  %v1183 = vadd.f32 %v1151, 1e-05
  %v1184 = vadd.f32 %v1152, 1e-05
  %v1185 = vadd.f32 %v1153, 1e-05
  %v1186 = vadd.f32 %v1154, 1e-05
  %v1187 = vadd.f32 %v1155, 1e-05
  %v1188 = vadd.f32 %v1156, 1e-05
  %v1189 = vadd.f32 %v1157, 1e-05
  %v1190 = vadd.f32 %v1158, 1e-05
  %v1191 = vadd.f32 %v1159, 1e-05
  %v1192 = vadd.f32 %v1160, 1e-05
  %v1193 = vadd.f32 %v1161, 1e-05
  %v1194 = vadd.f32 %v1162, 1e-05
  %v1195 = vadd.f32 %v1163, 1e-05
  %v1196 = vadd.f32 %v1164, 1e-05
  %v1197 = vadd.f32 %v1165, 1e-05
  %v1198 = vadd.f32 %v1166, 1e-05
  %v1199 = vadd.f32 %v1167, 1e-05
  %v1200 = vadd.f32 %v1168, 1e-05
  %v1201 = vadd.f32 %v1169, 1e-05
  %v1202 = vadd.f32 %v1170, 1e-05
  %v1203 = vrsqrt.pop %v1171
  %v1204 = vrsqrt.pop %v1172
  %v1205 = vrsqrt.pop %v1173
  %v1206 = vrsqrt.pop %v1174
  %v1207 = vrsqrt.pop %v1175
  %v1208 = vrsqrt.pop %v1176
  %v1209 = vrsqrt.pop %v1177
  %v1210 = vrsqrt.pop %v1178
  %v1211 = vrsqrt.pop %v1179
  %v1212 = vrsqrt.pop %v1180
  %v1213 = vrsqrt.pop %v1181
  %v1214 = vrsqrt.pop %v1182
  %v1215 = vrsqrt.pop %v1183
  %v1216 = vrsqrt.pop %v1184
  %v1217 = vrsqrt.pop %v1185
  %v1218 = vrsqrt.pop %v1186
  %v1219 = vrsqrt.pop %v1187
  %v1220 = vrsqrt.pop %v1188
  %v1221 = vrsqrt.pop %v1189
  %v1222 = vrsqrt.pop %v1190
  %v1223 = vrsqrt.pop %v1191
  %v1224 = vrsqrt.pop %v1192
  %v1225 = vrsqrt.pop %v1193
  %v1226 = vrsqrt.pop %v1194
  %v1227 = vrsqrt.pop %v1195
  %v1228 = vrsqrt.pop %v1196
  %v1229 = vrsqrt.pop %v1197
  %v1230 = vrsqrt.pop %v1198
  %v1231 = vrsqrt.pop %v1199
  %v1232 = vrsqrt.pop %v1200
  %v1233 = vrsqrt.pop %v1201
  %v1234 = vrsqrt.pop %v1202
  %v1235 = vmul.f32 %v915, %v1203
  %v1236 = vmul.f32 %v916, %v1203
  %v1237 = vmul.f32 %v917, %v1204
  %v1238 = vmul.f32 %v918, %v1204
  %v1239 = vmul.f32 %v919, %v1205
  %v1240 = vmul.f32 %v920, %v1205
  %v1241 = vmul.f32 %v921, %v1206
  %v1242 = vmul.f32 %v922, %v1206
  %v1243 = vmul.f32 %v923, %v1207
  %v1244 = vmul.f32 %v924, %v1207
  %v1245 = vmul.f32 %v925, %v1208
  %v1246 = vmul.f32 %v926, %v1208
  %v1247 = vmul.f32 %v927, %v1209
  %v1248 = vmul.f32 %v928, %v1209
  %v1249 = vmul.f32 %v929, %v1210
  %v1250 = vmul.f32 %v930, %v1210
  %v1251 = vmul.f32 %v931, %v1211
  %v1252 = vmul.f32 %v932, %v1211
  %v1253 = vmul.f32 %v933, %v1212
  %v1254 = vmul.f32 %v934, %v1212
  %v1255 = vmul.f32 %v935, %v1213
  %v1256 = vmul.f32 %v936, %v1213
  %v1257 = vmul.f32 %v937, %v1214
  %v1258 = vmul.f32 %v938, %v1214
  %v1259 = vmul.f32 %v939, %v1215
  %v1260 = vmul.f32 %v940, %v1215
  %v1261 = vmul.f32 %v941, %v1216
  %v1262 = vmul.f32 %v942, %v1216
  %v1263 = vmul.f32 %v943, %v1217
  %v1264 = vmul.f32 %v944, %v1217
  %v1265 = vmul.f32 %v945, %v1218
  %v1266 = vmul.f32 %v946, %v1218
  %v1267 = vmul.f32 %v947, %v1219
  %v1268 = vmul.f32 %v948, %v1219
  %v1269 = vmul.f32 %v949, %v1220
  %v1270 = vmul.f32 %v950, %v1220
  %v1271 = vmul.f32 %v951, %v1221
  %v1272 = vmul.f32 %v952, %v1221
  %v1273 = vmul.f32 %v953, %v1222
  %v1274 = vmul.f32 %v954, %v1222
  %v1275 = vmul.f32 %v955, %v1223
  %v1276 = vmul.f32 %v956, %v1223
  %v1277 = vmul.f32 %v957, %v1224
  %v1278 = vmul.f32 %v958, %v1224
  %v1279 = vmul.f32 %v959, %v1225
  %v1280 = vmul.f32 %v960, %v1225
  %v1281 = vmul.f32 %v961, %v1226
  %v1282 = vmul.f32 %v962, %v1226
  %v1283 = vmul.f32 %v963, %v1227
  %v1284 = vmul.f32 %v964, %v1227
  %v1285 = vmul.f32 %v965, %v1228
  %v1286 = vmul.f32 %v966, %v1228
  %v1287 = vmul.f32 %v967, %v1229
  %v1288 = vmul.f32 %v968, %v1229
  %v1289 = vmul.f32 %v969, %v1230
  %v1290 = vmul.f32 %v970, %v1230
  %v1291 = vmul.f32 %v971, %v1231
  %v1292 = vmul.f32 %v972, %v1231
  %v1293 = vmul.f32 %v973, %v1232
  %v1294 = vmul.f32 %v974, %v1232
  %v1295 = vmul.f32 %v975, %v1233
  %v1296 = vmul.f32 %v976, %v1233
  %v1297 = vmul.f32 %v977, %v1234
  %v1298 = vmul.f32 %v978, %v1234
  %v1300 = vlaneseq
  %v1301 = vshrl.u32 %v1300, 7
  %v1302 = vsub.s32 0, %v1301
  %v1303 = vrot.slane %v784, %v1302
  %v1304 = vlaneseq
  %v1305 = vshrl.u32 %v1304, 7
  %v1306 = vsub.s32 1, %v1305
  %v1307 = vrot.slane %v784, %v1306
  %v1310 = vmul.f32 %v1235, %v1303
  %v1311 = vmul.f32 %v1236, %v1307
  %v1312 = vmul.f32 %v1237, %v1303
  %v1313 = vmul.f32 %v1238, %v1307
  %v1314 = vmul.f32 %v1239, %v1303
  %v1315 = vmul.f32 %v1240, %v1307
  %v1316 = vmul.f32 %v1241, %v1303
  %v1317 = vmul.f32 %v1242, %v1307
  %v1318 = vmul.f32 %v1243, %v1303
  %v1319 = vmul.f32 %v1244, %v1307
  %v1320 = vmul.f32 %v1245, %v1303
  %v1321 = vmul.f32 %v1246, %v1307
  %v1322 = vmul.f32 %v1247, %v1303
  %v1323 = vmul.f32 %v1248, %v1307
  %v1324 = vmul.f32 %v1249, %v1303
  %v1325 = vmul.f32 %v1250, %v1307
  %v1326 = vmul.f32 %v1251, %v1303
  %v1327 = vmul.f32 %v1252, %v1307
  %v1328 = vmul.f32 %v1253, %v1303
  %v1329 = vmul.f32 %v1254, %v1307
  %v1330 = vmul.f32 %v1255, %v1303
  %v1331 = vmul.f32 %v1256, %v1307
  %v1332 = vmul.f32 %v1257, %v1303
  %v1333 = vmul.f32 %v1258, %v1307
  %v1334 = vmul.f32 %v1259, %v1303
  %v1335 = vmul.f32 %v1260, %v1307
  %v1336 = vmul.f32 %v1261, %v1303
  %v1337 = vmul.f32 %v1262, %v1307
  %v1338 = vmul.f32 %v1263, %v1303
  %v1339 = vmul.f32 %v1264, %v1307
  %v1340 = vmul.f32 %v1265, %v1303
  %v1341 = vmul.f32 %v1266, %v1307
  %v1342 = vmul.f32 %v1267, %v1303
  %v1343 = vmul.f32 %v1268, %v1307
  %v1344 = vmul.f32 %v1269, %v1303
  %v1345 = vmul.f32 %v1270, %v1307
  %v1346 = vmul.f32 %v1271, %v1303
  %v1347 = vmul.f32 %v1272, %v1307
  %v1348 = vmul.f32 %v1273, %v1303
  %v1349 = vmul.f32 %v1274, %v1307
  %v1350 = vmul.f32 %v1275, %v1303
  %v1351 = vmul.f32 %v1276, %v1307
  %v1352 = vmul.f32 %v1277, %v1303
  %v1353 = vmul.f32 %v1278, %v1307
  %v1354 = vmul.f32 %v1279, %v1303
  %v1355 = vmul.f32 %v1280, %v1307
  %v1356 = vmul.f32 %v1281, %v1303
  %v1357 = vmul.f32 %v1282, %v1307
  %v1358 = vmul.f32 %v1283, %v1303
  %v1359 = vmul.f32 %v1284, %v1307
  %v1360 = vmul.f32 %v1285, %v1303
  %v1361 = vmul.f32 %v1286, %v1307
  %v1362 = vmul.f32 %v1287, %v1303
  %v1363 = vmul.f32 %v1288, %v1307
  %v1364 = vmul.f32 %v1289, %v1303
  %v1365 = vmul.f32 %v1290, %v1307
  %v1366 = vmul.f32 %v1291, %v1303
  %v1367 = vmul.f32 %v1292, %v1307
  %v1368 = vmul.f32 %v1293, %v1303
  %v1369 = vmul.f32 %v1294, %v1307
  %v1370 = vmul.f32 %v1295, %v1303
  %v1371 = vmul.f32 %v1296, %v1307
  %v1372 = vmul.f32 %v1297, %v1303
  %v1373 = vmul.f32 %v1298, %v1307
  %v1375 = vlaneseq
  %v1376 = vshrl.u32 %v1375, 7
  %v1377 = vsub.s32 0, %v1376
  %v1378 = vrot.slane %v785, %v1377
  %v1379 = vlaneseq
  %v1380 = vshrl.u32 %v1379, 7
  %v1381 = vsub.s32 1, %v1380
  %v1382 = vrot.slane %v785, %v1381
  %v1385 = vadd.f32 %v1310, %v1378
  %v1386 = vadd.f32 %v1311, %v1382
  %v1387 = vadd.f32 %v1312, %v1378
  %v1388 = vadd.f32 %v1313, %v1382
  %v1389 = vadd.f32 %v1314, %v1378
  %v1390 = vadd.f32 %v1315, %v1382
  %v1391 = vadd.f32 %v1316, %v1378
  %v1392 = vadd.f32 %v1317, %v1382
  %v1393 = vadd.f32 %v1318, %v1378
  %v1394 = vadd.f32 %v1319, %v1382
  %v1395 = vadd.f32 %v1320, %v1378
  %v1396 = vadd.f32 %v1321, %v1382
  %v1397 = vadd.f32 %v1322, %v1378
  %v1398 = vadd.f32 %v1323, %v1382
  %v1399 = vadd.f32 %v1324, %v1378
  %v1400 = vadd.f32 %v1325, %v1382
  %v1401 = vadd.f32 %v1326, %v1378
  %v1402 = vadd.f32 %v1327, %v1382
  %v1403 = vadd.f32 %v1328, %v1378
  %v1404 = vadd.f32 %v1329, %v1382
  %v1405 = vadd.f32 %v1330, %v1378
  %v1406 = vadd.f32 %v1331, %v1382
  %v1407 = vadd.f32 %v1332, %v1378
  %v1408 = vadd.f32 %v1333, %v1382
  %v1409 = vadd.f32 %v1334, %v1378
  %v1410 = vadd.f32 %v1335, %v1382
  %v1411 = vadd.f32 %v1336, %v1378
  %v1412 = vadd.f32 %v1337, %v1382
  %v1413 = vadd.f32 %v1338, %v1378
  %v1414 = vadd.f32 %v1339, %v1382
  %v1415 = vadd.f32 %v1340, %v1378
  %v1416 = vadd.f32 %v1341, %v1382
  %v1417 = vadd.f32 %v1342, %v1378
  %v1418 = vadd.f32 %v1343, %v1382
  %v1419 = vadd.f32 %v1344, %v1378
  %v1420 = vadd.f32 %v1345, %v1382
  %v1421 = vadd.f32 %v1346, %v1378
  %v1422 = vadd.f32 %v1347, %v1382
  %v1423 = vadd.f32 %v1348, %v1378
  %v1424 = vadd.f32 %v1349, %v1382
  %v1425 = vadd.f32 %v1350, %v1378
  %v1426 = vadd.f32 %v1351, %v1382
  %v1427 = vadd.f32 %v1352, %v1378
  %v1428 = vadd.f32 %v1353, %v1382
  %v1429 = vadd.f32 %v1354, %v1378
  %v1430 = vadd.f32 %v1355, %v1382
  %v1431 = vadd.f32 %v1356, %v1378
  %v1432 = vadd.f32 %v1357, %v1382
  %v1433 = vadd.f32 %v1358, %v1378
  %v1434 = vadd.f32 %v1359, %v1382
  %v1435 = vadd.f32 %v1360, %v1378
  %v1436 = vadd.f32 %v1361, %v1382
  %v1437 = vadd.f32 %v1362, %v1378
  %v1438 = vadd.f32 %v1363, %v1382
  %v1439 = vadd.f32 %v1364, %v1378
  %v1440 = vadd.f32 %v1365, %v1382
  %v1441 = vadd.f32 %v1366, %v1378
  %v1442 = vadd.f32 %v1367, %v1382
  %v1443 = vadd.f32 %v1368, %v1378
  %v1444 = vadd.f32 %v1369, %v1382
  %v1445 = vadd.f32 %v1370, %v1378
  %v1446 = vadd.f32 %v1371, %v1382
  %v1447 = vadd.f32 %v1372, %v1378
  %v1448 = vadd.f32 %v1373, %v1382
  %v1449 = vpack.c.bf16 %v1387, %v1385
  %v1450 = vpack.c.bf16 %v1388, %v1386
  %v1451 = vpack.c.bf16 %v1391, %v1389
  %v1452 = vpack.c.bf16 %v1392, %v1390
  %v1453 = vpack.c.bf16 %v1395, %v1393
  %v1454 = vpack.c.bf16 %v1396, %v1394
  %v1455 = vpack.c.bf16 %v1399, %v1397
  %v1456 = vpack.c.bf16 %v1400, %v1398
  %v1457 = vpack.c.bf16 %v1403, %v1401
  %v1458 = vpack.c.bf16 %v1404, %v1402
  %v1459 = vpack.c.bf16 %v1407, %v1405
  %v1460 = vpack.c.bf16 %v1408, %v1406
  %v1461 = vpack.c.bf16 %v1411, %v1409
  %v1462 = vpack.c.bf16 %v1412, %v1410
  %v1463 = vpack.c.bf16 %v1415, %v1413
  %v1464 = vpack.c.bf16 %v1416, %v1414
  %v1465 = vpack.c.bf16 %v1419, %v1417
  %v1466 = vpack.c.bf16 %v1420, %v1418
  %v1467 = vpack.c.bf16 %v1423, %v1421
  %v1468 = vpack.c.bf16 %v1424, %v1422
  %v1469 = vpack.c.bf16 %v1427, %v1425
  %v1470 = vpack.c.bf16 %v1428, %v1426
  %v1471 = vpack.c.bf16 %v1431, %v1429
  %v1472 = vpack.c.bf16 %v1432, %v1430
  %v1473 = vpack.c.bf16 %v1435, %v1433
  %v1474 = vpack.c.bf16 %v1436, %v1434
  %v1475 = vpack.c.bf16 %v1439, %v1437
  %v1476 = vpack.c.bf16 %v1440, %v1438
  %v1477 = vpack.c.bf16 %v1443, %v1441
  %v1478 = vpack.c.bf16 %v1444, %v1442
  %v1479 = vpack.c.bf16 %v1447, %v1445
  %v1480 = vpack.c.bf16 %v1448, %v1446
  %v1481 = vld [vmem:[%s6] sm:$0xff]
  %v1482 = vld [vmem:[%s6 + $0x8] sm:$0xff]
  %v1483 = vld [vmem:[%s6 + $0x10] sm:$0xff]
  %v1484 = vld [vmem:[%s6 + $0x18] sm:$0xff]
  %v1485 = vld [vmem:[%s6 + $0x20] sm:$0xff]
  %v1486 = vld [vmem:[%s6 + $0x28] sm:$0xff]
  %v1487 = vld [vmem:[%s6 + $0x30] sm:$0xff]
  %v1488 = vld [vmem:[%s6 + $0x38] sm:$0xff]
  %v1489 = vld [vmem:[%s6 + $0x40] sm:$0xff]
  %v1490 = vld [vmem:[%s6 + $0x48] sm:$0xff]
  %v1491 = vld [vmem:[%s6 + $0x50] sm:$0xff]
  %v1492 = vld [vmem:[%s6 + $0x58] sm:$0xff]
  %v1493 = vld [vmem:[%s6 + $0x60] sm:$0xff]
  %v1494 = vld [vmem:[%s6 + $0x68] sm:$0xff]
  %v1495 = vld [vmem:[%s6 + $0x70] sm:$0xff]
  %v1496 = vld [vmem:[%s6 + $0x78] sm:$0xff]
  %v1497 = vld [vmem:[%s6 + $0x80] sm:$0xff]
  %v1498 = vld [vmem:[%s6 + $0x88] sm:$0xff]
  %v1499 = vld [vmem:[%s6 + $0x90] sm:$0xff]
  %v1500 = vld [vmem:[%s6 + $0x98] sm:$0xff]
  %v1501 = vld [vmem:[%s6 + $0xa0] sm:$0xff]
  %v1502 = vld [vmem:[%s6 + $0xa8] sm:$0xff]
  %v1503 = vld [vmem:[%s6 + $0xb0] sm:$0xff]
  %v1504 = vld [vmem:[%s6 + $0xb8] sm:$0xff]
  %v1505 = vld [vmem:[%s6 + $0xc0] sm:$0xff]
  %v1506 = vld [vmem:[%s6 + $0xc8] sm:$0xff]
  %v1507 = vld [vmem:[%s6 + $0xd0] sm:$0xff]
  %v1508 = vld [vmem:[%s6 + $0xd8] sm:$0xff]
  %v1509 = vld [vmem:[%s6 + $0xe0] sm:$0xff]
  %v1510 = vld [vmem:[%s6 + $0xe8] sm:$0xff]
  %v1511 = vld [vmem:[%s6 + $0xf0] sm:$0xff]
  %v1512 = vld [vmem:[%s6 + $0xf8] sm:$0xff]
  %v1513 = vld [vmem:[%s6 + $0x100] sm:$0xff]
  %v1514 = vld [vmem:[%s6 + $0x108] sm:$0xff]
  %v1515 = vld [vmem:[%s6 + $0x110] sm:$0xff]
  %v1516 = vld [vmem:[%s6 + $0x118] sm:$0xff]
  %v1517 = vld [vmem:[%s6 + $0x120] sm:$0xff]
  %v1518 = vld [vmem:[%s6 + $0x128] sm:$0xff]
  %v1519 = vld [vmem:[%s6 + $0x130] sm:$0xff]
  %v1520 = vld [vmem:[%s6 + $0x138] sm:$0xff]
  %v1521 = vld [vmem:[%s6 + $0x140] sm:$0xff]
  %v1522 = vld [vmem:[%s6 + $0x148] sm:$0xff]
  %v1523 = vld [vmem:[%s6 + $0x150] sm:$0xff]
  %v1524 = vld [vmem:[%s6 + $0x158] sm:$0xff]
  %v1525 = vld [vmem:[%s6 + $0x160] sm:$0xff]
  %v1526 = vld [vmem:[%s6 + $0x168] sm:$0xff]
  %v1527 = vld [vmem:[%s6 + $0x170] sm:$0xff]
  %v1528 = vld [vmem:[%s6 + $0x178] sm:$0xff]
  %v1529 = vld [vmem:[%s6 + $0x180] sm:$0xff]
  %v1530 = vld [vmem:[%s6 + $0x188] sm:$0xff]
  %v1531 = vld [vmem:[%s6 + $0x190] sm:$0xff]
  %v1532 = vld [vmem:[%s6 + $0x198] sm:$0xff]
  %v1533 = vld [vmem:[%s6 + $0x1a0] sm:$0xff]
  %v1534 = vld [vmem:[%s6 + $0x1a8] sm:$0xff]
  %v1535 = vld [vmem:[%s6 + $0x1b0] sm:$0xff]
  %v1536 = vld [vmem:[%s6 + $0x1b8] sm:$0xff]
  %v1537 = vld [vmem:[%s6 + $0x1c0] sm:$0xff]
  %v1538 = vld [vmem:[%s6 + $0x1c8] sm:$0xff]
  %v1539 = vld [vmem:[%s6 + $0x1d0] sm:$0xff]
  %v1540 = vld [vmem:[%s6 + $0x1d8] sm:$0xff]
  %v1541 = vld [vmem:[%s6 + $0x1e0] sm:$0xff]
  %v1542 = vld [vmem:[%s6 + $0x1e8] sm:$0xff]
  %v1543 = vld [vmem:[%s6 + $0x1f0] sm:$0xff]
  %v1544 = vld [vmem:[%s6 + $0x1f8] sm:$0xff]
  %v1545 = vld [vmem:[%s7] sm:$0xf]
  %v1547 = vlaneseq
  %v1548 = vshrl.u32 %v1547, 7
  %v1549 = vsub.s32 0, %v1548
  %v1550 = vrot.slane %v1545, %v1549
  %v1551 = vlaneseq
  %v1552 = vshrl.u32 %v1551, 7
  %v1553 = vsub.s32 1, %v1552
  %v1554 = vrot.slane %v1545, %v1553
  %v1555 = vlaneseq
  %v1556 = vshrl.u32 %v1555, 7
  %v1557 = vsub.s32 2, %v1556
  %v1558 = vrot.slane %v1545, %v1557
  %v1559 = vlaneseq
  %v1560 = vshrl.u32 %v1559, 7
  %v1561 = vsub.s32 3, %v1560
  %v1562 = vrot.slane %v1545, %v1561
  %v1631 = vunpack.c.l.b16 %v1481
  %v1632 = vunpack.c.h.b16 %v1481
  %v1633 = vunpack.c.l.b16 %v1482
  %v1634 = vunpack.c.h.b16 %v1482
  %v1635 = vunpack.c.l.b16 %v1483
  %v1636 = vunpack.c.h.b16 %v1483
  %v1637 = vunpack.c.l.b16 %v1484
  %v1638 = vunpack.c.h.b16 %v1484
  %v1639 = vunpack.c.l.b16 %v1485
  %v1640 = vunpack.c.h.b16 %v1485
  %v1641 = vunpack.c.l.b16 %v1486
  %v1642 = vunpack.c.h.b16 %v1486
  %v1643 = vunpack.c.l.b16 %v1487
  %v1644 = vunpack.c.h.b16 %v1487
  %v1645 = vunpack.c.l.b16 %v1488
  %v1646 = vunpack.c.h.b16 %v1488
  %v1647 = vunpack.c.l.b16 %v1489
  %v1648 = vunpack.c.h.b16 %v1489
  %v1649 = vunpack.c.l.b16 %v1490
  %v1650 = vunpack.c.h.b16 %v1490
  %v1651 = vunpack.c.l.b16 %v1491
  %v1652 = vunpack.c.h.b16 %v1491
  %v1653 = vunpack.c.l.b16 %v1492
  %v1654 = vunpack.c.h.b16 %v1492
  %v1655 = vunpack.c.l.b16 %v1493
  %v1656 = vunpack.c.h.b16 %v1493
  %v1657 = vunpack.c.l.b16 %v1494
  %v1658 = vunpack.c.h.b16 %v1494
  %v1659 = vunpack.c.l.b16 %v1495
  %v1660 = vunpack.c.h.b16 %v1495
  %v1661 = vunpack.c.l.b16 %v1496
  %v1662 = vunpack.c.h.b16 %v1496
  %v1663 = vunpack.c.l.b16 %v1497
  %v1664 = vunpack.c.h.b16 %v1497
  %v1665 = vunpack.c.l.b16 %v1498
  %v1666 = vunpack.c.h.b16 %v1498
  %v1667 = vunpack.c.l.b16 %v1499
  %v1668 = vunpack.c.h.b16 %v1499
  %v1669 = vunpack.c.l.b16 %v1500
  %v1670 = vunpack.c.h.b16 %v1500
  %v1671 = vunpack.c.l.b16 %v1501
  %v1672 = vunpack.c.h.b16 %v1501
  %v1673 = vunpack.c.l.b16 %v1502
  %v1674 = vunpack.c.h.b16 %v1502
  %v1675 = vunpack.c.l.b16 %v1503
  %v1676 = vunpack.c.h.b16 %v1503
  %v1677 = vunpack.c.l.b16 %v1504
  %v1678 = vunpack.c.h.b16 %v1504
  %v1679 = vunpack.c.l.b16 %v1505
  %v1680 = vunpack.c.h.b16 %v1505
  %v1681 = vunpack.c.l.b16 %v1506
  %v1682 = vunpack.c.h.b16 %v1506
  %v1683 = vunpack.c.l.b16 %v1507
  %v1684 = vunpack.c.h.b16 %v1507
  %v1685 = vunpack.c.l.b16 %v1508
  %v1686 = vunpack.c.h.b16 %v1508
  %v1687 = vunpack.c.l.b16 %v1509
  %v1688 = vunpack.c.h.b16 %v1509
  %v1689 = vunpack.c.l.b16 %v1510
  %v1690 = vunpack.c.h.b16 %v1510
  %v1691 = vunpack.c.l.b16 %v1511
  %v1692 = vunpack.c.h.b16 %v1511
  %v1693 = vunpack.c.l.b16 %v1512
  %v1694 = vunpack.c.h.b16 %v1512
  %v1695 = vunpack.c.l.b16 %v1513
  %v1696 = vunpack.c.h.b16 %v1513
  %v1697 = vunpack.c.l.b16 %v1514
  %v1698 = vunpack.c.h.b16 %v1514
  %v1699 = vunpack.c.l.b16 %v1515
  %v1700 = vunpack.c.h.b16 %v1515
  %v1701 = vunpack.c.l.b16 %v1516
  %v1702 = vunpack.c.h.b16 %v1516
  %v1703 = vunpack.c.l.b16 %v1517
  %v1704 = vunpack.c.h.b16 %v1517
  %v1705 = vunpack.c.l.b16 %v1518
  %v1706 = vunpack.c.h.b16 %v1518
  %v1707 = vunpack.c.l.b16 %v1519
  %v1708 = vunpack.c.h.b16 %v1519
  %v1709 = vunpack.c.l.b16 %v1520
  %v1710 = vunpack.c.h.b16 %v1520
  %v1711 = vunpack.c.l.b16 %v1521
  %v1712 = vunpack.c.h.b16 %v1521
  %v1713 = vunpack.c.l.b16 %v1522
  %v1714 = vunpack.c.h.b16 %v1522
  %v1715 = vunpack.c.l.b16 %v1523
  %v1716 = vunpack.c.h.b16 %v1523
  %v1717 = vunpack.c.l.b16 %v1524
  %v1718 = vunpack.c.h.b16 %v1524
  %v1719 = vunpack.c.l.b16 %v1525
  %v1720 = vunpack.c.h.b16 %v1525
  %v1721 = vunpack.c.l.b16 %v1526
  %v1722 = vunpack.c.h.b16 %v1526
  %v1723 = vunpack.c.l.b16 %v1527
  %v1724 = vunpack.c.h.b16 %v1527
  %v1725 = vunpack.c.l.b16 %v1528
  %v1726 = vunpack.c.h.b16 %v1528
  %v1727 = vunpack.c.l.b16 %v1529
  %v1728 = vunpack.c.h.b16 %v1529
  %v1729 = vunpack.c.l.b16 %v1530
  %v1730 = vunpack.c.h.b16 %v1530
  %v1731 = vunpack.c.l.b16 %v1531
  %v1732 = vunpack.c.h.b16 %v1531
  %v1733 = vunpack.c.l.b16 %v1532
  %v1734 = vunpack.c.h.b16 %v1532
  %v1735 = vunpack.c.l.b16 %v1533
  %v1736 = vunpack.c.h.b16 %v1533
  %v1737 = vunpack.c.l.b16 %v1534
  %v1738 = vunpack.c.h.b16 %v1534
  %v1739 = vunpack.c.l.b16 %v1535
  %v1740 = vunpack.c.h.b16 %v1535
  %v1741 = vunpack.c.l.b16 %v1536
  %v1742 = vunpack.c.h.b16 %v1536
  %v1743 = vunpack.c.l.b16 %v1537
  %v1744 = vunpack.c.h.b16 %v1537
  %v1745 = vunpack.c.l.b16 %v1538
  %v1746 = vunpack.c.h.b16 %v1538
  %v1747 = vunpack.c.l.b16 %v1539
  %v1748 = vunpack.c.h.b16 %v1539
  %v1749 = vunpack.c.l.b16 %v1540
  %v1750 = vunpack.c.h.b16 %v1540
  %v1751 = vunpack.c.l.b16 %v1541
  %v1752 = vunpack.c.h.b16 %v1541
  %v1753 = vunpack.c.l.b16 %v1542
  %v1754 = vunpack.c.h.b16 %v1542
  %v1755 = vunpack.c.l.b16 %v1543
  %v1756 = vunpack.c.h.b16 %v1543
  %v1757 = vunpack.c.l.b16 %v1544
  %v1758 = vunpack.c.h.b16 %v1544
  %v1759 = vpack.c.b16 %v1635, %v1631
  %v1760 = vpack.c.b16 %v1636, %v1632
  %v1761 = vpack.c.b16 %v1637, %v1633
  %v1762 = vpack.c.b16 %v1638, %v1634
  %v1763 = vpack.c.b16 %v1643, %v1639
  %v1764 = vpack.c.b16 %v1644, %v1640
  %v1765 = vpack.c.b16 %v1645, %v1641
  %v1766 = vpack.c.b16 %v1646, %v1642
  %v1767 = vpack.c.b16 %v1651, %v1647
  %v1768 = vpack.c.b16 %v1652, %v1648
  %v1769 = vpack.c.b16 %v1653, %v1649
  %v1770 = vpack.c.b16 %v1654, %v1650
  %v1771 = vpack.c.b16 %v1659, %v1655
  %v1772 = vpack.c.b16 %v1660, %v1656
  %v1773 = vpack.c.b16 %v1661, %v1657
  %v1774 = vpack.c.b16 %v1662, %v1658
  %v1775 = vpack.c.b16 %v1667, %v1663
  %v1776 = vpack.c.b16 %v1668, %v1664
  %v1777 = vpack.c.b16 %v1669, %v1665
  %v1778 = vpack.c.b16 %v1670, %v1666
  %v1779 = vpack.c.b16 %v1675, %v1671
  %v1780 = vpack.c.b16 %v1676, %v1672
  %v1781 = vpack.c.b16 %v1677, %v1673
  %v1782 = vpack.c.b16 %v1678, %v1674
  %v1783 = vpack.c.b16 %v1683, %v1679
  %v1784 = vpack.c.b16 %v1684, %v1680
  %v1785 = vpack.c.b16 %v1685, %v1681
  %v1786 = vpack.c.b16 %v1686, %v1682
  %v1787 = vpack.c.b16 %v1691, %v1687
  %v1788 = vpack.c.b16 %v1692, %v1688
  %v1789 = vpack.c.b16 %v1693, %v1689
  %v1790 = vpack.c.b16 %v1694, %v1690
  %v1791 = vpack.c.b16 %v1699, %v1695
  %v1792 = vpack.c.b16 %v1700, %v1696
  %v1793 = vpack.c.b16 %v1701, %v1697
  %v1794 = vpack.c.b16 %v1702, %v1698
  %v1795 = vpack.c.b16 %v1707, %v1703
  %v1796 = vpack.c.b16 %v1708, %v1704
  %v1797 = vpack.c.b16 %v1709, %v1705
  %v1798 = vpack.c.b16 %v1710, %v1706
  %v1799 = vpack.c.b16 %v1715, %v1711
  %v1800 = vpack.c.b16 %v1716, %v1712
  %v1801 = vpack.c.b16 %v1717, %v1713
  %v1802 = vpack.c.b16 %v1718, %v1714
  %v1803 = vpack.c.b16 %v1723, %v1719
  %v1804 = vpack.c.b16 %v1724, %v1720
  %v1805 = vpack.c.b16 %v1725, %v1721
  %v1806 = vpack.c.b16 %v1726, %v1722
  %v1807 = vpack.c.b16 %v1731, %v1727
  %v1808 = vpack.c.b16 %v1732, %v1728
  %v1809 = vpack.c.b16 %v1733, %v1729
  %v1810 = vpack.c.b16 %v1734, %v1730
  %v1811 = vpack.c.b16 %v1739, %v1735
  %v1812 = vpack.c.b16 %v1740, %v1736
  %v1813 = vpack.c.b16 %v1741, %v1737
  %v1814 = vpack.c.b16 %v1742, %v1738
  %v1815 = vpack.c.b16 %v1747, %v1743
  %v1816 = vpack.c.b16 %v1748, %v1744
  %v1817 = vpack.c.b16 %v1749, %v1745
  %v1818 = vpack.c.b16 %v1750, %v1746
  %v1819 = vpack.c.b16 %v1755, %v1751
  %v1820 = vpack.c.b16 %v1756, %v1752
  %v1821 = vpack.c.b16 %v1757, %v1753
  %v1822 = vpack.c.b16 %v1758, %v1754
  %1887 = vmatprep.subr.bf16.mxu0 %v1788
  %1888 = vmatpush1.bf16.msra.mxu0 %v1787
  %1889 = vmatprep.subr.bf16.mxu0 %v1784
  %1890 = vmatpush1.bf16.msra.mxu0 %v1783
  %1891 = vmatprep.subr.bf16.mxu0 %v1780
  %1892 = vmatpush1.bf16.msra.mxu0 %v1779
  %1893 = vmatprep.subr.bf16.mxu0 %v1776
  %1894 = vmatpush1.bf16.msra.mxu0 %v1775
  %1895 = vmatprep.subr.bf16.mxu0 %v1772
  %1896 = vmatpush1.bf16.msra.mxu0 %v1771
  %1897 = vmatprep.subr.bf16.mxu0 %v1768
  %1898 = vmatpush1.bf16.msra.mxu0 %v1767
  %1899 = vmatprep.subr.bf16.mxu0 %v1764
  %1900 = vmatpush1.bf16.msra.mxu0 %v1763
  %1901 = vmatprep.subr.bf16.mxu0 %v1760
  %1902 = vmatpush1.bf16.msra.mxu0 %v1759
  %1903 = vmatprep.subr.bf16.mxu0 %v1820
  %1904 = vmatpush2.bf16.msra.mxu0 %v1819
  %1905 = vmatprep.subr.bf16.mxu0 %v1816
  %1906 = vmatpush2.bf16.msra.mxu0 %v1815
  %1907 = vmatprep.subr.bf16.mxu0 %v1812
  %1908 = vmatpush2.bf16.msra.mxu0 %v1811
  %1909 = vmatprep.subr.bf16.mxu0 %v1808
  %1910 = vmatpush2.bf16.msra.mxu0 %v1807
  %1911 = vmatprep.subr.bf16.mxu0 %v1804
  %1912 = vmatpush2.bf16.msra.mxu0 %v1803
  %1913 = vmatprep.subr.bf16.mxu0 %v1800
  %1914 = vmatpush2.bf16.msra.mxu0 %v1799
  %1915 = vmatprep.subr.bf16.mxu0 %v1796
  %1916 = vmatpush2.bf16.msra.mxu0 %v1795
  %1917 = vmatprep.subr.bf16.mxu0 %v1792
  %1918 = vmatpush2.bf16.msra.mxu0 %v1791
  %1919 = vmatprep.mubr.bf16.mxu0 %v1450
  %1920 = vmatmul.mubr.bf16.gmra.mxu0 %v1449
  %v1921 = vpop.f32.mrf.mxu0
  %v1922 = vadd.f32 %v1550, %v1921
  %v1923 = vpop.f32.mrf.mxu0
  %v1924 = vadd.f32 %v1554, %v1923
  %v1925 = vpop.f32.mrf.mxu0
  %v1926 = vadd.f32 %v1550, %v1925
  %v1927 = vpop.f32.mrf.mxu0
  %v1928 = vadd.f32 %v1554, %v1927
  %1929 = vmatprep.mubr.bf16.mxu0 %v1452
  %1930 = vmatmul.mubr.bf16.gmra.mxu0 %v1451
  %v1931 = vpop.f32.mrf.mxu0
  %v1932 = vadd.f32 %v1550, %v1931
  %v1933 = vpop.f32.mrf.mxu0
  %v1934 = vadd.f32 %v1554, %v1933
  %v1935 = vpop.f32.mrf.mxu0
  %v1936 = vadd.f32 %v1550, %v1935
  %v1937 = vpop.f32.mrf.mxu0
  %v1938 = vadd.f32 %v1554, %v1937
  %1939 = vmatprep.mubr.bf16.mxu0 %v1454
  %1940 = vmatmul.mubr.bf16.gmra.mxu0 %v1453
  %v1941 = vpop.f32.mrf.mxu0
  %v1942 = vadd.f32 %v1550, %v1941
  %v1943 = vpop.f32.mrf.mxu0
  %v1944 = vadd.f32 %v1554, %v1943
  %v1945 = vpop.f32.mrf.mxu0
  %v1946 = vadd.f32 %v1550, %v1945
  %v1947 = vpop.f32.mrf.mxu0
  %v1948 = vadd.f32 %v1554, %v1947
  %1949 = vmatprep.mubr.bf16.mxu0 %v1456
  %1950 = vmatmul.mubr.bf16.gmra.mxu0 %v1455
  %v1951 = vpop.f32.mrf.mxu0
  %v1952 = vadd.f32 %v1550, %v1951
  %v1953 = vpop.f32.mrf.mxu0
  %v1954 = vadd.f32 %v1554, %v1953
  %v1955 = vpop.f32.mrf.mxu0
  %v1956 = vadd.f32 %v1550, %v1955
  %v1957 = vpop.f32.mrf.mxu0
  %v1958 = vadd.f32 %v1554, %v1957
  %1959 = vmatprep.mubr.bf16.mxu0 %v1458
  %1960 = vmatmul.mubr.bf16.gmra.mxu0 %v1457
  %v1961 = vpop.f32.mrf.mxu0
  %v1962 = vadd.f32 %v1550, %v1961
  %v1963 = vpop.f32.mrf.mxu0
  %v1964 = vadd.f32 %v1554, %v1963
  %v1965 = vpop.f32.mrf.mxu0
  %v1966 = vadd.f32 %v1550, %v1965
  %v1967 = vpop.f32.mrf.mxu0
  %v1968 = vadd.f32 %v1554, %v1967
  %1969 = vmatprep.mubr.bf16.mxu0 %v1460
  %1970 = vmatmul.mubr.bf16.gmra.mxu0 %v1459
  %v1971 = vpop.f32.mrf.mxu0
  %v1972 = vadd.f32 %v1550, %v1971
  %v1973 = vpop.f32.mrf.mxu0
  %v1974 = vadd.f32 %v1554, %v1973
  %v1975 = vpop.f32.mrf.mxu0
  %v1976 = vadd.f32 %v1550, %v1975
  %v1977 = vpop.f32.mrf.mxu0
  %v1978 = vadd.f32 %v1554, %v1977
  %1979 = vmatprep.mubr.bf16.mxu0 %v1462
  %1980 = vmatmul.mubr.bf16.gmra.mxu0 %v1461
  %v1981 = vpop.f32.mrf.mxu0
  %v1982 = vadd.f32 %v1550, %v1981
  %v1983 = vpop.f32.mrf.mxu0
  %v1984 = vadd.f32 %v1554, %v1983
  %v1985 = vpop.f32.mrf.mxu0
  %v1986 = vadd.f32 %v1550, %v1985
  %v1987 = vpop.f32.mrf.mxu0
  %v1988 = vadd.f32 %v1554, %v1987
  %1989 = vmatprep.mubr.bf16.mxu0 %v1464
  %1990 = vmatmul.mubr.bf16.gmra.mxu0 %v1463
  %v1991 = vpop.f32.mrf.mxu0
  %v1992 = vadd.f32 %v1550, %v1991
  %v1993 = vpop.f32.mrf.mxu0
  %v1994 = vadd.f32 %v1554, %v1993
  %v1995 = vpop.f32.mrf.mxu0
  %v1996 = vadd.f32 %v1550, %v1995
  %v1997 = vpop.f32.mrf.mxu0
  %v1998 = vadd.f32 %v1554, %v1997
  %1999 = vmatprep.mubr.bf16.mxu0 %v1466
  %2000 = vmatmul.mubr.bf16.gmra.mxu0 %v1465
  %v2001 = vpop.f32.mrf.mxu0
  %v2002 = vadd.f32 %v1550, %v2001
  %v2003 = vpop.f32.mrf.mxu0
  %v2004 = vadd.f32 %v1554, %v2003
  %v2005 = vpop.f32.mrf.mxu0
  %v2006 = vadd.f32 %v1550, %v2005
  %v2007 = vpop.f32.mrf.mxu0
  %v2008 = vadd.f32 %v1554, %v2007
  %2009 = vmatprep.mubr.bf16.mxu0 %v1468
  %2010 = vmatmul.mubr.bf16.gmra.mxu0 %v1467
  %v2011 = vpop.f32.mrf.mxu0
  %v2012 = vadd.f32 %v1550, %v2011
  %v2013 = vpop.f32.mrf.mxu0
  %v2014 = vadd.f32 %v1554, %v2013
  %v2015 = vpop.f32.mrf.mxu0
  %v2016 = vadd.f32 %v1550, %v2015
  %v2017 = vpop.f32.mrf.mxu0
  %v2018 = vadd.f32 %v1554, %v2017
  %2019 = vmatprep.mubr.bf16.mxu0 %v1470
  %2020 = vmatmul.mubr.bf16.gmra.mxu0 %v1469
  %v2021 = vpop.f32.mrf.mxu0
  %v2022 = vadd.f32 %v1550, %v2021
  %v2023 = vpop.f32.mrf.mxu0
  %v2024 = vadd.f32 %v1554, %v2023
  %v2025 = vpop.f32.mrf.mxu0
  %v2026 = vadd.f32 %v1550, %v2025
  %v2027 = vpop.f32.mrf.mxu0
  %v2028 = vadd.f32 %v1554, %v2027
  %2029 = vmatprep.mubr.bf16.mxu0 %v1472
  %2030 = vmatmul.mubr.bf16.gmra.mxu0 %v1471
  %v2031 = vpop.f32.mrf.mxu0
  %v2032 = vadd.f32 %v1550, %v2031
  %v2033 = vpop.f32.mrf.mxu0
  %v2034 = vadd.f32 %v1554, %v2033
  %v2035 = vpop.f32.mrf.mxu0
  %v2036 = vadd.f32 %v1550, %v2035
  %v2037 = vpop.f32.mrf.mxu0
  %v2038 = vadd.f32 %v1554, %v2037
  %2039 = vmatprep.mubr.bf16.mxu0 %v1474
  %2040 = vmatmul.mubr.bf16.gmra.mxu0 %v1473
  %v2041 = vpop.f32.mrf.mxu0
  %v2042 = vadd.f32 %v1550, %v2041
  %v2043 = vpop.f32.mrf.mxu0
  %v2044 = vadd.f32 %v1554, %v2043
  %v2045 = vpop.f32.mrf.mxu0
  %v2046 = vadd.f32 %v1550, %v2045
  %v2047 = vpop.f32.mrf.mxu0
  %v2048 = vadd.f32 %v1554, %v2047
  %2049 = vmatprep.mubr.bf16.mxu0 %v1476
  %2050 = vmatmul.mubr.bf16.gmra.mxu0 %v1475
  %v2051 = vpop.f32.mrf.mxu0
  %v2052 = vadd.f32 %v1550, %v2051
  %v2053 = vpop.f32.mrf.mxu0
  %v2054 = vadd.f32 %v1554, %v2053
  %v2055 = vpop.f32.mrf.mxu0
  %v2056 = vadd.f32 %v1550, %v2055
  %v2057 = vpop.f32.mrf.mxu0
  %v2058 = vadd.f32 %v1554, %v2057
  %2059 = vmatprep.mubr.bf16.mxu0 %v1478
  %2060 = vmatmul.mubr.bf16.gmra.mxu0 %v1477
  %v2061 = vpop.f32.mrf.mxu0
  %v2062 = vadd.f32 %v1550, %v2061
  %v2063 = vpop.f32.mrf.mxu0
  %v2064 = vadd.f32 %v1554, %v2063
  %v2065 = vpop.f32.mrf.mxu0
  %v2066 = vadd.f32 %v1550, %v2065
  %v2067 = vpop.f32.mrf.mxu0
  %v2068 = vadd.f32 %v1554, %v2067
  %2069 = vmatprep.mubr.bf16.mxu0 %v1480
  %2070 = vmatmul.mubr.bf16.gmra.mxu0 %v1479
  %v2071 = vpop.f32.mrf.mxu0
  %v2072 = vadd.f32 %v1550, %v2071
  %v2073 = vpop.f32.mrf.mxu0
  %v2074 = vadd.f32 %v1554, %v2073
  %v2075 = vpop.f32.mrf.mxu0
  %v2076 = vadd.f32 %v1550, %v2075
  %v2077 = vpop.f32.mrf.mxu0
  %v2078 = vadd.f32 %v1554, %v2077
  %2079 = vdwg.mxu0
  %2080 = vmatprep.subr.bf16.mxu0 %v1790
  %2081 = vmatpush1.bf16.msra.mxu0 %v1789
  %2082 = vmatprep.subr.bf16.mxu0 %v1786
  %2083 = vmatpush1.bf16.msra.mxu0 %v1785
  %2084 = vmatprep.subr.bf16.mxu0 %v1782
  %2085 = vmatpush1.bf16.msra.mxu0 %v1781
  %2086 = vmatprep.subr.bf16.mxu0 %v1778
  %2087 = vmatpush1.bf16.msra.mxu0 %v1777
  %2088 = vmatprep.subr.bf16.mxu0 %v1774
  %2089 = vmatpush1.bf16.msra.mxu0 %v1773
  %2090 = vmatprep.subr.bf16.mxu0 %v1770
  %2091 = vmatpush1.bf16.msra.mxu0 %v1769
  %2092 = vmatprep.subr.bf16.mxu0 %v1766
  %2093 = vmatpush1.bf16.msra.mxu0 %v1765
  %2094 = vmatprep.subr.bf16.mxu0 %v1762
  %2095 = vmatpush1.bf16.msra.mxu0 %v1761
  %2096 = vmatprep.subr.bf16.mxu0 %v1822
  %2097 = vmatpush2.bf16.msra.mxu0 %v1821
  %2098 = vmatprep.subr.bf16.mxu0 %v1818
  %2099 = vmatpush2.bf16.msra.mxu0 %v1817
  %2100 = vmatprep.subr.bf16.mxu0 %v1814
  %2101 = vmatpush2.bf16.msra.mxu0 %v1813
  %2102 = vmatprep.subr.bf16.mxu0 %v1810
  %2103 = vmatpush2.bf16.msra.mxu0 %v1809
  %2104 = vmatprep.subr.bf16.mxu0 %v1806
  %2105 = vmatpush2.bf16.msra.mxu0 %v1805
  %2106 = vmatprep.subr.bf16.mxu0 %v1802
  %2107 = vmatpush2.bf16.msra.mxu0 %v1801
  %2108 = vmatprep.subr.bf16.mxu0 %v1798
  %2109 = vmatpush2.bf16.msra.mxu0 %v1797
  %2110 = vmatprep.subr.bf16.mxu0 %v1794
  %2111 = vmatpush2.bf16.msra.mxu0 %v1793
  %2112 = vmatprep.mubr.bf16.mxu0 %v1450
  %2113 = vmatmul.mubr.bf16.gmra.mxu0 %v1449
  %v2114 = vpop.f32.mrf.mxu0
  %v2115 = vadd.f32 %v1558, %v2114
  %v2116 = vpop.f32.mrf.mxu0
  %v2117 = vadd.f32 %v1562, %v2116
  %v2118 = vpop.f32.mrf.mxu0
  %v2119 = vadd.f32 %v1558, %v2118
  %v2120 = vpop.f32.mrf.mxu0
  %v2121 = vadd.f32 %v1562, %v2120
  %2122 = vmatprep.mubr.bf16.mxu0 %v1452
  %2123 = vmatmul.mubr.bf16.gmra.mxu0 %v1451
  %v2124 = vpop.f32.mrf.mxu0
  %v2125 = vadd.f32 %v1558, %v2124
  %v2126 = vpop.f32.mrf.mxu0
  %v2127 = vadd.f32 %v1562, %v2126
  %v2128 = vpop.f32.mrf.mxu0
  %v2129 = vadd.f32 %v1558, %v2128
  %v2130 = vpop.f32.mrf.mxu0
  %v2131 = vadd.f32 %v1562, %v2130
  %2132 = vmatprep.mubr.bf16.mxu0 %v1454
  %2133 = vmatmul.mubr.bf16.gmra.mxu0 %v1453
  %v2134 = vpop.f32.mrf.mxu0
  %v2135 = vadd.f32 %v1558, %v2134
  %v2136 = vpop.f32.mrf.mxu0
  %v2137 = vadd.f32 %v1562, %v2136
  %v2138 = vpop.f32.mrf.mxu0
  %v2139 = vadd.f32 %v1558, %v2138
  %v2140 = vpop.f32.mrf.mxu0
  %v2141 = vadd.f32 %v1562, %v2140
  %2142 = vmatprep.mubr.bf16.mxu0 %v1456
  %2143 = vmatmul.mubr.bf16.gmra.mxu0 %v1455
  %v2144 = vpop.f32.mrf.mxu0
  %v2145 = vadd.f32 %v1558, %v2144
  %v2146 = vpop.f32.mrf.mxu0
  %v2147 = vadd.f32 %v1562, %v2146
  %v2148 = vpop.f32.mrf.mxu0
  %v2149 = vadd.f32 %v1558, %v2148
  %v2150 = vpop.f32.mrf.mxu0
  %v2151 = vadd.f32 %v1562, %v2150
  %2152 = vmatprep.mubr.bf16.mxu0 %v1458
  %2153 = vmatmul.mubr.bf16.gmra.mxu0 %v1457
  %v2154 = vpop.f32.mrf.mxu0
  %v2155 = vadd.f32 %v1558, %v2154
  %v2156 = vpop.f32.mrf.mxu0
  %v2157 = vadd.f32 %v1562, %v2156
  %v2158 = vpop.f32.mrf.mxu0
  %v2159 = vadd.f32 %v1558, %v2158
  %v2160 = vpop.f32.mrf.mxu0
  %v2161 = vadd.f32 %v1562, %v2160
  %2162 = vmatprep.mubr.bf16.mxu0 %v1460
  %2163 = vmatmul.mubr.bf16.gmra.mxu0 %v1459
  %v2164 = vpop.f32.mrf.mxu0
  %v2165 = vadd.f32 %v1558, %v2164
  %v2166 = vpop.f32.mrf.mxu0
  %v2167 = vadd.f32 %v1562, %v2166
  %v2168 = vpop.f32.mrf.mxu0
  %v2169 = vadd.f32 %v1558, %v2168
  %v2170 = vpop.f32.mrf.mxu0
  %v2171 = vadd.f32 %v1562, %v2170
  %2172 = vmatprep.mubr.bf16.mxu0 %v1462
  %2173 = vmatmul.mubr.bf16.gmra.mxu0 %v1461
  %v2174 = vpop.f32.mrf.mxu0
  %v2175 = vadd.f32 %v1558, %v2174
  %v2176 = vpop.f32.mrf.mxu0
  %v2177 = vadd.f32 %v1562, %v2176
  %v2178 = vpop.f32.mrf.mxu0
  %v2179 = vadd.f32 %v1558, %v2178
  %v2180 = vpop.f32.mrf.mxu0
  %v2181 = vadd.f32 %v1562, %v2180
  %2182 = vmatprep.mubr.bf16.mxu0 %v1464
  %2183 = vmatmul.mubr.bf16.gmra.mxu0 %v1463
  %v2184 = vpop.f32.mrf.mxu0
  %v2185 = vadd.f32 %v1558, %v2184
  %v2186 = vpop.f32.mrf.mxu0
  %v2187 = vadd.f32 %v1562, %v2186
  %v2188 = vpop.f32.mrf.mxu0
  %v2189 = vadd.f32 %v1558, %v2188
  %v2190 = vpop.f32.mrf.mxu0
  %v2191 = vadd.f32 %v1562, %v2190
  %2192 = vmatprep.mubr.bf16.mxu0 %v1466
  %2193 = vmatmul.mubr.bf16.gmra.mxu0 %v1465
  %v2194 = vpop.f32.mrf.mxu0
  %v2195 = vadd.f32 %v1558, %v2194
  %v2196 = vpop.f32.mrf.mxu0
  %v2197 = vadd.f32 %v1562, %v2196
  %v2198 = vpop.f32.mrf.mxu0
  %v2199 = vadd.f32 %v1558, %v2198
  %v2200 = vpop.f32.mrf.mxu0
  %v2201 = vadd.f32 %v1562, %v2200
  %2202 = vmatprep.mubr.bf16.mxu0 %v1468
  %2203 = vmatmul.mubr.bf16.gmra.mxu0 %v1467
  %v2204 = vpop.f32.mrf.mxu0
  %v2205 = vadd.f32 %v1558, %v2204
  %v2206 = vpop.f32.mrf.mxu0
  %v2207 = vadd.f32 %v1562, %v2206
  %v2208 = vpop.f32.mrf.mxu0
  %v2209 = vadd.f32 %v1558, %v2208
  %v2210 = vpop.f32.mrf.mxu0
  %v2211 = vadd.f32 %v1562, %v2210
  %2212 = vmatprep.mubr.bf16.mxu0 %v1470
  %2213 = vmatmul.mubr.bf16.gmra.mxu0 %v1469
  %v2214 = vpop.f32.mrf.mxu0
  %v2215 = vadd.f32 %v1558, %v2214
  %v2216 = vpop.f32.mrf.mxu0
  %v2217 = vadd.f32 %v1562, %v2216
  %v2218 = vpop.f32.mrf.mxu0
  %v2219 = vadd.f32 %v1558, %v2218
  %v2220 = vpop.f32.mrf.mxu0
  %v2221 = vadd.f32 %v1562, %v2220
  %2222 = vmatprep.mubr.bf16.mxu0 %v1472
  %2223 = vmatmul.mubr.bf16.gmra.mxu0 %v1471
  %v2224 = vpop.f32.mrf.mxu0
  %v2225 = vadd.f32 %v1558, %v2224
  %v2226 = vpop.f32.mrf.mxu0
  %v2227 = vadd.f32 %v1562, %v2226
  %v2228 = vpop.f32.mrf.mxu0
  %v2229 = vadd.f32 %v1558, %v2228
  %v2230 = vpop.f32.mrf.mxu0
  %v2231 = vadd.f32 %v1562, %v2230
  %2232 = vmatprep.mubr.bf16.mxu0 %v1474
  %2233 = vmatmul.mubr.bf16.gmra.mxu0 %v1473
  %v2234 = vpop.f32.mrf.mxu0
  %v2235 = vadd.f32 %v1558, %v2234
  %v2236 = vpop.f32.mrf.mxu0
  %v2237 = vadd.f32 %v1562, %v2236
  %v2238 = vpop.f32.mrf.mxu0
  %v2239 = vadd.f32 %v1558, %v2238
  %v2240 = vpop.f32.mrf.mxu0
  %v2241 = vadd.f32 %v1562, %v2240
  %2242 = vmatprep.mubr.bf16.mxu0 %v1476
  %2243 = vmatmul.mubr.bf16.gmra.mxu0 %v1475
  %v2244 = vpop.f32.mrf.mxu0
  %v2245 = vadd.f32 %v1558, %v2244
  %v2246 = vpop.f32.mrf.mxu0
  %v2247 = vadd.f32 %v1562, %v2246
  %v2248 = vpop.f32.mrf.mxu0
  %v2249 = vadd.f32 %v1558, %v2248
  %v2250 = vpop.f32.mrf.mxu0
  %v2251 = vadd.f32 %v1562, %v2250
  %2252 = vmatprep.mubr.bf16.mxu0 %v1478
  %2253 = vmatmul.mubr.bf16.gmra.mxu0 %v1477
  %v2254 = vpop.f32.mrf.mxu0
  %v2255 = vadd.f32 %v1558, %v2254
  %v2256 = vpop.f32.mrf.mxu0
  %v2257 = vadd.f32 %v1562, %v2256
  %v2258 = vpop.f32.mrf.mxu0
  %v2259 = vadd.f32 %v1558, %v2258
  %v2260 = vpop.f32.mrf.mxu0
  %v2261 = vadd.f32 %v1562, %v2260
  %2262 = vmatprep.mubr.bf16.mxu0 %v1480
  %2263 = vmatmul.mubr.bf16.gmra.mxu0 %v1479
  %v2264 = vpop.f32.mrf.mxu0
  %v2265 = vadd.f32 %v1558, %v2264
  %v2266 = vpop.f32.mrf.mxu0
  %v2267 = vadd.f32 %v1562, %v2266
  %v2268 = vpop.f32.mrf.mxu0
  %v2269 = vadd.f32 %v1558, %v2268
  %v2270 = vpop.f32.mrf.mxu0
  %v2271 = vadd.f32 %v1562, %v2270
  %2272 = vdwg.mxu0
  %v2273 = vmul.f32 %v1922, 0.5
  %v2274 = vmul.f32 %v1924, 0.5
  %v2275 = vmul.f32 %v2115, 0.5
  %v2276 = vmul.f32 %v2117, 0.5
  %v2277 = vmul.f32 %v1926, 0.5
  %v2278 = vmul.f32 %v1928, 0.5
  %v2279 = vmul.f32 %v2119, 0.5
  %v2280 = vmul.f32 %v2121, 0.5
  %v2281 = vmul.f32 %v1932, 0.5
  %v2282 = vmul.f32 %v1934, 0.5
  %v2283 = vmul.f32 %v2125, 0.5
  %v2284 = vmul.f32 %v2127, 0.5
  %v2285 = vmul.f32 %v1936, 0.5
  %v2286 = vmul.f32 %v1938, 0.5
  %v2287 = vmul.f32 %v2129, 0.5
  %v2288 = vmul.f32 %v2131, 0.5
  %v2289 = vmul.f32 %v1942, 0.5
  %v2290 = vmul.f32 %v1944, 0.5
  %v2291 = vmul.f32 %v2135, 0.5
  %v2292 = vmul.f32 %v2137, 0.5
  %v2293 = vmul.f32 %v1946, 0.5
  %v2294 = vmul.f32 %v1948, 0.5
  %v2295 = vmul.f32 %v2139, 0.5
  %v2296 = vmul.f32 %v2141, 0.5
  %v2297 = vmul.f32 %v1952, 0.5
  %v2298 = vmul.f32 %v1954, 0.5
  %v2299 = vmul.f32 %v2145, 0.5
  %v2300 = vmul.f32 %v2147, 0.5
  %v2301 = vmul.f32 %v1956, 0.5
  %v2302 = vmul.f32 %v1958, 0.5
  %v2303 = vmul.f32 %v2149, 0.5
  %v2304 = vmul.f32 %v2151, 0.5
  %v2305 = vmul.f32 %v1962, 0.5
  %v2306 = vmul.f32 %v1964, 0.5
  %v2307 = vmul.f32 %v2155, 0.5
  %v2308 = vmul.f32 %v2157, 0.5
  %v2309 = vmul.f32 %v1966, 0.5
  %v2310 = vmul.f32 %v1968, 0.5
  %v2311 = vmul.f32 %v2159, 0.5
  %v2312 = vmul.f32 %v2161, 0.5
  %v2313 = vmul.f32 %v1972, 0.5
  %v2314 = vmul.f32 %v1974, 0.5
  %v2315 = vmul.f32 %v2165, 0.5
  %v2316 = vmul.f32 %v2167, 0.5
  %v2317 = vmul.f32 %v1976, 0.5
  %v2318 = vmul.f32 %v1978, 0.5
  %v2319 = vmul.f32 %v2169, 0.5
  %v2320 = vmul.f32 %v2171, 0.5
  %v2321 = vmul.f32 %v1982, 0.5
  %v2322 = vmul.f32 %v1984, 0.5
  %v2323 = vmul.f32 %v2175, 0.5
  %v2324 = vmul.f32 %v2177, 0.5
  %v2325 = vmul.f32 %v1986, 0.5
  %v2326 = vmul.f32 %v1988, 0.5
  %v2327 = vmul.f32 %v2179, 0.5
  %v2328 = vmul.f32 %v2181, 0.5
  %v2329 = vmul.f32 %v1992, 0.5
  %v2330 = vmul.f32 %v1994, 0.5
  %v2331 = vmul.f32 %v2185, 0.5
  %v2332 = vmul.f32 %v2187, 0.5
  %v2333 = vmul.f32 %v1996, 0.5
  %v2334 = vmul.f32 %v1998, 0.5
  %v2335 = vmul.f32 %v2189, 0.5
  %v2336 = vmul.f32 %v2191, 0.5
  %v2337 = vmul.f32 %v2002, 0.5
  %v2338 = vmul.f32 %v2004, 0.5
  %v2339 = vmul.f32 %v2195, 0.5
  %v2340 = vmul.f32 %v2197, 0.5
  %v2341 = vmul.f32 %v2006, 0.5
  %v2342 = vmul.f32 %v2008, 0.5
  %v2343 = vmul.f32 %v2199, 0.5
  %v2344 = vmul.f32 %v2201, 0.5
  %v2345 = vmul.f32 %v2012, 0.5
  %v2346 = vmul.f32 %v2014, 0.5
  %v2347 = vmul.f32 %v2205, 0.5
  %v2348 = vmul.f32 %v2207, 0.5
  %v2349 = vmul.f32 %v2016, 0.5
  %v2350 = vmul.f32 %v2018, 0.5
  %v2351 = vmul.f32 %v2209, 0.5
  %v2352 = vmul.f32 %v2211, 0.5
  %v2353 = vmul.f32 %v2022, 0.5
  %v2354 = vmul.f32 %v2024, 0.5
  %v2355 = vmul.f32 %v2215, 0.5
  %v2356 = vmul.f32 %v2217, 0.5
  %v2357 = vmul.f32 %v2026, 0.5
  %v2358 = vmul.f32 %v2028, 0.5
  %v2359 = vmul.f32 %v2219, 0.5
  %v2360 = vmul.f32 %v2221, 0.5
  %v2361 = vmul.f32 %v2032, 0.5
  %v2362 = vmul.f32 %v2034, 0.5
  %v2363 = vmul.f32 %v2225, 0.5
  %v2364 = vmul.f32 %v2227, 0.5
  %v2365 = vmul.f32 %v2036, 0.5
  %v2366 = vmul.f32 %v2038, 0.5
  %v2367 = vmul.f32 %v2229, 0.5
  %v2368 = vmul.f32 %v2231, 0.5
  %v2369 = vmul.f32 %v2042, 0.5
  %v2370 = vmul.f32 %v2044, 0.5
  %v2371 = vmul.f32 %v2235, 0.5
  %v2372 = vmul.f32 %v2237, 0.5
  %v2373 = vmul.f32 %v2046, 0.5
  %v2374 = vmul.f32 %v2048, 0.5
  %v2375 = vmul.f32 %v2239, 0.5
  %v2376 = vmul.f32 %v2241, 0.5
  %v2377 = vmul.f32 %v2052, 0.5
  %v2378 = vmul.f32 %v2054, 0.5
  %v2379 = vmul.f32 %v2245, 0.5
  %v2380 = vmul.f32 %v2247, 0.5
  %v2381 = vmul.f32 %v2056, 0.5
  %v2382 = vmul.f32 %v2058, 0.5
  %v2383 = vmul.f32 %v2249, 0.5
  %v2384 = vmul.f32 %v2251, 0.5
  %v2385 = vmul.f32 %v2062, 0.5
  %v2386 = vmul.f32 %v2064, 0.5
  %v2387 = vmul.f32 %v2255, 0.5
  %v2388 = vmul.f32 %v2257, 0.5
  %v2389 = vmul.f32 %v2066, 0.5
  %v2390 = vmul.f32 %v2068, 0.5
  %v2391 = vmul.f32 %v2259, 0.5
  %v2392 = vmul.f32 %v2261, 0.5
  %v2393 = vmul.f32 %v2072, 0.5
  %v2394 = vmul.f32 %v2074, 0.5
  %v2395 = vmul.f32 %v2265, 0.5
  %v2396 = vmul.f32 %v2267, 0.5
  %v2397 = vmul.f32 %v2076, 0.5
  %v2398 = vmul.f32 %v2078, 0.5
  %v2399 = vmul.f32 %v2269, 0.5
  %v2400 = vmul.f32 %v2271, 0.5
  %v2401 = vmul.f32 %v1922, 0.044715
  %v2402 = vmul.f32 %v1924, 0.044715
  %v2403 = vmul.f32 %v2115, 0.044715
  %v2404 = vmul.f32 %v2117, 0.044715
  %v2405 = vmul.f32 %v1926, 0.044715
  %v2406 = vmul.f32 %v1928, 0.044715
  %v2407 = vmul.f32 %v2119, 0.044715
  %v2408 = vmul.f32 %v2121, 0.044715
  %v2409 = vmul.f32 %v1932, 0.044715
  %v2410 = vmul.f32 %v1934, 0.044715
  %v2411 = vmul.f32 %v2125, 0.044715
  %v2412 = vmul.f32 %v2127, 0.044715
  %v2413 = vmul.f32 %v1936, 0.044715
  %v2414 = vmul.f32 %v1938, 0.044715
  %v2415 = vmul.f32 %v2129, 0.044715
  %v2416 = vmul.f32 %v2131, 0.044715
  %v2417 = vmul.f32 %v1942, 0.044715
  %v2418 = vmul.f32 %v1944, 0.044715
  %v2419 = vmul.f32 %v2135, 0.044715
  %v2420 = vmul.f32 %v2137, 0.044715
  %v2421 = vmul.f32 %v1946, 0.044715
  %v2422 = vmul.f32 %v1948, 0.044715
  %v2423 = vmul.f32 %v2139, 0.044715
  %v2424 = vmul.f32 %v2141, 0.044715
  %v2425 = vmul.f32 %v1952, 0.044715
  %v2426 = vmul.f32 %v1954, 0.044715
  %v2427 = vmul.f32 %v2145, 0.044715
  %v2428 = vmul.f32 %v2147, 0.044715
  %v2429 = vmul.f32 %v1956, 0.044715
  %v2430 = vmul.f32 %v1958, 0.044715
  %v2431 = vmul.f32 %v2149, 0.044715
  %v2432 = vmul.f32 %v2151, 0.044715
  %v2433 = vmul.f32 %v1962, 0.044715
  %v2434 = vmul.f32 %v1964, 0.044715
  %v2435 = vmul.f32 %v2155, 0.044715
  %v2436 = vmul.f32 %v2157, 0.044715
  %v2437 = vmul.f32 %v1966, 0.044715
  %v2438 = vmul.f32 %v1968, 0.044715
  %v2439 = vmul.f32 %v2159, 0.044715
  %v2440 = vmul.f32 %v2161, 0.044715
  %v2441 = vmul.f32 %v1972, 0.044715
  %v2442 = vmul.f32 %v1974, 0.044715
  %v2443 = vmul.f32 %v2165, 0.044715
  %v2444 = vmul.f32 %v2167, 0.044715
  %v2445 = vmul.f32 %v1976, 0.044715
  %v2446 = vmul.f32 %v1978, 0.044715
  %v2447 = vmul.f32 %v2169, 0.044715
  %v2448 = vmul.f32 %v2171, 0.044715
  %v2449 = vmul.f32 %v1982, 0.044715
  %v2450 = vmul.f32 %v1984, 0.044715
  %v2451 = vmul.f32 %v2175, 0.044715
  %v2452 = vmul.f32 %v2177, 0.044715
  %v2453 = vmul.f32 %v1986, 0.044715
  %v2454 = vmul.f32 %v1988, 0.044715
  %v2455 = vmul.f32 %v2179, 0.044715
  %v2456 = vmul.f32 %v2181, 0.044715
  %v2457 = vmul.f32 %v1992, 0.044715
  %v2458 = vmul.f32 %v1994, 0.044715
  %v2459 = vmul.f32 %v2185, 0.044715
  %v2460 = vmul.f32 %v2187, 0.044715
  %v2461 = vmul.f32 %v1996, 0.044715
  %v2462 = vmul.f32 %v1998, 0.044715
  %v2463 = vmul.f32 %v2189, 0.044715
  %v2464 = vmul.f32 %v2191, 0.044715
  %v2465 = vmul.f32 %v2002, 0.044715
  %v2466 = vmul.f32 %v2004, 0.044715
  %v2467 = vmul.f32 %v2195, 0.044715
  %v2468 = vmul.f32 %v2197, 0.044715
  %v2469 = vmul.f32 %v2006, 0.044715
  %v2470 = vmul.f32 %v2008, 0.044715
  %v2471 = vmul.f32 %v2199, 0.044715
  %v2472 = vmul.f32 %v2201, 0.044715
  %v2473 = vmul.f32 %v2012, 0.044715
  %v2474 = vmul.f32 %v2014, 0.044715
  %v2475 = vmul.f32 %v2205, 0.044715
  %v2476 = vmul.f32 %v2207, 0.044715
  %v2477 = vmul.f32 %v2016, 0.044715
  %v2478 = vmul.f32 %v2018, 0.044715
  %v2479 = vmul.f32 %v2209, 0.044715
  %v2480 = vmul.f32 %v2211, 0.044715
  %v2481 = vmul.f32 %v2022, 0.044715
  %v2482 = vmul.f32 %v2024, 0.044715
  %v2483 = vmul.f32 %v2215, 0.044715
  %v2484 = vmul.f32 %v2217, 0.044715
  %v2485 = vmul.f32 %v2026, 0.044715
  %v2486 = vmul.f32 %v2028, 0.044715
  %v2487 = vmul.f32 %v2219, 0.044715
  %v2488 = vmul.f32 %v2221, 0.044715
  %v2489 = vmul.f32 %v2032, 0.044715
  %v2490 = vmul.f32 %v2034, 0.044715
  %v2491 = vmul.f32 %v2225, 0.044715
  %v2492 = vmul.f32 %v2227, 0.044715
  %v2493 = vmul.f32 %v2036, 0.044715
  %v2494 = vmul.f32 %v2038, 0.044715
  %v2495 = vmul.f32 %v2229, 0.044715
  %v2496 = vmul.f32 %v2231, 0.044715
  %v2497 = vmul.f32 %v2042, 0.044715
  %v2498 = vmul.f32 %v2044, 0.044715
  %v2499 = vmul.f32 %v2235, 0.044715
  %v2500 = vmul.f32 %v2237, 0.044715
  %v2501 = vmul.f32 %v2046, 0.044715
  %v2502 = vmul.f32 %v2048, 0.044715
  %v2503 = vmul.f32 %v2239, 0.044715
  %v2504 = vmul.f32 %v2241, 0.044715
  %v2505 = vmul.f32 %v2052, 0.044715
  %v2506 = vmul.f32 %v2054, 0.044715
  %v2507 = vmul.f32 %v2245, 0.044715
  %v2508 = vmul.f32 %v2247, 0.044715
  %v2509 = vmul.f32 %v2056, 0.044715
  %v2510 = vmul.f32 %v2058, 0.044715
  %v2511 = vmul.f32 %v2249, 0.044715
  %v2512 = vmul.f32 %v2251, 0.044715
  %v2513 = vmul.f32 %v2062, 0.044715
  %v2514 = vmul.f32 %v2064, 0.044715
  %v2515 = vmul.f32 %v2255, 0.044715
  %v2516 = vmul.f32 %v2257, 0.044715
  %v2517 = vmul.f32 %v2066, 0.044715
  %v2518 = vmul.f32 %v2068, 0.044715
  %v2519 = vmul.f32 %v2259, 0.044715
  %v2520 = vmul.f32 %v2261, 0.044715
  %v2521 = vmul.f32 %v2072, 0.044715
  %v2522 = vmul.f32 %v2074, 0.044715
  %v2523 = vmul.f32 %v2265, 0.044715
  %v2524 = vmul.f32 %v2267, 0.044715
  %v2525 = vmul.f32 %v2076, 0.044715
  %v2526 = vmul.f32 %v2078, 0.044715
  %v2527 = vmul.f32 %v2269, 0.044715
  %v2528 = vmul.f32 %v2271, 0.044715
  %v2529 = vmul.f32 %v2401, %v1922
  %v2530 = vmul.f32 %v2402, %v1924
  %v2531 = vmul.f32 %v2403, %v2115
  %v2532 = vmul.f32 %v2404, %v2117
  %v2533 = vmul.f32 %v2405, %v1926
  %v2534 = vmul.f32 %v2406, %v1928
  %v2535 = vmul.f32 %v2407, %v2119
  %v2536 = vmul.f32 %v2408, %v2121
  %v2537 = vmul.f32 %v2409, %v1932
  %v2538 = vmul.f32 %v2410, %v1934
  %v2539 = vmul.f32 %v2411, %v2125
  %v2540 = vmul.f32 %v2412, %v2127
  %v2541 = vmul.f32 %v2413, %v1936
  %v2542 = vmul.f32 %v2414, %v1938
  %v2543 = vmul.f32 %v2415, %v2129
  %v2544 = vmul.f32 %v2416, %v2131
  %v2545 = vmul.f32 %v2417, %v1942
  %v2546 = vmul.f32 %v2418, %v1944
  %v2547 = vmul.f32 %v2419, %v2135
  %v2548 = vmul.f32 %v2420, %v2137
  %v2549 = vmul.f32 %v2421, %v1946
  %v2550 = vmul.f32 %v2422, %v1948
  %v2551 = vmul.f32 %v2423, %v2139
  %v2552 = vmul.f32 %v2424, %v2141
  %v2553 = vmul.f32 %v2425, %v1952
  %v2554 = vmul.f32 %v2426, %v1954
  %v2555 = vmul.f32 %v2427, %v2145
  %v2556 = vmul.f32 %v2428, %v2147
  %v2557 = vmul.f32 %v2429, %v1956
  %v2558 = vmul.f32 %v2430, %v1958
  %v2559 = vmul.f32 %v2431, %v2149
  %v2560 = vmul.f32 %v2432, %v2151
  %v2561 = vmul.f32 %v2433, %v1962
  %v2562 = vmul.f32 %v2434, %v1964
  %v2563 = vmul.f32 %v2435, %v2155
  %v2564 = vmul.f32 %v2436, %v2157
  %v2565 = vmul.f32 %v2437, %v1966
  %v2566 = vmul.f32 %v2438, %v1968
  %v2567 = vmul.f32 %v2439, %v2159
  %v2568 = vmul.f32 %v2440, %v2161
  %v2569 = vmul.f32 %v2441, %v1972
  %v2570 = vmul.f32 %v2442, %v1974
  %v2571 = vmul.f32 %v2443, %v2165
  %v2572 = vmul.f32 %v2444, %v2167
  %v2573 = vmul.f32 %v2445, %v1976
  %v2574 = vmul.f32 %v2446, %v1978
  %v2575 = vmul.f32 %v2447, %v2169
  %v2576 = vmul.f32 %v2448, %v2171
  %v2577 = vmul.f32 %v2449, %v1982
  %v2578 = vmul.f32 %v2450, %v1984
  %v2579 = vmul.f32 %v2451, %v2175
  %v2580 = vmul.f32 %v2452, %v2177
  %v2581 = vmul.f32 %v2453, %v1986
  %v2582 = vmul.f32 %v2454, %v1988
  %v2583 = vmul.f32 %v2455, %v2179
  %v2584 = vmul.f32 %v2456, %v2181
  %v2585 = vmul.f32 %v2457, %v1992
  %v2586 = vmul.f32 %v2458, %v1994
  %v2587 = vmul.f32 %v2459, %v2185
  %v2588 = vmul.f32 %v2460, %v2187
  %v2589 = vmul.f32 %v2461, %v1996
  %v2590 = vmul.f32 %v2462, %v1998
  %v2591 = vmul.f32 %v2463, %v2189
  %v2592 = vmul.f32 %v2464, %v2191
  %v2593 = vmul.f32 %v2465, %v2002
  %v2594 = vmul.f32 %v2466, %v2004
  %v2595 = vmul.f32 %v2467, %v2195
  %v2596 = vmul.f32 %v2468, %v2197
  %v2597 = vmul.f32 %v2469, %v2006
  %v2598 = vmul.f32 %v2470, %v2008
  %v2599 = vmul.f32 %v2471, %v2199
  %v2600 = vmul.f32 %v2472, %v2201
  %v2601 = vmul.f32 %v2473, %v2012
  %v2602 = vmul.f32 %v2474, %v2014
  %v2603 = vmul.f32 %v2475, %v2205
  %v2604 = vmul.f32 %v2476, %v2207
  %v2605 = vmul.f32 %v2477, %v2016
  %v2606 = vmul.f32 %v2478, %v2018
  %v2607 = vmul.f32 %v2479, %v2209
  %v2608 = vmul.f32 %v2480, %v2211
  %v2609 = vmul.f32 %v2481, %v2022
  %v2610 = vmul.f32 %v2482, %v2024
  %v2611 = vmul.f32 %v2483, %v2215
  %v2612 = vmul.f32 %v2484, %v2217
  %v2613 = vmul.f32 %v2485, %v2026
  %v2614 = vmul.f32 %v2486, %v2028
  %v2615 = vmul.f32 %v2487, %v2219
  %v2616 = vmul.f32 %v2488, %v2221
  %v2617 = vmul.f32 %v2489, %v2032
  %v2618 = vmul.f32 %v2490, %v2034
  %v2619 = vmul.f32 %v2491, %v2225
  %v2620 = vmul.f32 %v2492, %v2227
  %v2621 = vmul.f32 %v2493, %v2036
  %v2622 = vmul.f32 %v2494, %v2038
  %v2623 = vmul.f32 %v2495, %v2229
  %v2624 = vmul.f32 %v2496, %v2231
  %v2625 = vmul.f32 %v2497, %v2042
  %v2626 = vmul.f32 %v2498, %v2044
  %v2627 = vmul.f32 %v2499, %v2235
  %v2628 = vmul.f32 %v2500, %v2237
  %v2629 = vmul.f32 %v2501, %v2046
  %v2630 = vmul.f32 %v2502, %v2048
  %v2631 = vmul.f32 %v2503, %v2239
  %v2632 = vmul.f32 %v2504, %v2241
  %v2633 = vmul.f32 %v2505, %v2052
  %v2634 = vmul.f32 %v2506, %v2054
  %v2635 = vmul.f32 %v2507, %v2245
  %v2636 = vmul.f32 %v2508, %v2247
  %v2637 = vmul.f32 %v2509, %v2056
  %v2638 = vmul.f32 %v2510, %v2058
  %v2639 = vmul.f32 %v2511, %v2249
  %v2640 = vmul.f32 %v2512, %v2251
  %v2641 = vmul.f32 %v2513, %v2062
  %v2642 = vmul.f32 %v2514, %v2064
  %v2643 = vmul.f32 %v2515, %v2255
  %v2644 = vmul.f32 %v2516, %v2257
  %v2645 = vmul.f32 %v2517, %v2066
  %v2646 = vmul.f32 %v2518, %v2068
  %v2647 = vmul.f32 %v2519, %v2259
  %v2648 = vmul.f32 %v2520, %v2261
  %v2649 = vmul.f32 %v2521, %v2072
  %v2650 = vmul.f32 %v2522, %v2074
  %v2651 = vmul.f32 %v2523, %v2265
  %v2652 = vmul.f32 %v2524, %v2267
  %v2653 = vmul.f32 %v2525, %v2076
  %v2654 = vmul.f32 %v2526, %v2078
  %v2655 = vmul.f32 %v2527, %v2269
  %v2656 = vmul.f32 %v2528, %v2271
  %v2657 = vmul.f32 %v2529, %v1922
  %v2658 = vmul.f32 %v2530, %v1924
  %v2659 = vmul.f32 %v2531, %v2115
  %v2660 = vmul.f32 %v2532, %v2117
  %v2661 = vmul.f32 %v2533, %v1926
  %v2662 = vmul.f32 %v2534, %v1928
  %v2663 = vmul.f32 %v2535, %v2119
  %v2664 = vmul.f32 %v2536, %v2121
  %v2665 = vmul.f32 %v2537, %v1932
  %v2666 = vmul.f32 %v2538, %v1934
  %v2667 = vmul.f32 %v2539, %v2125
  %v2668 = vmul.f32 %v2540, %v2127
  %v2669 = vmul.f32 %v2541, %v1936
  %v2670 = vmul.f32 %v2542, %v1938
  %v2671 = vmul.f32 %v2543, %v2129
  %v2672 = vmul.f32 %v2544, %v2131
  %v2673 = vmul.f32 %v2545, %v1942
  %v2674 = vmul.f32 %v2546, %v1944
  %v2675 = vmul.f32 %v2547, %v2135
  %v2676 = vmul.f32 %v2548, %v2137
  %v2677 = vmul.f32 %v2549, %v1946
  %v2678 = vmul.f32 %v2550, %v1948
  %v2679 = vmul.f32 %v2551, %v2139
  %v2680 = vmul.f32 %v2552, %v2141
  %v2681 = vmul.f32 %v2553, %v1952
  %v2682 = vmul.f32 %v2554, %v1954
  %v2683 = vmul.f32 %v2555, %v2145
  %v2684 = vmul.f32 %v2556, %v2147
  %v2685 = vmul.f32 %v2557, %v1956
  %v2686 = vmul.f32 %v2558, %v1958
  %v2687 = vmul.f32 %v2559, %v2149
  %v2688 = vmul.f32 %v2560, %v2151
  %v2689 = vmul.f32 %v2561, %v1962
  %v2690 = vmul.f32 %v2562, %v1964
  %v2691 = vmul.f32 %v2563, %v2155
  %v2692 = vmul.f32 %v2564, %v2157
  %v2693 = vmul.f32 %v2565, %v1966
  %v2694 = vmul.f32 %v2566, %v1968
  %v2695 = vmul.f32 %v2567, %v2159
  %v2696 = vmul.f32 %v2568, %v2161
  %v2697 = vmul.f32 %v2569, %v1972
  %v2698 = vmul.f32 %v2570, %v1974
  %v2699 = vmul.f32 %v2571, %v2165
  %v2700 = vmul.f32 %v2572, %v2167
  %v2701 = vmul.f32 %v2573, %v1976
  %v2702 = vmul.f32 %v2574, %v1978
  %v2703 = vmul.f32 %v2575, %v2169
  %v2704 = vmul.f32 %v2576, %v2171
  %v2705 = vmul.f32 %v2577, %v1982
  %v2706 = vmul.f32 %v2578, %v1984
  %v2707 = vmul.f32 %v2579, %v2175
  %v2708 = vmul.f32 %v2580, %v2177
  %v2709 = vmul.f32 %v2581, %v1986
  %v2710 = vmul.f32 %v2582, %v1988
  %v2711 = vmul.f32 %v2583, %v2179
  %v2712 = vmul.f32 %v2584, %v2181
  %v2713 = vmul.f32 %v2585, %v1992
  %v2714 = vmul.f32 %v2586, %v1994
  %v2715 = vmul.f32 %v2587, %v2185
  %v2716 = vmul.f32 %v2588, %v2187
  %v2717 = vmul.f32 %v2589, %v1996
  %v2718 = vmul.f32 %v2590, %v1998
  %v2719 = vmul.f32 %v2591, %v2189
  %v2720 = vmul.f32 %v2592, %v2191
  %v2721 = vmul.f32 %v2593, %v2002
  %v2722 = vmul.f32 %v2594, %v2004
  %v2723 = vmul.f32 %v2595, %v2195
  %v2724 = vmul.f32 %v2596, %v2197
  %v2725 = vmul.f32 %v2597, %v2006
  %v2726 = vmul.f32 %v2598, %v2008
  %v2727 = vmul.f32 %v2599, %v2199
  %v2728 = vmul.f32 %v2600, %v2201
  %v2729 = vmul.f32 %v2601, %v2012
  %v2730 = vmul.f32 %v2602, %v2014
  %v2731 = vmul.f32 %v2603, %v2205
  %v2732 = vmul.f32 %v2604, %v2207
  %v2733 = vmul.f32 %v2605, %v2016
  %v2734 = vmul.f32 %v2606, %v2018
  %v2735 = vmul.f32 %v2607, %v2209
  %v2736 = vmul.f32 %v2608, %v2211
  %v2737 = vmul.f32 %v2609, %v2022
  %v2738 = vmul.f32 %v2610, %v2024
  %v2739 = vmul.f32 %v2611, %v2215
  %v2740 = vmul.f32 %v2612, %v2217
  %v2741 = vmul.f32 %v2613, %v2026
  %v2742 = vmul.f32 %v2614, %v2028
  %v2743 = vmul.f32 %v2615, %v2219
  %v2744 = vmul.f32 %v2616, %v2221
  %v2745 = vmul.f32 %v2617, %v2032
  %v2746 = vmul.f32 %v2618, %v2034
  %v2747 = vmul.f32 %v2619, %v2225
  %v2748 = vmul.f32 %v2620, %v2227
  %v2749 = vmul.f32 %v2621, %v2036
  %v2750 = vmul.f32 %v2622, %v2038
  %v2751 = vmul.f32 %v2623, %v2229
  %v2752 = vmul.f32 %v2624, %v2231
  %v2753 = vmul.f32 %v2625, %v2042
  %v2754 = vmul.f32 %v2626, %v2044
  %v2755 = vmul.f32 %v2627, %v2235
  %v2756 = vmul.f32 %v2628, %v2237
  %v2757 = vmul.f32 %v2629, %v2046
  %v2758 = vmul.f32 %v2630, %v2048
  %v2759 = vmul.f32 %v2631, %v2239
  %v2760 = vmul.f32 %v2632, %v2241
  %v2761 = vmul.f32 %v2633, %v2052
  %v2762 = vmul.f32 %v2634, %v2054
  %v2763 = vmul.f32 %v2635, %v2245
  %v2764 = vmul.f32 %v2636, %v2247
  %v2765 = vmul.f32 %v2637, %v2056
  %v2766 = vmul.f32 %v2638, %v2058
  %v2767 = vmul.f32 %v2639, %v2249
  %v2768 = vmul.f32 %v2640, %v2251
  %v2769 = vmul.f32 %v2641, %v2062
  %v2770 = vmul.f32 %v2642, %v2064
  %v2771 = vmul.f32 %v2643, %v2255
  %v2772 = vmul.f32 %v2644, %v2257
  %v2773 = vmul.f32 %v2645, %v2066
  %v2774 = vmul.f32 %v2646, %v2068
  %v2775 = vmul.f32 %v2647, %v2259
  %v2776 = vmul.f32 %v2648, %v2261
  %v2777 = vmul.f32 %v2649, %v2072
  %v2778 = vmul.f32 %v2650, %v2074
  %v2779 = vmul.f32 %v2651, %v2265
  %v2780 = vmul.f32 %v2652, %v2267
  %v2781 = vmul.f32 %v2653, %v2076
  %v2782 = vmul.f32 %v2654, %v2078
  %v2783 = vmul.f32 %v2655, %v2269
  %v2784 = vmul.f32 %v2656, %v2271
  %v2785 = vadd.f32 %v1922, %v2657
  %v2786 = vadd.f32 %v1924, %v2658
  %v2787 = vadd.f32 %v2115, %v2659
  %v2788 = vadd.f32 %v2117, %v2660
  %v2789 = vadd.f32 %v1926, %v2661
  %v2790 = vadd.f32 %v1928, %v2662
  %v2791 = vadd.f32 %v2119, %v2663
  %v2792 = vadd.f32 %v2121, %v2664
  %v2793 = vadd.f32 %v1932, %v2665
  %v2794 = vadd.f32 %v1934, %v2666
  %v2795 = vadd.f32 %v2125, %v2667
  %v2796 = vadd.f32 %v2127, %v2668
  %v2797 = vadd.f32 %v1936, %v2669
  %v2798 = vadd.f32 %v1938, %v2670
  %v2799 = vadd.f32 %v2129, %v2671
  %v2800 = vadd.f32 %v2131, %v2672
  %v2801 = vadd.f32 %v1942, %v2673
  %v2802 = vadd.f32 %v1944, %v2674
  %v2803 = vadd.f32 %v2135, %v2675
  %v2804 = vadd.f32 %v2137, %v2676
  %v2805 = vadd.f32 %v1946, %v2677
  %v2806 = vadd.f32 %v1948, %v2678
  %v2807 = vadd.f32 %v2139, %v2679
  %v2808 = vadd.f32 %v2141, %v2680
  %v2809 = vadd.f32 %v1952, %v2681
  %v2810 = vadd.f32 %v1954, %v2682
  %v2811 = vadd.f32 %v2145, %v2683
  %v2812 = vadd.f32 %v2147, %v2684
  %v2813 = vadd.f32 %v1956, %v2685
  %v2814 = vadd.f32 %v1958, %v2686
  %v2815 = vadd.f32 %v2149, %v2687
  %v2816 = vadd.f32 %v2151, %v2688
  %v2817 = vadd.f32 %v1962, %v2689
  %v2818 = vadd.f32 %v1964, %v2690
  %v2819 = vadd.f32 %v2155, %v2691
  %v2820 = vadd.f32 %v2157, %v2692
  %v2821 = vadd.f32 %v1966, %v2693
  %v2822 = vadd.f32 %v1968, %v2694
  %v2823 = vadd.f32 %v2159, %v2695
  %v2824 = vadd.f32 %v2161, %v2696
  %v2825 = vadd.f32 %v1972, %v2697
  %v2826 = vadd.f32 %v1974, %v2698
  %v2827 = vadd.f32 %v2165, %v2699
  %v2828 = vadd.f32 %v2167, %v2700
  %v2829 = vadd.f32 %v1976, %v2701
  %v2830 = vadd.f32 %v1978, %v2702
  %v2831 = vadd.f32 %v2169, %v2703
  %v2832 = vadd.f32 %v2171, %v2704
  %v2833 = vadd.f32 %v1982, %v2705
  %v2834 = vadd.f32 %v1984, %v2706
  %v2835 = vadd.f32 %v2175, %v2707
  %v2836 = vadd.f32 %v2177, %v2708
  %v2837 = vadd.f32 %v1986, %v2709
  %v2838 = vadd.f32 %v1988, %v2710
  %v2839 = vadd.f32 %v2179, %v2711
  %v2840 = vadd.f32 %v2181, %v2712
  %v2841 = vadd.f32 %v1992, %v2713
  %v2842 = vadd.f32 %v1994, %v2714
  %v2843 = vadd.f32 %v2185, %v2715
  %v2844 = vadd.f32 %v2187, %v2716
  %v2845 = vadd.f32 %v1996, %v2717
  %v2846 = vadd.f32 %v1998, %v2718
  %v2847 = vadd.f32 %v2189, %v2719
  %v2848 = vadd.f32 %v2191, %v2720
  %v2849 = vadd.f32 %v2002, %v2721
  %v2850 = vadd.f32 %v2004, %v2722
  %v2851 = vadd.f32 %v2195, %v2723
  %v2852 = vadd.f32 %v2197, %v2724
  %v2853 = vadd.f32 %v2006, %v2725
  %v2854 = vadd.f32 %v2008, %v2726
  %v2855 = vadd.f32 %v2199, %v2727
  %v2856 = vadd.f32 %v2201, %v2728
  %v2857 = vadd.f32 %v2012, %v2729
  %v2858 = vadd.f32 %v2014, %v2730
  %v2859 = vadd.f32 %v2205, %v2731
  %v2860 = vadd.f32 %v2207, %v2732
  %v2861 = vadd.f32 %v2016, %v2733
  %v2862 = vadd.f32 %v2018, %v2734
  %v2863 = vadd.f32 %v2209, %v2735
  %v2864 = vadd.f32 %v2211, %v2736
  %v2865 = vadd.f32 %v2022, %v2737
  %v2866 = vadd.f32 %v2024, %v2738
  %v2867 = vadd.f32 %v2215, %v2739
  %v2868 = vadd.f32 %v2217, %v2740
  %v2869 = vadd.f32 %v2026, %v2741
  %v2870 = vadd.f32 %v2028, %v2742
  %v2871 = vadd.f32 %v2219, %v2743
  %v2872 = vadd.f32 %v2221, %v2744
  %v2873 = vadd.f32 %v2032, %v2745
  %v2874 = vadd.f32 %v2034, %v2746
  %v2875 = vadd.f32 %v2225, %v2747
  %v2876 = vadd.f32 %v2227, %v2748
  %v2877 = vadd.f32 %v2036, %v2749
  %v2878 = vadd.f32 %v2038, %v2750
  %v2879 = vadd.f32 %v2229, %v2751
  %v2880 = vadd.f32 %v2231, %v2752
  %v2881 = vadd.f32 %v2042, %v2753
  %v2882 = vadd.f32 %v2044, %v2754
  %v2883 = vadd.f32 %v2235, %v2755
  %v2884 = vadd.f32 %v2237, %v2756
  %v2885 = vadd.f32 %v2046, %v2757
  %v2886 = vadd.f32 %v2048, %v2758
  %v2887 = vadd.f32 %v2239, %v2759
  %v2888 = vadd.f32 %v2241, %v2760
  %v2889 = vadd.f32 %v2052, %v2761
  %v2890 = vadd.f32 %v2054, %v2762
  %v2891 = vadd.f32 %v2245, %v2763
  %v2892 = vadd.f32 %v2247, %v2764
  %v2893 = vadd.f32 %v2056, %v2765
  %v2894 = vadd.f32 %v2058, %v2766
  %v2895 = vadd.f32 %v2249, %v2767
  %v2896 = vadd.f32 %v2251, %v2768
  %v2897 = vadd.f32 %v2062, %v2769
  %v2898 = vadd.f32 %v2064, %v2770
  %v2899 = vadd.f32 %v2255, %v2771
  %v2900 = vadd.f32 %v2257, %v2772
  %v2901 = vadd.f32 %v2066, %v2773
  %v2902 = vadd.f32 %v2068, %v2774
  %v2903 = vadd.f32 %v2259, %v2775
  %v2904 = vadd.f32 %v2261, %v2776
  %v2905 = vadd.f32 %v2072, %v2777
  %v2906 = vadd.f32 %v2074, %v2778
  %v2907 = vadd.f32 %v2265, %v2779
  %v2908 = vadd.f32 %v2267, %v2780
  %v2909 = vadd.f32 %v2076, %v2781
  %v2910 = vadd.f32 %v2078, %v2782
  %v2911 = vadd.f32 %v2269, %v2783
  %v2912 = vadd.f32 %v2271, %v2784
  %v2913 = vmul.f32 %v2785, 0.7978846
  %v2914 = vmul.f32 %v2786, 0.7978846
  %v2915 = vmul.f32 %v2787, 0.7978846
  %v2916 = vmul.f32 %v2788, 0.7978846
  %v2917 = vmul.f32 %v2789, 0.7978846
  %v2918 = vmul.f32 %v2790, 0.7978846
  %v2919 = vmul.f32 %v2791, 0.7978846
  %v2920 = vmul.f32 %v2792, 0.7978846
  %v2921 = vmul.f32 %v2793, 0.7978846
  %v2922 = vmul.f32 %v2794, 0.7978846
  %v2923 = vmul.f32 %v2795, 0.7978846
  %v2924 = vmul.f32 %v2796, 0.7978846
  %v2925 = vmul.f32 %v2797, 0.7978846
  %v2926 = vmul.f32 %v2798, 0.7978846
  %v2927 = vmul.f32 %v2799, 0.7978846
  %v2928 = vmul.f32 %v2800, 0.7978846
  %v2929 = vmul.f32 %v2801, 0.7978846
  %v2930 = vmul.f32 %v2802, 0.7978846
  %v2931 = vmul.f32 %v2803, 0.7978846
  %v2932 = vmul.f32 %v2804, 0.7978846
  %v2933 = vmul.f32 %v2805, 0.7978846
  %v2934 = vmul.f32 %v2806, 0.7978846
  %v2935 = vmul.f32 %v2807, 0.7978846
  %v2936 = vmul.f32 %v2808, 0.7978846
  %v2937 = vmul.f32 %v2809, 0.7978846
  %v2938 = vmul.f32 %v2810, 0.7978846
  %v2939 = vmul.f32 %v2811, 0.7978846
  %v2940 = vmul.f32 %v2812, 0.7978846
  %v2941 = vmul.f32 %v2813, 0.7978846
  %v2942 = vmul.f32 %v2814, 0.7978846
  %v2943 = vmul.f32 %v2815, 0.7978846
  %v2944 = vmul.f32 %v2816, 0.7978846
  %v2945 = vmul.f32 %v2817, 0.7978846
  %v2946 = vmul.f32 %v2818, 0.7978846
  %v2947 = vmul.f32 %v2819, 0.7978846
  %v2948 = vmul.f32 %v2820, 0.7978846
  %v2949 = vmul.f32 %v2821, 0.7978846
  %v2950 = vmul.f32 %v2822, 0.7978846
  %v2951 = vmul.f32 %v2823, 0.7978846
  %v2952 = vmul.f32 %v2824, 0.7978846
  %v2953 = vmul.f32 %v2825, 0.7978846
  %v2954 = vmul.f32 %v2826, 0.7978846
  %v2955 = vmul.f32 %v2827, 0.7978846
  %v2956 = vmul.f32 %v2828, 0.7978846
  %v2957 = vmul.f32 %v2829, 0.7978846
  %v2958 = vmul.f32 %v2830, 0.7978846
  %v2959 = vmul.f32 %v2831, 0.7978846
  %v2960 = vmul.f32 %v2832, 0.7978846
  %v2961 = vmul.f32 %v2833, 0.7978846
  %v2962 = vmul.f32 %v2834, 0.7978846
  %v2963 = vmul.f32 %v2835, 0.7978846
  %v2964 = vmul.f32 %v2836, 0.7978846
  %v2965 = vmul.f32 %v2837, 0.7978846
  %v2966 = vmul.f32 %v2838, 0.7978846
  %v2967 = vmul.f32 %v2839, 0.7978846
  %v2968 = vmul.f32 %v2840, 0.7978846
  %v2969 = vmul.f32 %v2841, 0.7978846
  %v2970 = vmul.f32 %v2842, 0.7978846
  %v2971 = vmul.f32 %v2843, 0.7978846
  %v2972 = vmul.f32 %v2844, 0.7978846
  %v2973 = vmul.f32 %v2845, 0.7978846
  %v2974 = vmul.f32 %v2846, 0.7978846
  %v2975 = vmul.f32 %v2847, 0.7978846
  %v2976 = vmul.f32 %v2848, 0.7978846
  %v2977 = vmul.f32 %v2849, 0.7978846
  %v2978 = vmul.f32 %v2850, 0.7978846
  %v2979 = vmul.f32 %v2851, 0.7978846
  %v2980 = vmul.f32 %v2852, 0.7978846
  %v2981 = vmul.f32 %v2853, 0.7978846
  %v2982 = vmul.f32 %v2854, 0.7978846
  %v2983 = vmul.f32 %v2855, 0.7978846
  %v2984 = vmul.f32 %v2856, 0.7978846
  %v2985 = vmul.f32 %v2857, 0.7978846
  %v2986 = vmul.f32 %v2858, 0.7978846
  %v2987 = vmul.f32 %v2859, 0.7978846
  %v2988 = vmul.f32 %v2860, 0.7978846
  %v2989 = vmul.f32 %v2861, 0.7978846
  %v2990 = vmul.f32 %v2862, 0.7978846
  %v2991 = vmul.f32 %v2863, 0.7978846
  %v2992 = vmul.f32 %v2864, 0.7978846
  %v2993 = vmul.f32 %v2865, 0.7978846
  %v2994 = vmul.f32 %v2866, 0.7978846
  %v2995 = vmul.f32 %v2867, 0.7978846
  %v2996 = vmul.f32 %v2868, 0.7978846
  %v2997 = vmul.f32 %v2869, 0.7978846
  %v2998 = vmul.f32 %v2870, 0.7978846
  %v2999 = vmul.f32 %v2871, 0.7978846
  %v3000 = vmul.f32 %v2872, 0.7978846
  %v3001 = vmul.f32 %v2873, 0.7978846
  %v3002 = vmul.f32 %v2874, 0.7978846
  %v3003 = vmul.f32 %v2875, 0.7978846
  %v3004 = vmul.f32 %v2876, 0.7978846
  %v3005 = vmul.f32 %v2877, 0.7978846
  %v3006 = vmul.f32 %v2878, 0.7978846
  %v3007 = vmul.f32 %v2879, 0.7978846
  %v3008 = vmul.f32 %v2880, 0.7978846
  %v3009 = vmul.f32 %v2881, 0.7978846
  %v3010 = vmul.f32 %v2882, 0.7978846
  %v3011 = vmul.f32 %v2883, 0.7978846
  %v3012 = vmul.f32 %v2884, 0.7978846
  %v3013 = vmul.f32 %v2885, 0.7978846
  %v3014 = vmul.f32 %v2886, 0.7978846
  %v3015 = vmul.f32 %v2887, 0.7978846
  %v3016 = vmul.f32 %v2888, 0.7978846
  %v3017 = vmul.f32 %v2889, 0.7978846
  %v3018 = vmul.f32 %v2890, 0.7978846
  %v3019 = vmul.f32 %v2891, 0.7978846
  %v3020 = vmul.f32 %v2892, 0.7978846
  %v3021 = vmul.f32 %v2893, 0.7978846
  %v3022 = vmul.f32 %v2894, 0.7978846
  %v3023 = vmul.f32 %v2895, 0.7978846
  %v3024 = vmul.f32 %v2896, 0.7978846
  %v3025 = vmul.f32 %v2897, 0.7978846
  %v3026 = vmul.f32 %v2898, 0.7978846
  %v3027 = vmul.f32 %v2899, 0.7978846
  %v3028 = vmul.f32 %v2900, 0.7978846
  %v3029 = vmul.f32 %v2901, 0.7978846
  %v3030 = vmul.f32 %v2902, 0.7978846
  %v3031 = vmul.f32 %v2903, 0.7978846
  %v3032 = vmul.f32 %v2904, 0.7978846
  %v3033 = vmul.f32 %v2905, 0.7978846
  %v3034 = vmul.f32 %v2906, 0.7978846
  %v3035 = vmul.f32 %v2907, 0.7978846
  %v3036 = vmul.f32 %v2908, 0.7978846
  %v3037 = vmul.f32 %v2909, 0.7978846
  %v3038 = vmul.f32 %v2910, 0.7978846
  %v3039 = vmul.f32 %v2911, 0.7978846
  %v3040 = vmul.f32 %v2912, 0.7978846
  %v3041 = vtanh.pop %v2913
  %v3042 = vtanh.pop %v2914
  %v3043 = vtanh.pop %v2915
  %v3044 = vtanh.pop %v2916
  %v3045 = vtanh.pop %v2917
  %v3046 = vtanh.pop %v2918
  %v3047 = vtanh.pop %v2919
  %v3048 = vtanh.pop %v2920
  %v3049 = vtanh.pop %v2921
  %v3050 = vtanh.pop %v2922
  %v3051 = vtanh.pop %v2923
  %v3052 = vtanh.pop %v2924
  %v3053 = vtanh.pop %v2925
  %v3054 = vtanh.pop %v2926
  %v3055 = vtanh.pop %v2927
  %v3056 = vtanh.pop %v2928
  %v3057 = vtanh.pop %v2929
  %v3058 = vtanh.pop %v2930
  %v3059 = vtanh.pop %v2931
  %v3060 = vtanh.pop %v2932
  %v3061 = vtanh.pop %v2933
  %v3062 = vtanh.pop %v2934
  %v3063 = vtanh.pop %v2935
  %v3064 = vtanh.pop %v2936
  %v3065 = vtanh.pop %v2937
  %v3066 = vtanh.pop %v2938
  %v3067 = vtanh.pop %v2939
  %v3068 = vtanh.pop %v2940
  %v3069 = vtanh.pop %v2941
  %v3070 = vtanh.pop %v2942
  %v3071 = vtanh.pop %v2943
  %v3072 = vtanh.pop %v2944
  %v3073 = vtanh.pop %v2945
  %v3074 = vtanh.pop %v2946
  %v3075 = vtanh.pop %v2947
  %v3076 = vtanh.pop %v2948
  %v3077 = vtanh.pop %v2949
  %v3078 = vtanh.pop %v2950
  %v3079 = vtanh.pop %v2951
  %v3080 = vtanh.pop %v2952
  %v3081 = vtanh.pop %v2953
  %v3082 = vtanh.pop %v2954
  %v3083 = vtanh.pop %v2955
  %v3084 = vtanh.pop %v2956
  %v3085 = vtanh.pop %v2957
  %v3086 = vtanh.pop %v2958
  %v3087 = vtanh.pop %v2959
  %v3088 = vtanh.pop %v2960
  %v3089 = vtanh.pop %v2961
  %v3090 = vtanh.pop %v2962
  %v3091 = vtanh.pop %v2963
  %v3092 = vtanh.pop %v2964
  %v3093 = vtanh.pop %v2965
  %v3094 = vtanh.pop %v2966
  %v3095 = vtanh.pop %v2967
  %v3096 = vtanh.pop %v2968
  %v3097 = vtanh.pop %v2969
  %v3098 = vtanh.pop %v2970
  %v3099 = vtanh.pop %v2971
  %v3100 = vtanh.pop %v2972
  %v3101 = vtanh.pop %v2973
  %v3102 = vtanh.pop %v2974
  %v3103 = vtanh.pop %v2975
  %v3104 = vtanh.pop %v2976
  %v3105 = vtanh.pop %v2977
  %v3106 = vtanh.pop %v2978
  %v3107 = vtanh.pop %v2979
  %v3108 = vtanh.pop %v2980
  %v3109 = vtanh.pop %v2981
  %v3110 = vtanh.pop %v2982
  %v3111 = vtanh.pop %v2983
  %v3112 = vtanh.pop %v2984
  %v3113 = vtanh.pop %v2985
  %v3114 = vtanh.pop %v2986
  %v3115 = vtanh.pop %v2987
  %v3116 = vtanh.pop %v2988
  %v3117 = vtanh.pop %v2989
  %v3118 = vtanh.pop %v2990
  %v3119 = vtanh.pop %v2991
  %v3120 = vtanh.pop %v2992
  %v3121 = vtanh.pop %v2993
  %v3122 = vtanh.pop %v2994
  %v3123 = vtanh.pop %v2995
  %v3124 = vtanh.pop %v2996
  %v3125 = vtanh.pop %v2997
  %v3126 = vtanh.pop %v2998
  %v3127 = vtanh.pop %v2999
  %v3128 = vtanh.pop %v3000
  %v3129 = vtanh.pop %v3001
  %v3130 = vtanh.pop %v3002
  %v3131 = vtanh.pop %v3003
  %v3132 = vtanh.pop %v3004
  %v3133 = vtanh.pop %v3005
  %v3134 = vtanh.pop %v3006
  %v3135 = vtanh.pop %v3007
  %v3136 = vtanh.pop %v3008
  %v3137 = vtanh.pop %v3009
  %v3138 = vtanh.pop %v3010
  %v3139 = vtanh.pop %v3011
  %v3140 = vtanh.pop %v3012
  %v3141 = vtanh.pop %v3013
  %v3142 = vtanh.pop %v3014
  %v3143 = vtanh.pop %v3015
  %v3144 = vtanh.pop %v3016
  %v3145 = vtanh.pop %v3017
  %v3146 = vtanh.pop %v3018
  %v3147 = vtanh.pop %v3019
  %v3148 = vtanh.pop %v3020
  %v3149 = vtanh.pop %v3021
  %v3150 = vtanh.pop %v3022
  %v3151 = vtanh.pop %v3023
  %v3152 = vtanh.pop %v3024
  %v3153 = vtanh.pop %v3025
  %v3154 = vtanh.pop %v3026
  %v3155 = vtanh.pop %v3027
  %v3156 = vtanh.pop %v3028
  %v3157 = vtanh.pop %v3029
  %v3158 = vtanh.pop %v3030
  %v3159 = vtanh.pop %v3031
  %v3160 = vtanh.pop %v3032
  %v3161 = vtanh.pop %v3033
  %v3162 = vtanh.pop %v3034
  %v3163 = vtanh.pop %v3035
  %v3164 = vtanh.pop %v3036
  %v3165 = vtanh.pop %v3037
  %v3166 = vtanh.pop %v3038
  %v3167 = vtanh.pop %v3039
  %v3168 = vtanh.pop %v3040
  %v3169 = vadd.f32 %v3041, 1.0
  %v3170 = vadd.f32 %v3042, 1.0
  %v3171 = vadd.f32 %v3043, 1.0
  %v3172 = vadd.f32 %v3044, 1.0
  %v3173 = vadd.f32 %v3045, 1.0
  %v3174 = vadd.f32 %v3046, 1.0
  %v3175 = vadd.f32 %v3047, 1.0
  %v3176 = vadd.f32 %v3048, 1.0
  %v3177 = vadd.f32 %v3049, 1.0
  %v3178 = vadd.f32 %v3050, 1.0
  %v3179 = vadd.f32 %v3051, 1.0
  %v3180 = vadd.f32 %v3052, 1.0
  %v3181 = vadd.f32 %v3053, 1.0
  %v3182 = vadd.f32 %v3054, 1.0
  %v3183 = vadd.f32 %v3055, 1.0
  %v3184 = vadd.f32 %v3056, 1.0
  %v3185 = vadd.f32 %v3057, 1.0
  %v3186 = vadd.f32 %v3058, 1.0
  %v3187 = vadd.f32 %v3059, 1.0
  %v3188 = vadd.f32 %v3060, 1.0
  %v3189 = vadd.f32 %v3061, 1.0
  %v3190 = vadd.f32 %v3062, 1.0
  %v3191 = vadd.f32 %v3063, 1.0
  %v3192 = vadd.f32 %v3064, 1.0
  %v3193 = vadd.f32 %v3065, 1.0
  %v3194 = vadd.f32 %v3066, 1.0
  %v3195 = vadd.f32 %v3067, 1.0
  %v3196 = vadd.f32 %v3068, 1.0
  %v3197 = vadd.f32 %v3069, 1.0
  %v3198 = vadd.f32 %v3070, 1.0
  %v3199 = vadd.f32 %v3071, 1.0
  %v3200 = vadd.f32 %v3072, 1.0
  %v3201 = vadd.f32 %v3073, 1.0
  %v3202 = vadd.f32 %v3074, 1.0
  %v3203 = vadd.f32 %v3075, 1.0
  %v3204 = vadd.f32 %v3076, 1.0
  %v3205 = vadd.f32 %v3077, 1.0
  %v3206 = vadd.f32 %v3078, 1.0
  %v3207 = vadd.f32 %v3079, 1.0
  %v3208 = vadd.f32 %v3080, 1.0
  %v3209 = vadd.f32 %v3081, 1.0
  %v3210 = vadd.f32 %v3082, 1.0
  %v3211 = vadd.f32 %v3083, 1.0
  %v3212 = vadd.f32 %v3084, 1.0
  %v3213 = vadd.f32 %v3085, 1.0
  %v3214 = vadd.f32 %v3086, 1.0
  %v3215 = vadd.f32 %v3087, 1.0
  %v3216 = vadd.f32 %v3088, 1.0
  %v3217 = vadd.f32 %v3089, 1.0
  %v3218 = vadd.f32 %v3090, 1.0
  %v3219 = vadd.f32 %v3091, 1.0
  %v3220 = vadd.f32 %v3092, 1.0
  %v3221 = vadd.f32 %v3093, 1.0
  %v3222 = vadd.f32 %v3094, 1.0
  %v3223 = vadd.f32 %v3095, 1.0
  %v3224 = vadd.f32 %v3096, 1.0
  %v3225 = vadd.f32 %v3097, 1.0
  %v3226 = vadd.f32 %v3098, 1.0
  %v3227 = vadd.f32 %v3099, 1.0
  %v3228 = vadd.f32 %v3100, 1.0
  %v3229 = vadd.f32 %v3101, 1.0
  %v3230 = vadd.f32 %v3102, 1.0
  %v3231 = vadd.f32 %v3103, 1.0
  %v3232 = vadd.f32 %v3104, 1.0
  %v3233 = vadd.f32 %v3105, 1.0
  %v3234 = vadd.f32 %v3106, 1.0
  %v3235 = vadd.f32 %v3107, 1.0
  %v3236 = vadd.f32 %v3108, 1.0
  %v3237 = vadd.f32 %v3109, 1.0
  %v3238 = vadd.f32 %v3110, 1.0
  %v3239 = vadd.f32 %v3111, 1.0
  %v3240 = vadd.f32 %v3112, 1.0
  %v3241 = vadd.f32 %v3113, 1.0
  %v3242 = vadd.f32 %v3114, 1.0
  %v3243 = vadd.f32 %v3115, 1.0
  %v3244 = vadd.f32 %v3116, 1.0
  %v3245 = vadd.f32 %v3117, 1.0
  %v3246 = vadd.f32 %v3118, 1.0
  %v3247 = vadd.f32 %v3119, 1.0
  %v3248 = vadd.f32 %v3120, 1.0
  %v3249 = vadd.f32 %v3121, 1.0
  %v3250 = vadd.f32 %v3122, 1.0
  %v3251 = vadd.f32 %v3123, 1.0
  %v3252 = vadd.f32 %v3124, 1.0
  %v3253 = vadd.f32 %v3125, 1.0
  %v3254 = vadd.f32 %v3126, 1.0
  %v3255 = vadd.f32 %v3127, 1.0
  %v3256 = vadd.f32 %v3128, 1.0
  %v3257 = vadd.f32 %v3129, 1.0
  %v3258 = vadd.f32 %v3130, 1.0
  %v3259 = vadd.f32 %v3131, 1.0
  %v3260 = vadd.f32 %v3132, 1.0
  %v3261 = vadd.f32 %v3133, 1.0
  %v3262 = vadd.f32 %v3134, 1.0
  %v3263 = vadd.f32 %v3135, 1.0
  %v3264 = vadd.f32 %v3136, 1.0
  %v3265 = vadd.f32 %v3137, 1.0
  %v3266 = vadd.f32 %v3138, 1.0
  %v3267 = vadd.f32 %v3139, 1.0
  %v3268 = vadd.f32 %v3140, 1.0
  %v3269 = vadd.f32 %v3141, 1.0
  %v3270 = vadd.f32 %v3142, 1.0
  %v3271 = vadd.f32 %v3143, 1.0
  %v3272 = vadd.f32 %v3144, 1.0
  %v3273 = vadd.f32 %v3145, 1.0
  %v3274 = vadd.f32 %v3146, 1.0
  %v3275 = vadd.f32 %v3147, 1.0
  %v3276 = vadd.f32 %v3148, 1.0
  %v3277 = vadd.f32 %v3149, 1.0
  %v3278 = vadd.f32 %v3150, 1.0
  %v3279 = vadd.f32 %v3151, 1.0
  %v3280 = vadd.f32 %v3152, 1.0
  %v3281 = vadd.f32 %v3153, 1.0
  %v3282 = vadd.f32 %v3154, 1.0
  %v3283 = vadd.f32 %v3155, 1.0
  %v3284 = vadd.f32 %v3156, 1.0
  %v3285 = vadd.f32 %v3157, 1.0
  %v3286 = vadd.f32 %v3158, 1.0
  %v3287 = vadd.f32 %v3159, 1.0
  %v3288 = vadd.f32 %v3160, 1.0
  %v3289 = vadd.f32 %v3161, 1.0
  %v3290 = vadd.f32 %v3162, 1.0
  %v3291 = vadd.f32 %v3163, 1.0
  %v3292 = vadd.f32 %v3164, 1.0
  %v3293 = vadd.f32 %v3165, 1.0
  %v3294 = vadd.f32 %v3166, 1.0
  %v3295 = vadd.f32 %v3167, 1.0
  %v3296 = vadd.f32 %v3168, 1.0
  %v3297 = vmul.f32 %v2273, %v3169
  %v3298 = vmul.f32 %v2274, %v3170
  %v3299 = vmul.f32 %v2275, %v3171
  %v3300 = vmul.f32 %v2276, %v3172
  %v3301 = vmul.f32 %v2277, %v3173
  %v3302 = vmul.f32 %v2278, %v3174
  %v3303 = vmul.f32 %v2279, %v3175
  %v3304 = vmul.f32 %v2280, %v3176
  %v3305 = vmul.f32 %v2281, %v3177
  %v3306 = vmul.f32 %v2282, %v3178
  %v3307 = vmul.f32 %v2283, %v3179
  %v3308 = vmul.f32 %v2284, %v3180
  %v3309 = vmul.f32 %v2285, %v3181
  %v3310 = vmul.f32 %v2286, %v3182
  %v3311 = vmul.f32 %v2287, %v3183
  %v3312 = vmul.f32 %v2288, %v3184
  %v3313 = vmul.f32 %v2289, %v3185
  %v3314 = vmul.f32 %v2290, %v3186
  %v3315 = vmul.f32 %v2291, %v3187
  %v3316 = vmul.f32 %v2292, %v3188
  %v3317 = vmul.f32 %v2293, %v3189
  %v3318 = vmul.f32 %v2294, %v3190
  %v3319 = vmul.f32 %v2295, %v3191
  %v3320 = vmul.f32 %v2296, %v3192
  %v3321 = vmul.f32 %v2297, %v3193
  %v3322 = vmul.f32 %v2298, %v3194
  %v3323 = vmul.f32 %v2299, %v3195
  %v3324 = vmul.f32 %v2300, %v3196
  %v3325 = vmul.f32 %v2301, %v3197
  %v3326 = vmul.f32 %v2302, %v3198
  %v3327 = vmul.f32 %v2303, %v3199
  %v3328 = vmul.f32 %v2304, %v3200
  %v3329 = vmul.f32 %v2305, %v3201
  %v3330 = vmul.f32 %v2306, %v3202
  %v3331 = vmul.f32 %v2307, %v3203
  %v3332 = vmul.f32 %v2308, %v3204
  %v3333 = vmul.f32 %v2309, %v3205
  %v3334 = vmul.f32 %v2310, %v3206
  %v3335 = vmul.f32 %v2311, %v3207
  %v3336 = vmul.f32 %v2312, %v3208
  %v3337 = vmul.f32 %v2313, %v3209
  %v3338 = vmul.f32 %v2314, %v3210
  %v3339 = vmul.f32 %v2315, %v3211
  %v3340 = vmul.f32 %v2316, %v3212
  %v3341 = vmul.f32 %v2317, %v3213
  %v3342 = vmul.f32 %v2318, %v3214
  %v3343 = vmul.f32 %v2319, %v3215
  %v3344 = vmul.f32 %v2320, %v3216
  %v3345 = vmul.f32 %v2321, %v3217
  %v3346 = vmul.f32 %v2322, %v3218
  %v3347 = vmul.f32 %v2323, %v3219
  %v3348 = vmul.f32 %v2324, %v3220
  %v3349 = vmul.f32 %v2325, %v3221
  %v3350 = vmul.f32 %v2326, %v3222
  %v3351 = vmul.f32 %v2327, %v3223
  %v3352 = vmul.f32 %v2328, %v3224
  %v3353 = vmul.f32 %v2329, %v3225
  %v3354 = vmul.f32 %v2330, %v3226
  %v3355 = vmul.f32 %v2331, %v3227
  %v3356 = vmul.f32 %v2332, %v3228
  %v3357 = vmul.f32 %v2333, %v3229
  %v3358 = vmul.f32 %v2334, %v3230
  %v3359 = vmul.f32 %v2335, %v3231
  %v3360 = vmul.f32 %v2336, %v3232
  %v3361 = vmul.f32 %v2337, %v3233
  %v3362 = vmul.f32 %v2338, %v3234
  %v3363 = vmul.f32 %v2339, %v3235
  %v3364 = vmul.f32 %v2340, %v3236
  %v3365 = vmul.f32 %v2341, %v3237
  %v3366 = vmul.f32 %v2342, %v3238
  %v3367 = vmul.f32 %v2343, %v3239
  %v3368 = vmul.f32 %v2344, %v3240
  %v3369 = vmul.f32 %v2345, %v3241
  %v3370 = vmul.f32 %v2346, %v3242
  %v3371 = vmul.f32 %v2347, %v3243
  %v3372 = vmul.f32 %v2348, %v3244
  %v3373 = vmul.f32 %v2349, %v3245
  %v3374 = vmul.f32 %v2350, %v3246
  %v3375 = vmul.f32 %v2351, %v3247
  %v3376 = vmul.f32 %v2352, %v3248
  %v3377 = vmul.f32 %v2353, %v3249
  %v3378 = vmul.f32 %v2354, %v3250
  %v3379 = vmul.f32 %v2355, %v3251
  %v3380 = vmul.f32 %v2356, %v3252
  %v3381 = vmul.f32 %v2357, %v3253
  %v3382 = vmul.f32 %v2358, %v3254
  %v3383 = vmul.f32 %v2359, %v3255
  %v3384 = vmul.f32 %v2360, %v3256
  %v3385 = vmul.f32 %v2361, %v3257
  %v3386 = vmul.f32 %v2362, %v3258
  %v3387 = vmul.f32 %v2363, %v3259
  %v3388 = vmul.f32 %v2364, %v3260
  %v3389 = vmul.f32 %v2365, %v3261
  %v3390 = vmul.f32 %v2366, %v3262
  %v3391 = vmul.f32 %v2367, %v3263
  %v3392 = vmul.f32 %v2368, %v3264
  %v3393 = vmul.f32 %v2369, %v3265
  %v3394 = vmul.f32 %v2370, %v3266
  %v3395 = vmul.f32 %v2371, %v3267
  %v3396 = vmul.f32 %v2372, %v3268
  %v3397 = vmul.f32 %v2373, %v3269
  %v3398 = vmul.f32 %v2374, %v3270
  %v3399 = vmul.f32 %v2375, %v3271
  %v3400 = vmul.f32 %v2376, %v3272
  %v3401 = vmul.f32 %v2377, %v3273
  %v3402 = vmul.f32 %v2378, %v3274
  %v3403 = vmul.f32 %v2379, %v3275
  %v3404 = vmul.f32 %v2380, %v3276
  %v3405 = vmul.f32 %v2381, %v3277
  %v3406 = vmul.f32 %v2382, %v3278
  %v3407 = vmul.f32 %v2383, %v3279
  %v3408 = vmul.f32 %v2384, %v3280
  %v3409 = vmul.f32 %v2385, %v3281
  %v3410 = vmul.f32 %v2386, %v3282
  %v3411 = vmul.f32 %v2387, %v3283
  %v3412 = vmul.f32 %v2388, %v3284
  %v3413 = vmul.f32 %v2389, %v3285
  %v3414 = vmul.f32 %v2390, %v3286
  %v3415 = vmul.f32 %v2391, %v3287
  %v3416 = vmul.f32 %v2392, %v3288
  %v3417 = vmul.f32 %v2393, %v3289
  %v3418 = vmul.f32 %v2394, %v3290
  %v3419 = vmul.f32 %v2395, %v3291
  %v3420 = vmul.f32 %v2396, %v3292
  %v3421 = vmul.f32 %v2397, %v3293
  %v3422 = vmul.f32 %v2398, %v3294
  %v3423 = vmul.f32 %v2399, %v3295
  %v3424 = vmul.f32 %v2400, %v3296
  %v3425 = vpack.c.bf16 %v3301, %v3297
  %v3426 = vpack.c.bf16 %v3302, %v3298
  %v3427 = vpack.c.bf16 %v3303, %v3299
  %v3428 = vpack.c.bf16 %v3304, %v3300
  %v3429 = vpack.c.bf16 %v3309, %v3305
  %v3430 = vpack.c.bf16 %v3310, %v3306
  %v3431 = vpack.c.bf16 %v3311, %v3307
  %v3432 = vpack.c.bf16 %v3312, %v3308
  %v3433 = vpack.c.bf16 %v3317, %v3313
  %v3434 = vpack.c.bf16 %v3318, %v3314
  %v3435 = vpack.c.bf16 %v3319, %v3315
  %v3436 = vpack.c.bf16 %v3320, %v3316
  %v3437 = vpack.c.bf16 %v3325, %v3321
  %v3438 = vpack.c.bf16 %v3326, %v3322
  %v3439 = vpack.c.bf16 %v3327, %v3323
  %v3440 = vpack.c.bf16 %v3328, %v3324
  %v3441 = vpack.c.bf16 %v3333, %v3329
  %v3442 = vpack.c.bf16 %v3334, %v3330
  %v3443 = vpack.c.bf16 %v3335, %v3331
  %v3444 = vpack.c.bf16 %v3336, %v3332
  %v3445 = vpack.c.bf16 %v3341, %v3337
  %v3446 = vpack.c.bf16 %v3342, %v3338
  %v3447 = vpack.c.bf16 %v3343, %v3339
  %v3448 = vpack.c.bf16 %v3344, %v3340
  %v3449 = vpack.c.bf16 %v3349, %v3345
  %v3450 = vpack.c.bf16 %v3350, %v3346
  %v3451 = vpack.c.bf16 %v3351, %v3347
  %v3452 = vpack.c.bf16 %v3352, %v3348
  %v3453 = vpack.c.bf16 %v3357, %v3353
  %v3454 = vpack.c.bf16 %v3358, %v3354
  %v3455 = vpack.c.bf16 %v3359, %v3355
  %v3456 = vpack.c.bf16 %v3360, %v3356
  %v3457 = vpack.c.bf16 %v3365, %v3361
  %v3458 = vpack.c.bf16 %v3366, %v3362
  %v3459 = vpack.c.bf16 %v3367, %v3363
  %v3460 = vpack.c.bf16 %v3368, %v3364
  %v3461 = vpack.c.bf16 %v3373, %v3369
  %v3462 = vpack.c.bf16 %v3374, %v3370
  %v3463 = vpack.c.bf16 %v3375, %v3371
  %v3464 = vpack.c.bf16 %v3376, %v3372
  %v3465 = vpack.c.bf16 %v3381, %v3377
  %v3466 = vpack.c.bf16 %v3382, %v3378
  %v3467 = vpack.c.bf16 %v3383, %v3379
  %v3468 = vpack.c.bf16 %v3384, %v3380
  %v3469 = vpack.c.bf16 %v3389, %v3385
  %v3470 = vpack.c.bf16 %v3390, %v3386
  %v3471 = vpack.c.bf16 %v3391, %v3387
  %v3472 = vpack.c.bf16 %v3392, %v3388
  %v3473 = vpack.c.bf16 %v3397, %v3393
  %v3474 = vpack.c.bf16 %v3398, %v3394
  %v3475 = vpack.c.bf16 %v3399, %v3395
  %v3476 = vpack.c.bf16 %v3400, %v3396
  %v3477 = vpack.c.bf16 %v3405, %v3401
  %v3478 = vpack.c.bf16 %v3406, %v3402
  %v3479 = vpack.c.bf16 %v3407, %v3403
  %v3480 = vpack.c.bf16 %v3408, %v3404
  %v3481 = vpack.c.bf16 %v3413, %v3409
  %v3482 = vpack.c.bf16 %v3414, %v3410
  %v3483 = vpack.c.bf16 %v3415, %v3411
  %v3484 = vpack.c.bf16 %v3416, %v3412
  %v3485 = vpack.c.bf16 %v3421, %v3417
  %v3486 = vpack.c.bf16 %v3422, %v3418
  %v3487 = vpack.c.bf16 %v3423, %v3419
  %v3488 = vpack.c.bf16 %v3424, %v3420
  %v3489 = vld [vmem:[%s8] sm:$0xff]
  %v3490 = vld [vmem:[%s8 + $0x8] sm:$0xff]
  %v3491 = vld [vmem:[%s8 + $0x10] sm:$0xff]
  %v3492 = vld [vmem:[%s8 + $0x18] sm:$0xff]
  %v3493 = vld [vmem:[%s8 + $0x20] sm:$0xff]
  %v3494 = vld [vmem:[%s8 + $0x28] sm:$0xff]
  %v3495 = vld [vmem:[%s8 + $0x30] sm:$0xff]
  %v3496 = vld [vmem:[%s8 + $0x38] sm:$0xff]
  %v3497 = vld [vmem:[%s8 + $0x40] sm:$0xff]
  %v3498 = vld [vmem:[%s8 + $0x48] sm:$0xff]
  %v3499 = vld [vmem:[%s8 + $0x50] sm:$0xff]
  %v3500 = vld [vmem:[%s8 + $0x58] sm:$0xff]
  %v3501 = vld [vmem:[%s8 + $0x60] sm:$0xff]
  %v3502 = vld [vmem:[%s8 + $0x68] sm:$0xff]
  %v3503 = vld [vmem:[%s8 + $0x70] sm:$0xff]
  %v3504 = vld [vmem:[%s8 + $0x78] sm:$0xff]
  %v3505 = vld [vmem:[%s8 + $0x80] sm:$0xff]
  %v3506 = vld [vmem:[%s8 + $0x88] sm:$0xff]
  %v3507 = vld [vmem:[%s8 + $0x90] sm:$0xff]
  %v3508 = vld [vmem:[%s8 + $0x98] sm:$0xff]
  %v3509 = vld [vmem:[%s8 + $0xa0] sm:$0xff]
  %v3510 = vld [vmem:[%s8 + $0xa8] sm:$0xff]
  %v3511 = vld [vmem:[%s8 + $0xb0] sm:$0xff]
  %v3512 = vld [vmem:[%s8 + $0xb8] sm:$0xff]
  %v3513 = vld [vmem:[%s8 + $0xc0] sm:$0xff]
  %v3514 = vld [vmem:[%s8 + $0xc8] sm:$0xff]
  %v3515 = vld [vmem:[%s8 + $0xd0] sm:$0xff]
  %v3516 = vld [vmem:[%s8 + $0xd8] sm:$0xff]
  %v3517 = vld [vmem:[%s8 + $0xe0] sm:$0xff]
  %v3518 = vld [vmem:[%s8 + $0xe8] sm:$0xff]
  %v3519 = vld [vmem:[%s8 + $0xf0] sm:$0xff]
  %v3520 = vld [vmem:[%s8 + $0xf8] sm:$0xff]
  %v3521 = vld [vmem:[%s8 + $0x100] sm:$0xff]
  %v3522 = vld [vmem:[%s8 + $0x108] sm:$0xff]
  %v3523 = vld [vmem:[%s8 + $0x110] sm:$0xff]
  %v3524 = vld [vmem:[%s8 + $0x118] sm:$0xff]
  %v3525 = vld [vmem:[%s8 + $0x120] sm:$0xff]
  %v3526 = vld [vmem:[%s8 + $0x128] sm:$0xff]
  %v3527 = vld [vmem:[%s8 + $0x130] sm:$0xff]
  %v3528 = vld [vmem:[%s8 + $0x138] sm:$0xff]
  %v3529 = vld [vmem:[%s8 + $0x140] sm:$0xff]
  %v3530 = vld [vmem:[%s8 + $0x148] sm:$0xff]
  %v3531 = vld [vmem:[%s8 + $0x150] sm:$0xff]
  %v3532 = vld [vmem:[%s8 + $0x158] sm:$0xff]
  %v3533 = vld [vmem:[%s8 + $0x160] sm:$0xff]
  %v3534 = vld [vmem:[%s8 + $0x168] sm:$0xff]
  %v3535 = vld [vmem:[%s8 + $0x170] sm:$0xff]
  %v3536 = vld [vmem:[%s8 + $0x178] sm:$0xff]
  %v3537 = vld [vmem:[%s8 + $0x180] sm:$0xff]
  %v3538 = vld [vmem:[%s8 + $0x188] sm:$0xff]
  %v3539 = vld [vmem:[%s8 + $0x190] sm:$0xff]
  %v3540 = vld [vmem:[%s8 + $0x198] sm:$0xff]
  %v3541 = vld [vmem:[%s8 + $0x1a0] sm:$0xff]
  %v3542 = vld [vmem:[%s8 + $0x1a8] sm:$0xff]
  %v3543 = vld [vmem:[%s8 + $0x1b0] sm:$0xff]
  %v3544 = vld [vmem:[%s8 + $0x1b8] sm:$0xff]
  %v3545 = vld [vmem:[%s8 + $0x1c0] sm:$0xff]
  %v3546 = vld [vmem:[%s8 + $0x1c8] sm:$0xff]
  %v3547 = vld [vmem:[%s8 + $0x1d0] sm:$0xff]
  %v3548 = vld [vmem:[%s8 + $0x1d8] sm:$0xff]
  %v3549 = vld [vmem:[%s8 + $0x1e0] sm:$0xff]
  %v3550 = vld [vmem:[%s8 + $0x1e8] sm:$0xff]
  %v3551 = vld [vmem:[%s8 + $0x1f0] sm:$0xff]
  %v3552 = vld [vmem:[%s8 + $0x1f8] sm:$0xff]
  %v3617 = vunpack.c.l.b16 %v3489
  %v3618 = vunpack.c.h.b16 %v3489
  %v3619 = vunpack.c.l.b16 %v3490
  %v3620 = vunpack.c.h.b16 %v3490
  %v3621 = vunpack.c.l.b16 %v3491
  %v3622 = vunpack.c.h.b16 %v3491
  %v3623 = vunpack.c.l.b16 %v3492
  %v3624 = vunpack.c.h.b16 %v3492
  %v3625 = vunpack.c.l.b16 %v3493
  %v3626 = vunpack.c.h.b16 %v3493
  %v3627 = vunpack.c.l.b16 %v3494
  %v3628 = vunpack.c.h.b16 %v3494
  %v3629 = vunpack.c.l.b16 %v3495
  %v3630 = vunpack.c.h.b16 %v3495
  %v3631 = vunpack.c.l.b16 %v3496
  %v3632 = vunpack.c.h.b16 %v3496
  %v3633 = vunpack.c.l.b16 %v3497
  %v3634 = vunpack.c.h.b16 %v3497
  %v3635 = vunpack.c.l.b16 %v3498
  %v3636 = vunpack.c.h.b16 %v3498
  %v3637 = vunpack.c.l.b16 %v3499
  %v3638 = vunpack.c.h.b16 %v3499
  %v3639 = vunpack.c.l.b16 %v3500
  %v3640 = vunpack.c.h.b16 %v3500
  %v3641 = vunpack.c.l.b16 %v3501
  %v3642 = vunpack.c.h.b16 %v3501
  %v3643 = vunpack.c.l.b16 %v3502
  %v3644 = vunpack.c.h.b16 %v3502
  %v3645 = vunpack.c.l.b16 %v3503
  %v3646 = vunpack.c.h.b16 %v3503
  %v3647 = vunpack.c.l.b16 %v3504
  %v3648 = vunpack.c.h.b16 %v3504
  %v3649 = vunpack.c.l.b16 %v3505
  %v3650 = vunpack.c.h.b16 %v3505
  %v3651 = vunpack.c.l.b16 %v3506
  %v3652 = vunpack.c.h.b16 %v3506
  %v3653 = vunpack.c.l.b16 %v3507
  %v3654 = vunpack.c.h.b16 %v3507
  %v3655 = vunpack.c.l.b16 %v3508
  %v3656 = vunpack.c.h.b16 %v3508
  %v3657 = vunpack.c.l.b16 %v3509
  %v3658 = vunpack.c.h.b16 %v3509
  %v3659 = vunpack.c.l.b16 %v3510
  %v3660 = vunpack.c.h.b16 %v3510
  %v3661 = vunpack.c.l.b16 %v3511
  %v3662 = vunpack.c.h.b16 %v3511
  %v3663 = vunpack.c.l.b16 %v3512
  %v3664 = vunpack.c.h.b16 %v3512
  %v3665 = vunpack.c.l.b16 %v3513
  %v3666 = vunpack.c.h.b16 %v3513
  %v3667 = vunpack.c.l.b16 %v3514
  %v3668 = vunpack.c.h.b16 %v3514
  %v3669 = vunpack.c.l.b16 %v3515
  %v3670 = vunpack.c.h.b16 %v3515
  %v3671 = vunpack.c.l.b16 %v3516
  %v3672 = vunpack.c.h.b16 %v3516
  %v3673 = vunpack.c.l.b16 %v3517
  %v3674 = vunpack.c.h.b16 %v3517
  %v3675 = vunpack.c.l.b16 %v3518
  %v3676 = vunpack.c.h.b16 %v3518
  %v3677 = vunpack.c.l.b16 %v3519
  %v3678 = vunpack.c.h.b16 %v3519
  %v3679 = vunpack.c.l.b16 %v3520
  %v3680 = vunpack.c.h.b16 %v3520
  %v3681 = vunpack.c.l.b16 %v3521
  %v3682 = vunpack.c.h.b16 %v3521
  %v3683 = vunpack.c.l.b16 %v3522
  %v3684 = vunpack.c.h.b16 %v3522
  %v3685 = vunpack.c.l.b16 %v3523
  %v3686 = vunpack.c.h.b16 %v3523
  %v3687 = vunpack.c.l.b16 %v3524
  %v3688 = vunpack.c.h.b16 %v3524
  %v3689 = vunpack.c.l.b16 %v3525
  %v3690 = vunpack.c.h.b16 %v3525
  %v3691 = vunpack.c.l.b16 %v3526
  %v3692 = vunpack.c.h.b16 %v3526
  %v3693 = vunpack.c.l.b16 %v3527
  %v3694 = vunpack.c.h.b16 %v3527
  %v3695 = vunpack.c.l.b16 %v3528
  %v3696 = vunpack.c.h.b16 %v3528
  %v3697 = vunpack.c.l.b16 %v3529
  %v3698 = vunpack.c.h.b16 %v3529
  %v3699 = vunpack.c.l.b16 %v3530
  %v3700 = vunpack.c.h.b16 %v3530
  %v3701 = vunpack.c.l.b16 %v3531
  %v3702 = vunpack.c.h.b16 %v3531
  %v3703 = vunpack.c.l.b16 %v3532
  %v3704 = vunpack.c.h.b16 %v3532
  %v3705 = vunpack.c.l.b16 %v3533
  %v3706 = vunpack.c.h.b16 %v3533
  %v3707 = vunpack.c.l.b16 %v3534
  %v3708 = vunpack.c.h.b16 %v3534
  %v3709 = vunpack.c.l.b16 %v3535
  %v3710 = vunpack.c.h.b16 %v3535
  %v3711 = vunpack.c.l.b16 %v3536
  %v3712 = vunpack.c.h.b16 %v3536
  %v3713 = vunpack.c.l.b16 %v3537
  %v3714 = vunpack.c.h.b16 %v3537
  %v3715 = vunpack.c.l.b16 %v3538
  %v3716 = vunpack.c.h.b16 %v3538
  %v3717 = vunpack.c.l.b16 %v3539
  %v3718 = vunpack.c.h.b16 %v3539
  %v3719 = vunpack.c.l.b16 %v3540
  %v3720 = vunpack.c.h.b16 %v3540
  %v3721 = vunpack.c.l.b16 %v3541
  %v3722 = vunpack.c.h.b16 %v3541
  %v3723 = vunpack.c.l.b16 %v3542
  %v3724 = vunpack.c.h.b16 %v3542
  %v3725 = vunpack.c.l.b16 %v3543
  %v3726 = vunpack.c.h.b16 %v3543
  %v3727 = vunpack.c.l.b16 %v3544
  %v3728 = vunpack.c.h.b16 %v3544
  %v3729 = vunpack.c.l.b16 %v3545
  %v3730 = vunpack.c.h.b16 %v3545
  %v3731 = vunpack.c.l.b16 %v3546
  %v3732 = vunpack.c.h.b16 %v3546
  %v3733 = vunpack.c.l.b16 %v3547
  %v3734 = vunpack.c.h.b16 %v3547
  %v3735 = vunpack.c.l.b16 %v3548
  %v3736 = vunpack.c.h.b16 %v3548
  %v3737 = vunpack.c.l.b16 %v3549
  %v3738 = vunpack.c.h.b16 %v3549
  %v3739 = vunpack.c.l.b16 %v3550
  %v3740 = vunpack.c.h.b16 %v3550
  %v3741 = vunpack.c.l.b16 %v3551
  %v3742 = vunpack.c.h.b16 %v3551
  %v3743 = vunpack.c.l.b16 %v3552
  %v3744 = vunpack.c.h.b16 %v3552
  %v3745 = vpack.c.b16 %v3619, %v3617
  %v3746 = vpack.c.b16 %v3620, %v3618
  %v3747 = vpack.c.b16 %v3623, %v3621
  %v3748 = vpack.c.b16 %v3624, %v3622
  %v3749 = vpack.c.b16 %v3627, %v3625
  %v3750 = vpack.c.b16 %v3628, %v3626
  %v3751 = vpack.c.b16 %v3631, %v3629
  %v3752 = vpack.c.b16 %v3632, %v3630
  %v3753 = vpack.c.b16 %v3635, %v3633
  %v3754 = vpack.c.b16 %v3636, %v3634
  %v3755 = vpack.c.b16 %v3639, %v3637
  %v3756 = vpack.c.b16 %v3640, %v3638
  %v3757 = vpack.c.b16 %v3643, %v3641
  %v3758 = vpack.c.b16 %v3644, %v3642
  %v3759 = vpack.c.b16 %v3647, %v3645
  %v3760 = vpack.c.b16 %v3648, %v3646
  %v3761 = vpack.c.b16 %v3651, %v3649
  %v3762 = vpack.c.b16 %v3652, %v3650
  %v3763 = vpack.c.b16 %v3655, %v3653
  %v3764 = vpack.c.b16 %v3656, %v3654
  %v3765 = vpack.c.b16 %v3659, %v3657
  %v3766 = vpack.c.b16 %v3660, %v3658
  %v3767 = vpack.c.b16 %v3663, %v3661
  %v3768 = vpack.c.b16 %v3664, %v3662
  %v3769 = vpack.c.b16 %v3667, %v3665
  %v3770 = vpack.c.b16 %v3668, %v3666
  %v3771 = vpack.c.b16 %v3671, %v3669
  %v3772 = vpack.c.b16 %v3672, %v3670
  %v3773 = vpack.c.b16 %v3675, %v3673
  %v3774 = vpack.c.b16 %v3676, %v3674
  %v3775 = vpack.c.b16 %v3679, %v3677
  %v3776 = vpack.c.b16 %v3680, %v3678
  %v3777 = vpack.c.b16 %v3683, %v3681
  %v3778 = vpack.c.b16 %v3684, %v3682
  %v3779 = vpack.c.b16 %v3687, %v3685
  %v3780 = vpack.c.b16 %v3688, %v3686
  %v3781 = vpack.c.b16 %v3691, %v3689
  %v3782 = vpack.c.b16 %v3692, %v3690
  %v3783 = vpack.c.b16 %v3695, %v3693
  %v3784 = vpack.c.b16 %v3696, %v3694
  %v3785 = vpack.c.b16 %v3699, %v3697
  %v3786 = vpack.c.b16 %v3700, %v3698
  %v3787 = vpack.c.b16 %v3703, %v3701
  %v3788 = vpack.c.b16 %v3704, %v3702
  %v3789 = vpack.c.b16 %v3707, %v3705
  %v3790 = vpack.c.b16 %v3708, %v3706
  %v3791 = vpack.c.b16 %v3711, %v3709
  %v3792 = vpack.c.b16 %v3712, %v3710
  %v3793 = vpack.c.b16 %v3715, %v3713
  %v3794 = vpack.c.b16 %v3716, %v3714
  %v3795 = vpack.c.b16 %v3719, %v3717
  %v3796 = vpack.c.b16 %v3720, %v3718
  %v3797 = vpack.c.b16 %v3723, %v3721
  %v3798 = vpack.c.b16 %v3724, %v3722
  %v3799 = vpack.c.b16 %v3727, %v3725
  %v3800 = vpack.c.b16 %v3728, %v3726
  %v3801 = vpack.c.b16 %v3731, %v3729
  %v3802 = vpack.c.b16 %v3732, %v3730
  %v3803 = vpack.c.b16 %v3735, %v3733
  %v3804 = vpack.c.b16 %v3736, %v3734
  %v3805 = vpack.c.b16 %v3739, %v3737
  %v3806 = vpack.c.b16 %v3740, %v3738
  %v3807 = vpack.c.b16 %v3743, %v3741
  %v3808 = vpack.c.b16 %v3744, %v3742
  %3873 = vmatprep.subr.bf16.mxu0 %v3760
  %3874 = vmatpush1.bf16.msra.mxu0 %v3759
  %3875 = vmatprep.subr.bf16.mxu0 %v3758
  %3876 = vmatpush1.bf16.msra.mxu0 %v3757
  %3877 = vmatprep.subr.bf16.mxu0 %v3756
  %3878 = vmatpush1.bf16.msra.mxu0 %v3755
  %3879 = vmatprep.subr.bf16.mxu0 %v3754
  %3880 = vmatpush1.bf16.msra.mxu0 %v3753
  %3881 = vmatprep.subr.bf16.mxu0 %v3752
  %3882 = vmatpush1.bf16.msra.mxu0 %v3751
  %3883 = vmatprep.subr.bf16.mxu0 %v3750
  %3884 = vmatpush1.bf16.msra.mxu0 %v3749
  %3885 = vmatprep.subr.bf16.mxu0 %v3748
  %3886 = vmatpush1.bf16.msra.mxu0 %v3747
  %3887 = vmatprep.subr.bf16.mxu0 %v3746
  %3888 = vmatpush1.bf16.msra.mxu0 %v3745
  %3889 = vmatprep.subr.bf16.mxu0 %v3776
  %3890 = vmatpush2.bf16.msra.mxu0 %v3775
  %3891 = vmatprep.subr.bf16.mxu0 %v3774
  %3892 = vmatpush2.bf16.msra.mxu0 %v3773
  %3893 = vmatprep.subr.bf16.mxu0 %v3772
  %3894 = vmatpush2.bf16.msra.mxu0 %v3771
  %3895 = vmatprep.subr.bf16.mxu0 %v3770
  %3896 = vmatpush2.bf16.msra.mxu0 %v3769
  %3897 = vmatprep.subr.bf16.mxu0 %v3768
  %3898 = vmatpush2.bf16.msra.mxu0 %v3767
  %3899 = vmatprep.subr.bf16.mxu0 %v3766
  %3900 = vmatpush2.bf16.msra.mxu0 %v3765
  %3901 = vmatprep.subr.bf16.mxu0 %v3764
  %3902 = vmatpush2.bf16.msra.mxu0 %v3763
  %3903 = vmatprep.subr.bf16.mxu0 %v3762
  %3904 = vmatpush2.bf16.msra.mxu0 %v3761
  %3905 = vmatprep.mubr.bf16.mxu0 %v3426
  %3906 = vmatmul.mubr.bf16.gmra.mxu0 %v3425
  %v3907 = vpop.f32.mrf.mxu0
  %v3908 = vadd.f32 0.0, %v3907
  %v3909 = vpop.f32.mrf.mxu0
  %v3910 = vadd.f32 0.0, %v3909
  %v3911 = vpop.f32.mrf.mxu0
  %v3912 = vadd.f32 0.0, %v3911
  %v3913 = vpop.f32.mrf.mxu0
  %v3914 = vadd.f32 0.0, %v3913
  %3915 = vmatprep.mubr.bf16.mxu0 %v3430
  %3916 = vmatmul.mubr.bf16.gmra.mxu0 %v3429
  %v3917 = vpop.f32.mrf.mxu0
  %v3918 = vadd.f32 0.0, %v3917
  %v3919 = vpop.f32.mrf.mxu0
  %v3920 = vadd.f32 0.0, %v3919
  %v3921 = vpop.f32.mrf.mxu0
  %v3922 = vadd.f32 0.0, %v3921
  %v3923 = vpop.f32.mrf.mxu0
  %v3924 = vadd.f32 0.0, %v3923
  %3925 = vmatprep.mubr.bf16.mxu0 %v3434
  %3926 = vmatmul.mubr.bf16.gmra.mxu0 %v3433
  %v3927 = vpop.f32.mrf.mxu0
  %v3928 = vadd.f32 0.0, %v3927
  %v3929 = vpop.f32.mrf.mxu0
  %v3930 = vadd.f32 0.0, %v3929
  %v3931 = vpop.f32.mrf.mxu0
  %v3932 = vadd.f32 0.0, %v3931
  %v3933 = vpop.f32.mrf.mxu0
  %v3934 = vadd.f32 0.0, %v3933
  %3935 = vmatprep.mubr.bf16.mxu0 %v3438
  %3936 = vmatmul.mubr.bf16.gmra.mxu0 %v3437
  %v3937 = vpop.f32.mrf.mxu0
  %v3938 = vadd.f32 0.0, %v3937
  %v3939 = vpop.f32.mrf.mxu0
  %v3940 = vadd.f32 0.0, %v3939
  %v3941 = vpop.f32.mrf.mxu0
  %v3942 = vadd.f32 0.0, %v3941
  %v3943 = vpop.f32.mrf.mxu0
  %v3944 = vadd.f32 0.0, %v3943
  %3945 = vmatprep.mubr.bf16.mxu0 %v3442
  %3946 = vmatmul.mubr.bf16.gmra.mxu0 %v3441
  %v3947 = vpop.f32.mrf.mxu0
  %v3948 = vadd.f32 0.0, %v3947
  %v3949 = vpop.f32.mrf.mxu0
  %v3950 = vadd.f32 0.0, %v3949
  %v3951 = vpop.f32.mrf.mxu0
  %v3952 = vadd.f32 0.0, %v3951
  %v3953 = vpop.f32.mrf.mxu0
  %v3954 = vadd.f32 0.0, %v3953
  %3955 = vmatprep.mubr.bf16.mxu0 %v3446
  %3956 = vmatmul.mubr.bf16.gmra.mxu0 %v3445
  %v3957 = vpop.f32.mrf.mxu0
  %v3958 = vadd.f32 0.0, %v3957
  %v3959 = vpop.f32.mrf.mxu0
  %v3960 = vadd.f32 0.0, %v3959
  %v3961 = vpop.f32.mrf.mxu0
  %v3962 = vadd.f32 0.0, %v3961
  %v3963 = vpop.f32.mrf.mxu0
  %v3964 = vadd.f32 0.0, %v3963
  %3965 = vmatprep.mubr.bf16.mxu0 %v3450
  %3966 = vmatmul.mubr.bf16.gmra.mxu0 %v3449
  %v3967 = vpop.f32.mrf.mxu0
  %v3968 = vadd.f32 0.0, %v3967
  %v3969 = vpop.f32.mrf.mxu0
  %v3970 = vadd.f32 0.0, %v3969
  %v3971 = vpop.f32.mrf.mxu0
  %v3972 = vadd.f32 0.0, %v3971
  %v3973 = vpop.f32.mrf.mxu0
  %v3974 = vadd.f32 0.0, %v3973
  %3975 = vmatprep.mubr.bf16.mxu0 %v3454
  %3976 = vmatmul.mubr.bf16.gmra.mxu0 %v3453
  %v3977 = vpop.f32.mrf.mxu0
  %v3978 = vadd.f32 0.0, %v3977
  %v3979 = vpop.f32.mrf.mxu0
  %v3980 = vadd.f32 0.0, %v3979
  %v3981 = vpop.f32.mrf.mxu0
  %v3982 = vadd.f32 0.0, %v3981
  %v3983 = vpop.f32.mrf.mxu0
  %v3984 = vadd.f32 0.0, %v3983
  %3985 = vmatprep.mubr.bf16.mxu0 %v3458
  %3986 = vmatmul.mubr.bf16.gmra.mxu0 %v3457
  %v3987 = vpop.f32.mrf.mxu0
  %v3988 = vadd.f32 0.0, %v3987
  %v3989 = vpop.f32.mrf.mxu0
  %v3990 = vadd.f32 0.0, %v3989
  %v3991 = vpop.f32.mrf.mxu0
  %v3992 = vadd.f32 0.0, %v3991
  %v3993 = vpop.f32.mrf.mxu0
  %v3994 = vadd.f32 0.0, %v3993
  %3995 = vmatprep.mubr.bf16.mxu0 %v3462
  %3996 = vmatmul.mubr.bf16.gmra.mxu0 %v3461
  %v3997 = vpop.f32.mrf.mxu0
  %v3998 = vadd.f32 0.0, %v3997
  %v3999 = vpop.f32.mrf.mxu0
  %v4000 = vadd.f32 0.0, %v3999
  %v4001 = vpop.f32.mrf.mxu0
  %v4002 = vadd.f32 0.0, %v4001
  %v4003 = vpop.f32.mrf.mxu0
  %v4004 = vadd.f32 0.0, %v4003
  %4005 = vmatprep.mubr.bf16.mxu0 %v3466
  %4006 = vmatmul.mubr.bf16.gmra.mxu0 %v3465
  %v4007 = vpop.f32.mrf.mxu0
  %v4008 = vadd.f32 0.0, %v4007
  %v4009 = vpop.f32.mrf.mxu0
  %v4010 = vadd.f32 0.0, %v4009
  %v4011 = vpop.f32.mrf.mxu0
  %v4012 = vadd.f32 0.0, %v4011
  %v4013 = vpop.f32.mrf.mxu0
  %v4014 = vadd.f32 0.0, %v4013
  %4015 = vmatprep.mubr.bf16.mxu0 %v3470
  %4016 = vmatmul.mubr.bf16.gmra.mxu0 %v3469
  %v4017 = vpop.f32.mrf.mxu0
  %v4018 = vadd.f32 0.0, %v4017
  %v4019 = vpop.f32.mrf.mxu0
  %v4020 = vadd.f32 0.0, %v4019
  %v4021 = vpop.f32.mrf.mxu0
  %v4022 = vadd.f32 0.0, %v4021
  %v4023 = vpop.f32.mrf.mxu0
  %v4024 = vadd.f32 0.0, %v4023
  %4025 = vmatprep.mubr.bf16.mxu0 %v3474
  %4026 = vmatmul.mubr.bf16.gmra.mxu0 %v3473
  %v4027 = vpop.f32.mrf.mxu0
  %v4028 = vadd.f32 0.0, %v4027
  %v4029 = vpop.f32.mrf.mxu0
  %v4030 = vadd.f32 0.0, %v4029
  %v4031 = vpop.f32.mrf.mxu0
  %v4032 = vadd.f32 0.0, %v4031
  %v4033 = vpop.f32.mrf.mxu0
  %v4034 = vadd.f32 0.0, %v4033
  %4035 = vmatprep.mubr.bf16.mxu0 %v3478
  %4036 = vmatmul.mubr.bf16.gmra.mxu0 %v3477
  %v4037 = vpop.f32.mrf.mxu0
  %v4038 = vadd.f32 0.0, %v4037
  %v4039 = vpop.f32.mrf.mxu0
  %v4040 = vadd.f32 0.0, %v4039
  %v4041 = vpop.f32.mrf.mxu0
  %v4042 = vadd.f32 0.0, %v4041
  %v4043 = vpop.f32.mrf.mxu0
  %v4044 = vadd.f32 0.0, %v4043
  %4045 = vmatprep.mubr.bf16.mxu0 %v3482
  %4046 = vmatmul.mubr.bf16.gmra.mxu0 %v3481
  %v4047 = vpop.f32.mrf.mxu0
  %v4048 = vadd.f32 0.0, %v4047
  %v4049 = vpop.f32.mrf.mxu0
  %v4050 = vadd.f32 0.0, %v4049
  %v4051 = vpop.f32.mrf.mxu0
  %v4052 = vadd.f32 0.0, %v4051
  %v4053 = vpop.f32.mrf.mxu0
  %v4054 = vadd.f32 0.0, %v4053
  %4055 = vmatprep.mubr.bf16.mxu0 %v3486
  %4056 = vmatmul.mubr.bf16.gmra.mxu0 %v3485
  %v4057 = vpop.f32.mrf.mxu0
  %v4058 = vadd.f32 0.0, %v4057
  %v4059 = vpop.f32.mrf.mxu0
  %v4060 = vadd.f32 0.0, %v4059
  %v4061 = vpop.f32.mrf.mxu0
  %v4062 = vadd.f32 0.0, %v4061
  %v4063 = vpop.f32.mrf.mxu0
  %v4064 = vadd.f32 0.0, %v4063
  %4065 = vdwg.mxu0
  %4066 = vmatprep.subr.bf16.mxu0 %v3792
  %4067 = vmatpush1.bf16.msra.mxu0 %v3791
  %4068 = vmatprep.subr.bf16.mxu0 %v3790
  %4069 = vmatpush1.bf16.msra.mxu0 %v3789
  %4070 = vmatprep.subr.bf16.mxu0 %v3788
  %4071 = vmatpush1.bf16.msra.mxu0 %v3787
  %4072 = vmatprep.subr.bf16.mxu0 %v3786
  %4073 = vmatpush1.bf16.msra.mxu0 %v3785
  %4074 = vmatprep.subr.bf16.mxu0 %v3784
  %4075 = vmatpush1.bf16.msra.mxu0 %v3783
  %4076 = vmatprep.subr.bf16.mxu0 %v3782
  %4077 = vmatpush1.bf16.msra.mxu0 %v3781
  %4078 = vmatprep.subr.bf16.mxu0 %v3780
  %4079 = vmatpush1.bf16.msra.mxu0 %v3779
  %4080 = vmatprep.subr.bf16.mxu0 %v3778
  %4081 = vmatpush1.bf16.msra.mxu0 %v3777
  %4082 = vmatprep.subr.bf16.mxu0 %v3808
  %4083 = vmatpush2.bf16.msra.mxu0 %v3807
  %4084 = vmatprep.subr.bf16.mxu0 %v3806
  %4085 = vmatpush2.bf16.msra.mxu0 %v3805
  %4086 = vmatprep.subr.bf16.mxu0 %v3804
  %4087 = vmatpush2.bf16.msra.mxu0 %v3803
  %4088 = vmatprep.subr.bf16.mxu0 %v3802
  %4089 = vmatpush2.bf16.msra.mxu0 %v3801
  %4090 = vmatprep.subr.bf16.mxu0 %v3800
  %4091 = vmatpush2.bf16.msra.mxu0 %v3799
  %4092 = vmatprep.subr.bf16.mxu0 %v3798
  %4093 = vmatpush2.bf16.msra.mxu0 %v3797
  %4094 = vmatprep.subr.bf16.mxu0 %v3796
  %4095 = vmatpush2.bf16.msra.mxu0 %v3795
  %4096 = vmatprep.subr.bf16.mxu0 %v3794
  %4097 = vmatpush2.bf16.msra.mxu0 %v3793
  %4098 = vmatprep.mubr.bf16.mxu0 %v3428
  %4099 = vmatmul.mubr.bf16.gmra.mxu0 %v3427
  %v4100 = vpop.f32.mrf.mxu0
  %v4101 = vadd.f32 %v3908, %v4100
  %v4102 = vpop.f32.mrf.mxu0
  %v4103 = vadd.f32 %v3910, %v4102
  %v4104 = vpop.f32.mrf.mxu0
  %v4105 = vadd.f32 %v3912, %v4104
  %v4106 = vpop.f32.mrf.mxu0
  %v4107 = vadd.f32 %v3914, %v4106
  %4108 = vmatprep.mubr.bf16.mxu0 %v3432
  %4109 = vmatmul.mubr.bf16.gmra.mxu0 %v3431
  %v4110 = vpop.f32.mrf.mxu0
  %v4111 = vadd.f32 %v3918, %v4110
  %v4112 = vpop.f32.mrf.mxu0
  %v4113 = vadd.f32 %v3920, %v4112
  %v4114 = vpop.f32.mrf.mxu0
  %v4115 = vadd.f32 %v3922, %v4114
  %v4116 = vpop.f32.mrf.mxu0
  %v4117 = vadd.f32 %v3924, %v4116
  %4118 = vmatprep.mubr.bf16.mxu0 %v3436
  %4119 = vmatmul.mubr.bf16.gmra.mxu0 %v3435
  %v4120 = vpop.f32.mrf.mxu0
  %v4121 = vadd.f32 %v3928, %v4120
  %v4122 = vpop.f32.mrf.mxu0
  %v4123 = vadd.f32 %v3930, %v4122
  %v4124 = vpop.f32.mrf.mxu0
  %v4125 = vadd.f32 %v3932, %v4124
  %v4126 = vpop.f32.mrf.mxu0
  %v4127 = vadd.f32 %v3934, %v4126
  %4128 = vmatprep.mubr.bf16.mxu0 %v3440
  %4129 = vmatmul.mubr.bf16.gmra.mxu0 %v3439
  %v4130 = vpop.f32.mrf.mxu0
  %v4131 = vadd.f32 %v3938, %v4130
  %v4132 = vpop.f32.mrf.mxu0
  %v4133 = vadd.f32 %v3940, %v4132
  %v4134 = vpop.f32.mrf.mxu0
  %v4135 = vadd.f32 %v3942, %v4134
  %v4136 = vpop.f32.mrf.mxu0
  %v4137 = vadd.f32 %v3944, %v4136
  %4138 = vmatprep.mubr.bf16.mxu0 %v3444
  %4139 = vmatmul.mubr.bf16.gmra.mxu0 %v3443
  %v4140 = vpop.f32.mrf.mxu0
  %v4141 = vadd.f32 %v3948, %v4140
  %v4142 = vpop.f32.mrf.mxu0
  %v4143 = vadd.f32 %v3950, %v4142
  %v4144 = vpop.f32.mrf.mxu0
  %v4145 = vadd.f32 %v3952, %v4144
  %v4146 = vpop.f32.mrf.mxu0
  %v4147 = vadd.f32 %v3954, %v4146
  %4148 = vmatprep.mubr.bf16.mxu0 %v3448
  %4149 = vmatmul.mubr.bf16.gmra.mxu0 %v3447
  %v4150 = vpop.f32.mrf.mxu0
  %v4151 = vadd.f32 %v3958, %v4150
  %v4152 = vpop.f32.mrf.mxu0
  %v4153 = vadd.f32 %v3960, %v4152
  %v4154 = vpop.f32.mrf.mxu0
  %v4155 = vadd.f32 %v3962, %v4154
  %v4156 = vpop.f32.mrf.mxu0
  %v4157 = vadd.f32 %v3964, %v4156
  %4158 = vmatprep.mubr.bf16.mxu0 %v3452
  %4159 = vmatmul.mubr.bf16.gmra.mxu0 %v3451
  %v4160 = vpop.f32.mrf.mxu0
  %v4161 = vadd.f32 %v3968, %v4160
  %v4162 = vpop.f32.mrf.mxu0
  %v4163 = vadd.f32 %v3970, %v4162
  %v4164 = vpop.f32.mrf.mxu0
  %v4165 = vadd.f32 %v3972, %v4164
  %v4166 = vpop.f32.mrf.mxu0
  %v4167 = vadd.f32 %v3974, %v4166
  %4168 = vmatprep.mubr.bf16.mxu0 %v3456
  %4169 = vmatmul.mubr.bf16.gmra.mxu0 %v3455
  %v4170 = vpop.f32.mrf.mxu0
  %v4171 = vadd.f32 %v3978, %v4170
  %v4172 = vpop.f32.mrf.mxu0
  %v4173 = vadd.f32 %v3980, %v4172
  %v4174 = vpop.f32.mrf.mxu0
  %v4175 = vadd.f32 %v3982, %v4174
  %v4176 = vpop.f32.mrf.mxu0
  %v4177 = vadd.f32 %v3984, %v4176
  %4178 = vmatprep.mubr.bf16.mxu0 %v3460
  %4179 = vmatmul.mubr.bf16.gmra.mxu0 %v3459
  %v4180 = vpop.f32.mrf.mxu0
  %v4181 = vadd.f32 %v3988, %v4180
  %v4182 = vpop.f32.mrf.mxu0
  %v4183 = vadd.f32 %v3990, %v4182
  %v4184 = vpop.f32.mrf.mxu0
  %v4185 = vadd.f32 %v3992, %v4184
  %v4186 = vpop.f32.mrf.mxu0
  %v4187 = vadd.f32 %v3994, %v4186
  %4188 = vmatprep.mubr.bf16.mxu0 %v3464
  %4189 = vmatmul.mubr.bf16.gmra.mxu0 %v3463
  %v4190 = vpop.f32.mrf.mxu0
  %v4191 = vadd.f32 %v3998, %v4190
  %v4192 = vpop.f32.mrf.mxu0
  %v4193 = vadd.f32 %v4000, %v4192
  %v4194 = vpop.f32.mrf.mxu0
  %v4195 = vadd.f32 %v4002, %v4194
  %v4196 = vpop.f32.mrf.mxu0
  %v4197 = vadd.f32 %v4004, %v4196
  %4198 = vmatprep.mubr.bf16.mxu0 %v3468
  %4199 = vmatmul.mubr.bf16.gmra.mxu0 %v3467
  %v4200 = vpop.f32.mrf.mxu0
  %v4201 = vadd.f32 %v4008, %v4200
  %v4202 = vpop.f32.mrf.mxu0
  %v4203 = vadd.f32 %v4010, %v4202
  %v4204 = vpop.f32.mrf.mxu0
  %v4205 = vadd.f32 %v4012, %v4204
  %v4206 = vpop.f32.mrf.mxu0
  %v4207 = vadd.f32 %v4014, %v4206
  %4208 = vmatprep.mubr.bf16.mxu0 %v3472
  %4209 = vmatmul.mubr.bf16.gmra.mxu0 %v3471
  %v4210 = vpop.f32.mrf.mxu0
  %v4211 = vadd.f32 %v4018, %v4210
  %v4212 = vpop.f32.mrf.mxu0
  %v4213 = vadd.f32 %v4020, %v4212
  %v4214 = vpop.f32.mrf.mxu0
  %v4215 = vadd.f32 %v4022, %v4214
  %v4216 = vpop.f32.mrf.mxu0
  %v4217 = vadd.f32 %v4024, %v4216
  %4218 = vmatprep.mubr.bf16.mxu0 %v3476
  %4219 = vmatmul.mubr.bf16.gmra.mxu0 %v3475
  %v4220 = vpop.f32.mrf.mxu0
  %v4221 = vadd.f32 %v4028, %v4220
  %v4222 = vpop.f32.mrf.mxu0
  %v4223 = vadd.f32 %v4030, %v4222
  %v4224 = vpop.f32.mrf.mxu0
  %v4225 = vadd.f32 %v4032, %v4224
  %v4226 = vpop.f32.mrf.mxu0
  %v4227 = vadd.f32 %v4034, %v4226
  %4228 = vmatprep.mubr.bf16.mxu0 %v3480
  %4229 = vmatmul.mubr.bf16.gmra.mxu0 %v3479
  %v4230 = vpop.f32.mrf.mxu0
  %v4231 = vadd.f32 %v4038, %v4230
  %v4232 = vpop.f32.mrf.mxu0
  %v4233 = vadd.f32 %v4040, %v4232
  %v4234 = vpop.f32.mrf.mxu0
  %v4235 = vadd.f32 %v4042, %v4234
  %v4236 = vpop.f32.mrf.mxu0
  %v4237 = vadd.f32 %v4044, %v4236
  %4238 = vmatprep.mubr.bf16.mxu0 %v3484
  %4239 = vmatmul.mubr.bf16.gmra.mxu0 %v3483
  %v4240 = vpop.f32.mrf.mxu0
  %v4241 = vadd.f32 %v4048, %v4240
  %v4242 = vpop.f32.mrf.mxu0
  %v4243 = vadd.f32 %v4050, %v4242
  %v4244 = vpop.f32.mrf.mxu0
  %v4245 = vadd.f32 %v4052, %v4244
  %v4246 = vpop.f32.mrf.mxu0
  %v4247 = vadd.f32 %v4054, %v4246
  %4248 = vmatprep.mubr.bf16.mxu0 %v3488
  %4249 = vmatmul.mubr.bf16.gmra.mxu0 %v3487
  %v4250 = vpop.f32.mrf.mxu0
  %v4251 = vadd.f32 %v4058, %v4250
  %v4252 = vpop.f32.mrf.mxu0
  %v4253 = vadd.f32 %v4060, %v4252
  %v4254 = vpop.f32.mrf.mxu0
  %v4255 = vadd.f32 %v4062, %v4254
  %v4256 = vpop.f32.mrf.mxu0
  %v4257 = vadd.f32 %v4064, %v4256
  %4258 = vdwg.mxu0
  %v4259 = vadd.f32 %v720, %v4101
  %v4260 = vadd.f32 %v721, %v4103
  %v4261 = vadd.f32 %v722, %v4105
  %v4262 = vadd.f32 %v723, %v4107
  %v4263 = vadd.f32 %v724, %v4111
  %v4264 = vadd.f32 %v725, %v4113
  %v4265 = vadd.f32 %v726, %v4115
  %v4266 = vadd.f32 %v727, %v4117
  %v4267 = vadd.f32 %v728, %v4121
  %v4268 = vadd.f32 %v729, %v4123
  %v4269 = vadd.f32 %v730, %v4125
  %v4270 = vadd.f32 %v731, %v4127
  %v4271 = vadd.f32 %v732, %v4131
  %v4272 = vadd.f32 %v733, %v4133
  %v4273 = vadd.f32 %v734, %v4135
  %v4274 = vadd.f32 %v735, %v4137
  %v4275 = vadd.f32 %v736, %v4141
  %v4276 = vadd.f32 %v737, %v4143
  %v4277 = vadd.f32 %v738, %v4145
  %v4278 = vadd.f32 %v739, %v4147
  %v4279 = vadd.f32 %v740, %v4151
  %v4280 = vadd.f32 %v741, %v4153
  %v4281 = vadd.f32 %v742, %v4155
  %v4282 = vadd.f32 %v743, %v4157
  %v4283 = vadd.f32 %v744, %v4161
  %v4284 = vadd.f32 %v745, %v4163
  %v4285 = vadd.f32 %v746, %v4165
  %v4286 = vadd.f32 %v747, %v4167
  %v4287 = vadd.f32 %v748, %v4171
  %v4288 = vadd.f32 %v749, %v4173
  %v4289 = vadd.f32 %v750, %v4175
  %v4290 = vadd.f32 %v751, %v4177
  %v4291 = vadd.f32 %v752, %v4181
  %v4292 = vadd.f32 %v753, %v4183
  %v4293 = vadd.f32 %v754, %v4185
  %v4294 = vadd.f32 %v755, %v4187
  %v4295 = vadd.f32 %v756, %v4191
  %v4296 = vadd.f32 %v757, %v4193
  %v4297 = vadd.f32 %v758, %v4195
  %v4298 = vadd.f32 %v759, %v4197
  %v4299 = vadd.f32 %v760, %v4201
  %v4300 = vadd.f32 %v761, %v4203
  %v4301 = vadd.f32 %v762, %v4205
  %v4302 = vadd.f32 %v763, %v4207
  %v4303 = vadd.f32 %v764, %v4211
  %v4304 = vadd.f32 %v765, %v4213
  %v4305 = vadd.f32 %v766, %v4215
  %v4306 = vadd.f32 %v767, %v4217
  %v4307 = vadd.f32 %v768, %v4221
  %v4308 = vadd.f32 %v769, %v4223
  %v4309 = vadd.f32 %v770, %v4225
  %v4310 = vadd.f32 %v771, %v4227
  %v4311 = vadd.f32 %v772, %v4231
  %v4312 = vadd.f32 %v773, %v4233
  %v4313 = vadd.f32 %v774, %v4235
  %v4314 = vadd.f32 %v775, %v4237
  %v4315 = vadd.f32 %v776, %v4241
  %v4316 = vadd.f32 %v777, %v4243
  %v4317 = vadd.f32 %v778, %v4245
  %v4318 = vadd.f32 %v779, %v4247
  %v4319 = vadd.f32 %v780, %v4251
  %v4320 = vadd.f32 %v781, %v4253
  %v4321 = vadd.f32 %v782, %v4255
  %v4322 = vadd.f32 %v783, %v4257
  %v4323 = vld [vmem:[%s9] sm:$0x3]
  %v4325 = vlaneseq
  %v4326 = vshrl.u32 %v4325, 7
  %v4327 = vsub.s32 0, %v4326
  %v4328 = vrot.slane %v4323, %v4327
  %v4329 = vlaneseq
  %v4330 = vshrl.u32 %v4329, 7
  %v4331 = vsub.s32 1, %v4330
  %v4332 = vrot.slane %v4323, %v4331
  %v4335 = vadd.f32 %v4259, %v4328
  %v4336 = vadd.f32 %v4260, %v4332
  %v4337 = vadd.f32 %v4261, %v4328
  %v4338 = vadd.f32 %v4262, %v4332
  %v4339 = vadd.f32 %v4263, %v4328
  %v4340 = vadd.f32 %v4264, %v4332
  %v4341 = vadd.f32 %v4265, %v4328
  %v4342 = vadd.f32 %v4266, %v4332
  %v4343 = vadd.f32 %v4267, %v4328
  %v4344 = vadd.f32 %v4268, %v4332
  %v4345 = vadd.f32 %v4269, %v4328
  %v4346 = vadd.f32 %v4270, %v4332
  %v4347 = vadd.f32 %v4271, %v4328
  %v4348 = vadd.f32 %v4272, %v4332
  %v4349 = vadd.f32 %v4273, %v4328
  %v4350 = vadd.f32 %v4274, %v4332
  %v4351 = vadd.f32 %v4275, %v4328
  %v4352 = vadd.f32 %v4276, %v4332
  %v4353 = vadd.f32 %v4277, %v4328
  %v4354 = vadd.f32 %v4278, %v4332
  %v4355 = vadd.f32 %v4279, %v4328
  %v4356 = vadd.f32 %v4280, %v4332
  %v4357 = vadd.f32 %v4281, %v4328
  %v4358 = vadd.f32 %v4282, %v4332
  %v4359 = vadd.f32 %v4283, %v4328
  %v4360 = vadd.f32 %v4284, %v4332
  %v4361 = vadd.f32 %v4285, %v4328
  %v4362 = vadd.f32 %v4286, %v4332
  %v4363 = vadd.f32 %v4287, %v4328
  %v4364 = vadd.f32 %v4288, %v4332
  %v4365 = vadd.f32 %v4289, %v4328
  %v4366 = vadd.f32 %v4290, %v4332
  %v4367 = vadd.f32 %v4291, %v4328
  %v4368 = vadd.f32 %v4292, %v4332
  %v4369 = vadd.f32 %v4293, %v4328
  %v4370 = vadd.f32 %v4294, %v4332
  %v4371 = vadd.f32 %v4295, %v4328
  %v4372 = vadd.f32 %v4296, %v4332
  %v4373 = vadd.f32 %v4297, %v4328
  %v4374 = vadd.f32 %v4298, %v4332
  %v4375 = vadd.f32 %v4299, %v4328
  %v4376 = vadd.f32 %v4300, %v4332
  %v4377 = vadd.f32 %v4301, %v4328
  %v4378 = vadd.f32 %v4302, %v4332
  %v4379 = vadd.f32 %v4303, %v4328
  %v4380 = vadd.f32 %v4304, %v4332
  %v4381 = vadd.f32 %v4305, %v4328
  %v4382 = vadd.f32 %v4306, %v4332
  %v4383 = vadd.f32 %v4307, %v4328
  %v4384 = vadd.f32 %v4308, %v4332
  %v4385 = vadd.f32 %v4309, %v4328
  %v4386 = vadd.f32 %v4310, %v4332
  %v4387 = vadd.f32 %v4311, %v4328
  %v4388 = vadd.f32 %v4312, %v4332
  %v4389 = vadd.f32 %v4313, %v4328
  %v4390 = vadd.f32 %v4314, %v4332
  %v4391 = vadd.f32 %v4315, %v4328
  %v4392 = vadd.f32 %v4316, %v4332
  %v4393 = vadd.f32 %v4317, %v4328
  %v4394 = vadd.f32 %v4318, %v4332
  %v4395 = vadd.f32 %v4319, %v4328
  %v4396 = vadd.f32 %v4320, %v4332
  %v4397 = vadd.f32 %v4321, %v4328
  %v4398 = vadd.f32 %v4322, %v4332
  %v4399 = vpack.c.bf16 %v4337, %v4335
  %v4400 = vpack.c.bf16 %v4338, %v4336
  %v4401 = vpack.c.bf16 %v4341, %v4339
  %v4402 = vpack.c.bf16 %v4342, %v4340
  %v4403 = vpack.c.bf16 %v4345, %v4343
  %v4404 = vpack.c.bf16 %v4346, %v4344
  %v4405 = vpack.c.bf16 %v4349, %v4347
  %v4406 = vpack.c.bf16 %v4350, %v4348
  %v4407 = vpack.c.bf16 %v4353, %v4351
  %v4408 = vpack.c.bf16 %v4354, %v4352
  %v4409 = vpack.c.bf16 %v4357, %v4355
  %v4410 = vpack.c.bf16 %v4358, %v4356
  %v4411 = vpack.c.bf16 %v4361, %v4359
  %v4412 = vpack.c.bf16 %v4362, %v4360
  %v4413 = vpack.c.bf16 %v4365, %v4363
  %v4414 = vpack.c.bf16 %v4366, %v4364
  %v4415 = vpack.c.bf16 %v4369, %v4367
  %v4416 = vpack.c.bf16 %v4370, %v4368
  %v4417 = vpack.c.bf16 %v4373, %v4371
  %v4418 = vpack.c.bf16 %v4374, %v4372
  %v4419 = vpack.c.bf16 %v4377, %v4375
  %v4420 = vpack.c.bf16 %v4378, %v4376
  %v4421 = vpack.c.bf16 %v4381, %v4379
  %v4422 = vpack.c.bf16 %v4382, %v4380
  %v4423 = vpack.c.bf16 %v4385, %v4383
  %v4424 = vpack.c.bf16 %v4386, %v4384
  %v4425 = vpack.c.bf16 %v4389, %v4387
  %v4426 = vpack.c.bf16 %v4390, %v4388
  %v4427 = vpack.c.bf16 %v4393, %v4391
  %v4428 = vpack.c.bf16 %v4394, %v4392
  %v4429 = vpack.c.bf16 %v4397, %v4395
  %v4430 = vpack.c.bf16 %v4398, %v4396
  %v4463 = vunpack.c.l.b16 %v4399
  %v4464 = vunpack.c.l.b16 %v4400
  %v4465 = vunpack.c.h.b16 %v4399
  %v4466 = vunpack.c.h.b16 %v4400
  %v4467 = vunpack.c.l.b16 %v4401
  %v4468 = vunpack.c.l.b16 %v4402
  %v4469 = vunpack.c.h.b16 %v4401
  %v4470 = vunpack.c.h.b16 %v4402
  %v4471 = vunpack.c.l.b16 %v4403
  %v4472 = vunpack.c.l.b16 %v4404
  %v4473 = vunpack.c.h.b16 %v4403
  %v4474 = vunpack.c.h.b16 %v4404
  %v4475 = vunpack.c.l.b16 %v4405
  %v4476 = vunpack.c.l.b16 %v4406
  %v4477 = vunpack.c.h.b16 %v4405
  %v4478 = vunpack.c.h.b16 %v4406
  %v4479 = vunpack.c.l.b16 %v4407
  %v4480 = vunpack.c.l.b16 %v4408
  %v4481 = vunpack.c.h.b16 %v4407
  %v4482 = vunpack.c.h.b16 %v4408
  %v4483 = vunpack.c.l.b16 %v4409
  %v4484 = vunpack.c.l.b16 %v4410
  %v4485 = vunpack.c.h.b16 %v4409
  %v4486 = vunpack.c.h.b16 %v4410
  %v4487 = vunpack.c.l.b16 %v4411
  %v4488 = vunpack.c.l.b16 %v4412
  %v4489 = vunpack.c.h.b16 %v4411
  %v4490 = vunpack.c.h.b16 %v4412
  %v4491 = vunpack.c.l.b16 %v4413
  %v4492 = vunpack.c.l.b16 %v4414
  %v4493 = vunpack.c.h.b16 %v4413
  %v4494 = vunpack.c.h.b16 %v4414
  %v4495 = vunpack.c.l.b16 %v4415
  %v4496 = vunpack.c.l.b16 %v4416
  %v4497 = vunpack.c.h.b16 %v4415
  %v4498 = vunpack.c.h.b16 %v4416
  %v4499 = vunpack.c.l.b16 %v4417
  %v4500 = vunpack.c.l.b16 %v4418
  %v4501 = vunpack.c.h.b16 %v4417
  %v4502 = vunpack.c.h.b16 %v4418
  %v4503 = vunpack.c.l.b16 %v4419
  %v4504 = vunpack.c.l.b16 %v4420
  %v4505 = vunpack.c.h.b16 %v4419
  %v4506 = vunpack.c.h.b16 %v4420
  %v4507 = vunpack.c.l.b16 %v4421
  %v4508 = vunpack.c.l.b16 %v4422
  %v4509 = vunpack.c.h.b16 %v4421
  %v4510 = vunpack.c.h.b16 %v4422
  %v4511 = vunpack.c.l.b16 %v4423
  %v4512 = vunpack.c.l.b16 %v4424
  %v4513 = vunpack.c.h.b16 %v4423
  %v4514 = vunpack.c.h.b16 %v4424
  %v4515 = vunpack.c.l.b16 %v4425
  %v4516 = vunpack.c.l.b16 %v4426
  %v4517 = vunpack.c.h.b16 %v4425
  %v4518 = vunpack.c.h.b16 %v4426
  %v4519 = vunpack.c.l.b16 %v4427
  %v4520 = vunpack.c.l.b16 %v4428
  %v4521 = vunpack.c.h.b16 %v4427
  %v4522 = vunpack.c.h.b16 %v4428
  %v4523 = vunpack.c.l.b16 %v4429
  %v4524 = vunpack.c.l.b16 %v4430
  %v4525 = vunpack.c.h.b16 %v4429
  %v4526 = vunpack.c.h.b16 %v4430
  %v4527 = vpack.c.b16 %v4464, %v4463
  %v4528 = vpack.c.b16 %v4466, %v4465
  %v4529 = vpack.c.b16 %v4468, %v4467
  %v4530 = vpack.c.b16 %v4470, %v4469
  %v4531 = vpack.c.b16 %v4472, %v4471
  %v4532 = vpack.c.b16 %v4474, %v4473
  %v4533 = vpack.c.b16 %v4476, %v4475
  %v4534 = vpack.c.b16 %v4478, %v4477
  %v4535 = vpack.c.b16 %v4480, %v4479
  %v4536 = vpack.c.b16 %v4482, %v4481
  %v4537 = vpack.c.b16 %v4484, %v4483
  %v4538 = vpack.c.b16 %v4486, %v4485
  %v4539 = vpack.c.b16 %v4488, %v4487
  %v4540 = vpack.c.b16 %v4490, %v4489
  %v4541 = vpack.c.b16 %v4492, %v4491
  %v4542 = vpack.c.b16 %v4494, %v4493
  %v4543 = vpack.c.b16 %v4496, %v4495
  %v4544 = vpack.c.b16 %v4498, %v4497
  %v4545 = vpack.c.b16 %v4500, %v4499
  %v4546 = vpack.c.b16 %v4502, %v4501
  %v4547 = vpack.c.b16 %v4504, %v4503
  %v4548 = vpack.c.b16 %v4506, %v4505
  %v4549 = vpack.c.b16 %v4508, %v4507
  %v4550 = vpack.c.b16 %v4510, %v4509
  %v4551 = vpack.c.b16 %v4512, %v4511
  %v4552 = vpack.c.b16 %v4514, %v4513
  %v4553 = vpack.c.b16 %v4516, %v4515
  %v4554 = vpack.c.b16 %v4518, %v4517
  %v4555 = vpack.c.b16 %v4520, %v4519
  %v4556 = vpack.c.b16 %v4522, %v4521
  %v4557 = vpack.c.b16 %v4524, %v4523
  %v4558 = vpack.c.b16 %v4526, %v4525
  %4591 = vst [vmem:[%s10] sm:$0xff] %v4527
  %4592 = vst [vmem:[%s10 + $0x8] sm:$0xff] %v4528
  %4593 = vst [vmem:[%s10 + $0x10] sm:$0xff] %v4529
  %4594 = vst [vmem:[%s10 + $0x18] sm:$0xff] %v4530
  %4595 = vst [vmem:[%s10 + $0x20] sm:$0xff] %v4531
  %4596 = vst [vmem:[%s10 + $0x28] sm:$0xff] %v4532
  %4597 = vst [vmem:[%s10 + $0x30] sm:$0xff] %v4533
  %4598 = vst [vmem:[%s10 + $0x38] sm:$0xff] %v4534
  %4599 = vst [vmem:[%s10 + $0x40] sm:$0xff] %v4535
  %4600 = vst [vmem:[%s10 + $0x48] sm:$0xff] %v4536
  %4601 = vst [vmem:[%s10 + $0x50] sm:$0xff] %v4537
  %4602 = vst [vmem:[%s10 + $0x58] sm:$0xff] %v4538
  %4603 = vst [vmem:[%s10 + $0x60] sm:$0xff] %v4539
  %4604 = vst [vmem:[%s10 + $0x68] sm:$0xff] %v4540
  %4605 = vst [vmem:[%s10 + $0x70] sm:$0xff] %v4541
  %4606 = vst [vmem:[%s10 + $0x78] sm:$0xff] %v4542
  %4607 = vst [vmem:[%s10 + $0x80] sm:$0xff] %v4543
  %4608 = vst [vmem:[%s10 + $0x88] sm:$0xff] %v4544
  %4609 = vst [vmem:[%s10 + $0x90] sm:$0xff] %v4545
  %4610 = vst [vmem:[%s10 + $0x98] sm:$0xff] %v4546
  %4611 = vst [vmem:[%s10 + $0xa0] sm:$0xff] %v4547
  %4612 = vst [vmem:[%s10 + $0xa8] sm:$0xff] %v4548
  %4613 = vst [vmem:[%s10 + $0xb0] sm:$0xff] %v4549
  %4614 = vst [vmem:[%s10 + $0xb8] sm:$0xff] %v4550
  %4615 = vst [vmem:[%s10 + $0xc0] sm:$0xff] %v4551
  %4616 = vst [vmem:[%s10 + $0xc8] sm:$0xff] %v4552
  %4617 = vst [vmem:[%s10 + $0xd0] sm:$0xff] %v4553
  %4618 = vst [vmem:[%s10 + $0xd8] sm:$0xff] %v4554
  %4619 = vst [vmem:[%s10 + $0xe0] sm:$0xff] %v4555
  %4620 = vst [vmem:[%s10 + $0xe8] sm:$0xff] %v4556
  %4621 = vst [vmem:[%s10 + $0xf0] sm:$0xff] %v4557
  %4622 = vst [vmem:[%s10 + $0xf8] sm:$0xff] %v4558
  // Predicated region
  $region42: #{t5_decoder_lm_forward.9} parent=0 // pred_check
    _
  $region43: #{t5_decoder_lm_forward.9} parent=0 // pred_check_branch
    %4624 = sbr.rel (0) target = $region45
  $region44: #{t5_decoder_lm_forward.9} parent=0 // pred_region
    _
  $region45: #{t5_decoder_lm_forward.9} parent=0 // pred_fallthru
    _
  // Predicated region
  $region46: #{t5_decoder_lm_forward.9} parent=0 // pred_check
    _
  $region47: #{t5_decoder_lm_forward.9} parent=0 // pred_check_branch
    %4626 = sbr.rel (0) target = $region49
  $region48: #{t5_decoder_lm_forward.9} parent=0 // pred_region
    _
  $region49: #{t5_decoder_lm_forward.9} parent=0 // pred_fallthru
    _

</llo_original>
